<compile_context>
chip_gen: v6e
topology: v6e:2x2x1
jax: 0.10.0
libtpu: 0.0.40
codegen_flags: <defaults>
</compile_context>

<pallas_src>
import jax
import jax.numpy as jnp
import numpy as np
from jax.experimental import pallas as pl
from jax.experimental.pallas import tpu as pltpu

LATENT_DIM = 64
EPS = 1e-5

# Decoder geometry (fixed by the module).
C1, H1, W1 = 12, 7, 7          # after Linear + view(-1, 12, 7, 7)
C2, H2, W2 = 24, 15, 15        # after ConvTranspose2d(12, 24, 3, 2, 0)
C3, H3, W3 = 36, 28, 28        # after ConvTranspose2d(24, 36, 2, 2, 1)
HW1, HW2, HW3 = H1 * W1, H2 * W2, H3 * W3


# ------------------------------ kernel helpers ------------------------------ #

def _bn_rows(t, avg, gamma, beta):
    """Training-mode BatchNorm for activations laid out (channel*batch, spatial).

    `avg` (R, R) maps per-row sums to the per-channel mean: it averages over the
    batch rows of each channel AND broadcasts the result back to every row, so
    the statistics path is 2 dependent matmuls (was 4) with safe two-pass var.
    """
    mean = jnp.dot(avg, jnp.sum(t, axis=1, keepdims=True),
                   preferred_element_type=jnp.float32)
    d = t - mean
    var = jnp.dot(avg, jnp.sum(d * d, axis=1, keepdims=True),
                  preferred_element_type=jnp.float32)
    return d * jax.lax.rsqrt(var + EPS) * gamma + beta


def _shift_lanes(x, s):
    """y[:, j] = x[:, j + s] with zeros where j + s is out of range (s static)."""
    if s == 0:
        return x
    n = x.shape[1]
    if s > 0:
        pad = jnp.zeros((x.shape[0], s), x.dtype)
        return jnp.concatenate([x[:, s:], pad], axis=1)
    pad = jnp.zeros((x.shape[0], -s), x.dtype)
    return jnp.concatenate([pad, x[:, :n + s]], axis=1)


# ------------------------------ fused kernel -------------------------------- #

def _decoder_kernel(zrep_ref, wlin_ref, lmask_ref, lfold_ref, lbias_ref,
                    a1_ref, g1_ref, b1_ref,
                    cw1_ref, sg1_ref, cb1_ref,
                    a2_ref, g2_ref, b2_ref,
                    cw2_ref, sg2_ref, cb2_ref,
                    a3_ref, g3_ref, b3_ref,
                    cw3_ref, m3_ref, cb3_ref,
                    out_ref):
    f32 = jnp.float32

    # ---- Linear(64 -> 7*7*12), computed directly in (channel, batch)-row /
    #      spatial-lane layout (no transpose/reshape anywhere in the kernel).
    tw = jnp.dot(zrep_ref[...], wlin_ref[...], preferred_element_type=f32)    # (12B, 588)
    t = jnp.dot(tw * lmask_ref[...], lfold_ref[...],
                preferred_element_type=f32) + lbias_ref[...]                  # (12B, 49)

    # ---- BatchNorm2d(12) + ReLU
    x = jnp.maximum(_bn_rows(t, a1_ref[...], g1_ref[...], b1_ref[...]), 0.0)

    # ---- ConvTranspose2d(12, 24, 3, 2, 0): 9 taps of
    #      (channel-mix matmul) o (spatial-scatter matmul)        -> (24B, 225)
    acc = None
    for tap in range(9):
        cm = jnp.dot(cw1_ref[tap], x, preferred_element_type=f32)             # (24B, 49)
        c = jnp.dot(cm, sg1_ref[tap].astype(f32), preferred_element_type=f32)  # (24B, 225)
        acc = c if acc is None else acc + c
    x = jnp.maximum(_bn_rows(acc + cb1_ref[...],
                             a2_ref[...], g2_ref[...], b2_ref[...]), 0.0)

    # ---- ConvTranspose2d(24, 36, 2, 2, 1): 4 taps                -> (36B, 784)
    acc = None
    for tap in range(4):
        cm = jnp.dot(cw2_ref[tap], x, preferred_element_type=f32)             # (36B, 225)
        c = jnp.dot(cm, sg2_ref[tap].astype(f32), preferred_element_type=f32)  # (36B, 784)
        acc = c if acc is None else acc + c
    x = _bn_rows(acc + cb2_ref[...], a3_ref[...], g3_ref[...], b3_ref[...])    # no ReLU

    # ---- ConvTranspose2d(36, 1, 3, 1, 1): stride-1 taps are pure lane shifts
    #      of the channel-mixed rows, plus precomputed boundary masks -> (B, 784)
    acc = None
    for kh in range(3):
        for kw in range(3):
            tap = kh * 3 + kw
            cm = jnp.dot(cw3_ref[tap], x, preferred_element_type=f32)          # (B, 784)
            c = _shift_lanes(cm, (1 - kh) * W3 + (1 - kw)) * m3_ref[tap]
            acc = c if acc is None else acc + c
    out_ref[...] = acc + cb3_ref[...]


# --------------------------- constant preparation ---------------------------- #

def _scatter_matrix(hin, win, hout, wout, kh, kw, stride, pad):
    """0/1 matrix: input spatial index -> output spatial index for one ConvT tap."""
    g = np.zeros((hin * win, hout * wout), np.float32)
    for ih in range(hin):
        oh = ih * stride + kh - pad
        if not 0 <= oh < hout:
            continue
        for iw in range(win):
            ow = iw * stride + kw - pad
            if not 0 <= ow < wout:
                continue
            g[ih * win + iw, oh * wout + ow] = 1.0
    return g


def _scatter_stack(hin, win, hout, wout, k, stride, pad):
    return np.stack([_scatter_matrix(hin, win, hout, wout, kh, kw, stride, pad)
                     for kh in range(k) for kw in range(k)])


def _chan_mix_stack(wt, batch):
    """ConvTranspose2d weight (Cin, Cout, k, k) -> per-tap kron(W_tap^T, I_B)
    acting on (channel, batch)-ordered rows."""
    w = np.asarray(wt, np.float32)
    _, _, kh_, kw_ = w.shape
    eye = np.eye(batch, dtype=np.float32)
    return np.stack([np.kron(w[:, :, kh, kw].T, eye)
                     for kh in range(kh_) for kw in range(kw_)])


def _bn_consts(gamma, beta, batch, hw):
    c = np.asarray(gamma).shape[0]
    avg = np.kron(np.eye(c, dtype=np.float32),
                  np.ones((batch, batch), np.float32)) / float(batch * hw)
    g = np.repeat(np.asarray(gamma, np.float32), batch).reshape(c * batch, 1)
    b = np.repeat(np.asarray(beta, np.float32), batch).reshape(c * batch, 1)
    return avg, g, b


def _rows(v, batch):
    return np.repeat(np.asarray(v, np.float32), batch).reshape(-1, 1)


def prepare_params(p, batch):
    """One-time conversion of PyTorch-layout params into the fused-kernel constants
    (batch-size specific)."""
    B = batch
    # Linear in (channel, batch)-row form: t = (z_rep @ W^T) masked, folded to 49 lanes.
    w_lin_t = np.asarray(p["w_lin"], np.float32).T                          # (64, 588)
    lmask = (np.arange(C1 * B)[:, None] // B ==
             np.arange(C1 * HW1)[None, :] // HW1).astype(np.float32)        # (12B, 588)
    lfold = np.tile(np.eye(HW1, dtype=np.float32), (C1, 1))                 # (588, 49)
    lbias = np.repeat(np.asarray(p["b_lin"], np.float32).reshape(C1, 1, HW1),
                      B, axis=1).reshape(C1 * B, HW1)                       # (12B, 49)
    a1, g1, b1 = _bn_consts(p["g1"], p["be1"], B, HW1)
    a2, g2, b2 = _bn_consts(p["g2"], p["be2"], B, HW2)
    a3, g3, b3 = _bn_consts(p["g3"], p["be3"], B, HW3)
    # conv3 boundary masks (one per tap).
    m3 = np.zeros((9, 1, HW3), np.float32)
    oh = np.arange(H3)[:, None]
    ow = np.arange(W3)[None, :]
    for kh in range(3):
        for kw in range(3):
            dh, dw = 1 - kh, 1 - kw
            ok = (oh + dh >= 0) & (oh + dh < H3) & (ow + dw >= 0) & (ow + dw < W3)
            m3[kh * 3 + kw, 0] = ok.reshape(-1).astype(np.float32)
    to = lambda a, dt=jnp.float32: jnp.asarray(a, dt)
    return {
        "w_lin_t": to(w_lin_t), "lmask": to(lmask), "lfold": to(lfold), "lbias": to(lbias),
        "a1": to(a1), "g1": to(g1), "b1": to(b1),
        "cw1": to(_chan_mix_stack(p["wt1"], B)),                            # (9, 24B, 12B)
        "sg1": to(_scatter_stack(H1, W1, H2, W2, 3, 2, 0), jnp.bfloat16),   # (9, 49, 225)
        "cb1": to(_rows(p["bc1"], B)),
        "a2": to(a2), "g2": to(g2), "b2": to(b2),
        "cw2": to(_chan_mix_stack(p["wt2"], B)),                            # (4, 36B, 24B)
        "sg2": to(_scatter_stack(H2, W2, H3, W3, 2, 2, 1), jnp.bfloat16),   # (4, 225, 784)
        "cb2": to(_rows(p["bc2"], B)),
        "a3": to(a3), "g3": to(g3), "b3": to(b3),
        "cw3": to(_chan_mix_stack(p["wt3"], B)),                            # (9, B, 36B)
        "m3": to(m3),
        "cb3": to(np.asarray(p["bc3"], np.float32).reshape(1, 1)),
    }


# --------------------------------- forward ----------------------------------- #

def _full_spec(shape):
    return pl.BlockSpec(shape, lambda i: (0,) * len(shape))


def decoder_forward(z, prep):
    """Fused decoder forward: one pallas_call; activations never leave VMEM."""
    B = z.shape[0]
    z_rep = jnp.tile(z.astype(jnp.float32), (C1, 1))       # (12B, 64), rows (channel, batch)
    args = (z_rep, prep["w_lin_t"], prep["lmask"], prep["lfold"], prep["lbias"],
            prep["a1"], prep["g1"], prep["b1"],
            prep["cw1"], prep["sg1"], prep["cb1"],
            prep["a2"], prep["g2"], prep["b2"],
            prep["cw2"], prep["sg2"], prep["cb2"],
            prep["a3"], prep["g3"], prep["b3"],
            prep["cw3"], prep["m3"], prep["cb3"])
    out = pl.pallas_call(
        _decoder_kernel,
        out_shape=jax.ShapeDtypeStruct((B, HW3), jnp.float32),
        grid=(1,),
        in_specs=[_full_spec(a.shape) for a in args],
        out_specs=_full_spec((B, HW3)),
        compiler_params=pltpu.CompilerParams(
            dimension_semantics=("arbitrary",),
            vmem_limit_bytes=32 * 1024 * 1024),
    )(*args)
    return out.reshape(B, 1, H3, W3)


# --------------------------- params / reference ------------------------------ #

def init_params(key):
    ks = jax.random.split(key, 14)
    n = lambda k, shape, s=0.1: (s * jax.random.normal(k, shape)).astype(jnp.float32)
    return {
        "w_lin": n(ks[0], (C1 * HW1, LATENT_DIM)), "b_lin": n(ks[1], (C1 * HW1,)),
        "g1": 1.0 + n(ks[2], (12,)), "be1": n(ks[3], (12,)),
        "wt1": n(ks[4], (12, 24, 3, 3)), "bc1": n(ks[5], (24,)),
        "g2": 1.0 + n(ks[6], (24,)), "be2": n(ks[7], (24,)),
        "wt2": n(ks[8], (24, 36, 2, 2)), "bc2": n(ks[9], (36,)),
        "g3": 1.0 + n(ks[10], (36,)), "be3": n(ks[11], (36,)),
        "wt3": n(ks[12], (36, 1, 3, 3)), "bc3": n(ks[13], (1,)),
    }


def reference_forward(z, p):
    """Pure-JAX (XLA) reference matching PyTorch semantics, for validation."""
    HI = jax.lax.Precision.HIGHEST

    def bn(x, g, b):
        mean = jnp.mean(x, axis=(0, 2, 3), keepdims=True)
        var = jnp.mean((x - mean) ** 2, axis=(0, 2, 3), keepdims=True)
        return ((x - mean) * jax.lax.rsqrt(var + EPS) * g.reshape(1, -1, 1, 1)
                + b.reshape(1, -1, 1, 1))

    def convT(x, wt, b, k, s, pad):
        wc = jnp.transpose(wt[:, :, ::-1, ::-1], (1, 0, 2, 3))   # (Cout, Cin, k, k)
        y = jax.lax.conv_general_dilated(
            x, wc, window_strides=(1, 1),
            padding=[(k - 1 - pad, k - 1 - pad)] * 2,
            lhs_dilation=(s, s), rhs_dilation=(1, 1),
            dimension_numbers=("NCHW", "OIHW", "NCHW"), precision=HI)
        return y + b.reshape(1, -1, 1, 1)

    x = jnp.dot(z, p["w_lin"].T, precision=HI) + p["b_lin"]
    x = x.reshape(-1, 12, 7, 7)
    x = jnp.maximum(bn(x, p["g1"], p["be1"]), 0.0)
    x = convT(x, p["wt1"], p["bc1"], 3, 2, 0)
    x = jnp.maximum(bn(x, p["g2"], p["be2"]), 0.0)
    x = convT(x, p["wt2"], p["bc2"], 2, 2, 1)
    x = bn(x, p["g3"], p["be3"])
    x = convT(x, p["wt3"], p["bc3"], 3, 1, 1)
    return x


if __name__ == "__main__":
    key = jax.random.PRNGKey(0)
    pkey, zkey = jax.random.split(key)
    params = init_params(pkey)
    B = 2
    z = jax.random.normal(zkey, (B, LATENT_DIM), dtype=jnp.float32)

    prep = prepare_params(params, B)        # one-time, batch-size-specific constants
    fwd = jax.jit(decoder_forward)          # whole forward (kernel + tiny glue) in one jit

    out = jax.block_until_ready(fwd(z, prep))
    assert out.shape == (B, 1, 28, 28), out.shape

    ref = jax.block_until_ready(reference_forward(z, params))
    max_err = float(jnp.max(jnp.abs(out - ref)))
    assert jnp.allclose(out, ref, atol=1e-2, rtol=1e-2), max_err

    print("KERNEL_OK")
</pallas_src>

<mosaic_0001>
module attributes {stable_mosaic.version = 11 : i64} {
  func.func @_decoder_kernel(%arg0: i32, %arg1: memref<24x64xf32, #tpu.memory_space<vmem>>, %arg2: memref<64x588xf32, #tpu.memory_space<vmem>>, %arg3: memref<24x588xf32, #tpu.memory_space<vmem>>, %arg4: memref<588x49xf32, #tpu.memory_space<vmem>>, %arg5: memref<24x49xf32, #tpu.memory_space<vmem>>, %arg6: memref<24x24xf32, #tpu.memory_space<vmem>>, %arg7: memref<24x1xf32, #tpu.memory_space<vmem>>, %arg8: memref<24x1xf32, #tpu.memory_space<vmem>>, %arg9: memref<9x48x24xf32, #tpu.memory_space<vmem>>, %arg10: memref<9x49x225xbf16, #tpu.memory_space<vmem>>, %arg11: memref<48x1xf32, #tpu.memory_space<vmem>>, %arg12: memref<48x48xf32, #tpu.memory_space<vmem>>, %arg13: memref<48x1xf32, #tpu.memory_space<vmem>>, %arg14: memref<48x1xf32, #tpu.memory_space<vmem>>, %arg15: memref<4x72x48xf32, #tpu.memory_space<vmem>>, %arg16: memref<4x225x784xbf16, #tpu.memory_space<vmem>>, %arg17: memref<72x1xf32, #tpu.memory_space<vmem>>, %arg18: memref<72x72xf32, #tpu.memory_space<vmem>>, %arg19: memref<72x1xf32, #tpu.memory_space<vmem>>, %arg20: memref<72x1xf32, #tpu.memory_space<vmem>>, %arg21: memref<9x2x72xf32, #tpu.memory_space<vmem>>, %arg22: memref<9x1x784xf32, #tpu.memory_space<vmem>>, %arg23: memref<1x1xf32, #tpu.memory_space<vmem>>, %arg24: memref<2x784xf32, #tpu.memory_space<vmem>>) attributes {dimension_semantics = [#tpu.dimension_semantics<arbitrary>], iteration_bounds = array<i64: 1>, scalar_prefetch = 0 : i64, scratch_operands = 0 : i64, tpu.core_type = #tpu.core_type<tc>, window_params = [{pipeline_mode = #tpu.pipeline_mode<synchronous>, transform_indices = @transform_0, window_bounds = array<i64: 24, 64>}, {pipeline_mode = #tpu.pipeline_mode<synchronous>, transform_indices = @transform_1, window_bounds = array<i64: 64, 588>}, {pipeline_mode = #tpu.pipeline_mode<synchronous>, transform_indices = @transform_2, window_bounds = array<i64: 24, 588>}, {pipeline_mode = #tpu.pipeline_mode<synchronous>, transform_indices = @transform_3, window_bounds = array<i64: 588, 49>}, {pipeline_mode = #tpu.pipeline_mode<synchronous>, transform_indices = @transform_4, window_bounds = array<i64: 24, 49>}, {pipeline_mode = #tpu.pipeline_mode<synchronous>, transform_indices = @transform_5, window_bounds = array<i64: 24, 24>}, {pipeline_mode = #tpu.pipeline_mode<synchronous>, transform_indices = @transform_6, window_bounds = array<i64: 24, 1>}, {pipeline_mode = #tpu.pipeline_mode<synchronous>, transform_indices = @transform_7, window_bounds = array<i64: 24, 1>}, {pipeline_mode = #tpu.pipeline_mode<synchronous>, transform_indices = @transform_8, window_bounds = array<i64: 9, 48, 24>}, {pipeline_mode = #tpu.pipeline_mode<synchronous>, transform_indices = @transform_9, window_bounds = array<i64: 9, 49, 225>}, {pipeline_mode = #tpu.pipeline_mode<synchronous>, transform_indices = @transform_10, window_bounds = array<i64: 48, 1>}, {pipeline_mode = #tpu.pipeline_mode<synchronous>, transform_indices = @transform_11, window_bounds = array<i64: 48, 48>}, {pipeline_mode = #tpu.pipeline_mode<synchronous>, transform_indices = @transform_12, window_bounds = array<i64: 48, 1>}, {pipeline_mode = #tpu.pipeline_mode<synchronous>, transform_indices = @transform_13, window_bounds = array<i64: 48, 1>}, {pipeline_mode = #tpu.pipeline_mode<synchronous>, transform_indices = @transform_14, window_bounds = array<i64: 4, 72, 48>}, {pipeline_mode = #tpu.pipeline_mode<synchronous>, transform_indices = @transform_15, window_bounds = array<i64: 4, 225, 784>}, {pipeline_mode = #tpu.pipeline_mode<synchronous>, transform_indices = @transform_16, window_bounds = array<i64: 72, 1>}, {pipeline_mode = #tpu.pipeline_mode<synchronous>, transform_indices = @transform_17, window_bounds = array<i64: 72, 72>}, {pipeline_mode = #tpu.pipeline_mode<synchronous>, transform_indices = @transform_18, window_bounds = array<i64: 72, 1>}, {pipeline_mode = #tpu.pipeline_mode<synchronous>, transform_indices = @transform_19, window_bounds = array<i64: 72, 1>}, {pipeline_mode = #tpu.pipeline_mode<synchronous>, transform_indices = @transform_20, window_bounds = array<i64: 9, 2, 72>}, {pipeline_mode = #tpu.pipeline_mode<synchronous>, transform_indices = @transform_21, window_bounds = array<i64: 9, 1, 784>}, {pipeline_mode = #tpu.pipeline_mode<synchronous>, transform_indices = @transform_22, window_bounds = array<i64: 1, 1>}, {pipeline_mode = #tpu.pipeline_mode<synchronous>, transform_indices = @transform_23, window_bounds = array<i64: 2, 784>}]} {
    %c0 = arith.constant 0 : index
    %c0_0 = arith.constant 0 : index
    %0 = vector.load %arg1[%c0, %c0_0] : memref<24x64xf32, #tpu.memory_space<vmem>>, vector<24x64xf32>
    %c0_1 = arith.constant 0 : index
    %c0_2 = arith.constant 0 : index
    %1 = vector.load %arg2[%c0_1, %c0_2] : memref<64x588xf32, #tpu.memory_space<vmem>>, vector<64x588xf32>
    %cst = arith.constant dense<0.000000e+00> : vector<24x588xf32>
    %2 = tpu.matmul %0, %1, %cst {dimension_numbers = #tpu.dot_dimension_numbers<[1], [0], [0], [1], [0, 0, 1, 1], [], []>} : vector<24x64xf32>, vector<64x588xf32>, vector<24x588xf32> -> vector<24x588xf32>
    %c0_3 = arith.constant 0 : index
    %c0_4 = arith.constant 0 : index
    %3 = vector.load %arg3[%c0_3, %c0_4] : memref<24x588xf32, #tpu.memory_space<vmem>>, vector<24x588xf32>
    %4 = arith.mulf %2, %3 : vector<24x588xf32>
    %c0_5 = arith.constant 0 : index
    %c0_6 = arith.constant 0 : index
    %5 = vector.load %arg4[%c0_5, %c0_6] : memref<588x49xf32, #tpu.memory_space<vmem>>, vector<588x49xf32>
    %cst_7 = arith.constant dense<0.000000e+00> : vector<24x49xf32>
    %6 = tpu.matmul %4, %5, %cst_7 {dimension_numbers = #tpu.dot_dimension_numbers<[1], [0], [0], [1], [0, 0, 1, 1], [], []>} : vector<24x588xf32>, vector<588x49xf32>, vector<24x49xf32> -> vector<24x49xf32>
    %c0_8 = arith.constant 0 : index
    %c0_9 = arith.constant 0 : index
    %7 = vector.load %arg5[%c0_8, %c0_9] : memref<24x49xf32, #tpu.memory_space<vmem>>, vector<24x49xf32>
    %8 = arith.addf %6, %7 : vector<24x49xf32>
    %c0_10 = arith.constant 0 : index
    %c0_11 = arith.constant 0 : index
    %9 = vector.load %arg6[%c0_10, %c0_11] : memref<24x24xf32, #tpu.memory_space<vmem>>, vector<24x24xf32>
    %c0_12 = arith.constant 0 : index
    %c0_13 = arith.constant 0 : index
    %10 = vector.load %arg7[%c0_12, %c0_13] : memref<24x1xf32, #tpu.memory_space<vmem>>, vector<24x1xf32>
    %c0_14 = arith.constant 0 : index
    %c0_15 = arith.constant 0 : index
    %11 = vector.load %arg8[%c0_14, %c0_15] : memref<24x1xf32, #tpu.memory_space<vmem>>, vector<24x1xf32>
    %cst_16 = arith.constant dense<0.000000e+00> : vector<24xf32>
    %12 = vector.multi_reduction <add>, %8, %cst_16 [1] : vector<24x49xf32> to vector<24xf32>
    %13 = vector.shape_cast %12 : vector<24xf32> to vector<24x1xf32>
    %cst_17 = arith.constant dense<0.000000e+00> : vector<24x1xf32>
    %14 = tpu.matmul %9, %13, %cst_17 {dimension_numbers = #tpu.dot_dimension_numbers<[1], [0], [0], [1], [0, 0, 1, 1], [], []>} : vector<24x24xf32>, vector<24x1xf32>, vector<24x1xf32> -> vector<24x1xf32>
    %15 = vector.broadcast %14 : vector<24x1xf32> to vector<24x49xf32>
    %16 = arith.subf %8, %15 : vector<24x49xf32>
    %17 = arith.mulf %16, %16 : vector<24x49xf32>
    %cst_18 = arith.constant dense<0.000000e+00> : vector<24xf32>
    %18 = vector.multi_reduction <add>, %17, %cst_18 [1] : vector<24x49xf32> to vector<24xf32>
    %19 = vector.shape_cast %18 : vector<24xf32> to vector<24x1xf32>
    %cst_19 = arith.constant dense<0.000000e+00> : vector<24x1xf32>
    %20 = tpu.matmul %9, %19, %cst_19 {dimension_numbers = #tpu.dot_dimension_numbers<[1], [0], [0], [1], [0, 0, 1, 1], [], []>} : vector<24x24xf32>, vector<24x1xf32>, vector<24x1xf32> -> vector<24x1xf32>
    %cst_20 = arith.constant 9.99999974E-6 : f32
    %21 = vector.broadcast %cst_20 : f32 to vector<24x1xf32>
    %22 = arith.addf %20, %21 : vector<24x1xf32>
    %23 = math.rsqrt %22 : vector<24x1xf32>
    %24 = vector.broadcast %23 : vector<24x1xf32> to vector<24x49xf32>
    %25 = arith.mulf %16, %24 : vector<24x49xf32>
    %26 = vector.broadcast %10 : vector<24x1xf32> to vector<24x49xf32>
    %27 = arith.mulf %25, %26 : vector<24x49xf32>
    %28 = vector.broadcast %11 : vector<24x1xf32> to vector<24x49xf32>
    %29 = arith.addf %27, %28 : vector<24x49xf32>
    %cst_21 = arith.constant 0.000000e+00 : f32
    %30 = vector.broadcast %cst_21 : f32 to vector<24x49xf32>
    %31 = arith.maximumf %29, %30 : vector<24x49xf32>
    %c0_22 = arith.constant 0 : index
    %c0_23 = arith.constant 0 : index
    %c0_24 = arith.constant 0 : index
    %32 = vector.load %arg9[%c0_22, %c0_23, %c0_24] : memref<9x48x24xf32, #tpu.memory_space<vmem>>, vector<1x48x24xf32>
    %33 = vector.shape_cast %32 : vector<1x48x24xf32> to vector<48x24xf32>
    %cst_25 = arith.constant dense<0.000000e+00> : vector<48x49xf32>
    %34 = tpu.matmul %33, %31, %cst_25 {dimension_numbers = #tpu.dot_dimension_numbers<[1], [0], [0], [1], [0, 0, 1, 1], [], []>} : vector<48x24xf32>, vector<24x49xf32>, vector<48x49xf32> -> vector<48x49xf32>
    %c0_26 = arith.constant 0 : index
    %c0_27 = arith.constant 0 : index
    %c0_28 = arith.constant 0 : index
    %35 = vector.load %arg10[%c0_26, %c0_27, %c0_28] : memref<9x49x225xbf16, #tpu.memory_space<vmem>>, vector<1x49x225xbf16>
    %36 = vector.shape_cast %35 : vector<1x49x225xbf16> to vector<49x225xbf16>
    %37 = arith.extf %36 : vector<49x225xbf16> to vector<49x225xf32>
    %cst_29 = arith.constant dense<0.000000e+00> : vector<48x225xf32>
    %38 = tpu.matmul %34, %37, %cst_29 {dimension_numbers = #tpu.dot_dimension_numbers<[1], [0], [0], [1], [0, 0, 1, 1], [], []>} : vector<48x49xf32>, vector<49x225xf32>, vector<48x225xf32> -> vector<48x225xf32>
    %c1 = arith.constant 1 : index
    %c0_30 = arith.constant 0 : index
    %c0_31 = arith.constant 0 : index
    %39 = vector.load %arg9[%c1, %c0_30, %c0_31] : memref<9x48x24xf32, #tpu.memory_space<vmem>>, vector<1x48x24xf32>
    %40 = vector.shape_cast %39 : vector<1x48x24xf32> to vector<48x24xf32>
    %cst_32 = arith.constant dense<0.000000e+00> : vector<48x49xf32>
    %41 = tpu.matmul %40, %31, %cst_32 {dimension_numbers = #tpu.dot_dimension_numbers<[1], [0], [0], [1], [0, 0, 1, 1], [], []>} : vector<48x24xf32>, vector<24x49xf32>, vector<48x49xf32> -> vector<48x49xf32>
    %c1_33 = arith.constant 1 : index
    %c0_34 = arith.constant 0 : index
    %c0_35 = arith.constant 0 : index
    %42 = vector.load %arg10[%c1_33, %c0_34, %c0_35] : memref<9x49x225xbf16, #tpu.memory_space<vmem>>, vector<1x49x225xbf16>
    %43 = vector.shape_cast %42 : vector<1x49x225xbf16> to vector<49x225xbf16>
    %44 = arith.extf %43 : vector<49x225xbf16> to vector<49x225xf32>
    %cst_36 = arith.constant dense<0.000000e+00> : vector<48x225xf32>
    %45 = tpu.matmul %41, %44, %cst_36 {dimension_numbers = #tpu.dot_dimension_numbers<[1], [0], [0], [1], [0, 0, 1, 1], [], []>} : vector<48x49xf32>, vector<49x225xf32>, vector<48x225xf32> -> vector<48x225xf32>
    %46 = arith.addf %38, %45 : vector<48x225xf32>
    %c2 = arith.constant 2 : index
    %c0_37 = arith.constant 0 : index
    %c0_38 = arith.constant 0 : index
    %47 = vector.load %arg9[%c2, %c0_37, %c0_38] : memref<9x48x24xf32, #tpu.memory_space<vmem>>, vector<1x48x24xf32>
    %48 = vector.shape_cast %47 : vector<1x48x24xf32> to vector<48x24xf32>
    %cst_39 = arith.constant dense<0.000000e+00> : vector<48x49xf32>
    %49 = tpu.matmul %48, %31, %cst_39 {dimension_numbers = #tpu.dot_dimension_numbers<[1], [0], [0], [1], [0, 0, 1, 1], [], []>} : vector<48x24xf32>, vector<24x49xf32>, vector<48x49xf32> -> vector<48x49xf32>
    %c2_40 = arith.constant 2 : index
    %c0_41 = arith.constant 0 : index
    %c0_42 = arith.constant 0 : index
    %50 = vector.load %arg10[%c2_40, %c0_41, %c0_42] : memref<9x49x225xbf16, #tpu.memory_space<vmem>>, vector<1x49x225xbf16>
    %51 = vector.shape_cast %50 : vector<1x49x225xbf16> to vector<49x225xbf16>
    %52 = arith.extf %51 : vector<49x225xbf16> to vector<49x225xf32>
    %cst_43 = arith.constant dense<0.000000e+00> : vector<48x225xf32>
    %53 = tpu.matmul %49, %52, %cst_43 {dimension_numbers = #tpu.dot_dimension_numbers<[1], [0], [0], [1], [0, 0, 1, 1], [], []>} : vector<48x49xf32>, vector<49x225xf32>, vector<48x225xf32> -> vector<48x225xf32>
    %54 = arith.addf %46, %53 : vector<48x225xf32>
    %c3 = arith.constant 3 : index
    %c0_44 = arith.constant 0 : index
    %c0_45 = arith.constant 0 : index
    %55 = vector.load %arg9[%c3, %c0_44, %c0_45] : memref<9x48x24xf32, #tpu.memory_space<vmem>>, vector<1x48x24xf32>
    %56 = vector.shape_cast %55 : vector<1x48x24xf32> to vector<48x24xf32>
    %cst_46 = arith.constant dense<0.000000e+00> : vector<48x49xf32>
    %57 = tpu.matmul %56, %31, %cst_46 {dimension_numbers = #tpu.dot_dimension_numbers<[1], [0], [0], [1], [0, 0, 1, 1], [], []>} : vector<48x24xf32>, vector<24x49xf32>, vector<48x49xf32> -> vector<48x49xf32>
    %c3_47 = arith.constant 3 : index
    %c0_48 = arith.constant 0 : index
    %c0_49 = arith.constant 0 : index
    %58 = vector.load %arg10[%c3_47, %c0_48, %c0_49] : memref<9x49x225xbf16, #tpu.memory_space<vmem>>, vector<1x49x225xbf16>
    %59 = vector.shape_cast %58 : vector<1x49x225xbf16> to vector<49x225xbf16>
    %60 = arith.extf %59 : vector<49x225xbf16> to vector<49x225xf32>
    %cst_50 = arith.constant dense<0.000000e+00> : vector<48x225xf32>
    %61 = tpu.matmul %57, %60, %cst_50 {dimension_numbers = #tpu.dot_dimension_numbers<[1], [0], [0], [1], [0, 0, 1, 1], [], []>} : vector<48x49xf32>, vector<49x225xf32>, vector<48x225xf32> -> vector<48x225xf32>
    %62 = arith.addf %54, %61 : vector<48x225xf32>
    %c4 = arith.constant 4 : index
    %c0_51 = arith.constant 0 : index
    %c0_52 = arith.constant 0 : index
    %63 = vector.load %arg9[%c4, %c0_51, %c0_52] : memref<9x48x24xf32, #tpu.memory_space<vmem>>, vector<1x48x24xf32>
    %64 = vector.shape_cast %63 : vector<1x48x24xf32> to vector<48x24xf32>
    %cst_53 = arith.constant dense<0.000000e+00> : vector<48x49xf32>
    %65 = tpu.matmul %64, %31, %cst_53 {dimension_numbers = #tpu.dot_dimension_numbers<[1], [0], [0], [1], [0, 0, 1, 1], [], []>} : vector<48x24xf32>, vector<24x49xf32>, vector<48x49xf32> -> vector<48x49xf32>
    %c4_54 = arith.constant 4 : index
    %c0_55 = arith.constant 0 : index
    %c0_56 = arith.constant 0 : index
    %66 = vector.load %arg10[%c4_54, %c0_55, %c0_56] : memref<9x49x225xbf16, #tpu.memory_space<vmem>>, vector<1x49x225xbf16>
    %67 = vector.shape_cast %66 : vector<1x49x225xbf16> to vector<49x225xbf16>
    %68 = arith.extf %67 : vector<49x225xbf16> to vector<49x225xf32>
    %cst_57 = arith.constant dense<0.000000e+00> : vector<48x225xf32>
    %69 = tpu.matmul %65, %68, %cst_57 {dimension_numbers = #tpu.dot_dimension_numbers<[1], [0], [0], [1], [0, 0, 1, 1], [], []>} : vector<48x49xf32>, vector<49x225xf32>, vector<48x225xf32> -> vector<48x225xf32>
    %70 = arith.addf %62, %69 : vector<48x225xf32>
    %c5 = arith.constant 5 : index
    %c0_58 = arith.constant 0 : index
    %c0_59 = arith.constant 0 : index
    %71 = vector.load %arg9[%c5, %c0_58, %c0_59] : memref<9x48x24xf32, #tpu.memory_space<vmem>>, vector<1x48x24xf32>
    %72 = vector.shape_cast %71 : vector<1x48x24xf32> to vector<48x24xf32>
    %cst_60 = arith.constant dense<0.000000e+00> : vector<48x49xf32>
    %73 = tpu.matmul %72, %31, %cst_60 {dimension_numbers = #tpu.dot_dimension_numbers<[1], [0], [0], [1], [0, 0, 1, 1], [], []>} : vector<48x24xf32>, vector<24x49xf32>, vector<48x49xf32> -> vector<48x49xf32>
    %c5_61 = arith.constant 5 : index
    %c0_62 = arith.constant 0 : index
    %c0_63 = arith.constant 0 : index
    %74 = vector.load %arg10[%c5_61, %c0_62, %c0_63] : memref<9x49x225xbf16, #tpu.memory_space<vmem>>, vector<1x49x225xbf16>
    %75 = vector.shape_cast %74 : vector<1x49x225xbf16> to vector<49x225xbf16>
    %76 = arith.extf %75 : vector<49x225xbf16> to vector<49x225xf32>
    %cst_64 = arith.constant dense<0.000000e+00> : vector<48x225xf32>
    %77 = tpu.matmul %73, %76, %cst_64 {dimension_numbers = #tpu.dot_dimension_numbers<[1], [0], [0], [1], [0, 0, 1, 1], [], []>} : vector<48x49xf32>, vector<49x225xf32>, vector<48x225xf32> -> vector<48x225xf32>
    %78 = arith.addf %70, %77 : vector<48x225xf32>
    %c6 = arith.constant 6 : index
    %c0_65 = arith.constant 0 : index
    %c0_66 = arith.constant 0 : index
    %79 = vector.load %arg9[%c6, %c0_65, %c0_66] : memref<9x48x24xf32, #tpu.memory_space<vmem>>, vector<1x48x24xf32>
    %80 = vector.shape_cast %79 : vector<1x48x24xf32> to vector<48x24xf32>
    %cst_67 = arith.constant dense<0.000000e+00> : vector<48x49xf32>
    %81 = tpu.matmul %80, %31, %cst_67 {dimension_numbers = #tpu.dot_dimension_numbers<[1], [0], [0], [1], [0, 0, 1, 1], [], []>} : vector<48x24xf32>, vector<24x49xf32>, vector<48x49xf32> -> vector<48x49xf32>
    %c6_68 = arith.constant 6 : index
    %c0_69 = arith.constant 0 : index
    %c0_70 = arith.constant 0 : index
    %82 = vector.load %arg10[%c6_68, %c0_69, %c0_70] : memref<9x49x225xbf16, #tpu.memory_space<vmem>>, vector<1x49x225xbf16>
    %83 = vector.shape_cast %82 : vector<1x49x225xbf16> to vector<49x225xbf16>
    %84 = arith.extf %83 : vector<49x225xbf16> to vector<49x225xf32>
    %cst_71 = arith.constant dense<0.000000e+00> : vector<48x225xf32>
    %85 = tpu.matmul %81, %84, %cst_71 {dimension_numbers = #tpu.dot_dimension_numbers<[1], [0], [0], [1], [0, 0, 1, 1], [], []>} : vector<48x49xf32>, vector<49x225xf32>, vector<48x225xf32> -> vector<48x225xf32>
    %86 = arith.addf %78, %85 : vector<48x225xf32>
    %c7 = arith.constant 7 : index
    %c0_72 = arith.constant 0 : index
    %c0_73 = arith.constant 0 : index
    %87 = vector.load %arg9[%c7, %c0_72, %c0_73] : memref<9x48x24xf32, #tpu.memory_space<vmem>>, vector<1x48x24xf32>
    %88 = vector.shape_cast %87 : vector<1x48x24xf32> to vector<48x24xf32>
    %cst_74 = arith.constant dense<0.000000e+00> : vector<48x49xf32>
    %89 = tpu.matmul %88, %31, %cst_74 {dimension_numbers = #tpu.dot_dimension_numbers<[1], [0], [0], [1], [0, 0, 1, 1], [], []>} : vector<48x24xf32>, vector<24x49xf32>, vector<48x49xf32> -> vector<48x49xf32>
    %c7_75 = arith.constant 7 : index
    %c0_76 = arith.constant 0 : index
    %c0_77 = arith.constant 0 : index
    %90 = vector.load %arg10[%c7_75, %c0_76, %c0_77] : memref<9x49x225xbf16, #tpu.memory_space<vmem>>, vector<1x49x225xbf16>
    %91 = vector.shape_cast %90 : vector<1x49x225xbf16> to vector<49x225xbf16>
    %92 = arith.extf %91 : vector<49x225xbf16> to vector<49x225xf32>
    %cst_78 = arith.constant dense<0.000000e+00> : vector<48x225xf32>
    %93 = tpu.matmul %89, %92, %cst_78 {dimension_numbers = #tpu.dot_dimension_numbers<[1], [0], [0], [1], [0, 0, 1, 1], [], []>} : vector<48x49xf32>, vector<49x225xf32>, vector<48x225xf32> -> vector<48x225xf32>
    %94 = arith.addf %86, %93 : vector<48x225xf32>
    %c8 = arith.constant 8 : index
    %c0_79 = arith.constant 0 : index
    %c0_80 = arith.constant 0 : index
    %95 = vector.load %arg9[%c8, %c0_79, %c0_80] : memref<9x48x24xf32, #tpu.memory_space<vmem>>, vector<1x48x24xf32>
    %96 = vector.shape_cast %95 : vector<1x48x24xf32> to vector<48x24xf32>
    %cst_81 = arith.constant dense<0.000000e+00> : vector<48x49xf32>
    %97 = tpu.matmul %96, %31, %cst_81 {dimension_numbers = #tpu.dot_dimension_numbers<[1], [0], [0], [1], [0, 0, 1, 1], [], []>} : vector<48x24xf32>, vector<24x49xf32>, vector<48x49xf32> -> vector<48x49xf32>
    %c8_82 = arith.constant 8 : index
    %c0_83 = arith.constant 0 : index
    %c0_84 = arith.constant 0 : index
    %98 = vector.load %arg10[%c8_82, %c0_83, %c0_84] : memref<9x49x225xbf16, #tpu.memory_space<vmem>>, vector<1x49x225xbf16>
    %99 = vector.shape_cast %98 : vector<1x49x225xbf16> to vector<49x225xbf16>
    %100 = arith.extf %99 : vector<49x225xbf16> to vector<49x225xf32>
    %cst_85 = arith.constant dense<0.000000e+00> : vector<48x225xf32>
    %101 = tpu.matmul %97, %100, %cst_85 {dimension_numbers = #tpu.dot_dimension_numbers<[1], [0], [0], [1], [0, 0, 1, 1], [], []>} : vector<48x49xf32>, vector<49x225xf32>, vector<48x225xf32> -> vector<48x225xf32>
    %102 = arith.addf %94, %101 : vector<48x225xf32>
    %c0_86 = arith.constant 0 : index
    %c0_87 = arith.constant 0 : index
    %103 = vector.load %arg11[%c0_86, %c0_87] : memref<48x1xf32, #tpu.memory_space<vmem>>, vector<48x1xf32>
    %104 = vector.broadcast %103 : vector<48x1xf32> to vector<48x225xf32>
    %105 = arith.addf %102, %104 : vector<48x225xf32>
    %c0_88 = arith.constant 0 : index
    %c0_89 = arith.constant 0 : index
    %106 = vector.load %arg12[%c0_88, %c0_89] : memref<48x48xf32, #tpu.memory_space<vmem>>, vector<48x48xf32>
    %c0_90 = arith.constant 0 : index
    %c0_91 = arith.constant 0 : index
    %107 = vector.load %arg13[%c0_90, %c0_91] : memref<48x1xf32, #tpu.memory_space<vmem>>, vector<48x1xf32>
    %c0_92 = arith.constant 0 : index
    %c0_93 = arith.constant 0 : index
    %108 = vector.load %arg14[%c0_92, %c0_93] : memref<48x1xf32, #tpu.memory_space<vmem>>, vector<48x1xf32>
    %cst_94 = arith.constant dense<0.000000e+00> : vector<48xf32>
    %109 = vector.multi_reduction <add>, %105, %cst_94 [1] : vector<48x225xf32> to vector<48xf32>
    %110 = vector.shape_cast %109 : vector<48xf32> to vector<48x1xf32>
    %cst_95 = arith.constant dense<0.000000e+00> : vector<48x1xf32>
    %111 = tpu.matmul %106, %110, %cst_95 {dimension_numbers = #tpu.dot_dimension_numbers<[1], [0], [0], [1], [0, 0, 1, 1], [], []>} : vector<48x48xf32>, vector<48x1xf32>, vector<48x1xf32> -> vector<48x1xf32>
    %112 = vector.broadcast %111 : vector<48x1xf32> to vector<48x225xf32>
    %113 = arith.subf %105, %112 : vector<48x225xf32>
    %114 = arith.mulf %113, %113 : vector<48x225xf32>
    %cst_96 = arith.constant dense<0.000000e+00> : vector<48xf32>
    %115 = vector.multi_reduction <add>, %114, %cst_96 [1] : vector<48x225xf32> to vector<48xf32>
    %116 = vector.shape_cast %115 : vector<48xf32> to vector<48x1xf32>
    %cst_97 = arith.constant dense<0.000000e+00> : vector<48x1xf32>
    %117 = tpu.matmul %106, %116, %cst_97 {dimension_numbers = #tpu.dot_dimension_numbers<[1], [0], [0], [1], [0, 0, 1, 1], [], []>} : vector<48x48xf32>, vector<48x1xf32>, vector<48x1xf32> -> vector<48x1xf32>
    %cst_98 = arith.constant 9.99999974E-6 : f32
    %118 = vector.broadcast %cst_98 : f32 to vector<48x1xf32>
    %119 = arith.addf %117, %118 : vector<48x1xf32>
    %120 = math.rsqrt %119 : vector<48x1xf32>
    %121 = vector.broadcast %120 : vector<48x1xf32> to vector<48x225xf32>
    %122 = arith.mulf %113, %121 : vector<48x225xf32>
    %123 = vector.broadcast %107 : vector<48x1xf32> to vector<48x225xf32>
    %124 = arith.mulf %122, %123 : vector<48x225xf32>
    %125 = vector.broadcast %108 : vector<48x1xf32> to vector<48x225xf32>
    %126 = arith.addf %124, %125 : vector<48x225xf32>
    %cst_99 = arith.constant 0.000000e+00 : f32
    %127 = vector.broadcast %cst_99 : f32 to vector<48x225xf32>
    %128 = arith.maximumf %126, %127 : vector<48x225xf32>
    %c0_100 = arith.constant 0 : index
    %c0_101 = arith.constant 0 : index
    %c0_102 = arith.constant 0 : index
    %129 = vector.load %arg15[%c0_100, %c0_101, %c0_102] : memref<4x72x48xf32, #tpu.memory_space<vmem>>, vector<1x72x48xf32>
    %130 = vector.shape_cast %129 : vector<1x72x48xf32> to vector<72x48xf32>
    %cst_103 = arith.constant dense<0.000000e+00> : vector<72x225xf32>
    %131 = tpu.matmul %130, %128, %cst_103 {dimension_numbers = #tpu.dot_dimension_numbers<[1], [0], [0], [1], [0, 0, 1, 1], [], []>} : vector<72x48xf32>, vector<48x225xf32>, vector<72x225xf32> -> vector<72x225xf32>
    %c0_104 = arith.constant 0 : index
    %c0_105 = arith.constant 0 : index
    %c0_106 = arith.constant 0 : index
    %132 = vector.load %arg16[%c0_104, %c0_105, %c0_106] : memref<4x225x784xbf16, #tpu.memory_space<vmem>>, vector<1x225x784xbf16>
    %133 = vector.shape_cast %132 : vector<1x225x784xbf16> to vector<225x784xbf16>
    %134 = arith.extf %133 : vector<225x784xbf16> to vector<225x784xf32>
    %cst_107 = arith.constant dense<0.000000e+00> : vector<72x784xf32>
    %135 = tpu.matmul %131, %134, %cst_107 {dimension_numbers = #tpu.dot_dimension_numbers<[1], [0], [0], [1], [0, 0, 1, 1], [], []>} : vector<72x225xf32>, vector<225x784xf32>, vector<72x784xf32> -> vector<72x784xf32>
    %c1_108 = arith.constant 1 : index
    %c0_109 = arith.constant 0 : index
    %c0_110 = arith.constant 0 : index
    %136 = vector.load %arg15[%c1_108, %c0_109, %c0_110] : memref<4x72x48xf32, #tpu.memory_space<vmem>>, vector<1x72x48xf32>
    %137 = vector.shape_cast %136 : vector<1x72x48xf32> to vector<72x48xf32>
    %cst_111 = arith.constant dense<0.000000e+00> : vector<72x225xf32>
    %138 = tpu.matmul %137, %128, %cst_111 {dimension_numbers = #tpu.dot_dimension_numbers<[1], [0], [0], [1], [0, 0, 1, 1], [], []>} : vector<72x48xf32>, vector<48x225xf32>, vector<72x225xf32> -> vector<72x225xf32>
    %c1_112 = arith.constant 1 : index
    %c0_113 = arith.constant 0 : index
    %c0_114 = arith.constant 0 : index
    %139 = vector.load %arg16[%c1_112, %c0_113, %c0_114] : memref<4x225x784xbf16, #tpu.memory_space<vmem>>, vector<1x225x784xbf16>
    %140 = vector.shape_cast %139 : vector<1x225x784xbf16> to vector<225x784xbf16>
    %141 = arith.extf %140 : vector<225x784xbf16> to vector<225x784xf32>
    %cst_115 = arith.constant dense<0.000000e+00> : vector<72x784xf32>
    %142 = tpu.matmul %138, %141, %cst_115 {dimension_numbers = #tpu.dot_dimension_numbers<[1], [0], [0], [1], [0, 0, 1, 1], [], []>} : vector<72x225xf32>, vector<225x784xf32>, vector<72x784xf32> -> vector<72x784xf32>
    %143 = arith.addf %135, %142 : vector<72x784xf32>
    %c2_116 = arith.constant 2 : index
    %c0_117 = arith.constant 0 : index
    %c0_118 = arith.constant 0 : index
    %144 = vector.load %arg15[%c2_116, %c0_117, %c0_118] : memref<4x72x48xf32, #tpu.memory_space<vmem>>, vector<1x72x48xf32>
    %145 = vector.shape_cast %144 : vector<1x72x48xf32> to vector<72x48xf32>
    %cst_119 = arith.constant dense<0.000000e+00> : vector<72x225xf32>
    %146 = tpu.matmul %145, %128, %cst_119 {dimension_numbers = #tpu.dot_dimension_numbers<[1], [0], [0], [1], [0, 0, 1, 1], [], []>} : vector<72x48xf32>, vector<48x225xf32>, vector<72x225xf32> -> vector<72x225xf32>
    %c2_120 = arith.constant 2 : index
    %c0_121 = arith.constant 0 : index
    %c0_122 = arith.constant 0 : index
    %147 = vector.load %arg16[%c2_120, %c0_121, %c0_122] : memref<4x225x784xbf16, #tpu.memory_space<vmem>>, vector<1x225x784xbf16>
    %148 = vector.shape_cast %147 : vector<1x225x784xbf16> to vector<225x784xbf16>
    %149 = arith.extf %148 : vector<225x784xbf16> to vector<225x784xf32>
    %cst_123 = arith.constant dense<0.000000e+00> : vector<72x784xf32>
    %150 = tpu.matmul %146, %149, %cst_123 {dimension_numbers = #tpu.dot_dimension_numbers<[1], [0], [0], [1], [0, 0, 1, 1], [], []>} : vector<72x225xf32>, vector<225x784xf32>, vector<72x784xf32> -> vector<72x784xf32>
    %151 = arith.addf %143, %150 : vector<72x784xf32>
    %c3_124 = arith.constant 3 : index
    %c0_125 = arith.constant 0 : index
    %c0_126 = arith.constant 0 : index
    %152 = vector.load %arg15[%c3_124, %c0_125, %c0_126] : memref<4x72x48xf32, #tpu.memory_space<vmem>>, vector<1x72x48xf32>
    %153 = vector.shape_cast %152 : vector<1x72x48xf32> to vector<72x48xf32>
    %cst_127 = arith.constant dense<0.000000e+00> : vector<72x225xf32>
    %154 = tpu.matmul %153, %128, %cst_127 {dimension_numbers = #tpu.dot_dimension_numbers<[1], [0], [0], [1], [0, 0, 1, 1], [], []>} : vector<72x48xf32>, vector<48x225xf32>, vector<72x225xf32> -> vector<72x225xf32>
    %c3_128 = arith.constant 3 : index
    %c0_129 = arith.constant 0 : index
    %c0_130 = arith.constant 0 : index
    %155 = vector.load %arg16[%c3_128, %c0_129, %c0_130] : memref<4x225x784xbf16, #tpu.memory_space<vmem>>, vector<1x225x784xbf16>
    %156 = vector.shape_cast %155 : vector<1x225x784xbf16> to vector<225x784xbf16>
    %157 = arith.extf %156 : vector<225x784xbf16> to vector<225x784xf32>
    %cst_131 = arith.constant dense<0.000000e+00> : vector<72x784xf32>
    %158 = tpu.matmul %154, %157, %cst_131 {dimension_numbers = #tpu.dot_dimension_numbers<[1], [0], [0], [1], [0, 0, 1, 1], [], []>} : vector<72x225xf32>, vector<225x784xf32>, vector<72x784xf32> -> vector<72x784xf32>
    %159 = arith.addf %151, %158 : vector<72x784xf32>
    %c0_132 = arith.constant 0 : index
    %c0_133 = arith.constant 0 : index
    %160 = vector.load %arg17[%c0_132, %c0_133] : memref<72x1xf32, #tpu.memory_space<vmem>>, vector<72x1xf32>
    %161 = vector.broadcast %160 : vector<72x1xf32> to vector<72x784xf32>
    %162 = arith.addf %159, %161 : vector<72x784xf32>
    %c0_134 = arith.constant 0 : index
    %c0_135 = arith.constant 0 : index
    %163 = vector.load %arg18[%c0_134, %c0_135] : memref<72x72xf32, #tpu.memory_space<vmem>>, vector<72x72xf32>
    %c0_136 = arith.constant 0 : index
    %c0_137 = arith.constant 0 : index
    %164 = vector.load %arg19[%c0_136, %c0_137] : memref<72x1xf32, #tpu.memory_space<vmem>>, vector<72x1xf32>
    %c0_138 = arith.constant 0 : index
    %c0_139 = arith.constant 0 : index
    %165 = vector.load %arg20[%c0_138, %c0_139] : memref<72x1xf32, #tpu.memory_space<vmem>>, vector<72x1xf32>
    %cst_140 = arith.constant dense<0.000000e+00> : vector<72xf32>
    %166 = vector.multi_reduction <add>, %162, %cst_140 [1] : vector<72x784xf32> to vector<72xf32>
    %167 = vector.shape_cast %166 : vector<72xf32> to vector<72x1xf32>
    %cst_141 = arith.constant dense<0.000000e+00> : vector<72x1xf32>
    %168 = tpu.matmul %163, %167, %cst_141 {dimension_numbers = #tpu.dot_dimension_numbers<[1], [0], [0], [1], [0, 0, 1, 1], [], []>} : vector<72x72xf32>, vector<72x1xf32>, vector<72x1xf32> -> vector<72x1xf32>
    %169 = vector.broadcast %168 : vector<72x1xf32> to vector<72x784xf32>
    %170 = arith.subf %162, %169 : vector<72x784xf32>
    %171 = arith.mulf %170, %170 : vector<72x784xf32>
    %cst_142 = arith.constant dense<0.000000e+00> : vector<72xf32>
    %172 = vector.multi_reduction <add>, %171, %cst_142 [1] : vector<72x784xf32> to vector<72xf32>
    %173 = vector.shape_cast %172 : vector<72xf32> to vector<72x1xf32>
    %cst_143 = arith.constant dense<0.000000e+00> : vector<72x1xf32>
    %174 = tpu.matmul %163, %173, %cst_143 {dimension_numbers = #tpu.dot_dimension_numbers<[1], [0], [0], [1], [0, 0, 1, 1], [], []>} : vector<72x72xf32>, vector<72x1xf32>, vector<72x1xf32> -> vector<72x1xf32>
    %cst_144 = arith.constant 9.99999974E-6 : f32
    %175 = vector.broadcast %cst_144 : f32 to vector<72x1xf32>
    %176 = arith.addf %174, %175 : vector<72x1xf32>
    %177 = math.rsqrt %176 : vector<72x1xf32>
    %178 = vector.broadcast %177 : vector<72x1xf32> to vector<72x784xf32>
    %179 = arith.mulf %170, %178 : vector<72x784xf32>
    %180 = vector.broadcast %164 : vector<72x1xf32> to vector<72x784xf32>
    %181 = arith.mulf %179, %180 : vector<72x784xf32>
    %182 = vector.broadcast %165 : vector<72x1xf32> to vector<72x784xf32>
    %183 = arith.addf %181, %182 : vector<72x784xf32>
    %c0_145 = arith.constant 0 : index
    %c0_146 = arith.constant 0 : index
    %c0_147 = arith.constant 0 : index
    %184 = vector.load %arg21[%c0_145, %c0_146, %c0_147] : memref<9x2x72xf32, #tpu.memory_space<vmem>>, vector<1x2x72xf32>
    %185 = vector.shape_cast %184 : vector<1x2x72xf32> to vector<2x72xf32>
    %cst_148 = arith.constant dense<0.000000e+00> : vector<2x784xf32>
    %186 = tpu.matmul %185, %183, %cst_148 {dimension_numbers = #tpu.dot_dimension_numbers<[1], [0], [0], [1], [0, 0, 1, 1], [], []>} : vector<2x72xf32>, vector<72x784xf32>, vector<2x784xf32> -> vector<2x784xf32>
    %cst_149 = arith.constant 0.000000e+00 : f32
    %187 = vector.broadcast %cst_149 : f32 to vector<2x29xf32>
    %188 = vector.extract_strided_slice %186 {offsets = [0, 29], sizes = [2, 755], strides = [1, 1]} : vector<2x784xf32> to vector<2x755xf32>
    %189 = tpu.concatenate %188, %187 in 1 : vector<2x755xf32>, vector<2x29xf32> -> vector<2x784xf32>
    %c0_150 = arith.constant 0 : index
    %c0_151 = arith.constant 0 : index
    %c0_152 = arith.constant 0 : index
    %190 = vector.load %arg22[%c0_150, %c0_151, %c0_152] : memref<9x1x784xf32, #tpu.memory_space<vmem>>, vector<1x1x784xf32>
    %191 = vector.shape_cast %190 : vector<1x1x784xf32> to vector<1x784xf32>
    %192 = vector.broadcast %191 : vector<1x784xf32> to vector<2x784xf32>
    %193 = arith.mulf %189, %192 : vector<2x784xf32>
    %c1_153 = arith.constant 1 : index
    %c0_154 = arith.constant 0 : index
    %c0_155 = arith.constant 0 : index
    %194 = vector.load %arg21[%c1_153, %c0_154, %c0_155] : memref<9x2x72xf32, #tpu.memory_space<vmem>>, vector<1x2x72xf32>
    %195 = vector.shape_cast %194 : vector<1x2x72xf32> to vector<2x72xf32>
    %cst_156 = arith.constant dense<0.000000e+00> : vector<2x784xf32>
    %196 = tpu.matmul %195, %183, %cst_156 {dimension_numbers = #tpu.dot_dimension_numbers<[1], [0], [0], [1], [0, 0, 1, 1], [], []>} : vector<2x72xf32>, vector<72x784xf32>, vector<2x784xf32> -> vector<2x784xf32>
    %cst_157 = arith.constant 0.000000e+00 : f32
    %197 = vector.broadcast %cst_157 : f32 to vector<2x28xf32>
    %198 = vector.extract_strided_slice %196 {offsets = [0, 28], sizes = [2, 756], strides = [1, 1]} : vector<2x784xf32> to vector<2x756xf32>
    %199 = tpu.concatenate %198, %197 in 1 : vector<2x756xf32>, vector<2x28xf32> -> vector<2x784xf32>
    %c1_158 = arith.constant 1 : index
    %c0_159 = arith.constant 0 : index
    %c0_160 = arith.constant 0 : index
    %200 = vector.load %arg22[%c1_158, %c0_159, %c0_160] : memref<9x1x784xf32, #tpu.memory_space<vmem>>, vector<1x1x784xf32>
    %201 = vector.shape_cast %200 : vector<1x1x784xf32> to vector<1x784xf32>
    %202 = vector.broadcast %201 : vector<1x784xf32> to vector<2x784xf32>
    %203 = arith.mulf %199, %202 : vector<2x784xf32>
    %204 = arith.addf %193, %203 : vector<2x784xf32>
    %c2_161 = arith.constant 2 : index
    %c0_162 = arith.constant 0 : index
    %c0_163 = arith.constant 0 : index
    %205 = vector.load %arg21[%c2_161, %c0_162, %c0_163] : memref<9x2x72xf32, #tpu.memory_space<vmem>>, vector<1x2x72xf32>
    %206 = vector.shape_cast %205 : vector<1x2x72xf32> to vector<2x72xf32>
    %cst_164 = arith.constant dense<0.000000e+00> : vector<2x784xf32>
    %207 = tpu.matmul %206, %183, %cst_164 {dimension_numbers = #tpu.dot_dimension_numbers<[1], [0], [0], [1], [0, 0, 1, 1], [], []>} : vector<2x72xf32>, vector<72x784xf32>, vector<2x784xf32> -> vector<2x784xf32>
    %cst_165 = arith.constant 0.000000e+00 : f32
    %208 = vector.broadcast %cst_165 : f32 to vector<2x27xf32>
    %209 = vector.extract_strided_slice %207 {offsets = [0, 27], sizes = [2, 757], strides = [1, 1]} : vector<2x784xf32> to vector<2x757xf32>
    %210 = tpu.concatenate %209, %208 in 1 : vector<2x757xf32>, vector<2x27xf32> -> vector<2x784xf32>
    %c2_166 = arith.constant 2 : index
    %c0_167 = arith.constant 0 : index
    %c0_168 = arith.constant 0 : index
    %211 = vector.load %arg22[%c2_166, %c0_167, %c0_168] : memref<9x1x784xf32, #tpu.memory_space<vmem>>, vector<1x1x784xf32>
    %212 = vector.shape_cast %211 : vector<1x1x784xf32> to vector<1x784xf32>
    %213 = vector.broadcast %212 : vector<1x784xf32> to vector<2x784xf32>
    %214 = arith.mulf %210, %213 : vector<2x784xf32>
    %215 = arith.addf %204, %214 : vector<2x784xf32>
    %c3_169 = arith.constant 3 : index
    %c0_170 = arith.constant 0 : index
    %c0_171 = arith.constant 0 : index
    %216 = vector.load %arg21[%c3_169, %c0_170, %c0_171] : memref<9x2x72xf32, #tpu.memory_space<vmem>>, vector<1x2x72xf32>
    %217 = vector.shape_cast %216 : vector<1x2x72xf32> to vector<2x72xf32>
    %cst_172 = arith.constant dense<0.000000e+00> : vector<2x784xf32>
    %218 = tpu.matmul %217, %183, %cst_172 {dimension_numbers = #tpu.dot_dimension_numbers<[1], [0], [0], [1], [0, 0, 1, 1], [], []>} : vector<2x72xf32>, vector<72x784xf32>, vector<2x784xf32> -> vector<2x784xf32>
    %cst_173 = arith.constant 0.000000e+00 : f32
    %219 = vector.broadcast %cst_173 : f32 to vector<2x1xf32>
    %220 = vector.extract_strided_slice %218 {offsets = [0, 1], sizes = [2, 783], strides = [1, 1]} : vector<2x784xf32> to vector<2x783xf32>
    %221 = tpu.concatenate %220, %219 in 1 : vector<2x783xf32>, vector<2x1xf32> -> vector<2x784xf32>
    %c3_174 = arith.constant 3 : index
    %c0_175 = arith.constant 0 : index
    %c0_176 = arith.constant 0 : index
    %222 = vector.load %arg22[%c3_174, %c0_175, %c0_176] : memref<9x1x784xf32, #tpu.memory_space<vmem>>, vector<1x1x784xf32>
    %223 = vector.shape_cast %222 : vector<1x1x784xf32> to vector<1x784xf32>
    %224 = vector.broadcast %223 : vector<1x784xf32> to vector<2x784xf32>
    %225 = arith.mulf %221, %224 : vector<2x784xf32>
    %226 = arith.addf %215, %225 : vector<2x784xf32>
    %c4_177 = arith.constant 4 : index
    %c0_178 = arith.constant 0 : index
    %c0_179 = arith.constant 0 : index
    %227 = vector.load %arg21[%c4_177, %c0_178, %c0_179] : memref<9x2x72xf32, #tpu.memory_space<vmem>>, vector<1x2x72xf32>
    %228 = vector.shape_cast %227 : vector<1x2x72xf32> to vector<2x72xf32>
    %cst_180 = arith.constant dense<0.000000e+00> : vector<2x784xf32>
    %229 = tpu.matmul %228, %183, %cst_180 {dimension_numbers = #tpu.dot_dimension_numbers<[1], [0], [0], [1], [0, 0, 1, 1], [], []>} : vector<2x72xf32>, vector<72x784xf32>, vector<2x784xf32> -> vector<2x784xf32>
    %c4_181 = arith.constant 4 : index
    %c0_182 = arith.constant 0 : index
    %c0_183 = arith.constant 0 : index
    %230 = vector.load %arg22[%c4_181, %c0_182, %c0_183] : memref<9x1x784xf32, #tpu.memory_space<vmem>>, vector<1x1x784xf32>
    %231 = vector.shape_cast %230 : vector<1x1x784xf32> to vector<1x784xf32>
    %232 = vector.broadcast %231 : vector<1x784xf32> to vector<2x784xf32>
    %233 = arith.mulf %229, %232 : vector<2x784xf32>
    %234 = arith.addf %226, %233 : vector<2x784xf32>
    %c5_184 = arith.constant 5 : index
    %c0_185 = arith.constant 0 : index
    %c0_186 = arith.constant 0 : index
    %235 = vector.load %arg21[%c5_184, %c0_185, %c0_186] : memref<9x2x72xf32, #tpu.memory_space<vmem>>, vector<1x2x72xf32>
    %236 = vector.shape_cast %235 : vector<1x2x72xf32> to vector<2x72xf32>
    %cst_187 = arith.constant dense<0.000000e+00> : vector<2x784xf32>
    %237 = tpu.matmul %236, %183, %cst_187 {dimension_numbers = #tpu.dot_dimension_numbers<[1], [0], [0], [1], [0, 0, 1, 1], [], []>} : vector<2x72xf32>, vector<72x784xf32>, vector<2x784xf32> -> vector<2x784xf32>
    %cst_188 = arith.constant 0.000000e+00 : f32
    %238 = vector.broadcast %cst_188 : f32 to vector<2x1xf32>
    %239 = vector.extract_strided_slice %237 {offsets = [0, 0], sizes = [2, 783], strides = [1, 1]} : vector<2x784xf32> to vector<2x783xf32>
    %240 = tpu.concatenate %238, %239 in 1 : vector<2x1xf32>, vector<2x783xf32> -> vector<2x784xf32>
    %c5_189 = arith.constant 5 : index
    %c0_190 = arith.constant 0 : index
    %c0_191 = arith.constant 0 : index
    %241 = vector.load %arg22[%c5_189, %c0_190, %c0_191] : memref<9x1x784xf32, #tpu.memory_space<vmem>>, vector<1x1x784xf32>
    %242 = vector.shape_cast %241 : vector<1x1x784xf32> to vector<1x784xf32>
    %243 = vector.broadcast %242 : vector<1x784xf32> to vector<2x784xf32>
    %244 = arith.mulf %240, %243 : vector<2x784xf32>
    %245 = arith.addf %234, %244 : vector<2x784xf32>
    %c6_192 = arith.constant 6 : index
    %c0_193 = arith.constant 0 : index
    %c0_194 = arith.constant 0 : index
    %246 = vector.load %arg21[%c6_192, %c0_193, %c0_194] : memref<9x2x72xf32, #tpu.memory_space<vmem>>, vector<1x2x72xf32>
    %247 = vector.shape_cast %246 : vector<1x2x72xf32> to vector<2x72xf32>
    %cst_195 = arith.constant dense<0.000000e+00> : vector<2x784xf32>
    %248 = tpu.matmul %247, %183, %cst_195 {dimension_numbers = #tpu.dot_dimension_numbers<[1], [0], [0], [1], [0, 0, 1, 1], [], []>} : vector<2x72xf32>, vector<72x784xf32>, vector<2x784xf32> -> vector<2x784xf32>
    %cst_196 = arith.constant 0.000000e+00 : f32
    %249 = vector.broadcast %cst_196 : f32 to vector<2x27xf32>
    %250 = vector.extract_strided_slice %248 {offsets = [0, 0], sizes = [2, 757], strides = [1, 1]} : vector<2x784xf32> to vector<2x757xf32>
    %251 = tpu.concatenate %249, %250 in 1 : vector<2x27xf32>, vector<2x757xf32> -> vector<2x784xf32>
    %c6_197 = arith.constant 6 : index
    %c0_198 = arith.constant 0 : index
    %c0_199 = arith.constant 0 : index
    %252 = vector.load %arg22[%c6_197, %c0_198, %c0_199] : memref<9x1x784xf32, #tpu.memory_space<vmem>>, vector<1x1x784xf32>
    %253 = vector.shape_cast %252 : vector<1x1x784xf32> to vector<1x784xf32>
    %254 = vector.broadcast %253 : vector<1x784xf32> to vector<2x784xf32>
    %255 = arith.mulf %251, %254 : vector<2x784xf32>
    %256 = arith.addf %245, %255 : vector<2x784xf32>
    %c7_200 = arith.constant 7 : index
    %c0_201 = arith.constant 0 : index
    %c0_202 = arith.constant 0 : index
    %257 = vector.load %arg21[%c7_200, %c0_201, %c0_202] : memref<9x2x72xf32, #tpu.memory_space<vmem>>, vector<1x2x72xf32>
    %258 = vector.shape_cast %257 : vector<1x2x72xf32> to vector<2x72xf32>
    %cst_203 = arith.constant dense<0.000000e+00> : vector<2x784xf32>
    %259 = tpu.matmul %258, %183, %cst_203 {dimension_numbers = #tpu.dot_dimension_numbers<[1], [0], [0], [1], [0, 0, 1, 1], [], []>} : vector<2x72xf32>, vector<72x784xf32>, vector<2x784xf32> -> vector<2x784xf32>
    %cst_204 = arith.constant 0.000000e+00 : f32
    %260 = vector.broadcast %cst_204 : f32 to vector<2x28xf32>
    %261 = vector.extract_strided_slice %259 {offsets = [0, 0], sizes = [2, 756], strides = [1, 1]} : vector<2x784xf32> to vector<2x756xf32>
    %262 = tpu.concatenate %260, %261 in 1 : vector<2x28xf32>, vector<2x756xf32> -> vector<2x784xf32>
    %c7_205 = arith.constant 7 : index
    %c0_206 = arith.constant 0 : index
    %c0_207 = arith.constant 0 : index
    %263 = vector.load %arg22[%c7_205, %c0_206, %c0_207] : memref<9x1x784xf32, #tpu.memory_space<vmem>>, vector<1x1x784xf32>
    %264 = vector.shape_cast %263 : vector<1x1x784xf32> to vector<1x784xf32>
    %265 = vector.broadcast %264 : vector<1x784xf32> to vector<2x784xf32>
    %266 = arith.mulf %262, %265 : vector<2x784xf32>
    %267 = arith.addf %256, %266 : vector<2x784xf32>
    %c8_208 = arith.constant 8 : index
    %c0_209 = arith.constant 0 : index
    %c0_210 = arith.constant 0 : index
    %268 = vector.load %arg21[%c8_208, %c0_209, %c0_210] : memref<9x2x72xf32, #tpu.memory_space<vmem>>, vector<1x2x72xf32>
    %269 = vector.shape_cast %268 : vector<1x2x72xf32> to vector<2x72xf32>
    %cst_211 = arith.constant dense<0.000000e+00> : vector<2x784xf32>
    %270 = tpu.matmul %269, %183, %cst_211 {dimension_numbers = #tpu.dot_dimension_numbers<[1], [0], [0], [1], [0, 0, 1, 1], [], []>} : vector<2x72xf32>, vector<72x784xf32>, vector<2x784xf32> -> vector<2x784xf32>
    %cst_212 = arith.constant 0.000000e+00 : f32
    %271 = vector.broadcast %cst_212 : f32 to vector<2x29xf32>
    %272 = vector.extract_strided_slice %270 {offsets = [0, 0], sizes = [2, 755], strides = [1, 1]} : vector<2x784xf32> to vector<2x755xf32>
    %273 = tpu.concatenate %271, %272 in 1 : vector<2x29xf32>, vector<2x755xf32> -> vector<2x784xf32>
    %c8_213 = arith.constant 8 : index
    %c0_214 = arith.constant 0 : index
    %c0_215 = arith.constant 0 : index
    %274 = vector.load %arg22[%c8_213, %c0_214, %c0_215] : memref<9x1x784xf32, #tpu.memory_space<vmem>>, vector<1x1x784xf32>
    %275 = vector.shape_cast %274 : vector<1x1x784xf32> to vector<1x784xf32>
    %276 = vector.broadcast %275 : vector<1x784xf32> to vector<2x784xf32>
    %277 = arith.mulf %273, %276 : vector<2x784xf32>
    %278 = arith.addf %267, %277 : vector<2x784xf32>
    %c0_216 = arith.constant 0 : index
    %c0_217 = arith.constant 0 : index
    %279 = vector.load %arg23[%c0_216, %c0_217] : memref<1x1xf32, #tpu.memory_space<vmem>>, vector<1x1xf32>
    %280 = vector.broadcast %279 : vector<1x1xf32> to vector<2x784xf32>
    %281 = arith.addf %278, %280 : vector<2x784xf32>
    %c0_218 = arith.constant 0 : index
    %c0_219 = arith.constant 0 : index
    %282 = vector.load %arg24[%c0_218, %c0_219] : memref<2x784xf32, #tpu.memory_space<vmem>>, vector<2x784xf32>
    tpu.vector_store %arg24[%c0_218, %c0_219], %281 {strides = array<i32>} : memref<2x784xf32, #tpu.memory_space<vmem>>, vector<2x784xf32>,
    return
  }
  func.func @transform_0(%arg0: i32) -> (i32, i32) {
    %c0_i32 = arith.constant 0 : i32
    %c0_i32_0 = arith.constant 0 : i32
    %c0_i32_1 = arith.constant 0 : i32
    return %c0_i32, %c0_i32_0 : i32, i32
  }
  func.func @transform_1(%arg0: i32) -> (i32, i32) {
    %c0_i32 = arith.constant 0 : i32
    %c0_i32_0 = arith.constant 0 : i32
    %c0_i32_1 = arith.constant 0 : i32
    return %c0_i32, %c0_i32_0 : i32, i32
  }
  func.func @transform_2(%arg0: i32) -> (i32, i32) {
    %c0_i32 = arith.constant 0 : i32
    %c0_i32_0 = arith.constant 0 : i32
    %c0_i32_1 = arith.constant 0 : i32
    return %c0_i32, %c0_i32_0 : i32, i32
  }
  func.func @transform_3(%arg0: i32) -> (i32, i32) {
    %c0_i32 = arith.constant 0 : i32
    %c0_i32_0 = arith.constant 0 : i32
    %c0_i32_1 = arith.constant 0 : i32
    return %c0_i32, %c0_i32_0 : i32, i32
  }
  func.func @transform_4(%arg0: i32) -> (i32, i32) {
    %c0_i32 = arith.constant 0 : i32
    %c0_i32_0 = arith.constant 0 : i32
    %c0_i32_1 = arith.constant 0 : i32
    return %c0_i32, %c0_i32_0 : i32, i32
  }
  func.func @transform_5(%arg0: i32) -> (i32, i32) {
    %c0_i32 = arith.constant 0 : i32
    %c0_i32_0 = arith.constant 0 : i32
    %c0_i32_1 = arith.constant 0 : i32
    return %c0_i32, %c0_i32_0 : i32, i32
  }
  func.func @transform_6(%arg0: i32) -> (i32, i32) {
    %c0_i32 = arith.constant 0 : i32
    %c0_i32_0 = arith.constant 0 : i32
    %c0_i32_1 = arith.constant 0 : i32
    return %c0_i32, %c0_i32_0 : i32, i32
  }
  func.func @transform_7(%arg0: i32) -> (i32, i32) {
    %c0_i32 = arith.constant 0 : i32
    %c0_i32_0 = arith.constant 0 : i32
    %c0_i32_1 = arith.constant 0 : i32
    return %c0_i32, %c0_i32_0 : i32, i32
  }
  func.func @transform_8(%arg0: i32) -> (i32, i32, i32) {
    %c0_i32 = arith.constant 0 : i32
    %c0_i32_0 = arith.constant 0 : i32
    %c0_i32_1 = arith.constant 0 : i32
    %c0_i32_2 = arith.constant 0 : i32
    return %c0_i32, %c0_i32_0, %c0_i32_1 : i32, i32, i32
  }
  func.func @transform_9(%arg0: i32) -> (i32, i32, i32) {
    %c0_i32 = arith.constant 0 : i32
    %c0_i32_0 = arith.constant 0 : i32
    %c0_i32_1 = arith.constant 0 : i32
    %c0_i32_2 = arith.constant 0 : i32
    return %c0_i32, %c0_i32_0, %c0_i32_1 : i32, i32, i32
  }
  func.func @transform_10(%arg0: i32) -> (i32, i32) {
    %c0_i32 = arith.constant 0 : i32
    %c0_i32_0 = arith.constant 0 : i32
    %c0_i32_1 = arith.constant 0 : i32
    return %c0_i32, %c0_i32_0 : i32, i32
  }
  func.func @transform_11(%arg0: i32) -> (i32, i32) {
    %c0_i32 = arith.constant 0 : i32
    %c0_i32_0 = arith.constant 0 : i32
    %c0_i32_1 = arith.constant 0 : i32
    return %c0_i32, %c0_i32_0 : i32, i32
  }
  func.func @transform_12(%arg0: i32) -> (i32, i32) {
    %c0_i32 = arith.constant 0 : i32
    %c0_i32_0 = arith.constant 0 : i32
    %c0_i32_1 = arith.constant 0 : i32
    return %c0_i32, %c0_i32_0 : i32, i32
  }
  func.func @transform_13(%arg0: i32) -> (i32, i32) {
    %c0_i32 = arith.constant 0 : i32
    %c0_i32_0 = arith.constant 0 : i32
    %c0_i32_1 = arith.constant 0 : i32
    return %c0_i32, %c0_i32_0 : i32, i32
  }
  func.func @transform_14(%arg0: i32) -> (i32, i32, i32) {
    %c0_i32 = arith.constant 0 : i32
    %c0_i32_0 = arith.constant 0 : i32
    %c0_i32_1 = arith.constant 0 : i32
    %c0_i32_2 = arith.constant 0 : i32
    return %c0_i32, %c0_i32_0, %c0_i32_1 : i32, i32, i32
  }
  func.func @transform_15(%arg0: i32) -> (i32, i32, i32) {
    %c0_i32 = arith.constant 0 : i32
    %c0_i32_0 = arith.constant 0 : i32
    %c0_i32_1 = arith.constant 0 : i32
    %c0_i32_2 = arith.constant 0 : i32
    return %c0_i32, %c0_i32_0, %c0_i32_1 : i32, i32, i32
  }
  func.func @transform_16(%arg0: i32) -> (i32, i32) {
    %c0_i32 = arith.constant 0 : i32
    %c0_i32_0 = arith.constant 0 : i32
    %c0_i32_1 = arith.constant 0 : i32
    return %c0_i32, %c0_i32_0 : i32, i32
  }
  func.func @transform_17(%arg0: i32) -> (i32, i32) {
    %c0_i32 = arith.constant 0 : i32
    %c0_i32_0 = arith.constant 0 : i32
    %c0_i32_1 = arith.constant 0 : i32
    return %c0_i32, %c0_i32_0 : i32, i32
  }
  func.func @transform_18(%arg0: i32) -> (i32, i32) {
    %c0_i32 = arith.constant 0 : i32
    %c0_i32_0 = arith.constant 0 : i32
    %c0_i32_1 = arith.constant 0 : i32
    return %c0_i32, %c0_i32_0 : i32, i32
  }
  func.func @transform_19(%arg0: i32) -> (i32, i32) {
    %c0_i32 = arith.constant 0 : i32
    %c0_i32_0 = arith.constant 0 : i32
    %c0_i32_1 = arith.constant 0 : i32
    return %c0_i32, %c0_i32_0 : i32, i32
  }
  func.func @transform_20(%arg0: i32) -> (i32, i32, i32) {
    %c0_i32 = arith.constant 0 : i32
    %c0_i32_0 = arith.constant 0 : i32
    %c0_i32_1 = arith.constant 0 : i32
    %c0_i32_2 = arith.constant 0 : i32
    return %c0_i32, %c0_i32_0, %c0_i32_1 : i32, i32, i32
  }
  func.func @transform_21(%arg0: i32) -> (i32, i32, i32) {
    %c0_i32 = arith.constant 0 : i32
    %c0_i32_0 = arith.constant 0 : i32
    %c0_i32_1 = arith.constant 0 : i32
    %c0_i32_2 = arith.constant 0 : i32
    return %c0_i32, %c0_i32_0, %c0_i32_1 : i32, i32, i32
  }
  func.func @transform_22(%arg0: i32) -> (i32, i32) {
    %c0_i32 = arith.constant 0 : i32
    %c0_i32_0 = arith.constant 0 : i32
    %c0_i32_1 = arith.constant 0 : i32
    return %c0_i32, %c0_i32_0 : i32, i32
  }
  func.func @transform_23(%arg0: i32) -> (i32, i32) {
    %c0_i32 = arith.constant 0 : i32
    %c0_i32_0 = arith.constant 0 : i32
    %c0_i32_1 = arith.constant 0 : i32
    return %c0_i32, %c0_i32_0 : i32, i32
  }
}

</mosaic_0001>

<llo_original>
// kernel: decoder_forward.1
$region0: #{decoder_forward.1}
  #allocation0 [shape = 'u32[]', space=smem, size = 0x4, offset = 0x4, fixed_abs, tag = 'smem constant byte address 0x4 - core index']
  #allocation1 [shape = 'u32[144,128]{1,0:T(1,128)}', space=vmem, size = 0x12000, scoped, tag = 'internal scratch']
  #allocation2 [shape = 'f32[1,1]{1,0:T(1,128)S(1)}', space=vmem, size = 0x200, scoped, tag = 'scoped memory for decoder_forward.1']
  %s0 = inlined_call_operand.vmem [shape: f32[24,64], index: 0, kind: input, shape index: {}]
  %s1 = inlined_call_operand.vmem [shape: f32[64,588], index: 1, kind: input, shape index: {}]
  %s2 = inlined_call_operand.vmem [shape: f32[24,588], index: 2, kind: input, shape index: {}]
  %s3 = inlined_call_operand.vmem [shape: f32[588,49], index: 3, kind: input, shape index: {}]
  %s4 = inlined_call_operand.vmem [shape: f32[24,49], index: 4, kind: input, shape index: {}]
  %s5 = inlined_call_operand.vmem [shape: f32[24,24], index: 5, kind: input, shape index: {}]
  %s6 = inlined_call_operand.vmem [shape: f32[24,1], index: 6, kind: input, shape index: {}]
  %s7 = inlined_call_operand.vmem [shape: f32[24,1], index: 7, kind: input, shape index: {}]
  %s8 = inlined_call_operand.vmem [shape: f32[9,48,24], index: 8, kind: input, shape index: {}]
  %s9 = inlined_call_operand.vmem [shape: bf16[9,49,225], index: 9, kind: input, shape index: {}]
  %s10 = inlined_call_operand.vmem [shape: f32[48,1], index: 10, kind: input, shape index: {}]
  %s11 = inlined_call_operand.vmem [shape: f32[48,48], index: 11, kind: input, shape index: {}]
  %s12 = inlined_call_operand.vmem [shape: f32[48,1], index: 12, kind: input, shape index: {}]
  %s13 = inlined_call_operand.vmem [shape: f32[48,1], index: 13, kind: input, shape index: {}]
  %s14 = inlined_call_operand.vmem [shape: f32[4,72,48], index: 14, kind: input, shape index: {}]
  %s15 = inlined_call_operand.vmem [shape: bf16[4,225,784], index: 15, kind: input, shape index: {}]
  %s16 = inlined_call_operand.vmem [shape: f32[72,1], index: 16, kind: input, shape index: {}]
  %s17 = inlined_call_operand.vmem [shape: f32[72,72], index: 17, kind: input, shape index: {}]
  %s18 = inlined_call_operand.vmem [shape: f32[72,1], index: 18, kind: input, shape index: {}]
  %s19 = inlined_call_operand.vmem [shape: f32[72,1], index: 19, kind: input, shape index: {}]
  %s20 = inlined_call_operand.vmem [shape: f32[9,2,72], index: 20, kind: input, shape index: {}]
  %s21 = inlined_call_operand.vmem [shape: f32[9,1,784], index: 21, kind: input, shape index: {}]
  %s22 = inlined_call_operand.<no memory space> [shape: f32[1,1], index: 22, kind: input, shape index: {}]
  %s23 = inlined_call_operand.vmem [shape: f32[2,784], index: 23, kind: output, shape index: {}]
  %s24 = sld [smem:[#allocation0]]
  $region102: #{decoder_forward.1} parent=0
    _
  %s26 = ssub.s32 1, %s24
  %s27 = scalar_select 0, %s26, %s24
  %v28 = vstv %s22
  %29 = vst [vmem:[#allocation2] sm:$0x1] %v28
  // Predicated region
  $region2: #{decoder_forward.1} parent=0 // pred_check
    _
  $region3: #{decoder_forward.1} parent=0 // pred_check_branch
    %31 = sbr.rel (0) target = $region5
  $region4: #{decoder_forward.1} parent=0 // pred_region
    _
  $region5: #{decoder_forward.1} parent=0 // pred_fallthru
    _
  // Predicated region
  $region6: #{decoder_forward.1} parent=0 // pred_check
    _
  $region7: #{decoder_forward.1} parent=0 // pred_check_branch
    %33 = sbr.rel (0) target = $region9
  $region8: #{decoder_forward.1} parent=0 // pred_region
    _
  $region9: #{decoder_forward.1} parent=0 // pred_fallthru
    _
  // Predicated region
  $region10: #{decoder_forward.1} parent=0 // pred_check
    _
  $region11: #{decoder_forward.1} parent=0 // pred_check_branch
    %35 = sbr.rel (0) target = $region13
  $region12: #{decoder_forward.1} parent=0 // pred_region
    _
  $region13: #{decoder_forward.1} parent=0 // pred_fallthru
    _
  // Predicated region
  $region14: #{decoder_forward.1} parent=0 // pred_check
    _
  $region15: #{decoder_forward.1} parent=0 // pred_check_branch
    %37 = sbr.rel (0) target = $region17
  $region16: #{decoder_forward.1} parent=0 // pred_region
    _
  $region17: #{decoder_forward.1} parent=0 // pred_fallthru
    _
  // Predicated region
  $region18: #{decoder_forward.1} parent=0 // pred_check
    _
  $region19: #{decoder_forward.1} parent=0 // pred_check_branch
    %39 = sbr.rel (0) target = $region21
  $region20: #{decoder_forward.1} parent=0 // pred_region
    _
  $region21: #{decoder_forward.1} parent=0 // pred_fallthru
    _
  // Predicated region
  $region22: #{decoder_forward.1} parent=0 // pred_check
    _
  $region23: #{decoder_forward.1} parent=0 // pred_check_branch
    %41 = sbr.rel (0) target = $region25
  $region24: #{decoder_forward.1} parent=0 // pred_region
    _
  $region25: #{decoder_forward.1} parent=0 // pred_fallthru
    _
  // Predicated region
  $region26: #{decoder_forward.1} parent=0 // pred_check
    _
  $region27: #{decoder_forward.1} parent=0 // pred_check_branch
    %43 = sbr.rel (0) target = $region29
  $region28: #{decoder_forward.1} parent=0 // pred_region
    _
  $region29: #{decoder_forward.1} parent=0 // pred_fallthru
    _
  // Predicated region
  $region30: #{decoder_forward.1} parent=0 // pred_check
    _
  $region31: #{decoder_forward.1} parent=0 // pred_check_branch
    %45 = sbr.rel (0) target = $region33
  $region32: #{decoder_forward.1} parent=0 // pred_region
    _
  $region33: #{decoder_forward.1} parent=0 // pred_fallthru
    _
  // Predicated region
  $region34: #{decoder_forward.1} parent=0 // pred_check
    _
  $region35: #{decoder_forward.1} parent=0 // pred_check_branch
    %47 = sbr.rel (0) target = $region37
  $region36: #{decoder_forward.1} parent=0 // pred_region
    _
  $region37: #{decoder_forward.1} parent=0 // pred_fallthru
    _
  // Predicated region
  $region38: #{decoder_forward.1} parent=0 // pred_check
    _
  $region39: #{decoder_forward.1} parent=0 // pred_check_branch
    %49 = sbr.rel (0) target = $region41
  $region40: #{decoder_forward.1} parent=0 // pred_region
    _
  $region41: #{decoder_forward.1} parent=0 // pred_fallthru
    _
  // Predicated region
  $region42: #{decoder_forward.1} parent=0 // pred_check
    _
  $region43: #{decoder_forward.1} parent=0 // pred_check_branch
    %51 = sbr.rel (0) target = $region45
  $region44: #{decoder_forward.1} parent=0 // pred_region
    _
  $region45: #{decoder_forward.1} parent=0 // pred_fallthru
    _
  // Predicated region
  $region46: #{decoder_forward.1} parent=0 // pred_check
    _
  $region47: #{decoder_forward.1} parent=0 // pred_check_branch
    %53 = sbr.rel (0) target = $region49
  $region48: #{decoder_forward.1} parent=0 // pred_region
    _
  $region49: #{decoder_forward.1} parent=0 // pred_fallthru
    _
  // Predicated region
  $region50: #{decoder_forward.1} parent=0 // pred_check
    _
  $region51: #{decoder_forward.1} parent=0 // pred_check_branch
    %55 = sbr.rel (0) target = $region53
  $region52: #{decoder_forward.1} parent=0 // pred_region
    _
  $region53: #{decoder_forward.1} parent=0 // pred_fallthru
    _
  // Predicated region
  $region54: #{decoder_forward.1} parent=0 // pred_check
    _
  $region55: #{decoder_forward.1} parent=0 // pred_check_branch
    %57 = sbr.rel (0) target = $region57
  $region56: #{decoder_forward.1} parent=0 // pred_region
    _
  $region57: #{decoder_forward.1} parent=0 // pred_fallthru
    _
  // Predicated region
  $region58: #{decoder_forward.1} parent=0 // pred_check
    _
  $region59: #{decoder_forward.1} parent=0 // pred_check_branch
    %59 = sbr.rel (0) target = $region61
  $region60: #{decoder_forward.1} parent=0 // pred_region
    _
  $region61: #{decoder_forward.1} parent=0 // pred_fallthru
    _
  // Predicated region
  $region62: #{decoder_forward.1} parent=0 // pred_check
    _
  $region63: #{decoder_forward.1} parent=0 // pred_check_branch
    %61 = sbr.rel (0) target = $region65
  $region64: #{decoder_forward.1} parent=0 // pred_region
    _
  $region65: #{decoder_forward.1} parent=0 // pred_fallthru
    _
  // Predicated region
  $region66: #{decoder_forward.1} parent=0 // pred_check
    _
  $region67: #{decoder_forward.1} parent=0 // pred_check_branch
    %63 = sbr.rel (0) target = $region69
  $region68: #{decoder_forward.1} parent=0 // pred_region
    _
  $region69: #{decoder_forward.1} parent=0 // pred_fallthru
    _
  // Predicated region
  $region70: #{decoder_forward.1} parent=0 // pred_check
    _
  $region71: #{decoder_forward.1} parent=0 // pred_check_branch
    %65 = sbr.rel (0) target = $region73
  $region72: #{decoder_forward.1} parent=0 // pred_region
    _
  $region73: #{decoder_forward.1} parent=0 // pred_fallthru
    _
  // Predicated region
  $region74: #{decoder_forward.1} parent=0 // pred_check
    _
  $region75: #{decoder_forward.1} parent=0 // pred_check_branch
    %67 = sbr.rel (0) target = $region77
  $region76: #{decoder_forward.1} parent=0 // pred_region
    _
  $region77: #{decoder_forward.1} parent=0 // pred_fallthru
    _
  // Predicated region
  $region78: #{decoder_forward.1} parent=0 // pred_check
    _
  $region79: #{decoder_forward.1} parent=0 // pred_check_branch
    %69 = sbr.rel (0) target = $region81
  $region80: #{decoder_forward.1} parent=0 // pred_region
    _
  $region81: #{decoder_forward.1} parent=0 // pred_fallthru
    _
  // Predicated region
  $region82: #{decoder_forward.1} parent=0 // pred_check
    _
  $region83: #{decoder_forward.1} parent=0 // pred_check_branch
    %71 = sbr.rel (0) target = $region85
  $region84: #{decoder_forward.1} parent=0 // pred_region
    _
  $region85: #{decoder_forward.1} parent=0 // pred_fallthru
    _
  // Predicated region
  $region86: #{decoder_forward.1} parent=0 // pred_check
    _
  $region87: #{decoder_forward.1} parent=0 // pred_check_branch
    %73 = sbr.rel (0) target = $region89
  $region88: #{decoder_forward.1} parent=0 // pred_region
    _
  $region89: #{decoder_forward.1} parent=0 // pred_fallthru
    _
  // Predicated region
  $region90: #{decoder_forward.1} parent=0 // pred_check
    _
  $region91: #{decoder_forward.1} parent=0 // pred_check_branch
    %75 = sbr.rel (0) target = $region93
  $region92: #{decoder_forward.1} parent=0 // pred_region
    _
  $region93: #{decoder_forward.1} parent=0 // pred_fallthru
    _
  %v76 = vld [vmem:[%s0] sm:$0xff]
  %v77 = vld [vmem:[%s0 + $0x8] sm:$0xff]
  %v78 = vld [vmem:[%s0 + $0x10] sm:$0xff]
  %v79 = vld [vmem:[%s1] sm:$0xff]
  %v80 = vld [vmem:[%s1 + $0x8] sm:$0xff]
  %v81 = vld [vmem:[%s1 + $0x10] sm:$0xff]
  %v82 = vld [vmem:[%s1 + $0x18] sm:$0xff]
  %v83 = vld [vmem:[%s1 + $0x20] sm:$0xff]
  %v84 = vld [vmem:[%s1 + $0x28] sm:$0xff]
  %v85 = vld [vmem:[%s1 + $0x30] sm:$0xff]
  %v86 = vld [vmem:[%s1 + $0x38] sm:$0xff]
  %v87 = vld [vmem:[%s1 + $0x40] sm:$0xff]
  %v88 = vld [vmem:[%s1 + $0x48] sm:$0xff]
  %v89 = vld [vmem:[%s1 + $0x50] sm:$0xff]
  %v90 = vld [vmem:[%s1 + $0x58] sm:$0xff]
  %v91 = vld [vmem:[%s1 + $0x60] sm:$0xff]
  %v92 = vld [vmem:[%s1 + $0x68] sm:$0xff]
  %v93 = vld [vmem:[%s1 + $0x70] sm:$0xff]
  %v94 = vld [vmem:[%s1 + $0x78] sm:$0xff]
  %v95 = vld [vmem:[%s1 + $0x80] sm:$0xff]
  %v96 = vld [vmem:[%s1 + $0x88] sm:$0xff]
  %v97 = vld [vmem:[%s1 + $0x90] sm:$0xff]
  %v98 = vld [vmem:[%s1 + $0x98] sm:$0xff]
  %v99 = vld [vmem:[%s1 + $0xa0] sm:$0xff]
  %v100 = vld [vmem:[%s1 + $0xa8] sm:$0xff]
  %v101 = vld [vmem:[%s1 + $0xb0] sm:$0xff]
  %v102 = vld [vmem:[%s1 + $0xb8] sm:$0xff]
  %v103 = vld [vmem:[%s1 + $0xc0] sm:$0xff]
  %v104 = vld [vmem:[%s1 + $0xc8] sm:$0xff]
  %v105 = vld [vmem:[%s1 + $0xd0] sm:$0xff]
  %v106 = vld [vmem:[%s1 + $0xd8] sm:$0xff]
  %v107 = vld [vmem:[%s1 + $0xe0] sm:$0xff]
  %v108 = vld [vmem:[%s1 + $0xe8] sm:$0xff]
  %v109 = vld [vmem:[%s1 + $0xf0] sm:$0xff]
  %v110 = vld [vmem:[%s1 + $0xf8] sm:$0xff]
  %v111 = vld [vmem:[%s1 + $0x100] sm:$0xff]
  %v112 = vld [vmem:[%s1 + $0x108] sm:$0xff]
  %v113 = vld [vmem:[%s1 + $0x110] sm:$0xff]
  %v114 = vld [vmem:[%s1 + $0x118] sm:$0xff]
  %v115 = vld [vmem:[%s1 + $0x120] sm:$0xff]
  %v116 = vld [vmem:[%s1 + $0x128] sm:$0xff]
  %v117 = vld [vmem:[%s1 + $0x130] sm:$0xff]
  %v118 = vld [vmem:[%s1 + $0x138] sm:$0xff]
  %vm119 = vcmask 523264
  %v121 = vsel %vm119, %v76, 0
  %v124 = vsel %vm119, %v77, 0
  %v127 = vsel %vm119, %v78, 0
  %129 = vmatprep.subr.mxu0 0.0
  %130 = vmatpush1.msra.mxu0 0.0
  %131 = vmatprep.subr.mxu0 0.0
  %132 = vmatpush1.msra.mxu0 0.0
  %133 = vmatprep.subr.mxu0 0.0
  %134 = vmatpush1.msra.mxu0 0.0
  %135 = vmatprep.subr.mxu0 0.0
  %136 = vmatpush1.msra.mxu0 0.0
  %137 = vmatprep.subr.mxu0 0.0
  %138 = vmatpush1.msra.mxu0 0.0
  %139 = vmatprep.subr.mxu0 0.0
  %140 = vmatpush1.msra.mxu0 0.0
  %141 = vmatprep.subr.mxu0 0.0
  %142 = vmatpush1.msra.mxu0 0.0
  %143 = vmatprep.subr.mxu0 0.0
  %144 = vmatpush1.msra.mxu0 0.0
  %145 = vmatprep.subr.mxu0 %v115
  %146 = vmatpush1.msra.mxu0 %v114
  %147 = vmatprep.subr.mxu0 %v110
  %148 = vmatpush1.msra.mxu0 %v109
  %149 = vmatprep.subr.mxu0 %v105
  %150 = vmatpush1.msra.mxu0 %v104
  %151 = vmatprep.subr.mxu0 %v100
  %152 = vmatpush1.msra.mxu0 %v99
  %153 = vmatprep.subr.mxu0 %v95
  %154 = vmatpush1.msra.mxu0 %v94
  %155 = vmatprep.subr.mxu0 %v90
  %156 = vmatpush1.msra.mxu0 %v89
  %157 = vmatprep.subr.mxu0 %v85
  %158 = vmatpush1.msra.mxu0 %v84
  %159 = vmatprep.subr.mxu0 %v80
  %160 = vmatpush1.msra.mxu0 %v79
  %161 = vmatprep.subr.mxu0 0.0
  %162 = vmatpush2.msra.mxu0 0.0
  %163 = vmatprep.subr.mxu0 0.0
  %164 = vmatpush2.msra.mxu0 0.0
  %165 = vmatprep.subr.mxu0 0.0
  %166 = vmatpush2.msra.mxu0 0.0
  %167 = vmatprep.subr.mxu0 0.0
  %168 = vmatpush2.msra.mxu0 0.0
  %169 = vmatprep.subr.mxu0 0.0
  %170 = vmatpush2.msra.mxu0 0.0
  %171 = vmatprep.subr.mxu0 0.0
  %172 = vmatpush2.msra.mxu0 0.0
  %173 = vmatprep.subr.mxu0 0.0
  %174 = vmatpush2.msra.mxu0 0.0
  %175 = vmatprep.subr.mxu0 0.0
  %176 = vmatpush2.msra.mxu0 0.0
  %177 = vmatprep.subr.mxu0 0.0
  %178 = vmatpush2.msra.mxu0 0.0
  %179 = vmatprep.subr.mxu0 0.0
  %180 = vmatpush2.msra.mxu0 0.0
  %181 = vmatprep.subr.mxu0 0.0
  %182 = vmatpush2.msra.mxu0 0.0
  %183 = vmatprep.subr.mxu0 0.0
  %184 = vmatpush2.msra.mxu0 0.0
  %185 = vmatprep.subr.mxu0 0.0
  %186 = vmatpush2.msra.mxu0 0.0
  %187 = vmatprep.subr.mxu0 0.0
  %188 = vmatpush2.msra.mxu0 0.0
  %189 = vmatprep.subr.mxu0 0.0
  %190 = vmatpush2.msra.mxu0 0.0
  %191 = vmatprep.subr.mxu0 0.0
  %192 = vmatpush2.msra.mxu0 0.0
  %193 = vmatprep.mubr.f32.mxu0 0.0
  %194 = vmatmul.mubr.f32.gmra.mxu0 %v121
  %v195 = vpop.f32.mrf.mxu0
  %v196 = vadd.f32 0.0, %v195
  %v197 = vpop.f32.mrf.mxu0
  %v198 = vadd.f32 0.0, %v197
  %199 = vmatprep.mubr.f32.mxu0 0.0
  %200 = vmatmul.mubr.f32.gmra.mxu0 %v124
  %v201 = vpop.f32.mrf.mxu0
  %v202 = vadd.f32 0.0, %v201
  %v203 = vpop.f32.mrf.mxu0
  %v204 = vadd.f32 0.0, %v203
  %205 = vmatprep.mubr.f32.mxu0 0.0
  %206 = vmatmul.mubr.f32.gmra.mxu0 %v127
  %v207 = vpop.f32.mrf.mxu0
  %v208 = vadd.f32 0.0, %v207
  %v209 = vpop.f32.mrf.mxu0
  %v210 = vadd.f32 0.0, %v209
  %211 = vdwg.mxu0
  %212 = vmatprep.subr.mxu0 0.0
  %213 = vmatpush1.msra.mxu0 0.0
  %214 = vmatprep.subr.mxu0 0.0
  %215 = vmatpush1.msra.mxu0 0.0
  %216 = vmatprep.subr.mxu0 0.0
  %217 = vmatpush1.msra.mxu0 0.0
  %218 = vmatprep.subr.mxu0 0.0
  %219 = vmatpush1.msra.mxu0 0.0
  %220 = vmatprep.subr.mxu0 0.0
  %221 = vmatpush1.msra.mxu0 0.0
  %222 = vmatprep.subr.mxu0 0.0
  %223 = vmatpush1.msra.mxu0 0.0
  %224 = vmatprep.subr.mxu0 0.0
  %225 = vmatpush1.msra.mxu0 0.0
  %226 = vmatprep.subr.mxu0 0.0
  %227 = vmatpush1.msra.mxu0 0.0
  %228 = vmatprep.subr.mxu0 %v117
  %229 = vmatpush1.msra.mxu0 %v116
  %230 = vmatprep.subr.mxu0 %v112
  %231 = vmatpush1.msra.mxu0 %v111
  %232 = vmatprep.subr.mxu0 %v107
  %233 = vmatpush1.msra.mxu0 %v106
  %234 = vmatprep.subr.mxu0 %v102
  %235 = vmatpush1.msra.mxu0 %v101
  %236 = vmatprep.subr.mxu0 %v97
  %237 = vmatpush1.msra.mxu0 %v96
  %238 = vmatprep.subr.mxu0 %v92
  %239 = vmatpush1.msra.mxu0 %v91
  %240 = vmatprep.subr.mxu0 %v87
  %241 = vmatpush1.msra.mxu0 %v86
  %242 = vmatprep.subr.mxu0 %v82
  %243 = vmatpush1.msra.mxu0 %v81
  %244 = vmatprep.subr.mxu0 0.0
  %245 = vmatpush2.msra.mxu0 0.0
  %246 = vmatprep.subr.mxu0 0.0
  %247 = vmatpush2.msra.mxu0 0.0
  %248 = vmatprep.subr.mxu0 0.0
  %249 = vmatpush2.msra.mxu0 0.0
  %250 = vmatprep.subr.mxu0 0.0
  %251 = vmatpush2.msra.mxu0 0.0
  %252 = vmatprep.subr.mxu0 0.0
  %253 = vmatpush2.msra.mxu0 0.0
  %254 = vmatprep.subr.mxu0 0.0
  %255 = vmatpush2.msra.mxu0 0.0
  %256 = vmatprep.subr.mxu0 0.0
  %257 = vmatpush2.msra.mxu0 0.0
  %258 = vmatprep.subr.mxu0 0.0
  %259 = vmatpush2.msra.mxu0 0.0
  %260 = vmatprep.subr.mxu0 0.0
  %261 = vmatpush2.msra.mxu0 0.0
  %262 = vmatprep.subr.mxu0 0.0
  %263 = vmatpush2.msra.mxu0 0.0
  %264 = vmatprep.subr.mxu0 0.0
  %265 = vmatpush2.msra.mxu0 0.0
  %266 = vmatprep.subr.mxu0 0.0
  %267 = vmatpush2.msra.mxu0 0.0
  %268 = vmatprep.subr.mxu0 0.0
  %269 = vmatpush2.msra.mxu0 0.0
  %270 = vmatprep.subr.mxu0 0.0
  %271 = vmatpush2.msra.mxu0 0.0
  %272 = vmatprep.subr.mxu0 0.0
  %273 = vmatpush2.msra.mxu0 0.0
  %274 = vmatprep.subr.mxu0 0.0
  %275 = vmatpush2.msra.mxu0 0.0
  %276 = vmatprep.mubr.f32.mxu0 0.0
  %277 = vmatmul.mubr.f32.gmra.mxu0 %v121
  %v278 = vpop.f32.mrf.mxu0
  %v279 = vadd.f32 0.0, %v278
  %v280 = vpop.f32.mrf.mxu0
  %v281 = vadd.f32 0.0, %v280
  %282 = vmatprep.mubr.f32.mxu0 0.0
  %283 = vmatmul.mubr.f32.gmra.mxu0 %v124
  %v284 = vpop.f32.mrf.mxu0
  %v285 = vadd.f32 0.0, %v284
  %v286 = vpop.f32.mrf.mxu0
  %v287 = vadd.f32 0.0, %v286
  %288 = vmatprep.mubr.f32.mxu0 0.0
  %289 = vmatmul.mubr.f32.gmra.mxu0 %v127
  %v290 = vpop.f32.mrf.mxu0
  %v291 = vadd.f32 0.0, %v290
  %v292 = vpop.f32.mrf.mxu0
  %v293 = vadd.f32 0.0, %v292
  %294 = vdwg.mxu0
  %295 = vmatprep.subr.mxu0 0.0
  %296 = vmatpush1.msra.mxu0 0.0
  %297 = vmatprep.subr.mxu0 0.0
  %298 = vmatpush1.msra.mxu0 0.0
  %299 = vmatprep.subr.mxu0 0.0
  %300 = vmatpush1.msra.mxu0 0.0
  %301 = vmatprep.subr.mxu0 0.0
  %302 = vmatpush1.msra.mxu0 0.0
  %303 = vmatprep.subr.mxu0 0.0
  %304 = vmatpush1.msra.mxu0 0.0
  %305 = vmatprep.subr.mxu0 0.0
  %306 = vmatpush1.msra.mxu0 0.0
  %307 = vmatprep.subr.mxu0 0.0
  %308 = vmatpush1.msra.mxu0 0.0
  %309 = vmatprep.subr.mxu0 0.0
  %310 = vmatpush1.msra.mxu0 0.0
  %311 = vmatprep.subr.mxu0 0.0
  %312 = vmatpush1.msra.mxu0 %v118
  %313 = vmatprep.subr.mxu0 0.0
  %314 = vmatpush1.msra.mxu0 %v113
  %315 = vmatprep.subr.mxu0 0.0
  %316 = vmatpush1.msra.mxu0 %v108
  %317 = vmatprep.subr.mxu0 0.0
  %318 = vmatpush1.msra.mxu0 %v103
  %319 = vmatprep.subr.mxu0 0.0
  %320 = vmatpush1.msra.mxu0 %v98
  %321 = vmatprep.subr.mxu0 0.0
  %322 = vmatpush1.msra.mxu0 %v93
  %323 = vmatprep.subr.mxu0 0.0
  %324 = vmatpush1.msra.mxu0 %v88
  %325 = vmatprep.subr.mxu0 0.0
  %326 = vmatpush1.msra.mxu0 %v83
  %327 = vmatprep.subr.mxu0 0.0
  %328 = vmatpush2.msra.mxu0 0.0
  %329 = vmatprep.subr.mxu0 0.0
  %330 = vmatpush2.msra.mxu0 0.0
  %331 = vmatprep.subr.mxu0 0.0
  %332 = vmatpush2.msra.mxu0 0.0
  %333 = vmatprep.subr.mxu0 0.0
  %334 = vmatpush2.msra.mxu0 0.0
  %335 = vmatprep.subr.mxu0 0.0
  %336 = vmatpush2.msra.mxu0 0.0
  %337 = vmatprep.subr.mxu0 0.0
  %338 = vmatpush2.msra.mxu0 0.0
  %339 = vmatprep.subr.mxu0 0.0
  %340 = vmatpush2.msra.mxu0 0.0
  %341 = vmatprep.subr.mxu0 0.0
  %342 = vmatpush2.msra.mxu0 0.0
  %343 = vmatprep.subr.mxu0 0.0
  %344 = vmatpush2.msra.mxu0 0.0
  %345 = vmatprep.subr.mxu0 0.0
  %346 = vmatpush2.msra.mxu0 0.0
  %347 = vmatprep.subr.mxu0 0.0
  %348 = vmatpush2.msra.mxu0 0.0
  %349 = vmatprep.subr.mxu0 0.0
  %350 = vmatpush2.msra.mxu0 0.0
  %351 = vmatprep.subr.mxu0 0.0
  %352 = vmatpush2.msra.mxu0 0.0
  %353 = vmatprep.subr.mxu0 0.0
  %354 = vmatpush2.msra.mxu0 0.0
  %355 = vmatprep.subr.mxu0 0.0
  %356 = vmatpush2.msra.mxu0 0.0
  %357 = vmatprep.subr.mxu0 0.0
  %358 = vmatpush2.msra.mxu0 0.0
  %359 = vmatprep.mubr.f32.mxu0 0.0
  %360 = vmatmul.mubr.f32.gmra.mxu0 %v121
  %v361 = vpop.f32.mrf.mxu0
  %v362 = vadd.f32 0.0, %v361
  %v363 = vpop.f32.mrf.mxu0
  %364 = vmatprep.mubr.f32.mxu0 0.0
  %365 = vmatmul.mubr.f32.gmra.mxu0 %v124
  %v366 = vpop.f32.mrf.mxu0
  %v367 = vadd.f32 0.0, %v366
  %v368 = vpop.f32.mrf.mxu0
  %369 = vmatprep.mubr.f32.mxu0 0.0
  %370 = vmatmul.mubr.f32.gmra.mxu0 %v127
  %v371 = vpop.f32.mrf.mxu0
  %v372 = vadd.f32 0.0, %v371
  %v373 = vpop.f32.mrf.mxu0
  %374 = vdwg.mxu0
  %v375 = vld [vmem:[%s2] sm:$0xff]
  %v376 = vld [vmem:[%s2 + $0x8] sm:$0xff]
  %v377 = vld [vmem:[%s2 + $0x10] sm:$0xff]
  %v378 = vld [vmem:[%s2 + $0x18] sm:$0xff]
  %v379 = vld [vmem:[%s2 + $0x20] sm:$0xff]
  %v380 = vld [vmem:[%s2 + $0x28] sm:$0xff]
  %v381 = vld [vmem:[%s2 + $0x30] sm:$0xff]
  %v382 = vld [vmem:[%s2 + $0x38] sm:$0xff]
  %v383 = vld [vmem:[%s2 + $0x40] sm:$0xff]
  %v384 = vld [vmem:[%s2 + $0x48] sm:$0xff]
  %v385 = vld [vmem:[%s2 + $0x50] sm:$0xff]
  %v386 = vld [vmem:[%s2 + $0x58] sm:$0xff]
  %v387 = vld [vmem:[%s2 + $0x60] sm:$0xff]
  %v388 = vld [vmem:[%s2 + $0x68] sm:$0xff]
  %v389 = vld [vmem:[%s2 + $0x70] sm:$0xff]
  %v390 = vmul.f32 %v196, %v375
  %v391 = vmul.f32 %v198, %v376
  %v392 = vmul.f32 %v279, %v377
  %v393 = vmul.f32 %v281, %v378
  %v394 = vmul.f32 %v362, %v379
  %v395 = vmul.f32 %v202, %v380
  %v396 = vmul.f32 %v204, %v381
  %v397 = vmul.f32 %v285, %v382
  %v398 = vmul.f32 %v287, %v383
  %v399 = vmul.f32 %v367, %v384
  %v400 = vmul.f32 %v208, %v385
  %v401 = vmul.f32 %v210, %v386
  %v402 = vmul.f32 %v291, %v387
  %v403 = vmul.f32 %v293, %v388
  %v404 = vmul.f32 %v372, %v389
  %v405 = vld [vmem:[%s3] sm:$0xff]
  %v406 = vld [vmem:[%s3 + $0x8] sm:$0xff]
  %v407 = vld [vmem:[%s3 + $0x10] sm:$0xff]
  %v408 = vld [vmem:[%s3 + $0x18] sm:$0xff]
  %v409 = vld [vmem:[%s3 + $0x20] sm:$0xff]
  %v410 = vld [vmem:[%s3 + $0x28] sm:$0xff]
  %v411 = vld [vmem:[%s3 + $0x30] sm:$0xff]
  %v412 = vld [vmem:[%s3 + $0x38] sm:$0xff]
  %v413 = vld [vmem:[%s3 + $0x40] sm:$0xff]
  %v414 = vld [vmem:[%s3 + $0x48] sm:$0xff]
  %v415 = vld [vmem:[%s3 + $0x50] sm:$0xff]
  %v416 = vld [vmem:[%s3 + $0x58] sm:$0xff]
  %v417 = vld [vmem:[%s3 + $0x60] sm:$0xff]
  %v418 = vld [vmem:[%s3 + $0x68] sm:$0xff]
  %v419 = vld [vmem:[%s3 + $0x70] sm:$0xff]
  %v420 = vld [vmem:[%s3 + $0x78] sm:$0xff]
  %v421 = vld [vmem:[%s3 + $0x80] sm:$0xff]
  %v422 = vld [vmem:[%s3 + $0x88] sm:$0xff]
  %v423 = vld [vmem:[%s3 + $0x90] sm:$0xff]
  %v424 = vld [vmem:[%s3 + $0x98] sm:$0xff]
  %v425 = vld [vmem:[%s3 + $0xa0] sm:$0xff]
  %v426 = vld [vmem:[%s3 + $0xa8] sm:$0xff]
  %v427 = vld [vmem:[%s3 + $0xb0] sm:$0xff]
  %v428 = vld [vmem:[%s3 + $0xb8] sm:$0xff]
  %v429 = vld [vmem:[%s3 + $0xc0] sm:$0xff]
  %v430 = vld [vmem:[%s3 + $0xc8] sm:$0xff]
  %v431 = vld [vmem:[%s3 + $0xd0] sm:$0xff]
  %v432 = vld [vmem:[%s3 + $0xd8] sm:$0xff]
  %v433 = vld [vmem:[%s3 + $0xe0] sm:$0xff]
  %v434 = vld [vmem:[%s3 + $0xe8] sm:$0xff]
  %v435 = vld [vmem:[%s3 + $0xf0] sm:$0xff]
  %v436 = vld [vmem:[%s3 + $0xf8] sm:$0xff]
  %v437 = vld [vmem:[%s3 + $0x100] sm:$0xff]
  %v438 = vld [vmem:[%s3 + $0x108] sm:$0xff]
  %v439 = vld [vmem:[%s3 + $0x110] sm:$0xff]
  %v440 = vld [vmem:[%s3 + $0x118] sm:$0xff]
  %v441 = vld [vmem:[%s3 + $0x120] sm:$0xff]
  %v442 = vld [vmem:[%s3 + $0x128] sm:$0xff]
  %v443 = vld [vmem:[%s3 + $0x130] sm:$0xff]
  %v444 = vld [vmem:[%s3 + $0x138] sm:$0xff]
  %v445 = vld [vmem:[%s3 + $0x140] sm:$0xff]
  %v446 = vld [vmem:[%s3 + $0x148] sm:$0xff]
  %v447 = vld [vmem:[%s3 + $0x150] sm:$0xff]
  %v448 = vld [vmem:[%s3 + $0x158] sm:$0xff]
  %v449 = vld [vmem:[%s3 + $0x160] sm:$0xff]
  %v450 = vld [vmem:[%s3 + $0x168] sm:$0xff]
  %v451 = vld [vmem:[%s3 + $0x170] sm:$0xff]
  %v452 = vld [vmem:[%s3 + $0x178] sm:$0xff]
  %v453 = vld [vmem:[%s3 + $0x180] sm:$0xff]
  %v454 = vld [vmem:[%s3 + $0x188] sm:$0xff]
  %v455 = vld [vmem:[%s3 + $0x190] sm:$0xff]
  %v456 = vld [vmem:[%s3 + $0x198] sm:$0xff]
  %v457 = vld [vmem:[%s3 + $0x1a0] sm:$0xff]
  %v458 = vld [vmem:[%s3 + $0x1a8] sm:$0xff]
  %v459 = vld [vmem:[%s3 + $0x1b0] sm:$0xff]
  %v460 = vld [vmem:[%s3 + $0x1b8] sm:$0xff]
  %v461 = vld [vmem:[%s3 + $0x1c0] sm:$0xff]
  %v462 = vld [vmem:[%s3 + $0x1c8] sm:$0xff]
  %v463 = vld [vmem:[%s3 + $0x1d0] sm:$0xff]
  %v464 = vld [vmem:[%s3 + $0x1d8] sm:$0xff]
  %v465 = vld [vmem:[%s3 + $0x1e0] sm:$0xff]
  %v466 = vld [vmem:[%s3 + $0x1e8] sm:$0xff]
  %v467 = vld [vmem:[%s3 + $0x1f0] sm:$0xff]
  %v468 = vld [vmem:[%s3 + $0x1f8] sm:$0xff]
  %v469 = vld [vmem:[%s3 + $0x200] sm:$0xff]
  %v470 = vld [vmem:[%s3 + $0x208] sm:$0xff]
  %v471 = vld [vmem:[%s3 + $0x210] sm:$0xff]
  %v472 = vld [vmem:[%s3 + $0x218] sm:$0xff]
  %v473 = vld [vmem:[%s3 + $0x220] sm:$0xff]
  %v474 = vld [vmem:[%s3 + $0x228] sm:$0xff]
  %v475 = vld [vmem:[%s3 + $0x230] sm:$0xff]
  %v476 = vld [vmem:[%s3 + $0x238] sm:$0xff]
  %v477 = vld [vmem:[%s3 + $0x240] sm:$0xff]
  %v478 = vld [vmem:[%s3 + $0x248] sm:$0xf]
  %v479 = vld [vmem:[%s4] sm:$0xff]
  %v480 = vld [vmem:[%s4 + $0x8] sm:$0xff]
  %v481 = vld [vmem:[%s4 + $0x10] sm:$0xff]
  %vm482 = vcmask 621568
  %v484 = vsel %vm482, %v394, 0
  %v487 = vsel %vm482, %v399, 0
  %v490 = vsel %vm482, %v404, 0
  %vm492 = vcmask 1043456
  %v494 = vsel %vm492, %v478, 0
  %496 = vmatprep.subr.mxu0 0.0
  %497 = vmatpush1.msra.mxu0 %v420
  %498 = vmatprep.subr.mxu0 0.0
  %499 = vmatpush1.msra.mxu0 %v419
  %500 = vmatprep.subr.mxu0 0.0
  %501 = vmatpush1.msra.mxu0 %v418
  %502 = vmatprep.subr.mxu0 0.0
  %503 = vmatpush1.msra.mxu0 %v417
  %504 = vmatprep.subr.mxu0 0.0
  %505 = vmatpush1.msra.mxu0 %v416
  %506 = vmatprep.subr.mxu0 0.0
  %507 = vmatpush1.msra.mxu0 %v415
  %508 = vmatprep.subr.mxu0 0.0
  %509 = vmatpush1.msra.mxu0 %v414
  %510 = vmatprep.subr.mxu0 0.0
  %511 = vmatpush1.msra.mxu0 %v413
  %512 = vmatprep.subr.mxu0 0.0
  %513 = vmatpush1.msra.mxu0 %v412
  %514 = vmatprep.subr.mxu0 0.0
  %515 = vmatpush1.msra.mxu0 %v411
  %516 = vmatprep.subr.mxu0 0.0
  %517 = vmatpush1.msra.mxu0 %v410
  %518 = vmatprep.subr.mxu0 0.0
  %519 = vmatpush1.msra.mxu0 %v409
  %520 = vmatprep.subr.mxu0 0.0
  %521 = vmatpush1.msra.mxu0 %v408
  %522 = vmatprep.subr.mxu0 0.0
  %523 = vmatpush1.msra.mxu0 %v407
  %524 = vmatprep.subr.mxu0 0.0
  %525 = vmatpush1.msra.mxu0 %v406
  %526 = vmatprep.subr.mxu0 0.0
  %527 = vmatpush1.msra.mxu0 %v405
  %528 = vmatprep.subr.mxu0 0.0
  %529 = vmatpush2.msra.mxu0 %v436
  %530 = vmatprep.subr.mxu0 0.0
  %531 = vmatpush2.msra.mxu0 %v435
  %532 = vmatprep.subr.mxu0 0.0
  %533 = vmatpush2.msra.mxu0 %v434
  %534 = vmatprep.subr.mxu0 0.0
  %535 = vmatpush2.msra.mxu0 %v433
  %536 = vmatprep.subr.mxu0 0.0
  %537 = vmatpush2.msra.mxu0 %v432
  %538 = vmatprep.subr.mxu0 0.0
  %539 = vmatpush2.msra.mxu0 %v431
  %540 = vmatprep.subr.mxu0 0.0
  %541 = vmatpush2.msra.mxu0 %v430
  %542 = vmatprep.subr.mxu0 0.0
  %543 = vmatpush2.msra.mxu0 %v429
  %544 = vmatprep.subr.mxu0 0.0
  %545 = vmatpush2.msra.mxu0 %v428
  %546 = vmatprep.subr.mxu0 0.0
  %547 = vmatpush2.msra.mxu0 %v427
  %548 = vmatprep.subr.mxu0 0.0
  %549 = vmatpush2.msra.mxu0 %v426
  %550 = vmatprep.subr.mxu0 0.0
  %551 = vmatpush2.msra.mxu0 %v425
  %552 = vmatprep.subr.mxu0 0.0
  %553 = vmatpush2.msra.mxu0 %v424
  %554 = vmatprep.subr.mxu0 0.0
  %555 = vmatpush2.msra.mxu0 %v423
  %556 = vmatprep.subr.mxu0 0.0
  %557 = vmatpush2.msra.mxu0 %v422
  %558 = vmatprep.subr.mxu0 0.0
  %559 = vmatpush2.msra.mxu0 %v421
  %560 = vmatprep.mubr.f32.mxu0 %v391
  %561 = vmatmul.mubr.f32.gmra.mxu0 %v390
  %v562 = vpop.f32.mrf.mxu0
  %v563 = vadd.f32 %v479, %v562
  %v564 = vpop.f32.mrf.mxu0
  %565 = vmatprep.mubr.f32.mxu0 %v396
  %566 = vmatmul.mubr.f32.gmra.mxu0 %v395
  %v567 = vpop.f32.mrf.mxu0
  %v568 = vadd.f32 %v480, %v567
  %v569 = vpop.f32.mrf.mxu0
  %570 = vmatprep.mubr.f32.mxu0 %v401
  %571 = vmatmul.mubr.f32.gmra.mxu0 %v400
  %v572 = vpop.f32.mrf.mxu0
  %v573 = vadd.f32 %v481, %v572
  %v574 = vpop.f32.mrf.mxu0
  %575 = vdwg.mxu0
  %576 = vmatprep.subr.mxu0 0.0
  %577 = vmatpush1.msra.mxu0 %v452
  %578 = vmatprep.subr.mxu0 0.0
  %579 = vmatpush1.msra.mxu0 %v451
  %580 = vmatprep.subr.mxu0 0.0
  %581 = vmatpush1.msra.mxu0 %v450
  %582 = vmatprep.subr.mxu0 0.0
  %583 = vmatpush1.msra.mxu0 %v449
  %584 = vmatprep.subr.mxu0 0.0
  %585 = vmatpush1.msra.mxu0 %v448
  %586 = vmatprep.subr.mxu0 0.0
  %587 = vmatpush1.msra.mxu0 %v447
  %588 = vmatprep.subr.mxu0 0.0
  %589 = vmatpush1.msra.mxu0 %v446
  %590 = vmatprep.subr.mxu0 0.0
  %591 = vmatpush1.msra.mxu0 %v445
  %592 = vmatprep.subr.mxu0 0.0
  %593 = vmatpush1.msra.mxu0 %v444
  %594 = vmatprep.subr.mxu0 0.0
  %595 = vmatpush1.msra.mxu0 %v443
  %596 = vmatprep.subr.mxu0 0.0
  %597 = vmatpush1.msra.mxu0 %v442
  %598 = vmatprep.subr.mxu0 0.0
  %599 = vmatpush1.msra.mxu0 %v441
  %600 = vmatprep.subr.mxu0 0.0
  %601 = vmatpush1.msra.mxu0 %v440
  %602 = vmatprep.subr.mxu0 0.0
  %603 = vmatpush1.msra.mxu0 %v439
  %604 = vmatprep.subr.mxu0 0.0
  %605 = vmatpush1.msra.mxu0 %v438
  %606 = vmatprep.subr.mxu0 0.0
  %607 = vmatpush1.msra.mxu0 %v437
  %608 = vmatprep.subr.mxu0 0.0
  %609 = vmatpush2.msra.mxu0 %v468
  %610 = vmatprep.subr.mxu0 0.0
  %611 = vmatpush2.msra.mxu0 %v467
  %612 = vmatprep.subr.mxu0 0.0
  %613 = vmatpush2.msra.mxu0 %v466
  %614 = vmatprep.subr.mxu0 0.0
  %615 = vmatpush2.msra.mxu0 %v465
  %616 = vmatprep.subr.mxu0 0.0
  %617 = vmatpush2.msra.mxu0 %v464
  %618 = vmatprep.subr.mxu0 0.0
  %619 = vmatpush2.msra.mxu0 %v463
  %620 = vmatprep.subr.mxu0 0.0
  %621 = vmatpush2.msra.mxu0 %v462
  %622 = vmatprep.subr.mxu0 0.0
  %623 = vmatpush2.msra.mxu0 %v461
  %624 = vmatprep.subr.mxu0 0.0
  %625 = vmatpush2.msra.mxu0 %v460
  %626 = vmatprep.subr.mxu0 0.0
  %627 = vmatpush2.msra.mxu0 %v459
  %628 = vmatprep.subr.mxu0 0.0
  %629 = vmatpush2.msra.mxu0 %v458
  %630 = vmatprep.subr.mxu0 0.0
  %631 = vmatpush2.msra.mxu0 %v457
  %632 = vmatprep.subr.mxu0 0.0
  %633 = vmatpush2.msra.mxu0 %v456
  %634 = vmatprep.subr.mxu0 0.0
  %635 = vmatpush2.msra.mxu0 %v455
  %636 = vmatprep.subr.mxu0 0.0
  %637 = vmatpush2.msra.mxu0 %v454
  %638 = vmatprep.subr.mxu0 0.0
  %639 = vmatpush2.msra.mxu0 %v453
  %640 = vmatprep.mubr.f32.mxu0 %v393
  %641 = vmatmul.mubr.f32.gmra.mxu0 %v392
  %v642 = vpop.f32.mrf.mxu0
  %v643 = vadd.f32 %v563, %v642
  %v644 = vpop.f32.mrf.mxu0
  %645 = vmatprep.mubr.f32.mxu0 %v398
  %646 = vmatmul.mubr.f32.gmra.mxu0 %v397
  %v647 = vpop.f32.mrf.mxu0
  %v648 = vadd.f32 %v568, %v647
  %v649 = vpop.f32.mrf.mxu0
  %650 = vmatprep.mubr.f32.mxu0 %v403
  %651 = vmatmul.mubr.f32.gmra.mxu0 %v402
  %v652 = vpop.f32.mrf.mxu0
  %v653 = vadd.f32 %v573, %v652
  %v654 = vpop.f32.mrf.mxu0
  %655 = vdwg.mxu0
  %656 = vmatprep.subr.mxu0 0.0
  %657 = vmatpush1.msra.mxu0 0.0
  %658 = vmatprep.subr.mxu0 0.0
  %659 = vmatpush1.msra.mxu0 0.0
  %660 = vmatprep.subr.mxu0 0.0
  %661 = vmatpush1.msra.mxu0 0.0
  %662 = vmatprep.subr.mxu0 0.0
  %663 = vmatpush1.msra.mxu0 0.0
  %664 = vmatprep.subr.mxu0 0.0
  %665 = vmatpush1.msra.mxu0 0.0
  %666 = vmatprep.subr.mxu0 0.0
  %667 = vmatpush1.msra.mxu0 0.0
  %668 = vmatprep.subr.mxu0 0.0
  %669 = vmatpush1.msra.mxu0 %v494
  %670 = vmatprep.subr.mxu0 0.0
  %671 = vmatpush1.msra.mxu0 %v477
  %672 = vmatprep.subr.mxu0 0.0
  %673 = vmatpush1.msra.mxu0 %v476
  %674 = vmatprep.subr.mxu0 0.0
  %675 = vmatpush1.msra.mxu0 %v475
  %676 = vmatprep.subr.mxu0 0.0
  %677 = vmatpush1.msra.mxu0 %v474
  %678 = vmatprep.subr.mxu0 0.0
  %679 = vmatpush1.msra.mxu0 %v473
  %680 = vmatprep.subr.mxu0 0.0
  %681 = vmatpush1.msra.mxu0 %v472
  %682 = vmatprep.subr.mxu0 0.0
  %683 = vmatpush1.msra.mxu0 %v471
  %684 = vmatprep.subr.mxu0 0.0
  %685 = vmatpush1.msra.mxu0 %v470
  %686 = vmatprep.subr.mxu0 0.0
  %687 = vmatpush1.msra.mxu0 %v469
  %688 = vmatprep.subr.mxu0 0.0
  %689 = vmatpush2.msra.mxu0 0.0
  %690 = vmatprep.subr.mxu0 0.0
  %691 = vmatpush2.msra.mxu0 0.0
  %692 = vmatprep.subr.mxu0 0.0
  %693 = vmatpush2.msra.mxu0 0.0
  %694 = vmatprep.subr.mxu0 0.0
  %695 = vmatpush2.msra.mxu0 0.0
  %696 = vmatprep.subr.mxu0 0.0
  %697 = vmatpush2.msra.mxu0 0.0
  %698 = vmatprep.subr.mxu0 0.0
  %699 = vmatpush2.msra.mxu0 0.0
  %700 = vmatprep.subr.mxu0 0.0
  %701 = vmatpush2.msra.mxu0 0.0
  %702 = vmatprep.subr.mxu0 0.0
  %703 = vmatpush2.msra.mxu0 0.0
  %704 = vmatprep.subr.mxu0 0.0
  %705 = vmatpush2.msra.mxu0 0.0
  %706 = vmatprep.subr.mxu0 0.0
  %707 = vmatpush2.msra.mxu0 0.0
  %708 = vmatprep.subr.mxu0 0.0
  %709 = vmatpush2.msra.mxu0 0.0
  %710 = vmatprep.subr.mxu0 0.0
  %711 = vmatpush2.msra.mxu0 0.0
  %712 = vmatprep.subr.mxu0 0.0
  %713 = vmatpush2.msra.mxu0 0.0
  %714 = vmatprep.subr.mxu0 0.0
  %715 = vmatpush2.msra.mxu0 0.0
  %716 = vmatprep.subr.mxu0 0.0
  %717 = vmatpush2.msra.mxu0 0.0
  %718 = vmatprep.subr.mxu0 0.0
  %719 = vmatpush2.msra.mxu0 0.0
  %720 = vmatprep.mubr.f32.mxu0 0.0
  %721 = vmatmul.mubr.f32.gmra.mxu0 %v484
  %v722 = vpop.f32.mrf.mxu0
  %v723 = vadd.f32 %v643, %v722
  %v724 = vpop.f32.mrf.mxu0
  %725 = vmatprep.mubr.f32.mxu0 0.0
  %726 = vmatmul.mubr.f32.gmra.mxu0 %v487
  %v727 = vpop.f32.mrf.mxu0
  %v728 = vadd.f32 %v648, %v727
  %v729 = vpop.f32.mrf.mxu0
  %730 = vmatprep.mubr.f32.mxu0 0.0
  %731 = vmatmul.mubr.f32.gmra.mxu0 %v490
  %v732 = vpop.f32.mrf.mxu0
  %v733 = vadd.f32 %v653, %v732
  %v734 = vpop.f32.mrf.mxu0
  %735 = vdwg.mxu0
  %v736 = vld [vmem:[%s5] sm:$0xff]
  %v737 = vld [vmem:[%s5 + $0x8] sm:$0xff]
  %v738 = vld [vmem:[%s5 + $0x10] sm:$0xff]
  %v739 = vld [vmem:[%s6] sm:$0xff]
  %v740 = vld [vmem:[%s6 + $0x8] sm:$0xff]
  %v741 = vld [vmem:[%s6 + $0x10] sm:$0xff]
  %v742 = vld [vmem:[%s7] sm:$0xff]
  %v743 = vld [vmem:[%s7 + $0x8] sm:$0xff]
  %v744 = vld [vmem:[%s7 + $0x10] sm:$0xff]
  %vm745 = vcmask 400384
  %v746 = vsel %vm745, %v723, 0.0
  %747 = vadd.xlane.f32.xlu0 %v746
  %v748 = vpop.xlane.xlu0 %747
  %v749 = vsel %vm745, %v728, 0.0
  %750 = vadd.xlane.f32.xlu0 %v749
  %v751 = vpop.xlane.xlu0 %750
  %v752 = vsel %vm745, %v733, 0.0
  %753 = vadd.xlane.f32.xlu0 %v752
  %v754 = vpop.xlane.xlu0 %753
  %vm755 = vcmask 195584
  %v757 = vsel %vm755, %v736, 0
  %v760 = vsel %vm755, %v737, 0
  %v763 = vsel %vm755, %v738, 0
  %765 = vmatprep.subr.mxu0 0.0
  %766 = vmatpush1.msra.mxu0 0.0
  %767 = vmatprep.subr.mxu0 0.0
  %768 = vmatpush1.msra.mxu0 0.0
  %769 = vmatprep.subr.mxu0 0.0
  %770 = vmatpush1.msra.mxu0 0.0
  %771 = vmatprep.subr.mxu0 0.0
  %772 = vmatpush1.msra.mxu0 0.0
  %773 = vmatprep.subr.mxu0 0.0
  %774 = vmatpush1.msra.mxu0 0.0
  %775 = vmatprep.subr.mxu0 0.0
  %776 = vmatpush1.msra.mxu0 0.0
  %777 = vmatprep.subr.mxu0 0.0
  %778 = vmatpush1.msra.mxu0 0.0
  %779 = vmatprep.subr.mxu0 0.0
  %780 = vmatpush1.msra.mxu0 0.0
  %781 = vmatprep.subr.mxu0 0.0
  %782 = vmatpush1.msra.mxu0 0.0
  %783 = vmatprep.subr.mxu0 0.0
  %784 = vmatpush1.msra.mxu0 0.0
  %785 = vmatprep.subr.mxu0 0.0
  %786 = vmatpush1.msra.mxu0 0.0
  %787 = vmatprep.subr.mxu0 0.0
  %788 = vmatpush1.msra.mxu0 0.0
  %789 = vmatprep.subr.mxu0 0.0
  %790 = vmatpush1.msra.mxu0 0.0
  %791 = vmatprep.subr.mxu0 0.0
  %792 = vmatpush1.msra.mxu0 %v754
  %793 = vmatprep.subr.mxu0 0.0
  %794 = vmatpush1.msra.mxu0 %v751
  %795 = vmatprep.subr.mxu0 0.0
  %796 = vmatpush1.msra.mxu0 %v748
  %797 = vmatprep.subr.mxu0 0.0
  %798 = vmatpush2.msra.mxu0 0.0
  %799 = vmatprep.subr.mxu0 0.0
  %800 = vmatpush2.msra.mxu0 0.0
  %801 = vmatprep.subr.mxu0 0.0
  %802 = vmatpush2.msra.mxu0 0.0
  %803 = vmatprep.subr.mxu0 0.0
  %804 = vmatpush2.msra.mxu0 0.0
  %805 = vmatprep.subr.mxu0 0.0
  %806 = vmatpush2.msra.mxu0 0.0
  %807 = vmatprep.subr.mxu0 0.0
  %808 = vmatpush2.msra.mxu0 0.0
  %809 = vmatprep.subr.mxu0 0.0
  %810 = vmatpush2.msra.mxu0 0.0
  %811 = vmatprep.subr.mxu0 0.0
  %812 = vmatpush2.msra.mxu0 0.0
  %813 = vmatprep.subr.mxu0 0.0
  %814 = vmatpush2.msra.mxu0 0.0
  %815 = vmatprep.subr.mxu0 0.0
  %816 = vmatpush2.msra.mxu0 0.0
  %817 = vmatprep.subr.mxu0 0.0
  %818 = vmatpush2.msra.mxu0 0.0
  %819 = vmatprep.subr.mxu0 0.0
  %820 = vmatpush2.msra.mxu0 0.0
  %821 = vmatprep.subr.mxu0 0.0
  %822 = vmatpush2.msra.mxu0 0.0
  %823 = vmatprep.subr.mxu0 0.0
  %824 = vmatpush2.msra.mxu0 0.0
  %825 = vmatprep.subr.mxu0 0.0
  %826 = vmatpush2.msra.mxu0 0.0
  %827 = vmatprep.subr.mxu0 0.0
  %828 = vmatpush2.msra.mxu0 0.0
  %829 = vmatprep.mubr.f32.mxu0 0.0
  %830 = vmatmul.mubr.f32.gmra.mxu0 %v757
  %v831 = vpop.f32.mrf.mxu0
  %v832 = vadd.f32 0.0, %v831
  %v833 = vpop.f32.mrf.mxu0
  %834 = vmatprep.mubr.f32.mxu0 0.0
  %835 = vmatmul.mubr.f32.gmra.mxu0 %v760
  %v836 = vpop.f32.mrf.mxu0
  %v837 = vadd.f32 0.0, %v836
  %v838 = vpop.f32.mrf.mxu0
  %839 = vmatprep.mubr.f32.mxu0 0.0
  %840 = vmatmul.mubr.f32.gmra.mxu0 %v763
  %v841 = vpop.f32.mrf.mxu0
  %v842 = vadd.f32 0.0, %v841
  %v843 = vpop.f32.mrf.mxu0
  %844 = vdwg.mxu0
  %846 = vset.pattern.permute.xlu0 0
  %847 = vperm.xlu0 %846, %v832
  %v848 = vpop.permute.xlu0 %847
  %851 = vset.pattern.permute.xlu0 0
  %852 = vperm.xlu0 %851, %v837
  %v853 = vpop.permute.xlu0 %852
  %856 = vset.pattern.permute.xlu0 0
  %857 = vperm.xlu0 %856, %v842
  %v858 = vpop.permute.xlu0 %857
  %v860 = vsub.f32 %v723, %v848
  %v861 = vsub.f32 %v728, %v853
  %v862 = vsub.f32 %v733, %v858
  %v863 = vmul.f32 %v860, %v860
  %v864 = vmul.f32 %v861, %v861
  %v865 = vmul.f32 %v862, %v862
  %v866 = vsel %vm745, %v863, 0.0
  %867 = vadd.xlane.f32.xlu0 %v866
  %v868 = vpop.xlane.xlu0 %867
  %v869 = vsel %vm745, %v864, 0.0
  %870 = vadd.xlane.f32.xlu0 %v869
  %v871 = vpop.xlane.xlu0 %870
  %v872 = vsel %vm745, %v865, 0.0
  %873 = vadd.xlane.f32.xlu0 %v872
  %v874 = vpop.xlane.xlu0 %873
  %875 = vmatprep.subr.mxu0 0.0
  %876 = vmatpush1.msra.mxu0 0.0
  %877 = vmatprep.subr.mxu0 0.0
  %878 = vmatpush1.msra.mxu0 0.0
  %879 = vmatprep.subr.mxu0 0.0
  %880 = vmatpush1.msra.mxu0 0.0
  %881 = vmatprep.subr.mxu0 0.0
  %882 = vmatpush1.msra.mxu0 0.0
  %883 = vmatprep.subr.mxu0 0.0
  %884 = vmatpush1.msra.mxu0 0.0
  %885 = vmatprep.subr.mxu0 0.0
  %886 = vmatpush1.msra.mxu0 0.0
  %887 = vmatprep.subr.mxu0 0.0
  %888 = vmatpush1.msra.mxu0 0.0
  %889 = vmatprep.subr.mxu0 0.0
  %890 = vmatpush1.msra.mxu0 0.0
  %891 = vmatprep.subr.mxu0 0.0
  %892 = vmatpush1.msra.mxu0 0.0
  %893 = vmatprep.subr.mxu0 0.0
  %894 = vmatpush1.msra.mxu0 0.0
  %895 = vmatprep.subr.mxu0 0.0
  %896 = vmatpush1.msra.mxu0 0.0
  %897 = vmatprep.subr.mxu0 0.0
  %898 = vmatpush1.msra.mxu0 0.0
  %899 = vmatprep.subr.mxu0 0.0
  %900 = vmatpush1.msra.mxu0 0.0
  %901 = vmatprep.subr.mxu0 0.0
  %902 = vmatpush1.msra.mxu0 %v874
  %903 = vmatprep.subr.mxu0 0.0
  %904 = vmatpush1.msra.mxu0 %v871
  %905 = vmatprep.subr.mxu0 0.0
  %906 = vmatpush1.msra.mxu0 %v868
  %907 = vmatprep.subr.mxu0 0.0
  %908 = vmatpush2.msra.mxu0 0.0
  %909 = vmatprep.subr.mxu0 0.0
  %910 = vmatpush2.msra.mxu0 0.0
  %911 = vmatprep.subr.mxu0 0.0
  %912 = vmatpush2.msra.mxu0 0.0
  %913 = vmatprep.subr.mxu0 0.0
  %914 = vmatpush2.msra.mxu0 0.0
  %915 = vmatprep.subr.mxu0 0.0
  %916 = vmatpush2.msra.mxu0 0.0
  %917 = vmatprep.subr.mxu0 0.0
  %918 = vmatpush2.msra.mxu0 0.0
  %919 = vmatprep.subr.mxu0 0.0
  %920 = vmatpush2.msra.mxu0 0.0
  %921 = vmatprep.subr.mxu0 0.0
  %922 = vmatpush2.msra.mxu0 0.0
  %923 = vmatprep.subr.mxu0 0.0
  %924 = vmatpush2.msra.mxu0 0.0
  %925 = vmatprep.subr.mxu0 0.0
  %926 = vmatpush2.msra.mxu0 0.0
  %927 = vmatprep.subr.mxu0 0.0
  %928 = vmatpush2.msra.mxu0 0.0
  %929 = vmatprep.subr.mxu0 0.0
  %930 = vmatpush2.msra.mxu0 0.0
  %931 = vmatprep.subr.mxu0 0.0
  %932 = vmatpush2.msra.mxu0 0.0
  %933 = vmatprep.subr.mxu0 0.0
  %934 = vmatpush2.msra.mxu0 0.0
  %935 = vmatprep.subr.mxu0 0.0
  %936 = vmatpush2.msra.mxu0 0.0
  %937 = vmatprep.subr.mxu0 0.0
  %938 = vmatpush2.msra.mxu0 0.0
  %939 = vmatprep.mubr.f32.mxu0 0.0
  %940 = vmatmul.mubr.f32.gmra.mxu0 %v757
  %v941 = vpop.f32.mrf.mxu0
  %v942 = vadd.f32 1e-05, %v941
  %v943 = vpop.f32.mrf.mxu0
  %944 = vmatprep.mubr.f32.mxu0 0.0
  %945 = vmatmul.mubr.f32.gmra.mxu0 %v760
  %v946 = vpop.f32.mrf.mxu0
  %v947 = vadd.f32 1e-05, %v946
  %v948 = vpop.f32.mrf.mxu0
  %949 = vmatprep.mubr.f32.mxu0 0.0
  %950 = vmatmul.mubr.f32.gmra.mxu0 %v763
  %v951 = vpop.f32.mrf.mxu0
  %v952 = vadd.f32 1e-05, %v951
  %v953 = vpop.f32.mrf.mxu0
  %954 = vdwg.mxu0
  %v955 = vrsqrt.pop %v942
  %v956 = vrsqrt.pop %v947
  %v957 = vrsqrt.pop %v952
  %959 = vset.pattern.permute.xlu0 0
  %960 = vperm.xlu0 %959, %v955
  %v961 = vpop.permute.xlu0 %960
  %964 = vset.pattern.permute.xlu0 0
  %965 = vperm.xlu0 %964, %v956
  %v966 = vpop.permute.xlu0 %965
  %969 = vset.pattern.permute.xlu0 0
  %970 = vperm.xlu0 %969, %v957
  %v971 = vpop.permute.xlu0 %970
  %v973 = vmul.f32 %v860, %v961
  %v974 = vmul.f32 %v861, %v966
  %v975 = vmul.f32 %v862, %v971
  %977 = vset.pattern.permute.xlu0 0
  %978 = vperm.xlu0 %977, %v739
  %v979 = vpop.permute.xlu0 %978
  %982 = vset.pattern.permute.xlu0 0
  %983 = vperm.xlu0 %982, %v740
  %v984 = vpop.permute.xlu0 %983
  %987 = vset.pattern.permute.xlu0 0
  %988 = vperm.xlu0 %987, %v741
  %v989 = vpop.permute.xlu0 %988
  %v991 = vmul.f32 %v973, %v979
  %v992 = vmul.f32 %v974, %v984
  %v993 = vmul.f32 %v975, %v989
  %995 = vset.pattern.permute.xlu0 0
  %996 = vperm.xlu0 %995, %v742
  %v997 = vpop.permute.xlu0 %996
  %1000 = vset.pattern.permute.xlu0 0
  %1001 = vperm.xlu0 %1000, %v743
  %v1002 = vpop.permute.xlu0 %1001
  %1005 = vset.pattern.permute.xlu0 0
  %1006 = vperm.xlu0 %1005, %v744
  %v1007 = vpop.permute.xlu0 %1006
  %v1009 = vadd.f32 %v991, %v997
  %v1010 = vadd.f32 %v992, %v1002
  %v1011 = vadd.f32 %v993, %v1007
  %v1012 = vmax.f32 %v1009, 0.0
  %v1013 = vmax.f32 %v1010, 0.0
  %v1014 = vmax.f32 %v1011, 0.0
  %v1015 = vld [vmem:[%s8] sm:$0xff]
  %v1016 = vld [vmem:[%s8 + $0x8] sm:$0xff]
  %v1017 = vld [vmem:[%s8 + $0x10] sm:$0xff]
  %v1018 = vld [vmem:[%s8 + $0x18] sm:$0xff]
  %v1019 = vld [vmem:[%s8 + $0x20] sm:$0xff]
  %v1020 = vld [vmem:[%s8 + $0x28] sm:$0xff]
  %v1022 = vsel %vm755, %v1015, 0
  %v1025 = vsel %vm755, %v1016, 0
  %v1028 = vsel %vm755, %v1017, 0
  %v1031 = vsel %vm755, %v1018, 0
  %v1034 = vsel %vm755, %v1019, 0
  %v1037 = vsel %vm755, %v1020, 0
  %1039 = vmatprep.subr.mxu0 0.0
  %1040 = vmatpush1.msra.mxu0 0.0
  %1041 = vmatprep.subr.mxu0 0.0
  %1042 = vmatpush1.msra.mxu0 0.0
  %1043 = vmatprep.subr.mxu0 0.0
  %1044 = vmatpush1.msra.mxu0 0.0
  %1045 = vmatprep.subr.mxu0 0.0
  %1046 = vmatpush1.msra.mxu0 0.0
  %1047 = vmatprep.subr.mxu0 0.0
  %1048 = vmatpush1.msra.mxu0 0.0
  %1049 = vmatprep.subr.mxu0 0.0
  %1050 = vmatpush1.msra.mxu0 0.0
  %1051 = vmatprep.subr.mxu0 0.0
  %1052 = vmatpush1.msra.mxu0 0.0
  %1053 = vmatprep.subr.mxu0 0.0
  %1054 = vmatpush1.msra.mxu0 0.0
  %1055 = vmatprep.subr.mxu0 0.0
  %1056 = vmatpush1.msra.mxu0 0.0
  %1057 = vmatprep.subr.mxu0 0.0
  %1058 = vmatpush1.msra.mxu0 0.0
  %1059 = vmatprep.subr.mxu0 0.0
  %1060 = vmatpush1.msra.mxu0 0.0
  %1061 = vmatprep.subr.mxu0 0.0
  %1062 = vmatpush1.msra.mxu0 0.0
  %1063 = vmatprep.subr.mxu0 0.0
  %1064 = vmatpush1.msra.mxu0 0.0
  %1065 = vmatprep.subr.mxu0 0.0
  %1066 = vmatpush1.msra.mxu0 %v1014
  %1067 = vmatprep.subr.mxu0 0.0
  %1068 = vmatpush1.msra.mxu0 %v1013
  %1069 = vmatprep.subr.mxu0 0.0
  %1070 = vmatpush1.msra.mxu0 %v1012
  %1071 = vmatprep.subr.mxu0 0.0
  %1072 = vmatpush2.msra.mxu0 0.0
  %1073 = vmatprep.subr.mxu0 0.0
  %1074 = vmatpush2.msra.mxu0 0.0
  %1075 = vmatprep.subr.mxu0 0.0
  %1076 = vmatpush2.msra.mxu0 0.0
  %1077 = vmatprep.subr.mxu0 0.0
  %1078 = vmatpush2.msra.mxu0 0.0
  %1079 = vmatprep.subr.mxu0 0.0
  %1080 = vmatpush2.msra.mxu0 0.0
  %1081 = vmatprep.subr.mxu0 0.0
  %1082 = vmatpush2.msra.mxu0 0.0
  %1083 = vmatprep.subr.mxu0 0.0
  %1084 = vmatpush2.msra.mxu0 0.0
  %1085 = vmatprep.subr.mxu0 0.0
  %1086 = vmatpush2.msra.mxu0 0.0
  %1087 = vmatprep.subr.mxu0 0.0
  %1088 = vmatpush2.msra.mxu0 0.0
  %1089 = vmatprep.subr.mxu0 0.0
  %1090 = vmatpush2.msra.mxu0 0.0
  %1091 = vmatprep.subr.mxu0 0.0
  %1092 = vmatpush2.msra.mxu0 0.0
  %1093 = vmatprep.subr.mxu0 0.0
  %1094 = vmatpush2.msra.mxu0 0.0
  %1095 = vmatprep.subr.mxu0 0.0
  %1096 = vmatpush2.msra.mxu0 0.0
  %1097 = vmatprep.subr.mxu0 0.0
  %1098 = vmatpush2.msra.mxu0 0.0
  %1099 = vmatprep.subr.mxu0 0.0
  %1100 = vmatpush2.msra.mxu0 0.0
  %1101 = vmatprep.subr.mxu0 0.0
  %1102 = vmatpush2.msra.mxu0 0.0
  %1103 = vmatprep.mubr.f32.mxu0 0.0
  %1104 = vmatmul.mubr.f32.gmra.mxu0 %v1022
  %v1105 = vpop.f32.mrf.mxu0
  %v1106 = vadd.f32 0.0, %v1105
  %v1107 = vpop.f32.mrf.mxu0
  %1108 = vmatprep.mubr.f32.mxu0 0.0
  %1109 = vmatmul.mubr.f32.gmra.mxu0 %v1025
  %v1110 = vpop.f32.mrf.mxu0
  %v1111 = vadd.f32 0.0, %v1110
  %v1112 = vpop.f32.mrf.mxu0
  %1113 = vmatprep.mubr.f32.mxu0 0.0
  %1114 = vmatmul.mubr.f32.gmra.mxu0 %v1028
  %v1115 = vpop.f32.mrf.mxu0
  %v1116 = vadd.f32 0.0, %v1115
  %v1117 = vpop.f32.mrf.mxu0
  %1118 = vmatprep.mubr.f32.mxu0 0.0
  %1119 = vmatmul.mubr.f32.gmra.mxu0 %v1031
  %v1120 = vpop.f32.mrf.mxu0
  %v1121 = vadd.f32 0.0, %v1120
  %v1122 = vpop.f32.mrf.mxu0
  %1123 = vmatprep.mubr.f32.mxu0 0.0
  %1124 = vmatmul.mubr.f32.gmra.mxu0 %v1034
  %v1125 = vpop.f32.mrf.mxu0
  %v1126 = vadd.f32 0.0, %v1125
  %v1127 = vpop.f32.mrf.mxu0
  %1128 = vmatprep.mubr.f32.mxu0 0.0
  %1129 = vmatmul.mubr.f32.gmra.mxu0 %v1037
  %v1130 = vpop.f32.mrf.mxu0
  %v1131 = vadd.f32 0.0, %v1130
  %v1132 = vpop.f32.mrf.mxu0
  %1133 = vdwg.mxu0
  %v1134 = vld [vmem:[%s9] sm:$0xff]
  %v1135 = vld [vmem:[%s9 + $0x8] sm:$0xff]
  %v1136 = vld [vmem:[%s9 + $0x10] sm:$0xff]
  %v1137 = vld [vmem:[%s9 + $0x18] sm:$0xff]
  %v1138 = vld [vmem:[%s9 + $0x20] sm:$0xff]
  %v1139 = vld [vmem:[%s9 + $0x28] sm:$0xff]
  %v1140 = vld [vmem:[%s9 + $0x30] sm:$0x11]
  %v1141 = vunpack.c.l.bf16 %v1134
  %v1142 = vunpack.c.h.bf16 %v1134
  %v1143 = vunpack.c.l.bf16 %v1135
  %v1144 = vunpack.c.h.bf16 %v1135
  %v1145 = vunpack.c.l.bf16 %v1136
  %v1146 = vunpack.c.h.bf16 %v1136
  %v1147 = vunpack.c.l.bf16 %v1137
  %v1148 = vunpack.c.h.bf16 %v1137
  %v1149 = vunpack.c.l.bf16 %v1138
  %v1150 = vunpack.c.h.bf16 %v1138
  %v1151 = vunpack.c.l.bf16 %v1139
  %v1152 = vunpack.c.h.bf16 %v1139
  %v1153 = vunpack.c.l.bf16 %v1140
  %v1154 = vunpack.c.h.bf16 %v1140
  %s1155 = scalar_lea.vmem %s8, 48
  %v1156 = vld [vmem:[%s1155] sm:$0xff]
  %v1157 = vld [vmem:[%s1155 + $0x8] sm:$0xff]
  %v1158 = vld [vmem:[%s1155 + $0x10] sm:$0xff]
  %v1159 = vld [vmem:[%s1155 + $0x18] sm:$0xff]
  %v1160 = vld [vmem:[%s1155 + $0x20] sm:$0xff]
  %v1161 = vld [vmem:[%s1155 + $0x28] sm:$0xff]
  %v1163 = vsel %vm755, %v1156, 0
  %v1166 = vsel %vm755, %v1157, 0
  %v1169 = vsel %vm755, %v1158, 0
  %v1172 = vsel %vm755, %v1159, 0
  %v1175 = vsel %vm755, %v1160, 0
  %v1178 = vsel %vm755, %v1161, 0
  %1180 = vmatprep.subr.mxu0 0.0
  %1181 = vmatpush1.msra.mxu0 0.0
  %1182 = vmatprep.subr.mxu0 0.0
  %1183 = vmatpush1.msra.mxu0 0.0
  %1184 = vmatprep.subr.mxu0 0.0
  %1185 = vmatpush1.msra.mxu0 0.0
  %1186 = vmatprep.subr.mxu0 0.0
  %1187 = vmatpush1.msra.mxu0 0.0
  %1188 = vmatprep.subr.mxu0 0.0
  %1189 = vmatpush1.msra.mxu0 0.0
  %1190 = vmatprep.subr.mxu0 0.0
  %1191 = vmatpush1.msra.mxu0 0.0
  %1192 = vmatprep.subr.mxu0 0.0
  %1193 = vmatpush1.msra.mxu0 0.0
  %1194 = vmatprep.subr.mxu0 0.0
  %1195 = vmatpush1.msra.mxu0 0.0
  %1196 = vmatprep.subr.mxu0 0.0
  %1197 = vmatpush1.msra.mxu0 0.0
  %1198 = vmatprep.subr.mxu0 0.0
  %1199 = vmatpush1.msra.mxu0 0.0
  %1200 = vmatprep.subr.mxu0 0.0
  %1201 = vmatpush1.msra.mxu0 0.0
  %1202 = vmatprep.subr.mxu0 0.0
  %1203 = vmatpush1.msra.mxu0 0.0
  %1204 = vmatprep.subr.mxu0 0.0
  %1205 = vmatpush1.msra.mxu0 0.0
  %1206 = vmatprep.subr.mxu0 0.0
  %1207 = vmatpush1.msra.mxu0 %v1014
  %1208 = vmatprep.subr.mxu0 0.0
  %1209 = vmatpush1.msra.mxu0 %v1013
  %1210 = vmatprep.subr.mxu0 0.0
  %1211 = vmatpush1.msra.mxu0 %v1012
  %1212 = vmatprep.subr.mxu0 0.0
  %1213 = vmatpush2.msra.mxu0 0.0
  %1214 = vmatprep.subr.mxu0 0.0
  %1215 = vmatpush2.msra.mxu0 0.0
  %1216 = vmatprep.subr.mxu0 0.0
  %1217 = vmatpush2.msra.mxu0 0.0
  %1218 = vmatprep.subr.mxu0 0.0
  %1219 = vmatpush2.msra.mxu0 0.0
  %1220 = vmatprep.subr.mxu0 0.0
  %1221 = vmatpush2.msra.mxu0 0.0
  %1222 = vmatprep.subr.mxu0 0.0
  %1223 = vmatpush2.msra.mxu0 0.0
  %1224 = vmatprep.subr.mxu0 0.0
  %1225 = vmatpush2.msra.mxu0 0.0
  %1226 = vmatprep.subr.mxu0 0.0
  %1227 = vmatpush2.msra.mxu0 0.0
  %1228 = vmatprep.subr.mxu0 0.0
  %1229 = vmatpush2.msra.mxu0 0.0
  %1230 = vmatprep.subr.mxu0 0.0
  %1231 = vmatpush2.msra.mxu0 0.0
  %1232 = vmatprep.subr.mxu0 0.0
  %1233 = vmatpush2.msra.mxu0 0.0
  %1234 = vmatprep.subr.mxu0 0.0
  %1235 = vmatpush2.msra.mxu0 0.0
  %1236 = vmatprep.subr.mxu0 0.0
  %1237 = vmatpush2.msra.mxu0 0.0
  %1238 = vmatprep.subr.mxu0 0.0
  %1239 = vmatpush2.msra.mxu0 0.0
  %1240 = vmatprep.subr.mxu0 0.0
  %1241 = vmatpush2.msra.mxu0 0.0
  %1242 = vmatprep.subr.mxu0 0.0
  %1243 = vmatpush2.msra.mxu0 0.0
  %1244 = vmatprep.mubr.f32.mxu0 0.0
  %1245 = vmatmul.mubr.f32.gmra.mxu0 %v1163
  %v1246 = vpop.f32.mrf.mxu0
  %v1247 = vadd.f32 0.0, %v1246
  %v1248 = vpop.f32.mrf.mxu0
  %1249 = vmatprep.mubr.f32.mxu0 0.0
  %1250 = vmatmul.mubr.f32.gmra.mxu0 %v1166
  %v1251 = vpop.f32.mrf.mxu0
  %v1252 = vadd.f32 0.0, %v1251
  %v1253 = vpop.f32.mrf.mxu0
  %1254 = vmatprep.mubr.f32.mxu0 0.0
  %1255 = vmatmul.mubr.f32.gmra.mxu0 %v1169
  %v1256 = vpop.f32.mrf.mxu0
  %v1257 = vadd.f32 0.0, %v1256
  %v1258 = vpop.f32.mrf.mxu0
  %1259 = vmatprep.mubr.f32.mxu0 0.0
  %1260 = vmatmul.mubr.f32.gmra.mxu0 %v1172
  %v1261 = vpop.f32.mrf.mxu0
  %v1262 = vadd.f32 0.0, %v1261
  %v1263 = vpop.f32.mrf.mxu0
  %1264 = vmatprep.mubr.f32.mxu0 0.0
  %1265 = vmatmul.mubr.f32.gmra.mxu0 %v1175
  %v1266 = vpop.f32.mrf.mxu0
  %v1267 = vadd.f32 0.0, %v1266
  %v1268 = vpop.f32.mrf.mxu0
  %1269 = vmatprep.mubr.f32.mxu0 0.0
  %1270 = vmatmul.mubr.f32.gmra.mxu0 %v1178
  %v1271 = vpop.f32.mrf.mxu0
  %v1272 = vadd.f32 0.0, %v1271
  %v1273 = vpop.f32.mrf.mxu0
  %1274 = vdwg.mxu0
  %s1275 = scalar_lea.vmem %s9, 56
  %v1276 = vld [vmem:[%s1275] sm:$0xff]
  %v1277 = vld [vmem:[%s1275 + $0x8] sm:$0xff]
  %v1278 = vld [vmem:[%s1275 + $0x10] sm:$0xff]
  %v1279 = vld [vmem:[%s1275 + $0x18] sm:$0xff]
  %v1280 = vld [vmem:[%s1275 + $0x20] sm:$0xff]
  %v1281 = vld [vmem:[%s1275 + $0x28] sm:$0xff]
  %v1282 = vld [vmem:[%s1275 + $0x30] sm:$0x11]
  %v1283 = vunpack.c.l.bf16 %v1276
  %v1284 = vunpack.c.h.bf16 %v1276
  %v1285 = vunpack.c.l.bf16 %v1277
  %v1286 = vunpack.c.h.bf16 %v1277
  %v1287 = vunpack.c.l.bf16 %v1278
  %v1288 = vunpack.c.h.bf16 %v1278
  %v1289 = vunpack.c.l.bf16 %v1279
  %v1290 = vunpack.c.h.bf16 %v1279
  %v1291 = vunpack.c.l.bf16 %v1280
  %v1292 = vunpack.c.h.bf16 %v1280
  %v1293 = vunpack.c.l.bf16 %v1281
  %v1294 = vunpack.c.h.bf16 %v1281
  %v1295 = vunpack.c.l.bf16 %v1282
  %v1296 = vunpack.c.h.bf16 %v1282
  %v1298 = vsel %vm745, %v1247, 0
  %v1301 = vsel %vm745, %v1252, 0
  %v1304 = vsel %vm745, %v1257, 0
  %v1307 = vsel %vm745, %v1262, 0
  %v1310 = vsel %vm745, %v1267, 0
  %v1313 = vsel %vm745, %v1272, 0
  %vm1315 = vcmask 1040384
  %v1317 = vsel %vm1315, %v1295, 0
  %v1320 = vsel %vm1315, %v1296, 0
  %1322 = vmatprep.subr.mxu0 0.0
  %1323 = vmatpush1.msra.mxu0 0.0
  %1324 = vmatprep.subr.mxu0 0.0
  %1325 = vmatpush1.msra.mxu0 0.0
  %1326 = vmatprep.subr.mxu0 0.0
  %1327 = vmatpush1.msra.mxu0 0.0
  %1328 = vmatprep.subr.mxu0 0.0
  %1329 = vmatpush1.msra.mxu0 0.0
  %1330 = vmatprep.subr.mxu0 0.0
  %1331 = vmatpush1.msra.mxu0 0.0
  %1332 = vmatprep.subr.mxu0 0.0
  %1333 = vmatpush1.msra.mxu0 0.0
  %1334 = vmatprep.subr.mxu0 0.0
  %1335 = vmatpush1.msra.mxu0 0.0
  %1336 = vmatprep.subr.mxu0 0.0
  %1337 = vmatpush1.msra.mxu0 0.0
  %1338 = vmatprep.subr.mxu0 0.0
  %1339 = vmatpush1.msra.mxu0 0.0
  %1340 = vmatprep.subr.mxu0 %v1320
  %1341 = vmatpush1.msra.mxu0 %v1317
  %1342 = vmatprep.subr.mxu0 %v1294
  %1343 = vmatpush1.msra.mxu0 %v1293
  %1344 = vmatprep.subr.mxu0 %v1292
  %1345 = vmatpush1.msra.mxu0 %v1291
  %1346 = vmatprep.subr.mxu0 %v1290
  %1347 = vmatpush1.msra.mxu0 %v1289
  %1348 = vmatprep.subr.mxu0 %v1288
  %1349 = vmatpush1.msra.mxu0 %v1287
  %1350 = vmatprep.subr.mxu0 %v1286
  %1351 = vmatpush1.msra.mxu0 %v1285
  %1352 = vmatprep.subr.mxu0 %v1284
  %1353 = vmatpush1.msra.mxu0 %v1283
  %1354 = vmatprep.subr.mxu0 0.0
  %1355 = vmatpush2.msra.mxu0 0.0
  %1356 = vmatprep.subr.mxu0 0.0
  %1357 = vmatpush2.msra.mxu0 0.0
  %1358 = vmatprep.subr.mxu0 0.0
  %1359 = vmatpush2.msra.mxu0 0.0
  %1360 = vmatprep.subr.mxu0 0.0
  %1361 = vmatpush2.msra.mxu0 0.0
  %1362 = vmatprep.subr.mxu0 0.0
  %1363 = vmatpush2.msra.mxu0 0.0
  %1364 = vmatprep.subr.mxu0 0.0
  %1365 = vmatpush2.msra.mxu0 0.0
  %1366 = vmatprep.subr.mxu0 0.0
  %1367 = vmatpush2.msra.mxu0 0.0
  %1368 = vmatprep.subr.mxu0 0.0
  %1369 = vmatpush2.msra.mxu0 0.0
  %1370 = vmatprep.subr.mxu0 0.0
  %1371 = vmatpush2.msra.mxu0 0.0
  %1372 = vmatprep.subr.mxu0 0.0
  %1373 = vmatpush2.msra.mxu0 0.0
  %1374 = vmatprep.subr.mxu0 0.0
  %1375 = vmatpush2.msra.mxu0 0.0
  %1376 = vmatprep.subr.mxu0 0.0
  %1377 = vmatpush2.msra.mxu0 0.0
  %1378 = vmatprep.subr.mxu0 0.0
  %1379 = vmatpush2.msra.mxu0 0.0
  %1380 = vmatprep.subr.mxu0 0.0
  %1381 = vmatpush2.msra.mxu0 0.0
  %1382 = vmatprep.subr.mxu0 0.0
  %1383 = vmatpush2.msra.mxu0 0.0
  %1384 = vmatprep.subr.mxu0 0.0
  %1385 = vmatpush2.msra.mxu0 0.0
  %1386 = vmatprep.mubr.f32.mxu0 0.0
  %1387 = vmatmul.mubr.f32.gmra.mxu0 %v1298
  %v1388 = vpop.f32.mrf.mxu0
  %v1389 = vadd.f32 0.0, %v1388
  %v1390 = vpop.f32.mrf.mxu0
  %v1391 = vadd.f32 0.0, %v1390
  %1392 = vmatprep.mubr.f32.mxu0 0.0
  %1393 = vmatmul.mubr.f32.gmra.mxu0 %v1301
  %v1394 = vpop.f32.mrf.mxu0
  %v1395 = vadd.f32 0.0, %v1394
  %v1396 = vpop.f32.mrf.mxu0
  %v1397 = vadd.f32 0.0, %v1396
  %1398 = vmatprep.mubr.f32.mxu0 0.0
  %1399 = vmatmul.mubr.f32.gmra.mxu0 %v1304
  %v1400 = vpop.f32.mrf.mxu0
  %v1401 = vadd.f32 0.0, %v1400
  %v1402 = vpop.f32.mrf.mxu0
  %v1403 = vadd.f32 0.0, %v1402
  %1404 = vmatprep.mubr.f32.mxu0 0.0
  %1405 = vmatmul.mubr.f32.gmra.mxu0 %v1307
  %v1406 = vpop.f32.mrf.mxu0
  %v1407 = vadd.f32 0.0, %v1406
  %v1408 = vpop.f32.mrf.mxu0
  %v1409 = vadd.f32 0.0, %v1408
  %1410 = vmatprep.mubr.f32.mxu0 0.0
  %1411 = vmatmul.mubr.f32.gmra.mxu0 %v1310
  %v1412 = vpop.f32.mrf.mxu0
  %v1413 = vadd.f32 0.0, %v1412
  %v1414 = vpop.f32.mrf.mxu0
  %v1415 = vadd.f32 0.0, %v1414
  %1416 = vmatprep.mubr.f32.mxu0 0.0
  %1417 = vmatmul.mubr.f32.gmra.mxu0 %v1313
  %v1418 = vpop.f32.mrf.mxu0
  %v1419 = vadd.f32 0.0, %v1418
  %v1420 = vpop.f32.mrf.mxu0
  %v1421 = vadd.f32 0.0, %v1420
  %1422 = vdwg.mxu0
  %v1424 = vsel %vm745, %v1106, 0
  %v1427 = vsel %vm745, %v1111, 0
  %v1430 = vsel %vm745, %v1116, 0
  %v1433 = vsel %vm745, %v1121, 0
  %v1436 = vsel %vm745, %v1126, 0
  %v1439 = vsel %vm745, %v1131, 0
  %v1442 = vsel %vm1315, %v1153, 0
  %v1445 = vsel %vm1315, %v1154, 0
  %1447 = vmatprep.subr.mxu0 0.0
  %1448 = vmatpush1.msra.mxu0 0.0
  %1449 = vmatprep.subr.mxu0 0.0
  %1450 = vmatpush1.msra.mxu0 0.0
  %1451 = vmatprep.subr.mxu0 0.0
  %1452 = vmatpush1.msra.mxu0 0.0
  %1453 = vmatprep.subr.mxu0 0.0
  %1454 = vmatpush1.msra.mxu0 0.0
  %1455 = vmatprep.subr.mxu0 0.0
  %1456 = vmatpush1.msra.mxu0 0.0
  %1457 = vmatprep.subr.mxu0 0.0
  %1458 = vmatpush1.msra.mxu0 0.0
  %1459 = vmatprep.subr.mxu0 0.0
  %1460 = vmatpush1.msra.mxu0 0.0
  %1461 = vmatprep.subr.mxu0 0.0
  %1462 = vmatpush1.msra.mxu0 0.0
  %1463 = vmatprep.subr.mxu0 0.0
  %1464 = vmatpush1.msra.mxu0 0.0
  %1465 = vmatprep.subr.mxu0 %v1445
  %1466 = vmatpush1.msra.mxu0 %v1442
  %1467 = vmatprep.subr.mxu0 %v1152
  %1468 = vmatpush1.msra.mxu0 %v1151
  %1469 = vmatprep.subr.mxu0 %v1150
  %1470 = vmatpush1.msra.mxu0 %v1149
  %1471 = vmatprep.subr.mxu0 %v1148
  %1472 = vmatpush1.msra.mxu0 %v1147
  %1473 = vmatprep.subr.mxu0 %v1146
  %1474 = vmatpush1.msra.mxu0 %v1145
  %1475 = vmatprep.subr.mxu0 %v1144
  %1476 = vmatpush1.msra.mxu0 %v1143
  %1477 = vmatprep.subr.mxu0 %v1142
  %1478 = vmatpush1.msra.mxu0 %v1141
  %1479 = vmatprep.subr.mxu0 0.0
  %1480 = vmatpush2.msra.mxu0 0.0
  %1481 = vmatprep.subr.mxu0 0.0
  %1482 = vmatpush2.msra.mxu0 0.0
  %1483 = vmatprep.subr.mxu0 0.0
  %1484 = vmatpush2.msra.mxu0 0.0
  %1485 = vmatprep.subr.mxu0 0.0
  %1486 = vmatpush2.msra.mxu0 0.0
  %1487 = vmatprep.subr.mxu0 0.0
  %1488 = vmatpush2.msra.mxu0 0.0
  %1489 = vmatprep.subr.mxu0 0.0
  %1490 = vmatpush2.msra.mxu0 0.0
  %1491 = vmatprep.subr.mxu0 0.0
  %1492 = vmatpush2.msra.mxu0 0.0
  %1493 = vmatprep.subr.mxu0 0.0
  %1494 = vmatpush2.msra.mxu0 0.0
  %1495 = vmatprep.subr.mxu0 0.0
  %1496 = vmatpush2.msra.mxu0 0.0
  %1497 = vmatprep.subr.mxu0 0.0
  %1498 = vmatpush2.msra.mxu0 0.0
  %1499 = vmatprep.subr.mxu0 0.0
  %1500 = vmatpush2.msra.mxu0 0.0
  %1501 = vmatprep.subr.mxu0 0.0
  %1502 = vmatpush2.msra.mxu0 0.0
  %1503 = vmatprep.subr.mxu0 0.0
  %1504 = vmatpush2.msra.mxu0 0.0
  %1505 = vmatprep.subr.mxu0 0.0
  %1506 = vmatpush2.msra.mxu0 0.0
  %1507 = vmatprep.subr.mxu0 0.0
  %1508 = vmatpush2.msra.mxu0 0.0
  %1509 = vmatprep.subr.mxu0 0.0
  %1510 = vmatpush2.msra.mxu0 0.0
  %1511 = vmatprep.mubr.f32.mxu0 0.0
  %1512 = vmatmul.mubr.f32.gmra.mxu0 %v1424
  %v1513 = vpop.f32.mrf.mxu0
  %v1514 = vadd.f32 %v1389, %v1513
  %v1515 = vpop.f32.mrf.mxu0
  %v1516 = vadd.f32 %v1391, %v1515
  %1517 = vmatprep.mubr.f32.mxu0 0.0
  %1518 = vmatmul.mubr.f32.gmra.mxu0 %v1427
  %v1519 = vpop.f32.mrf.mxu0
  %v1520 = vadd.f32 %v1395, %v1519
  %v1521 = vpop.f32.mrf.mxu0
  %v1522 = vadd.f32 %v1397, %v1521
  %1523 = vmatprep.mubr.f32.mxu0 0.0
  %1524 = vmatmul.mubr.f32.gmra.mxu0 %v1430
  %v1525 = vpop.f32.mrf.mxu0
  %v1526 = vadd.f32 %v1401, %v1525
  %v1527 = vpop.f32.mrf.mxu0
  %v1528 = vadd.f32 %v1403, %v1527
  %1529 = vmatprep.mubr.f32.mxu0 0.0
  %1530 = vmatmul.mubr.f32.gmra.mxu0 %v1433
  %v1531 = vpop.f32.mrf.mxu0
  %v1532 = vadd.f32 %v1407, %v1531
  %v1533 = vpop.f32.mrf.mxu0
  %v1534 = vadd.f32 %v1409, %v1533
  %1535 = vmatprep.mubr.f32.mxu0 0.0
  %1536 = vmatmul.mubr.f32.gmra.mxu0 %v1436
  %v1537 = vpop.f32.mrf.mxu0
  %v1538 = vadd.f32 %v1413, %v1537
  %v1539 = vpop.f32.mrf.mxu0
  %v1540 = vadd.f32 %v1415, %v1539
  %1541 = vmatprep.mubr.f32.mxu0 0.0
  %1542 = vmatmul.mubr.f32.gmra.mxu0 %v1439
  %v1543 = vpop.f32.mrf.mxu0
  %v1544 = vadd.f32 %v1419, %v1543
  %v1545 = vpop.f32.mrf.mxu0
  %v1546 = vadd.f32 %v1421, %v1545
  %1547 = vdwg.mxu0
  %s1548 = scalar_lea.vmem %s8, 96
  %v1549 = vld [vmem:[%s1548] sm:$0xff]
  %v1550 = vld [vmem:[%s1548 + $0x8] sm:$0xff]
  %v1551 = vld [vmem:[%s1548 + $0x10] sm:$0xff]
  %v1552 = vld [vmem:[%s1548 + $0x18] sm:$0xff]
  %v1553 = vld [vmem:[%s1548 + $0x20] sm:$0xff]
  %v1554 = vld [vmem:[%s1548 + $0x28] sm:$0xff]
  %v1556 = vsel %vm755, %v1549, 0
  %v1559 = vsel %vm755, %v1550, 0
  %v1562 = vsel %vm755, %v1551, 0
  %v1565 = vsel %vm755, %v1552, 0
  %v1568 = vsel %vm755, %v1553, 0
  %v1571 = vsel %vm755, %v1554, 0
  %1573 = vmatprep.subr.mxu0 0.0
  %1574 = vmatpush1.msra.mxu0 0.0
  %1575 = vmatprep.subr.mxu0 0.0
  %1576 = vmatpush1.msra.mxu0 0.0
  %1577 = vmatprep.subr.mxu0 0.0
  %1578 = vmatpush1.msra.mxu0 0.0
  %1579 = vmatprep.subr.mxu0 0.0
  %1580 = vmatpush1.msra.mxu0 0.0
  %1581 = vmatprep.subr.mxu0 0.0
  %1582 = vmatpush1.msra.mxu0 0.0
  %1583 = vmatprep.subr.mxu0 0.0
  %1584 = vmatpush1.msra.mxu0 0.0
  %1585 = vmatprep.subr.mxu0 0.0
  %1586 = vmatpush1.msra.mxu0 0.0
  %1587 = vmatprep.subr.mxu0 0.0
  %1588 = vmatpush1.msra.mxu0 0.0
  %1589 = vmatprep.subr.mxu0 0.0
  %1590 = vmatpush1.msra.mxu0 0.0
  %1591 = vmatprep.subr.mxu0 0.0
  %1592 = vmatpush1.msra.mxu0 0.0
  %1593 = vmatprep.subr.mxu0 0.0
  %1594 = vmatpush1.msra.mxu0 0.0
  %1595 = vmatprep.subr.mxu0 0.0
  %1596 = vmatpush1.msra.mxu0 0.0
  %1597 = vmatprep.subr.mxu0 0.0
  %1598 = vmatpush1.msra.mxu0 0.0
  %1599 = vmatprep.subr.mxu0 0.0
  %1600 = vmatpush1.msra.mxu0 %v1014
  %1601 = vmatprep.subr.mxu0 0.0
  %1602 = vmatpush1.msra.mxu0 %v1013
  %1603 = vmatprep.subr.mxu0 0.0
  %1604 = vmatpush1.msra.mxu0 %v1012
  %1605 = vmatprep.subr.mxu0 0.0
  %1606 = vmatpush2.msra.mxu0 0.0
  %1607 = vmatprep.subr.mxu0 0.0
  %1608 = vmatpush2.msra.mxu0 0.0
  %1609 = vmatprep.subr.mxu0 0.0
  %1610 = vmatpush2.msra.mxu0 0.0
  %1611 = vmatprep.subr.mxu0 0.0
  %1612 = vmatpush2.msra.mxu0 0.0
  %1613 = vmatprep.subr.mxu0 0.0
  %1614 = vmatpush2.msra.mxu0 0.0
  %1615 = vmatprep.subr.mxu0 0.0
  %1616 = vmatpush2.msra.mxu0 0.0
  %1617 = vmatprep.subr.mxu0 0.0
  %1618 = vmatpush2.msra.mxu0 0.0
  %1619 = vmatprep.subr.mxu0 0.0
  %1620 = vmatpush2.msra.mxu0 0.0
  %1621 = vmatprep.subr.mxu0 0.0
  %1622 = vmatpush2.msra.mxu0 0.0
  %1623 = vmatprep.subr.mxu0 0.0
  %1624 = vmatpush2.msra.mxu0 0.0
  %1625 = vmatprep.subr.mxu0 0.0
  %1626 = vmatpush2.msra.mxu0 0.0
  %1627 = vmatprep.subr.mxu0 0.0
  %1628 = vmatpush2.msra.mxu0 0.0
  %1629 = vmatprep.subr.mxu0 0.0
  %1630 = vmatpush2.msra.mxu0 0.0
  %1631 = vmatprep.subr.mxu0 0.0
  %1632 = vmatpush2.msra.mxu0 0.0
  %1633 = vmatprep.subr.mxu0 0.0
  %1634 = vmatpush2.msra.mxu0 0.0
  %1635 = vmatprep.subr.mxu0 0.0
  %1636 = vmatpush2.msra.mxu0 0.0
  %1637 = vmatprep.mubr.f32.mxu0 0.0
  %1638 = vmatmul.mubr.f32.gmra.mxu0 %v1556
  %v1639 = vpop.f32.mrf.mxu0
  %v1640 = vadd.f32 0.0, %v1639
  %v1641 = vpop.f32.mrf.mxu0
  %1642 = vmatprep.mubr.f32.mxu0 0.0
  %1643 = vmatmul.mubr.f32.gmra.mxu0 %v1559
  %v1644 = vpop.f32.mrf.mxu0
  %v1645 = vadd.f32 0.0, %v1644
  %v1646 = vpop.f32.mrf.mxu0
  %1647 = vmatprep.mubr.f32.mxu0 0.0
  %1648 = vmatmul.mubr.f32.gmra.mxu0 %v1562
  %v1649 = vpop.f32.mrf.mxu0
  %v1650 = vadd.f32 0.0, %v1649
  %v1651 = vpop.f32.mrf.mxu0
  %1652 = vmatprep.mubr.f32.mxu0 0.0
  %1653 = vmatmul.mubr.f32.gmra.mxu0 %v1565
  %v1654 = vpop.f32.mrf.mxu0
  %v1655 = vadd.f32 0.0, %v1654
  %v1656 = vpop.f32.mrf.mxu0
  %1657 = vmatprep.mubr.f32.mxu0 0.0
  %1658 = vmatmul.mubr.f32.gmra.mxu0 %v1568
  %v1659 = vpop.f32.mrf.mxu0
  %v1660 = vadd.f32 0.0, %v1659
  %v1661 = vpop.f32.mrf.mxu0
  %1662 = vmatprep.mubr.f32.mxu0 0.0
  %1663 = vmatmul.mubr.f32.gmra.mxu0 %v1571
  %v1664 = vpop.f32.mrf.mxu0
  %v1665 = vadd.f32 0.0, %v1664
  %v1666 = vpop.f32.mrf.mxu0
  %1667 = vdwg.mxu0
  %s1668 = scalar_lea.vmem %s9, 112
  %v1669 = vld [vmem:[%s1668] sm:$0xff]
  %v1670 = vld [vmem:[%s1668 + $0x8] sm:$0xff]
  %v1671 = vld [vmem:[%s1668 + $0x10] sm:$0xff]
  %v1672 = vld [vmem:[%s1668 + $0x18] sm:$0xff]
  %v1673 = vld [vmem:[%s1668 + $0x20] sm:$0xff]
  %v1674 = vld [vmem:[%s1668 + $0x28] sm:$0xff]
  %v1675 = vld [vmem:[%s1668 + $0x30] sm:$0x11]
  %v1676 = vunpack.c.l.bf16 %v1669
  %v1677 = vunpack.c.h.bf16 %v1669
  %v1678 = vunpack.c.l.bf16 %v1670
  %v1679 = vunpack.c.h.bf16 %v1670
  %v1680 = vunpack.c.l.bf16 %v1671
  %v1681 = vunpack.c.h.bf16 %v1671
  %v1682 = vunpack.c.l.bf16 %v1672
  %v1683 = vunpack.c.h.bf16 %v1672
  %v1684 = vunpack.c.l.bf16 %v1673
  %v1685 = vunpack.c.h.bf16 %v1673
  %v1686 = vunpack.c.l.bf16 %v1674
  %v1687 = vunpack.c.h.bf16 %v1674
  %v1688 = vunpack.c.l.bf16 %v1675
  %v1689 = vunpack.c.h.bf16 %v1675
  %v1691 = vsel %vm745, %v1640, 0
  %v1694 = vsel %vm745, %v1645, 0
  %v1697 = vsel %vm745, %v1650, 0
  %v1700 = vsel %vm745, %v1655, 0
  %v1703 = vsel %vm745, %v1660, 0
  %v1706 = vsel %vm745, %v1665, 0
  %v1709 = vsel %vm1315, %v1688, 0
  %v1712 = vsel %vm1315, %v1689, 0
  %1714 = vmatprep.subr.mxu0 0.0
  %1715 = vmatpush1.msra.mxu0 0.0
  %1716 = vmatprep.subr.mxu0 0.0
  %1717 = vmatpush1.msra.mxu0 0.0
  %1718 = vmatprep.subr.mxu0 0.0
  %1719 = vmatpush1.msra.mxu0 0.0
  %1720 = vmatprep.subr.mxu0 0.0
  %1721 = vmatpush1.msra.mxu0 0.0
  %1722 = vmatprep.subr.mxu0 0.0
  %1723 = vmatpush1.msra.mxu0 0.0
  %1724 = vmatprep.subr.mxu0 0.0
  %1725 = vmatpush1.msra.mxu0 0.0
  %1726 = vmatprep.subr.mxu0 0.0
  %1727 = vmatpush1.msra.mxu0 0.0
  %1728 = vmatprep.subr.mxu0 0.0
  %1729 = vmatpush1.msra.mxu0 0.0
  %1730 = vmatprep.subr.mxu0 0.0
  %1731 = vmatpush1.msra.mxu0 0.0
  %1732 = vmatprep.subr.mxu0 %v1712
  %1733 = vmatpush1.msra.mxu0 %v1709
  %1734 = vmatprep.subr.mxu0 %v1687
  %1735 = vmatpush1.msra.mxu0 %v1686
  %1736 = vmatprep.subr.mxu0 %v1685
  %1737 = vmatpush1.msra.mxu0 %v1684
  %1738 = vmatprep.subr.mxu0 %v1683
  %1739 = vmatpush1.msra.mxu0 %v1682
  %1740 = vmatprep.subr.mxu0 %v1681
  %1741 = vmatpush1.msra.mxu0 %v1680
  %1742 = vmatprep.subr.mxu0 %v1679
  %1743 = vmatpush1.msra.mxu0 %v1678
  %1744 = vmatprep.subr.mxu0 %v1677
  %1745 = vmatpush1.msra.mxu0 %v1676
  %1746 = vmatprep.subr.mxu0 0.0
  %1747 = vmatpush2.msra.mxu0 0.0
  %1748 = vmatprep.subr.mxu0 0.0
  %1749 = vmatpush2.msra.mxu0 0.0
  %1750 = vmatprep.subr.mxu0 0.0
  %1751 = vmatpush2.msra.mxu0 0.0
  %1752 = vmatprep.subr.mxu0 0.0
  %1753 = vmatpush2.msra.mxu0 0.0
  %1754 = vmatprep.subr.mxu0 0.0
  %1755 = vmatpush2.msra.mxu0 0.0
  %1756 = vmatprep.subr.mxu0 0.0
  %1757 = vmatpush2.msra.mxu0 0.0
  %1758 = vmatprep.subr.mxu0 0.0
  %1759 = vmatpush2.msra.mxu0 0.0
  %1760 = vmatprep.subr.mxu0 0.0
  %1761 = vmatpush2.msra.mxu0 0.0
  %1762 = vmatprep.subr.mxu0 0.0
  %1763 = vmatpush2.msra.mxu0 0.0
  %1764 = vmatprep.subr.mxu0 0.0
  %1765 = vmatpush2.msra.mxu0 0.0
  %1766 = vmatprep.subr.mxu0 0.0
  %1767 = vmatpush2.msra.mxu0 0.0
  %1768 = vmatprep.subr.mxu0 0.0
  %1769 = vmatpush2.msra.mxu0 0.0
  %1770 = vmatprep.subr.mxu0 0.0
  %1771 = vmatpush2.msra.mxu0 0.0
  %1772 = vmatprep.subr.mxu0 0.0
  %1773 = vmatpush2.msra.mxu0 0.0
  %1774 = vmatprep.subr.mxu0 0.0
  %1775 = vmatpush2.msra.mxu0 0.0
  %1776 = vmatprep.subr.mxu0 0.0
  %1777 = vmatpush2.msra.mxu0 0.0
  %1778 = vmatprep.mubr.f32.mxu0 0.0
  %1779 = vmatmul.mubr.f32.gmra.mxu0 %v1691
  %v1780 = vpop.f32.mrf.mxu0
  %v1781 = vadd.f32 0.0, %v1780
  %v1782 = vpop.f32.mrf.mxu0
  %v1783 = vadd.f32 0.0, %v1782
  %1784 = vmatprep.mubr.f32.mxu0 0.0
  %1785 = vmatmul.mubr.f32.gmra.mxu0 %v1694
  %v1786 = vpop.f32.mrf.mxu0
  %v1787 = vadd.f32 0.0, %v1786
  %v1788 = vpop.f32.mrf.mxu0
  %v1789 = vadd.f32 0.0, %v1788
  %1790 = vmatprep.mubr.f32.mxu0 0.0
  %1791 = vmatmul.mubr.f32.gmra.mxu0 %v1697
  %v1792 = vpop.f32.mrf.mxu0
  %v1793 = vadd.f32 0.0, %v1792
  %v1794 = vpop.f32.mrf.mxu0
  %v1795 = vadd.f32 0.0, %v1794
  %1796 = vmatprep.mubr.f32.mxu0 0.0
  %1797 = vmatmul.mubr.f32.gmra.mxu0 %v1700
  %v1798 = vpop.f32.mrf.mxu0
  %v1799 = vadd.f32 0.0, %v1798
  %v1800 = vpop.f32.mrf.mxu0
  %v1801 = vadd.f32 0.0, %v1800
  %1802 = vmatprep.mubr.f32.mxu0 0.0
  %1803 = vmatmul.mubr.f32.gmra.mxu0 %v1703
  %v1804 = vpop.f32.mrf.mxu0
  %v1805 = vadd.f32 0.0, %v1804
  %v1806 = vpop.f32.mrf.mxu0
  %v1807 = vadd.f32 0.0, %v1806
  %1808 = vmatprep.mubr.f32.mxu0 0.0
  %1809 = vmatmul.mubr.f32.gmra.mxu0 %v1706
  %v1810 = vpop.f32.mrf.mxu0
  %v1811 = vadd.f32 0.0, %v1810
  %v1812 = vpop.f32.mrf.mxu0
  %v1813 = vadd.f32 0.0, %v1812
  %1814 = vdwg.mxu0
  %v1815 = vadd.f32 %v1514, %v1781
  %v1816 = vadd.f32 %v1516, %v1783
  %v1817 = vadd.f32 %v1520, %v1787
  %v1818 = vadd.f32 %v1522, %v1789
  %v1819 = vadd.f32 %v1526, %v1793
  %v1820 = vadd.f32 %v1528, %v1795
  %v1821 = vadd.f32 %v1532, %v1799
  %v1822 = vadd.f32 %v1534, %v1801
  %v1823 = vadd.f32 %v1538, %v1805
  %v1824 = vadd.f32 %v1540, %v1807
  %v1825 = vadd.f32 %v1544, %v1811
  %v1826 = vadd.f32 %v1546, %v1813
  %s1827 = scalar_lea.vmem %s8, 144
  %v1828 = vld [vmem:[%s1827] sm:$0xff]
  %v1829 = vld [vmem:[%s1827 + $0x8] sm:$0xff]
  %v1830 = vld [vmem:[%s1827 + $0x10] sm:$0xff]
  %v1831 = vld [vmem:[%s1827 + $0x18] sm:$0xff]
  %v1832 = vld [vmem:[%s1827 + $0x20] sm:$0xff]
  %v1833 = vld [vmem:[%s1827 + $0x28] sm:$0xff]
  %v1835 = vsel %vm755, %v1828, 0
  %v1838 = vsel %vm755, %v1829, 0
  %v1841 = vsel %vm755, %v1830, 0
  %v1844 = vsel %vm755, %v1831, 0
  %v1847 = vsel %vm755, %v1832, 0
  %v1850 = vsel %vm755, %v1833, 0
  %1852 = vmatprep.subr.mxu0 0.0
  %1853 = vmatpush1.msra.mxu0 0.0
  %1854 = vmatprep.subr.mxu0 0.0
  %1855 = vmatpush1.msra.mxu0 0.0
  %1856 = vmatprep.subr.mxu0 0.0
  %1857 = vmatpush1.msra.mxu0 0.0
  %1858 = vmatprep.subr.mxu0 0.0
  %1859 = vmatpush1.msra.mxu0 0.0
  %1860 = vmatprep.subr.mxu0 0.0
  %1861 = vmatpush1.msra.mxu0 0.0
  %1862 = vmatprep.subr.mxu0 0.0
  %1863 = vmatpush1.msra.mxu0 0.0
  %1864 = vmatprep.subr.mxu0 0.0
  %1865 = vmatpush1.msra.mxu0 0.0
  %1866 = vmatprep.subr.mxu0 0.0
  %1867 = vmatpush1.msra.mxu0 0.0
  %1868 = vmatprep.subr.mxu0 0.0
  %1869 = vmatpush1.msra.mxu0 0.0
  %1870 = vmatprep.subr.mxu0 0.0
  %1871 = vmatpush1.msra.mxu0 0.0
  %1872 = vmatprep.subr.mxu0 0.0
  %1873 = vmatpush1.msra.mxu0 0.0
  %1874 = vmatprep.subr.mxu0 0.0
  %1875 = vmatpush1.msra.mxu0 0.0
  %1876 = vmatprep.subr.mxu0 0.0
  %1877 = vmatpush1.msra.mxu0 0.0
  %1878 = vmatprep.subr.mxu0 0.0
  %1879 = vmatpush1.msra.mxu0 %v1014
  %1880 = vmatprep.subr.mxu0 0.0
  %1881 = vmatpush1.msra.mxu0 %v1013
  %1882 = vmatprep.subr.mxu0 0.0
  %1883 = vmatpush1.msra.mxu0 %v1012
  %1884 = vmatprep.subr.mxu0 0.0
  %1885 = vmatpush2.msra.mxu0 0.0
  %1886 = vmatprep.subr.mxu0 0.0
  %1887 = vmatpush2.msra.mxu0 0.0
  %1888 = vmatprep.subr.mxu0 0.0
  %1889 = vmatpush2.msra.mxu0 0.0
  %1890 = vmatprep.subr.mxu0 0.0
  %1891 = vmatpush2.msra.mxu0 0.0
  %1892 = vmatprep.subr.mxu0 0.0
  %1893 = vmatpush2.msra.mxu0 0.0
  %1894 = vmatprep.subr.mxu0 0.0
  %1895 = vmatpush2.msra.mxu0 0.0
  %1896 = vmatprep.subr.mxu0 0.0
  %1897 = vmatpush2.msra.mxu0 0.0
  %1898 = vmatprep.subr.mxu0 0.0
  %1899 = vmatpush2.msra.mxu0 0.0
  %1900 = vmatprep.subr.mxu0 0.0
  %1901 = vmatpush2.msra.mxu0 0.0
  %1902 = vmatprep.subr.mxu0 0.0
  %1903 = vmatpush2.msra.mxu0 0.0
  %1904 = vmatprep.subr.mxu0 0.0
  %1905 = vmatpush2.msra.mxu0 0.0
  %1906 = vmatprep.subr.mxu0 0.0
  %1907 = vmatpush2.msra.mxu0 0.0
  %1908 = vmatprep.subr.mxu0 0.0
  %1909 = vmatpush2.msra.mxu0 0.0
  %1910 = vmatprep.subr.mxu0 0.0
  %1911 = vmatpush2.msra.mxu0 0.0
  %1912 = vmatprep.subr.mxu0 0.0
  %1913 = vmatpush2.msra.mxu0 0.0
  %1914 = vmatprep.subr.mxu0 0.0
  %1915 = vmatpush2.msra.mxu0 0.0
  %1916 = vmatprep.mubr.f32.mxu0 0.0
  %1917 = vmatmul.mubr.f32.gmra.mxu0 %v1835
  %v1918 = vpop.f32.mrf.mxu0
  %v1919 = vadd.f32 0.0, %v1918
  %v1920 = vpop.f32.mrf.mxu0
  %1921 = vmatprep.mubr.f32.mxu0 0.0
  %1922 = vmatmul.mubr.f32.gmra.mxu0 %v1838
  %v1923 = vpop.f32.mrf.mxu0
  %v1924 = vadd.f32 0.0, %v1923
  %v1925 = vpop.f32.mrf.mxu0
  %1926 = vmatprep.mubr.f32.mxu0 0.0
  %1927 = vmatmul.mubr.f32.gmra.mxu0 %v1841
  %v1928 = vpop.f32.mrf.mxu0
  %v1929 = vadd.f32 0.0, %v1928
  %v1930 = vpop.f32.mrf.mxu0
  %1931 = vmatprep.mubr.f32.mxu0 0.0
  %1932 = vmatmul.mubr.f32.gmra.mxu0 %v1844
  %v1933 = vpop.f32.mrf.mxu0
  %v1934 = vadd.f32 0.0, %v1933
  %v1935 = vpop.f32.mrf.mxu0
  %1936 = vmatprep.mubr.f32.mxu0 0.0
  %1937 = vmatmul.mubr.f32.gmra.mxu0 %v1847
  %v1938 = vpop.f32.mrf.mxu0
  %v1939 = vadd.f32 0.0, %v1938
  %v1940 = vpop.f32.mrf.mxu0
  %1941 = vmatprep.mubr.f32.mxu0 0.0
  %1942 = vmatmul.mubr.f32.gmra.mxu0 %v1850
  %v1943 = vpop.f32.mrf.mxu0
  %v1944 = vadd.f32 0.0, %v1943
  %v1945 = vpop.f32.mrf.mxu0
  %1946 = vdwg.mxu0
  %s1947 = scalar_lea.vmem %s9, 168
  %v1948 = vld [vmem:[%s1947] sm:$0xff]
  %v1949 = vld [vmem:[%s1947 + $0x8] sm:$0xff]
  %v1950 = vld [vmem:[%s1947 + $0x10] sm:$0xff]
  %v1951 = vld [vmem:[%s1947 + $0x18] sm:$0xff]
  %v1952 = vld [vmem:[%s1947 + $0x20] sm:$0xff]
  %v1953 = vld [vmem:[%s1947 + $0x28] sm:$0xff]
  %v1954 = vld [vmem:[%s1947 + $0x30] sm:$0x11]
  %v1955 = vunpack.c.l.bf16 %v1948
  %v1956 = vunpack.c.h.bf16 %v1948
  %v1957 = vunpack.c.l.bf16 %v1949
  %v1958 = vunpack.c.h.bf16 %v1949
  %v1959 = vunpack.c.l.bf16 %v1950
  %v1960 = vunpack.c.h.bf16 %v1950
  %v1961 = vunpack.c.l.bf16 %v1951
  %v1962 = vunpack.c.h.bf16 %v1951
  %v1963 = vunpack.c.l.bf16 %v1952
  %v1964 = vunpack.c.h.bf16 %v1952
  %v1965 = vunpack.c.l.bf16 %v1953
  %v1966 = vunpack.c.h.bf16 %v1953
  %v1967 = vunpack.c.l.bf16 %v1954
  %v1968 = vunpack.c.h.bf16 %v1954
  %v1970 = vsel %vm745, %v1919, 0
  %v1973 = vsel %vm745, %v1924, 0
  %v1976 = vsel %vm745, %v1929, 0
  %v1979 = vsel %vm745, %v1934, 0
  %v1982 = vsel %vm745, %v1939, 0
  %v1985 = vsel %vm745, %v1944, 0
  %v1988 = vsel %vm1315, %v1967, 0
  %v1991 = vsel %vm1315, %v1968, 0
  %1993 = vmatprep.subr.mxu0 0.0
  %1994 = vmatpush1.msra.mxu0 0.0
  %1995 = vmatprep.subr.mxu0 0.0
  %1996 = vmatpush1.msra.mxu0 0.0
  %1997 = vmatprep.subr.mxu0 0.0
  %1998 = vmatpush1.msra.mxu0 0.0
  %1999 = vmatprep.subr.mxu0 0.0
  %2000 = vmatpush1.msra.mxu0 0.0
  %2001 = vmatprep.subr.mxu0 0.0
  %2002 = vmatpush1.msra.mxu0 0.0
  %2003 = vmatprep.subr.mxu0 0.0
  %2004 = vmatpush1.msra.mxu0 0.0
  %2005 = vmatprep.subr.mxu0 0.0
  %2006 = vmatpush1.msra.mxu0 0.0
  %2007 = vmatprep.subr.mxu0 0.0
  %2008 = vmatpush1.msra.mxu0 0.0
  %2009 = vmatprep.subr.mxu0 0.0
  %2010 = vmatpush1.msra.mxu0 0.0
  %2011 = vmatprep.subr.mxu0 %v1991
  %2012 = vmatpush1.msra.mxu0 %v1988
  %2013 = vmatprep.subr.mxu0 %v1966
  %2014 = vmatpush1.msra.mxu0 %v1965
  %2015 = vmatprep.subr.mxu0 %v1964
  %2016 = vmatpush1.msra.mxu0 %v1963
  %2017 = vmatprep.subr.mxu0 %v1962
  %2018 = vmatpush1.msra.mxu0 %v1961
  %2019 = vmatprep.subr.mxu0 %v1960
  %2020 = vmatpush1.msra.mxu0 %v1959
  %2021 = vmatprep.subr.mxu0 %v1958
  %2022 = vmatpush1.msra.mxu0 %v1957
  %2023 = vmatprep.subr.mxu0 %v1956
  %2024 = vmatpush1.msra.mxu0 %v1955
  %2025 = vmatprep.subr.mxu0 0.0
  %2026 = vmatpush2.msra.mxu0 0.0
  %2027 = vmatprep.subr.mxu0 0.0
  %2028 = vmatpush2.msra.mxu0 0.0
  %2029 = vmatprep.subr.mxu0 0.0
  %2030 = vmatpush2.msra.mxu0 0.0
  %2031 = vmatprep.subr.mxu0 0.0
  %2032 = vmatpush2.msra.mxu0 0.0
  %2033 = vmatprep.subr.mxu0 0.0
  %2034 = vmatpush2.msra.mxu0 0.0
  %2035 = vmatprep.subr.mxu0 0.0
  %2036 = vmatpush2.msra.mxu0 0.0
  %2037 = vmatprep.subr.mxu0 0.0
  %2038 = vmatpush2.msra.mxu0 0.0
  %2039 = vmatprep.subr.mxu0 0.0
  %2040 = vmatpush2.msra.mxu0 0.0
  %2041 = vmatprep.subr.mxu0 0.0
  %2042 = vmatpush2.msra.mxu0 0.0
  %2043 = vmatprep.subr.mxu0 0.0
  %2044 = vmatpush2.msra.mxu0 0.0
  %2045 = vmatprep.subr.mxu0 0.0
  %2046 = vmatpush2.msra.mxu0 0.0
  %2047 = vmatprep.subr.mxu0 0.0
  %2048 = vmatpush2.msra.mxu0 0.0
  %2049 = vmatprep.subr.mxu0 0.0
  %2050 = vmatpush2.msra.mxu0 0.0
  %2051 = vmatprep.subr.mxu0 0.0
  %2052 = vmatpush2.msra.mxu0 0.0
  %2053 = vmatprep.subr.mxu0 0.0
  %2054 = vmatpush2.msra.mxu0 0.0
  %2055 = vmatprep.subr.mxu0 0.0
  %2056 = vmatpush2.msra.mxu0 0.0
  %2057 = vmatprep.mubr.f32.mxu0 0.0
  %2058 = vmatmul.mubr.f32.gmra.mxu0 %v1970
  %v2059 = vpop.f32.mrf.mxu0
  %v2060 = vadd.f32 0.0, %v2059
  %v2061 = vpop.f32.mrf.mxu0
  %v2062 = vadd.f32 0.0, %v2061
  %2063 = vmatprep.mubr.f32.mxu0 0.0
  %2064 = vmatmul.mubr.f32.gmra.mxu0 %v1973
  %v2065 = vpop.f32.mrf.mxu0
  %v2066 = vadd.f32 0.0, %v2065
  %v2067 = vpop.f32.mrf.mxu0
  %v2068 = vadd.f32 0.0, %v2067
  %2069 = vmatprep.mubr.f32.mxu0 0.0
  %2070 = vmatmul.mubr.f32.gmra.mxu0 %v1976
  %v2071 = vpop.f32.mrf.mxu0
  %v2072 = vadd.f32 0.0, %v2071
  %v2073 = vpop.f32.mrf.mxu0
  %v2074 = vadd.f32 0.0, %v2073
  %2075 = vmatprep.mubr.f32.mxu0 0.0
  %2076 = vmatmul.mubr.f32.gmra.mxu0 %v1979
  %v2077 = vpop.f32.mrf.mxu0
  %v2078 = vadd.f32 0.0, %v2077
  %v2079 = vpop.f32.mrf.mxu0
  %v2080 = vadd.f32 0.0, %v2079
  %2081 = vmatprep.mubr.f32.mxu0 0.0
  %2082 = vmatmul.mubr.f32.gmra.mxu0 %v1982
  %v2083 = vpop.f32.mrf.mxu0
  %v2084 = vadd.f32 0.0, %v2083
  %v2085 = vpop.f32.mrf.mxu0
  %v2086 = vadd.f32 0.0, %v2085
  %2087 = vmatprep.mubr.f32.mxu0 0.0
  %2088 = vmatmul.mubr.f32.gmra.mxu0 %v1985
  %v2089 = vpop.f32.mrf.mxu0
  %v2090 = vadd.f32 0.0, %v2089
  %v2091 = vpop.f32.mrf.mxu0
  %v2092 = vadd.f32 0.0, %v2091
  %2093 = vdwg.mxu0
  %v2094 = vadd.f32 %v1815, %v2060
  %v2095 = vadd.f32 %v1816, %v2062
  %v2096 = vadd.f32 %v1817, %v2066
  %v2097 = vadd.f32 %v1818, %v2068
  %v2098 = vadd.f32 %v1819, %v2072
  %v2099 = vadd.f32 %v1820, %v2074
  %v2100 = vadd.f32 %v1821, %v2078
  %v2101 = vadd.f32 %v1822, %v2080
  %v2102 = vadd.f32 %v1823, %v2084
  %v2103 = vadd.f32 %v1824, %v2086
  %v2104 = vadd.f32 %v1825, %v2090
  %v2105 = vadd.f32 %v1826, %v2092
  %s2106 = scalar_lea.vmem %s8, 192
  %v2107 = vld [vmem:[%s2106] sm:$0xff]
  %v2108 = vld [vmem:[%s2106 + $0x8] sm:$0xff]
  %v2109 = vld [vmem:[%s2106 + $0x10] sm:$0xff]
  %v2110 = vld [vmem:[%s2106 + $0x18] sm:$0xff]
  %v2111 = vld [vmem:[%s2106 + $0x20] sm:$0xff]
  %v2112 = vld [vmem:[%s2106 + $0x28] sm:$0xff]
  %v2114 = vsel %vm755, %v2107, 0
  %v2117 = vsel %vm755, %v2108, 0
  %v2120 = vsel %vm755, %v2109, 0
  %v2123 = vsel %vm755, %v2110, 0
  %v2126 = vsel %vm755, %v2111, 0
  %v2129 = vsel %vm755, %v2112, 0
  %2131 = vmatprep.subr.mxu0 0.0
  %2132 = vmatpush1.msra.mxu0 0.0
  %2133 = vmatprep.subr.mxu0 0.0
  %2134 = vmatpush1.msra.mxu0 0.0
  %2135 = vmatprep.subr.mxu0 0.0
  %2136 = vmatpush1.msra.mxu0 0.0
  %2137 = vmatprep.subr.mxu0 0.0
  %2138 = vmatpush1.msra.mxu0 0.0
  %2139 = vmatprep.subr.mxu0 0.0
  %2140 = vmatpush1.msra.mxu0 0.0
  %2141 = vmatprep.subr.mxu0 0.0
  %2142 = vmatpush1.msra.mxu0 0.0
  %2143 = vmatprep.subr.mxu0 0.0
  %2144 = vmatpush1.msra.mxu0 0.0
  %2145 = vmatprep.subr.mxu0 0.0
  %2146 = vmatpush1.msra.mxu0 0.0
  %2147 = vmatprep.subr.mxu0 0.0
  %2148 = vmatpush1.msra.mxu0 0.0
  %2149 = vmatprep.subr.mxu0 0.0
  %2150 = vmatpush1.msra.mxu0 0.0
  %2151 = vmatprep.subr.mxu0 0.0
  %2152 = vmatpush1.msra.mxu0 0.0
  %2153 = vmatprep.subr.mxu0 0.0
  %2154 = vmatpush1.msra.mxu0 0.0
  %2155 = vmatprep.subr.mxu0 0.0
  %2156 = vmatpush1.msra.mxu0 0.0
  %2157 = vmatprep.subr.mxu0 0.0
  %2158 = vmatpush1.msra.mxu0 %v1014
  %2159 = vmatprep.subr.mxu0 0.0
  %2160 = vmatpush1.msra.mxu0 %v1013
  %2161 = vmatprep.subr.mxu0 0.0
  %2162 = vmatpush1.msra.mxu0 %v1012
  %2163 = vmatprep.subr.mxu0 0.0
  %2164 = vmatpush2.msra.mxu0 0.0
  %2165 = vmatprep.subr.mxu0 0.0
  %2166 = vmatpush2.msra.mxu0 0.0
  %2167 = vmatprep.subr.mxu0 0.0
  %2168 = vmatpush2.msra.mxu0 0.0
  %2169 = vmatprep.subr.mxu0 0.0
  %2170 = vmatpush2.msra.mxu0 0.0
  %2171 = vmatprep.subr.mxu0 0.0
  %2172 = vmatpush2.msra.mxu0 0.0
  %2173 = vmatprep.subr.mxu0 0.0
  %2174 = vmatpush2.msra.mxu0 0.0
  %2175 = vmatprep.subr.mxu0 0.0
  %2176 = vmatpush2.msra.mxu0 0.0
  %2177 = vmatprep.subr.mxu0 0.0
  %2178 = vmatpush2.msra.mxu0 0.0
  %2179 = vmatprep.subr.mxu0 0.0
  %2180 = vmatpush2.msra.mxu0 0.0
  %2181 = vmatprep.subr.mxu0 0.0
  %2182 = vmatpush2.msra.mxu0 0.0
  %2183 = vmatprep.subr.mxu0 0.0
  %2184 = vmatpush2.msra.mxu0 0.0
  %2185 = vmatprep.subr.mxu0 0.0
  %2186 = vmatpush2.msra.mxu0 0.0
  %2187 = vmatprep.subr.mxu0 0.0
  %2188 = vmatpush2.msra.mxu0 0.0
  %2189 = vmatprep.subr.mxu0 0.0
  %2190 = vmatpush2.msra.mxu0 0.0
  %2191 = vmatprep.subr.mxu0 0.0
  %2192 = vmatpush2.msra.mxu0 0.0
  %2193 = vmatprep.subr.mxu0 0.0
  %2194 = vmatpush2.msra.mxu0 0.0
  %2195 = vmatprep.mubr.f32.mxu0 0.0
  %2196 = vmatmul.mubr.f32.gmra.mxu0 %v2114
  %v2197 = vpop.f32.mrf.mxu0
  %v2198 = vadd.f32 0.0, %v2197
  %v2199 = vpop.f32.mrf.mxu0
  %2200 = vmatprep.mubr.f32.mxu0 0.0
  %2201 = vmatmul.mubr.f32.gmra.mxu0 %v2117
  %v2202 = vpop.f32.mrf.mxu0
  %v2203 = vadd.f32 0.0, %v2202
  %v2204 = vpop.f32.mrf.mxu0
  %2205 = vmatprep.mubr.f32.mxu0 0.0
  %2206 = vmatmul.mubr.f32.gmra.mxu0 %v2120
  %v2207 = vpop.f32.mrf.mxu0
  %v2208 = vadd.f32 0.0, %v2207
  %v2209 = vpop.f32.mrf.mxu0
  %2210 = vmatprep.mubr.f32.mxu0 0.0
  %2211 = vmatmul.mubr.f32.gmra.mxu0 %v2123
  %v2212 = vpop.f32.mrf.mxu0
  %v2213 = vadd.f32 0.0, %v2212
  %v2214 = vpop.f32.mrf.mxu0
  %2215 = vmatprep.mubr.f32.mxu0 0.0
  %2216 = vmatmul.mubr.f32.gmra.mxu0 %v2126
  %v2217 = vpop.f32.mrf.mxu0
  %v2218 = vadd.f32 0.0, %v2217
  %v2219 = vpop.f32.mrf.mxu0
  %2220 = vmatprep.mubr.f32.mxu0 0.0
  %2221 = vmatmul.mubr.f32.gmra.mxu0 %v2129
  %v2222 = vpop.f32.mrf.mxu0
  %v2223 = vadd.f32 0.0, %v2222
  %v2224 = vpop.f32.mrf.mxu0
  %2225 = vdwg.mxu0
  %s2226 = scalar_lea.vmem %s9, 224
  %v2227 = vld [vmem:[%s2226] sm:$0xff]
  %v2228 = vld [vmem:[%s2226 + $0x8] sm:$0xff]
  %v2229 = vld [vmem:[%s2226 + $0x10] sm:$0xff]
  %v2230 = vld [vmem:[%s2226 + $0x18] sm:$0xff]
  %v2231 = vld [vmem:[%s2226 + $0x20] sm:$0xff]
  %v2232 = vld [vmem:[%s2226 + $0x28] sm:$0xff]
  %v2233 = vld [vmem:[%s2226 + $0x30] sm:$0x11]
  %v2234 = vunpack.c.l.bf16 %v2227
  %v2235 = vunpack.c.h.bf16 %v2227
  %v2236 = vunpack.c.l.bf16 %v2228
  %v2237 = vunpack.c.h.bf16 %v2228
  %v2238 = vunpack.c.l.bf16 %v2229
  %v2239 = vunpack.c.h.bf16 %v2229
  %v2240 = vunpack.c.l.bf16 %v2230
  %v2241 = vunpack.c.h.bf16 %v2230
  %v2242 = vunpack.c.l.bf16 %v2231
  %v2243 = vunpack.c.h.bf16 %v2231
  %v2244 = vunpack.c.l.bf16 %v2232
  %v2245 = vunpack.c.h.bf16 %v2232
  %v2246 = vunpack.c.l.bf16 %v2233
  %v2247 = vunpack.c.h.bf16 %v2233
  %v2249 = vsel %vm745, %v2198, 0
  %v2252 = vsel %vm745, %v2203, 0
  %v2255 = vsel %vm745, %v2208, 0
  %v2258 = vsel %vm745, %v2213, 0
  %v2261 = vsel %vm745, %v2218, 0
  %v2264 = vsel %vm745, %v2223, 0
  %v2267 = vsel %vm1315, %v2246, 0
  %v2270 = vsel %vm1315, %v2247, 0
  %2272 = vmatprep.subr.mxu0 0.0
  %2273 = vmatpush1.msra.mxu0 0.0
  %2274 = vmatprep.subr.mxu0 0.0
  %2275 = vmatpush1.msra.mxu0 0.0
  %2276 = vmatprep.subr.mxu0 0.0
  %2277 = vmatpush1.msra.mxu0 0.0
  %2278 = vmatprep.subr.mxu0 0.0
  %2279 = vmatpush1.msra.mxu0 0.0
  %2280 = vmatprep.subr.mxu0 0.0
  %2281 = vmatpush1.msra.mxu0 0.0
  %2282 = vmatprep.subr.mxu0 0.0
  %2283 = vmatpush1.msra.mxu0 0.0
  %2284 = vmatprep.subr.mxu0 0.0
  %2285 = vmatpush1.msra.mxu0 0.0
  %2286 = vmatprep.subr.mxu0 0.0
  %2287 = vmatpush1.msra.mxu0 0.0
  %2288 = vmatprep.subr.mxu0 0.0
  %2289 = vmatpush1.msra.mxu0 0.0
  %2290 = vmatprep.subr.mxu0 %v2270
  %2291 = vmatpush1.msra.mxu0 %v2267
  %2292 = vmatprep.subr.mxu0 %v2245
  %2293 = vmatpush1.msra.mxu0 %v2244
  %2294 = vmatprep.subr.mxu0 %v2243
  %2295 = vmatpush1.msra.mxu0 %v2242
  %2296 = vmatprep.subr.mxu0 %v2241
  %2297 = vmatpush1.msra.mxu0 %v2240
  %2298 = vmatprep.subr.mxu0 %v2239
  %2299 = vmatpush1.msra.mxu0 %v2238
  %2300 = vmatprep.subr.mxu0 %v2237
  %2301 = vmatpush1.msra.mxu0 %v2236
  %2302 = vmatprep.subr.mxu0 %v2235
  %2303 = vmatpush1.msra.mxu0 %v2234
  %2304 = vmatprep.subr.mxu0 0.0
  %2305 = vmatpush2.msra.mxu0 0.0
  %2306 = vmatprep.subr.mxu0 0.0
  %2307 = vmatpush2.msra.mxu0 0.0
  %2308 = vmatprep.subr.mxu0 0.0
  %2309 = vmatpush2.msra.mxu0 0.0
  %2310 = vmatprep.subr.mxu0 0.0
  %2311 = vmatpush2.msra.mxu0 0.0
  %2312 = vmatprep.subr.mxu0 0.0
  %2313 = vmatpush2.msra.mxu0 0.0
  %2314 = vmatprep.subr.mxu0 0.0
  %2315 = vmatpush2.msra.mxu0 0.0
  %2316 = vmatprep.subr.mxu0 0.0
  %2317 = vmatpush2.msra.mxu0 0.0
  %2318 = vmatprep.subr.mxu0 0.0
  %2319 = vmatpush2.msra.mxu0 0.0
  %2320 = vmatprep.subr.mxu0 0.0
  %2321 = vmatpush2.msra.mxu0 0.0
  %2322 = vmatprep.subr.mxu0 0.0
  %2323 = vmatpush2.msra.mxu0 0.0
  %2324 = vmatprep.subr.mxu0 0.0
  %2325 = vmatpush2.msra.mxu0 0.0
  %2326 = vmatprep.subr.mxu0 0.0
  %2327 = vmatpush2.msra.mxu0 0.0
  %2328 = vmatprep.subr.mxu0 0.0
  %2329 = vmatpush2.msra.mxu0 0.0
  %2330 = vmatprep.subr.mxu0 0.0
  %2331 = vmatpush2.msra.mxu0 0.0
  %2332 = vmatprep.subr.mxu0 0.0
  %2333 = vmatpush2.msra.mxu0 0.0
  %2334 = vmatprep.subr.mxu0 0.0
  %2335 = vmatpush2.msra.mxu0 0.0
  %2336 = vmatprep.mubr.f32.mxu0 0.0
  %2337 = vmatmul.mubr.f32.gmra.mxu0 %v2249
  %v2338 = vpop.f32.mrf.mxu0
  %v2339 = vadd.f32 0.0, %v2338
  %v2340 = vpop.f32.mrf.mxu0
  %v2341 = vadd.f32 0.0, %v2340
  %2342 = vmatprep.mubr.f32.mxu0 0.0
  %2343 = vmatmul.mubr.f32.gmra.mxu0 %v2252
  %v2344 = vpop.f32.mrf.mxu0
  %v2345 = vadd.f32 0.0, %v2344
  %v2346 = vpop.f32.mrf.mxu0
  %v2347 = vadd.f32 0.0, %v2346
  %2348 = vmatprep.mubr.f32.mxu0 0.0
  %2349 = vmatmul.mubr.f32.gmra.mxu0 %v2255
  %v2350 = vpop.f32.mrf.mxu0
  %v2351 = vadd.f32 0.0, %v2350
  %v2352 = vpop.f32.mrf.mxu0
  %v2353 = vadd.f32 0.0, %v2352
  %2354 = vmatprep.mubr.f32.mxu0 0.0
  %2355 = vmatmul.mubr.f32.gmra.mxu0 %v2258
  %v2356 = vpop.f32.mrf.mxu0
  %v2357 = vadd.f32 0.0, %v2356
  %v2358 = vpop.f32.mrf.mxu0
  %v2359 = vadd.f32 0.0, %v2358
  %2360 = vmatprep.mubr.f32.mxu0 0.0
  %2361 = vmatmul.mubr.f32.gmra.mxu0 %v2261
  %v2362 = vpop.f32.mrf.mxu0
  %v2363 = vadd.f32 0.0, %v2362
  %v2364 = vpop.f32.mrf.mxu0
  %v2365 = vadd.f32 0.0, %v2364
  %2366 = vmatprep.mubr.f32.mxu0 0.0
  %2367 = vmatmul.mubr.f32.gmra.mxu0 %v2264
  %v2368 = vpop.f32.mrf.mxu0
  %v2369 = vadd.f32 0.0, %v2368
  %v2370 = vpop.f32.mrf.mxu0
  %v2371 = vadd.f32 0.0, %v2370
  %2372 = vdwg.mxu0
  %v2373 = vadd.f32 %v2094, %v2339
  %v2374 = vadd.f32 %v2095, %v2341
  %v2375 = vadd.f32 %v2096, %v2345
  %v2376 = vadd.f32 %v2097, %v2347
  %v2377 = vadd.f32 %v2098, %v2351
  %v2378 = vadd.f32 %v2099, %v2353
  %v2379 = vadd.f32 %v2100, %v2357
  %v2380 = vadd.f32 %v2101, %v2359
  %v2381 = vadd.f32 %v2102, %v2363
  %v2382 = vadd.f32 %v2103, %v2365
  %v2383 = vadd.f32 %v2104, %v2369
  %v2384 = vadd.f32 %v2105, %v2371
  %s2385 = scalar_lea.vmem %s8, 240
  %v2386 = vld [vmem:[%s2385] sm:$0xff]
  %v2387 = vld [vmem:[%s2385 + $0x8] sm:$0xff]
  %v2388 = vld [vmem:[%s2385 + $0x10] sm:$0xff]
  %v2389 = vld [vmem:[%s2385 + $0x18] sm:$0xff]
  %v2390 = vld [vmem:[%s2385 + $0x20] sm:$0xff]
  %v2391 = vld [vmem:[%s2385 + $0x28] sm:$0xff]
  %v2393 = vsel %vm755, %v2386, 0
  %v2396 = vsel %vm755, %v2387, 0
  %v2399 = vsel %vm755, %v2388, 0
  %v2402 = vsel %vm755, %v2389, 0
  %v2405 = vsel %vm755, %v2390, 0
  %v2408 = vsel %vm755, %v2391, 0
  %2410 = vmatprep.subr.mxu0 0.0
  %2411 = vmatpush1.msra.mxu0 0.0
  %2412 = vmatprep.subr.mxu0 0.0
  %2413 = vmatpush1.msra.mxu0 0.0
  %2414 = vmatprep.subr.mxu0 0.0
  %2415 = vmatpush1.msra.mxu0 0.0
  %2416 = vmatprep.subr.mxu0 0.0
  %2417 = vmatpush1.msra.mxu0 0.0
  %2418 = vmatprep.subr.mxu0 0.0
  %2419 = vmatpush1.msra.mxu0 0.0
  %2420 = vmatprep.subr.mxu0 0.0
  %2421 = vmatpush1.msra.mxu0 0.0
  %2422 = vmatprep.subr.mxu0 0.0
  %2423 = vmatpush1.msra.mxu0 0.0
  %2424 = vmatprep.subr.mxu0 0.0
  %2425 = vmatpush1.msra.mxu0 0.0
  %2426 = vmatprep.subr.mxu0 0.0
  %2427 = vmatpush1.msra.mxu0 0.0
  %2428 = vmatprep.subr.mxu0 0.0
  %2429 = vmatpush1.msra.mxu0 0.0
  %2430 = vmatprep.subr.mxu0 0.0
  %2431 = vmatpush1.msra.mxu0 0.0
  %2432 = vmatprep.subr.mxu0 0.0
  %2433 = vmatpush1.msra.mxu0 0.0
  %2434 = vmatprep.subr.mxu0 0.0
  %2435 = vmatpush1.msra.mxu0 0.0
  %2436 = vmatprep.subr.mxu0 0.0
  %2437 = vmatpush1.msra.mxu0 %v1014
  %2438 = vmatprep.subr.mxu0 0.0
  %2439 = vmatpush1.msra.mxu0 %v1013
  %2440 = vmatprep.subr.mxu0 0.0
  %2441 = vmatpush1.msra.mxu0 %v1012
  %2442 = vmatprep.subr.mxu0 0.0
  %2443 = vmatpush2.msra.mxu0 0.0
  %2444 = vmatprep.subr.mxu0 0.0
  %2445 = vmatpush2.msra.mxu0 0.0
  %2446 = vmatprep.subr.mxu0 0.0
  %2447 = vmatpush2.msra.mxu0 0.0
  %2448 = vmatprep.subr.mxu0 0.0
  %2449 = vmatpush2.msra.mxu0 0.0
  %2450 = vmatprep.subr.mxu0 0.0
  %2451 = vmatpush2.msra.mxu0 0.0
  %2452 = vmatprep.subr.mxu0 0.0
  %2453 = vmatpush2.msra.mxu0 0.0
  %2454 = vmatprep.subr.mxu0 0.0
  %2455 = vmatpush2.msra.mxu0 0.0
  %2456 = vmatprep.subr.mxu0 0.0
  %2457 = vmatpush2.msra.mxu0 0.0
  %2458 = vmatprep.subr.mxu0 0.0
  %2459 = vmatpush2.msra.mxu0 0.0
  %2460 = vmatprep.subr.mxu0 0.0
  %2461 = vmatpush2.msra.mxu0 0.0
  %2462 = vmatprep.subr.mxu0 0.0
  %2463 = vmatpush2.msra.mxu0 0.0
  %2464 = vmatprep.subr.mxu0 0.0
  %2465 = vmatpush2.msra.mxu0 0.0
  %2466 = vmatprep.subr.mxu0 0.0
  %2467 = vmatpush2.msra.mxu0 0.0
  %2468 = vmatprep.subr.mxu0 0.0
  %2469 = vmatpush2.msra.mxu0 0.0
  %2470 = vmatprep.subr.mxu0 0.0
  %2471 = vmatpush2.msra.mxu0 0.0
  %2472 = vmatprep.subr.mxu0 0.0
  %2473 = vmatpush2.msra.mxu0 0.0
  %2474 = vmatprep.mubr.f32.mxu0 0.0
  %2475 = vmatmul.mubr.f32.gmra.mxu0 %v2393
  %v2476 = vpop.f32.mrf.mxu0
  %v2477 = vadd.f32 0.0, %v2476
  %v2478 = vpop.f32.mrf.mxu0
  %2479 = vmatprep.mubr.f32.mxu0 0.0
  %2480 = vmatmul.mubr.f32.gmra.mxu0 %v2396
  %v2481 = vpop.f32.mrf.mxu0
  %v2482 = vadd.f32 0.0, %v2481
  %v2483 = vpop.f32.mrf.mxu0
  %2484 = vmatprep.mubr.f32.mxu0 0.0
  %2485 = vmatmul.mubr.f32.gmra.mxu0 %v2399
  %v2486 = vpop.f32.mrf.mxu0
  %v2487 = vadd.f32 0.0, %v2486
  %v2488 = vpop.f32.mrf.mxu0
  %2489 = vmatprep.mubr.f32.mxu0 0.0
  %2490 = vmatmul.mubr.f32.gmra.mxu0 %v2402
  %v2491 = vpop.f32.mrf.mxu0
  %v2492 = vadd.f32 0.0, %v2491
  %v2493 = vpop.f32.mrf.mxu0
  %2494 = vmatprep.mubr.f32.mxu0 0.0
  %2495 = vmatmul.mubr.f32.gmra.mxu0 %v2405
  %v2496 = vpop.f32.mrf.mxu0
  %v2497 = vadd.f32 0.0, %v2496
  %v2498 = vpop.f32.mrf.mxu0
  %2499 = vmatprep.mubr.f32.mxu0 0.0
  %2500 = vmatmul.mubr.f32.gmra.mxu0 %v2408
  %v2501 = vpop.f32.mrf.mxu0
  %v2502 = vadd.f32 0.0, %v2501
  %v2503 = vpop.f32.mrf.mxu0
  %2504 = vdwg.mxu0
  %s2505 = scalar_lea.vmem %s9, 280
  %v2506 = vld [vmem:[%s2505] sm:$0xff]
  %v2507 = vld [vmem:[%s2505 + $0x8] sm:$0xff]
  %v2508 = vld [vmem:[%s2505 + $0x10] sm:$0xff]
  %v2509 = vld [vmem:[%s2505 + $0x18] sm:$0xff]
  %v2510 = vld [vmem:[%s2505 + $0x20] sm:$0xff]
  %v2511 = vld [vmem:[%s2505 + $0x28] sm:$0xff]
  %v2512 = vld [vmem:[%s2505 + $0x30] sm:$0x11]
  %v2513 = vunpack.c.l.bf16 %v2506
  %v2514 = vunpack.c.h.bf16 %v2506
  %v2515 = vunpack.c.l.bf16 %v2507
  %v2516 = vunpack.c.h.bf16 %v2507
  %v2517 = vunpack.c.l.bf16 %v2508
  %v2518 = vunpack.c.h.bf16 %v2508
  %v2519 = vunpack.c.l.bf16 %v2509
  %v2520 = vunpack.c.h.bf16 %v2509
  %v2521 = vunpack.c.l.bf16 %v2510
  %v2522 = vunpack.c.h.bf16 %v2510
  %v2523 = vunpack.c.l.bf16 %v2511
  %v2524 = vunpack.c.h.bf16 %v2511
  %v2525 = vunpack.c.l.bf16 %v2512
  %v2526 = vunpack.c.h.bf16 %v2512
  %v2528 = vsel %vm745, %v2477, 0
  %v2531 = vsel %vm745, %v2482, 0
  %v2534 = vsel %vm745, %v2487, 0
  %v2537 = vsel %vm745, %v2492, 0
  %v2540 = vsel %vm745, %v2497, 0
  %v2543 = vsel %vm745, %v2502, 0
  %v2546 = vsel %vm1315, %v2525, 0
  %v2549 = vsel %vm1315, %v2526, 0
  %2551 = vmatprep.subr.mxu0 0.0
  %2552 = vmatpush1.msra.mxu0 0.0
  %2553 = vmatprep.subr.mxu0 0.0
  %2554 = vmatpush1.msra.mxu0 0.0
  %2555 = vmatprep.subr.mxu0 0.0
  %2556 = vmatpush1.msra.mxu0 0.0
  %2557 = vmatprep.subr.mxu0 0.0
  %2558 = vmatpush1.msra.mxu0 0.0
  %2559 = vmatprep.subr.mxu0 0.0
  %2560 = vmatpush1.msra.mxu0 0.0
  %2561 = vmatprep.subr.mxu0 0.0
  %2562 = vmatpush1.msra.mxu0 0.0
  %2563 = vmatprep.subr.mxu0 0.0
  %2564 = vmatpush1.msra.mxu0 0.0
  %2565 = vmatprep.subr.mxu0 0.0
  %2566 = vmatpush1.msra.mxu0 0.0
  %2567 = vmatprep.subr.mxu0 0.0
  %2568 = vmatpush1.msra.mxu0 0.0
  %2569 = vmatprep.subr.mxu0 %v2549
  %2570 = vmatpush1.msra.mxu0 %v2546
  %2571 = vmatprep.subr.mxu0 %v2524
  %2572 = vmatpush1.msra.mxu0 %v2523
  %2573 = vmatprep.subr.mxu0 %v2522
  %2574 = vmatpush1.msra.mxu0 %v2521
  %2575 = vmatprep.subr.mxu0 %v2520
  %2576 = vmatpush1.msra.mxu0 %v2519
  %2577 = vmatprep.subr.mxu0 %v2518
  %2578 = vmatpush1.msra.mxu0 %v2517
  %2579 = vmatprep.subr.mxu0 %v2516
  %2580 = vmatpush1.msra.mxu0 %v2515
  %2581 = vmatprep.subr.mxu0 %v2514
  %2582 = vmatpush1.msra.mxu0 %v2513
  %2583 = vmatprep.subr.mxu0 0.0
  %2584 = vmatpush2.msra.mxu0 0.0
  %2585 = vmatprep.subr.mxu0 0.0
  %2586 = vmatpush2.msra.mxu0 0.0
  %2587 = vmatprep.subr.mxu0 0.0
  %2588 = vmatpush2.msra.mxu0 0.0
  %2589 = vmatprep.subr.mxu0 0.0
  %2590 = vmatpush2.msra.mxu0 0.0
  %2591 = vmatprep.subr.mxu0 0.0
  %2592 = vmatpush2.msra.mxu0 0.0
  %2593 = vmatprep.subr.mxu0 0.0
  %2594 = vmatpush2.msra.mxu0 0.0
  %2595 = vmatprep.subr.mxu0 0.0
  %2596 = vmatpush2.msra.mxu0 0.0
  %2597 = vmatprep.subr.mxu0 0.0
  %2598 = vmatpush2.msra.mxu0 0.0
  %2599 = vmatprep.subr.mxu0 0.0
  %2600 = vmatpush2.msra.mxu0 0.0
  %2601 = vmatprep.subr.mxu0 0.0
  %2602 = vmatpush2.msra.mxu0 0.0
  %2603 = vmatprep.subr.mxu0 0.0
  %2604 = vmatpush2.msra.mxu0 0.0
  %2605 = vmatprep.subr.mxu0 0.0
  %2606 = vmatpush2.msra.mxu0 0.0
  %2607 = vmatprep.subr.mxu0 0.0
  %2608 = vmatpush2.msra.mxu0 0.0
  %2609 = vmatprep.subr.mxu0 0.0
  %2610 = vmatpush2.msra.mxu0 0.0
  %2611 = vmatprep.subr.mxu0 0.0
  %2612 = vmatpush2.msra.mxu0 0.0
  %2613 = vmatprep.subr.mxu0 0.0
  %2614 = vmatpush2.msra.mxu0 0.0
  %2615 = vmatprep.mubr.f32.mxu0 0.0
  %2616 = vmatmul.mubr.f32.gmra.mxu0 %v2528
  %v2617 = vpop.f32.mrf.mxu0
  %v2618 = vadd.f32 0.0, %v2617
  %v2619 = vpop.f32.mrf.mxu0
  %v2620 = vadd.f32 0.0, %v2619
  %2621 = vmatprep.mubr.f32.mxu0 0.0
  %2622 = vmatmul.mubr.f32.gmra.mxu0 %v2531
  %v2623 = vpop.f32.mrf.mxu0
  %v2624 = vadd.f32 0.0, %v2623
  %v2625 = vpop.f32.mrf.mxu0
  %v2626 = vadd.f32 0.0, %v2625
  %2627 = vmatprep.mubr.f32.mxu0 0.0
  %2628 = vmatmul.mubr.f32.gmra.mxu0 %v2534
  %v2629 = vpop.f32.mrf.mxu0
  %v2630 = vadd.f32 0.0, %v2629
  %v2631 = vpop.f32.mrf.mxu0
  %v2632 = vadd.f32 0.0, %v2631
  %2633 = vmatprep.mubr.f32.mxu0 0.0
  %2634 = vmatmul.mubr.f32.gmra.mxu0 %v2537
  %v2635 = vpop.f32.mrf.mxu0
  %v2636 = vadd.f32 0.0, %v2635
  %v2637 = vpop.f32.mrf.mxu0
  %v2638 = vadd.f32 0.0, %v2637
  %2639 = vmatprep.mubr.f32.mxu0 0.0
  %2640 = vmatmul.mubr.f32.gmra.mxu0 %v2540
  %v2641 = vpop.f32.mrf.mxu0
  %v2642 = vadd.f32 0.0, %v2641
  %v2643 = vpop.f32.mrf.mxu0
  %v2644 = vadd.f32 0.0, %v2643
  %2645 = vmatprep.mubr.f32.mxu0 0.0
  %2646 = vmatmul.mubr.f32.gmra.mxu0 %v2543
  %v2647 = vpop.f32.mrf.mxu0
  %v2648 = vadd.f32 0.0, %v2647
  %v2649 = vpop.f32.mrf.mxu0
  %v2650 = vadd.f32 0.0, %v2649
  %2651 = vdwg.mxu0
  %v2652 = vadd.f32 %v2373, %v2618
  %v2653 = vadd.f32 %v2374, %v2620
  %v2654 = vadd.f32 %v2375, %v2624
  %v2655 = vadd.f32 %v2376, %v2626
  %v2656 = vadd.f32 %v2377, %v2630
  %v2657 = vadd.f32 %v2378, %v2632
  %v2658 = vadd.f32 %v2379, %v2636
  %v2659 = vadd.f32 %v2380, %v2638
  %v2660 = vadd.f32 %v2381, %v2642
  %v2661 = vadd.f32 %v2382, %v2644
  %v2662 = vadd.f32 %v2383, %v2648
  %v2663 = vadd.f32 %v2384, %v2650
  %s2664 = scalar_lea.vmem %s8, 288
  %v2665 = vld [vmem:[%s2664] sm:$0xff]
  %v2666 = vld [vmem:[%s2664 + $0x8] sm:$0xff]
  %v2667 = vld [vmem:[%s2664 + $0x10] sm:$0xff]
  %v2668 = vld [vmem:[%s2664 + $0x18] sm:$0xff]
  %v2669 = vld [vmem:[%s2664 + $0x20] sm:$0xff]
  %v2670 = vld [vmem:[%s2664 + $0x28] sm:$0xff]
  %v2672 = vsel %vm755, %v2665, 0
  %v2675 = vsel %vm755, %v2666, 0
  %v2678 = vsel %vm755, %v2667, 0
  %v2681 = vsel %vm755, %v2668, 0
  %v2684 = vsel %vm755, %v2669, 0
  %v2687 = vsel %vm755, %v2670, 0
  %2689 = vmatprep.subr.mxu0 0.0
  %2690 = vmatpush1.msra.mxu0 0.0
  %2691 = vmatprep.subr.mxu0 0.0
  %2692 = vmatpush1.msra.mxu0 0.0
  %2693 = vmatprep.subr.mxu0 0.0
  %2694 = vmatpush1.msra.mxu0 0.0
  %2695 = vmatprep.subr.mxu0 0.0
  %2696 = vmatpush1.msra.mxu0 0.0
  %2697 = vmatprep.subr.mxu0 0.0
  %2698 = vmatpush1.msra.mxu0 0.0
  %2699 = vmatprep.subr.mxu0 0.0
  %2700 = vmatpush1.msra.mxu0 0.0
  %2701 = vmatprep.subr.mxu0 0.0
  %2702 = vmatpush1.msra.mxu0 0.0
  %2703 = vmatprep.subr.mxu0 0.0
  %2704 = vmatpush1.msra.mxu0 0.0
  %2705 = vmatprep.subr.mxu0 0.0
  %2706 = vmatpush1.msra.mxu0 0.0
  %2707 = vmatprep.subr.mxu0 0.0
  %2708 = vmatpush1.msra.mxu0 0.0
  %2709 = vmatprep.subr.mxu0 0.0
  %2710 = vmatpush1.msra.mxu0 0.0
  %2711 = vmatprep.subr.mxu0 0.0
  %2712 = vmatpush1.msra.mxu0 0.0
  %2713 = vmatprep.subr.mxu0 0.0
  %2714 = vmatpush1.msra.mxu0 0.0
  %2715 = vmatprep.subr.mxu0 0.0
  %2716 = vmatpush1.msra.mxu0 %v1014
  %2717 = vmatprep.subr.mxu0 0.0
  %2718 = vmatpush1.msra.mxu0 %v1013
  %2719 = vmatprep.subr.mxu0 0.0
  %2720 = vmatpush1.msra.mxu0 %v1012
  %2721 = vmatprep.subr.mxu0 0.0
  %2722 = vmatpush2.msra.mxu0 0.0
  %2723 = vmatprep.subr.mxu0 0.0
  %2724 = vmatpush2.msra.mxu0 0.0
  %2725 = vmatprep.subr.mxu0 0.0
  %2726 = vmatpush2.msra.mxu0 0.0
  %2727 = vmatprep.subr.mxu0 0.0
  %2728 = vmatpush2.msra.mxu0 0.0
  %2729 = vmatprep.subr.mxu0 0.0
  %2730 = vmatpush2.msra.mxu0 0.0
  %2731 = vmatprep.subr.mxu0 0.0
  %2732 = vmatpush2.msra.mxu0 0.0
  %2733 = vmatprep.subr.mxu0 0.0
  %2734 = vmatpush2.msra.mxu0 0.0
  %2735 = vmatprep.subr.mxu0 0.0
  %2736 = vmatpush2.msra.mxu0 0.0
  %2737 = vmatprep.subr.mxu0 0.0
  %2738 = vmatpush2.msra.mxu0 0.0
  %2739 = vmatprep.subr.mxu0 0.0
  %2740 = vmatpush2.msra.mxu0 0.0
  %2741 = vmatprep.subr.mxu0 0.0
  %2742 = vmatpush2.msra.mxu0 0.0
  %2743 = vmatprep.subr.mxu0 0.0
  %2744 = vmatpush2.msra.mxu0 0.0
  %2745 = vmatprep.subr.mxu0 0.0
  %2746 = vmatpush2.msra.mxu0 0.0
  %2747 = vmatprep.subr.mxu0 0.0
  %2748 = vmatpush2.msra.mxu0 0.0
  %2749 = vmatprep.subr.mxu0 0.0
  %2750 = vmatpush2.msra.mxu0 0.0
  %2751 = vmatprep.subr.mxu0 0.0
  %2752 = vmatpush2.msra.mxu0 0.0
  %2753 = vmatprep.mubr.f32.mxu0 0.0
  %2754 = vmatmul.mubr.f32.gmra.mxu0 %v2672
  %v2755 = vpop.f32.mrf.mxu0
  %v2756 = vadd.f32 0.0, %v2755
  %v2757 = vpop.f32.mrf.mxu0
  %2758 = vmatprep.mubr.f32.mxu0 0.0
  %2759 = vmatmul.mubr.f32.gmra.mxu0 %v2675
  %v2760 = vpop.f32.mrf.mxu0
  %v2761 = vadd.f32 0.0, %v2760
  %v2762 = vpop.f32.mrf.mxu0
  %2763 = vmatprep.mubr.f32.mxu0 0.0
  %2764 = vmatmul.mubr.f32.gmra.mxu0 %v2678
  %v2765 = vpop.f32.mrf.mxu0
  %v2766 = vadd.f32 0.0, %v2765
  %v2767 = vpop.f32.mrf.mxu0
  %2768 = vmatprep.mubr.f32.mxu0 0.0
  %2769 = vmatmul.mubr.f32.gmra.mxu0 %v2681
  %v2770 = vpop.f32.mrf.mxu0
  %v2771 = vadd.f32 0.0, %v2770
  %v2772 = vpop.f32.mrf.mxu0
  %2773 = vmatprep.mubr.f32.mxu0 0.0
  %2774 = vmatmul.mubr.f32.gmra.mxu0 %v2684
  %v2775 = vpop.f32.mrf.mxu0
  %v2776 = vadd.f32 0.0, %v2775
  %v2777 = vpop.f32.mrf.mxu0
  %2778 = vmatprep.mubr.f32.mxu0 0.0
  %2779 = vmatmul.mubr.f32.gmra.mxu0 %v2687
  %v2780 = vpop.f32.mrf.mxu0
  %v2781 = vadd.f32 0.0, %v2780
  %v2782 = vpop.f32.mrf.mxu0
  %2783 = vdwg.mxu0
  %s2784 = scalar_lea.vmem %s9, 336
  %v2785 = vld [vmem:[%s2784] sm:$0xff]
  %v2786 = vld [vmem:[%s2784 + $0x8] sm:$0xff]
  %v2787 = vld [vmem:[%s2784 + $0x10] sm:$0xff]
  %v2788 = vld [vmem:[%s2784 + $0x18] sm:$0xff]
  %v2789 = vld [vmem:[%s2784 + $0x20] sm:$0xff]
  %v2790 = vld [vmem:[%s2784 + $0x28] sm:$0xff]
  %v2791 = vld [vmem:[%s2784 + $0x30] sm:$0x11]
  %v2792 = vunpack.c.l.bf16 %v2785
  %v2793 = vunpack.c.h.bf16 %v2785
  %v2794 = vunpack.c.l.bf16 %v2786
  %v2795 = vunpack.c.h.bf16 %v2786
  %v2796 = vunpack.c.l.bf16 %v2787
  %v2797 = vunpack.c.h.bf16 %v2787
  %v2798 = vunpack.c.l.bf16 %v2788
  %v2799 = vunpack.c.h.bf16 %v2788
  %v2800 = vunpack.c.l.bf16 %v2789
  %v2801 = vunpack.c.h.bf16 %v2789
  %v2802 = vunpack.c.l.bf16 %v2790
  %v2803 = vunpack.c.h.bf16 %v2790
  %v2804 = vunpack.c.l.bf16 %v2791
  %v2805 = vunpack.c.h.bf16 %v2791
  %v2807 = vsel %vm745, %v2756, 0
  %v2810 = vsel %vm745, %v2761, 0
  %v2813 = vsel %vm745, %v2766, 0
  %v2816 = vsel %vm745, %v2771, 0
  %v2819 = vsel %vm745, %v2776, 0
  %v2822 = vsel %vm745, %v2781, 0
  %v2825 = vsel %vm1315, %v2804, 0
  %v2828 = vsel %vm1315, %v2805, 0
  %2830 = vmatprep.subr.mxu0 0.0
  %2831 = vmatpush1.msra.mxu0 0.0
  %2832 = vmatprep.subr.mxu0 0.0
  %2833 = vmatpush1.msra.mxu0 0.0
  %2834 = vmatprep.subr.mxu0 0.0
  %2835 = vmatpush1.msra.mxu0 0.0
  %2836 = vmatprep.subr.mxu0 0.0
  %2837 = vmatpush1.msra.mxu0 0.0
  %2838 = vmatprep.subr.mxu0 0.0
  %2839 = vmatpush1.msra.mxu0 0.0
  %2840 = vmatprep.subr.mxu0 0.0
  %2841 = vmatpush1.msra.mxu0 0.0
  %2842 = vmatprep.subr.mxu0 0.0
  %2843 = vmatpush1.msra.mxu0 0.0
  %2844 = vmatprep.subr.mxu0 0.0
  %2845 = vmatpush1.msra.mxu0 0.0
  %2846 = vmatprep.subr.mxu0 0.0
  %2847 = vmatpush1.msra.mxu0 0.0
  %2848 = vmatprep.subr.mxu0 %v2828
  %2849 = vmatpush1.msra.mxu0 %v2825
  %2850 = vmatprep.subr.mxu0 %v2803
  %2851 = vmatpush1.msra.mxu0 %v2802
  %2852 = vmatprep.subr.mxu0 %v2801
  %2853 = vmatpush1.msra.mxu0 %v2800
  %2854 = vmatprep.subr.mxu0 %v2799
  %2855 = vmatpush1.msra.mxu0 %v2798
  %2856 = vmatprep.subr.mxu0 %v2797
  %2857 = vmatpush1.msra.mxu0 %v2796
  %2858 = vmatprep.subr.mxu0 %v2795
  %2859 = vmatpush1.msra.mxu0 %v2794
  %2860 = vmatprep.subr.mxu0 %v2793
  %2861 = vmatpush1.msra.mxu0 %v2792
  %2862 = vmatprep.subr.mxu0 0.0
  %2863 = vmatpush2.msra.mxu0 0.0
  %2864 = vmatprep.subr.mxu0 0.0
  %2865 = vmatpush2.msra.mxu0 0.0
  %2866 = vmatprep.subr.mxu0 0.0
  %2867 = vmatpush2.msra.mxu0 0.0
  %2868 = vmatprep.subr.mxu0 0.0
  %2869 = vmatpush2.msra.mxu0 0.0
  %2870 = vmatprep.subr.mxu0 0.0
  %2871 = vmatpush2.msra.mxu0 0.0
  %2872 = vmatprep.subr.mxu0 0.0
  %2873 = vmatpush2.msra.mxu0 0.0
  %2874 = vmatprep.subr.mxu0 0.0
  %2875 = vmatpush2.msra.mxu0 0.0
  %2876 = vmatprep.subr.mxu0 0.0
  %2877 = vmatpush2.msra.mxu0 0.0
  %2878 = vmatprep.subr.mxu0 0.0
  %2879 = vmatpush2.msra.mxu0 0.0
  %2880 = vmatprep.subr.mxu0 0.0
  %2881 = vmatpush2.msra.mxu0 0.0
  %2882 = vmatprep.subr.mxu0 0.0
  %2883 = vmatpush2.msra.mxu0 0.0
  %2884 = vmatprep.subr.mxu0 0.0
  %2885 = vmatpush2.msra.mxu0 0.0
  %2886 = vmatprep.subr.mxu0 0.0
  %2887 = vmatpush2.msra.mxu0 0.0
  %2888 = vmatprep.subr.mxu0 0.0
  %2889 = vmatpush2.msra.mxu0 0.0
  %2890 = vmatprep.subr.mxu0 0.0
  %2891 = vmatpush2.msra.mxu0 0.0
  %2892 = vmatprep.subr.mxu0 0.0
  %2893 = vmatpush2.msra.mxu0 0.0
  %2894 = vmatprep.mubr.f32.mxu0 0.0
  %2895 = vmatmul.mubr.f32.gmra.mxu0 %v2807
  %v2896 = vpop.f32.mrf.mxu0
  %v2897 = vadd.f32 0.0, %v2896
  %v2898 = vpop.f32.mrf.mxu0
  %v2899 = vadd.f32 0.0, %v2898
  %2900 = vmatprep.mubr.f32.mxu0 0.0
  %2901 = vmatmul.mubr.f32.gmra.mxu0 %v2810
  %v2902 = vpop.f32.mrf.mxu0
  %v2903 = vadd.f32 0.0, %v2902
  %v2904 = vpop.f32.mrf.mxu0
  %v2905 = vadd.f32 0.0, %v2904
  %2906 = vmatprep.mubr.f32.mxu0 0.0
  %2907 = vmatmul.mubr.f32.gmra.mxu0 %v2813
  %v2908 = vpop.f32.mrf.mxu0
  %v2909 = vadd.f32 0.0, %v2908
  %v2910 = vpop.f32.mrf.mxu0
  %v2911 = vadd.f32 0.0, %v2910
  %2912 = vmatprep.mubr.f32.mxu0 0.0
  %2913 = vmatmul.mubr.f32.gmra.mxu0 %v2816
  %v2914 = vpop.f32.mrf.mxu0
  %v2915 = vadd.f32 0.0, %v2914
  %v2916 = vpop.f32.mrf.mxu0
  %v2917 = vadd.f32 0.0, %v2916
  %2918 = vmatprep.mubr.f32.mxu0 0.0
  %2919 = vmatmul.mubr.f32.gmra.mxu0 %v2819
  %v2920 = vpop.f32.mrf.mxu0
  %v2921 = vadd.f32 0.0, %v2920
  %v2922 = vpop.f32.mrf.mxu0
  %v2923 = vadd.f32 0.0, %v2922
  %2924 = vmatprep.mubr.f32.mxu0 0.0
  %2925 = vmatmul.mubr.f32.gmra.mxu0 %v2822
  %v2926 = vpop.f32.mrf.mxu0
  %v2927 = vadd.f32 0.0, %v2926
  %v2928 = vpop.f32.mrf.mxu0
  %v2929 = vadd.f32 0.0, %v2928
  %2930 = vdwg.mxu0
  %v2931 = vadd.f32 %v2652, %v2897
  %v2932 = vadd.f32 %v2653, %v2899
  %v2933 = vadd.f32 %v2654, %v2903
  %v2934 = vadd.f32 %v2655, %v2905
  %v2935 = vadd.f32 %v2656, %v2909
  %v2936 = vadd.f32 %v2657, %v2911
  %v2937 = vadd.f32 %v2658, %v2915
  %v2938 = vadd.f32 %v2659, %v2917
  %v2939 = vadd.f32 %v2660, %v2921
  %v2940 = vadd.f32 %v2661, %v2923
  %v2941 = vadd.f32 %v2662, %v2927
  %v2942 = vadd.f32 %v2663, %v2929
  %s2943 = scalar_lea.vmem %s8, 336
  %v2944 = vld [vmem:[%s2943] sm:$0xff]
  %v2945 = vld [vmem:[%s2943 + $0x8] sm:$0xff]
  %v2946 = vld [vmem:[%s2943 + $0x10] sm:$0xff]
  %v2947 = vld [vmem:[%s2943 + $0x18] sm:$0xff]
  %v2948 = vld [vmem:[%s2943 + $0x20] sm:$0xff]
  %v2949 = vld [vmem:[%s2943 + $0x28] sm:$0xff]
  %v2951 = vsel %vm755, %v2944, 0
  %v2954 = vsel %vm755, %v2945, 0
  %v2957 = vsel %vm755, %v2946, 0
  %v2960 = vsel %vm755, %v2947, 0
  %v2963 = vsel %vm755, %v2948, 0
  %v2966 = vsel %vm755, %v2949, 0
  %2968 = vmatprep.subr.mxu0 0.0
  %2969 = vmatpush1.msra.mxu0 0.0
  %2970 = vmatprep.subr.mxu0 0.0
  %2971 = vmatpush1.msra.mxu0 0.0
  %2972 = vmatprep.subr.mxu0 0.0
  %2973 = vmatpush1.msra.mxu0 0.0
  %2974 = vmatprep.subr.mxu0 0.0
  %2975 = vmatpush1.msra.mxu0 0.0
  %2976 = vmatprep.subr.mxu0 0.0
  %2977 = vmatpush1.msra.mxu0 0.0
  %2978 = vmatprep.subr.mxu0 0.0
  %2979 = vmatpush1.msra.mxu0 0.0
  %2980 = vmatprep.subr.mxu0 0.0
  %2981 = vmatpush1.msra.mxu0 0.0
  %2982 = vmatprep.subr.mxu0 0.0
  %2983 = vmatpush1.msra.mxu0 0.0
  %2984 = vmatprep.subr.mxu0 0.0
  %2985 = vmatpush1.msra.mxu0 0.0
  %2986 = vmatprep.subr.mxu0 0.0
  %2987 = vmatpush1.msra.mxu0 0.0
  %2988 = vmatprep.subr.mxu0 0.0
  %2989 = vmatpush1.msra.mxu0 0.0
  %2990 = vmatprep.subr.mxu0 0.0
  %2991 = vmatpush1.msra.mxu0 0.0
  %2992 = vmatprep.subr.mxu0 0.0
  %2993 = vmatpush1.msra.mxu0 0.0
  %2994 = vmatprep.subr.mxu0 0.0
  %2995 = vmatpush1.msra.mxu0 %v1014
  %2996 = vmatprep.subr.mxu0 0.0
  %2997 = vmatpush1.msra.mxu0 %v1013
  %2998 = vmatprep.subr.mxu0 0.0
  %2999 = vmatpush1.msra.mxu0 %v1012
  %3000 = vmatprep.subr.mxu0 0.0
  %3001 = vmatpush2.msra.mxu0 0.0
  %3002 = vmatprep.subr.mxu0 0.0
  %3003 = vmatpush2.msra.mxu0 0.0
  %3004 = vmatprep.subr.mxu0 0.0
  %3005 = vmatpush2.msra.mxu0 0.0
  %3006 = vmatprep.subr.mxu0 0.0
  %3007 = vmatpush2.msra.mxu0 0.0
  %3008 = vmatprep.subr.mxu0 0.0
  %3009 = vmatpush2.msra.mxu0 0.0
  %3010 = vmatprep.subr.mxu0 0.0
  %3011 = vmatpush2.msra.mxu0 0.0
  %3012 = vmatprep.subr.mxu0 0.0
  %3013 = vmatpush2.msra.mxu0 0.0
  %3014 = vmatprep.subr.mxu0 0.0
  %3015 = vmatpush2.msra.mxu0 0.0
  %3016 = vmatprep.subr.mxu0 0.0
  %3017 = vmatpush2.msra.mxu0 0.0
  %3018 = vmatprep.subr.mxu0 0.0
  %3019 = vmatpush2.msra.mxu0 0.0
  %3020 = vmatprep.subr.mxu0 0.0
  %3021 = vmatpush2.msra.mxu0 0.0
  %3022 = vmatprep.subr.mxu0 0.0
  %3023 = vmatpush2.msra.mxu0 0.0
  %3024 = vmatprep.subr.mxu0 0.0
  %3025 = vmatpush2.msra.mxu0 0.0
  %3026 = vmatprep.subr.mxu0 0.0
  %3027 = vmatpush2.msra.mxu0 0.0
  %3028 = vmatprep.subr.mxu0 0.0
  %3029 = vmatpush2.msra.mxu0 0.0
  %3030 = vmatprep.subr.mxu0 0.0
  %3031 = vmatpush2.msra.mxu0 0.0
  %3032 = vmatprep.mubr.f32.mxu0 0.0
  %3033 = vmatmul.mubr.f32.gmra.mxu0 %v2951
  %v3034 = vpop.f32.mrf.mxu0
  %v3035 = vadd.f32 0.0, %v3034
  %v3036 = vpop.f32.mrf.mxu0
  %3037 = vmatprep.mubr.f32.mxu0 0.0
  %3038 = vmatmul.mubr.f32.gmra.mxu0 %v2954
  %v3039 = vpop.f32.mrf.mxu0
  %v3040 = vadd.f32 0.0, %v3039
  %v3041 = vpop.f32.mrf.mxu0
  %3042 = vmatprep.mubr.f32.mxu0 0.0
  %3043 = vmatmul.mubr.f32.gmra.mxu0 %v2957
  %v3044 = vpop.f32.mrf.mxu0
  %v3045 = vadd.f32 0.0, %v3044
  %v3046 = vpop.f32.mrf.mxu0
  %3047 = vmatprep.mubr.f32.mxu0 0.0
  %3048 = vmatmul.mubr.f32.gmra.mxu0 %v2960
  %v3049 = vpop.f32.mrf.mxu0
  %v3050 = vadd.f32 0.0, %v3049
  %v3051 = vpop.f32.mrf.mxu0
  %3052 = vmatprep.mubr.f32.mxu0 0.0
  %3053 = vmatmul.mubr.f32.gmra.mxu0 %v2963
  %v3054 = vpop.f32.mrf.mxu0
  %v3055 = vadd.f32 0.0, %v3054
  %v3056 = vpop.f32.mrf.mxu0
  %3057 = vmatprep.mubr.f32.mxu0 0.0
  %3058 = vmatmul.mubr.f32.gmra.mxu0 %v2966
  %v3059 = vpop.f32.mrf.mxu0
  %v3060 = vadd.f32 0.0, %v3059
  %v3061 = vpop.f32.mrf.mxu0
  %3062 = vdwg.mxu0
  %s3063 = scalar_lea.vmem %s9, 392
  %v3064 = vld [vmem:[%s3063] sm:$0xff]
  %v3065 = vld [vmem:[%s3063 + $0x8] sm:$0xff]
  %v3066 = vld [vmem:[%s3063 + $0x10] sm:$0xff]
  %v3067 = vld [vmem:[%s3063 + $0x18] sm:$0xff]
  %v3068 = vld [vmem:[%s3063 + $0x20] sm:$0xff]
  %v3069 = vld [vmem:[%s3063 + $0x28] sm:$0xff]
  %v3070 = vld [vmem:[%s3063 + $0x30] sm:$0x11]
  %v3071 = vunpack.c.l.bf16 %v3064
  %v3072 = vunpack.c.h.bf16 %v3064
  %v3073 = vunpack.c.l.bf16 %v3065
  %v3074 = vunpack.c.h.bf16 %v3065
  %v3075 = vunpack.c.l.bf16 %v3066
  %v3076 = vunpack.c.h.bf16 %v3066
  %v3077 = vunpack.c.l.bf16 %v3067
  %v3078 = vunpack.c.h.bf16 %v3067
  %v3079 = vunpack.c.l.bf16 %v3068
  %v3080 = vunpack.c.h.bf16 %v3068
  %v3081 = vunpack.c.l.bf16 %v3069
  %v3082 = vunpack.c.h.bf16 %v3069
  %v3083 = vunpack.c.l.bf16 %v3070
  %v3084 = vunpack.c.h.bf16 %v3070
  %v3086 = vsel %vm745, %v3035, 0
  %v3089 = vsel %vm745, %v3040, 0
  %v3092 = vsel %vm745, %v3045, 0
  %v3095 = vsel %vm745, %v3050, 0
  %v3098 = vsel %vm745, %v3055, 0
  %v3101 = vsel %vm745, %v3060, 0
  %v3104 = vsel %vm1315, %v3083, 0
  %v3107 = vsel %vm1315, %v3084, 0
  %3109 = vmatprep.subr.mxu0 0.0
  %3110 = vmatpush1.msra.mxu0 0.0
  %3111 = vmatprep.subr.mxu0 0.0
  %3112 = vmatpush1.msra.mxu0 0.0
  %3113 = vmatprep.subr.mxu0 0.0
  %3114 = vmatpush1.msra.mxu0 0.0
  %3115 = vmatprep.subr.mxu0 0.0
  %3116 = vmatpush1.msra.mxu0 0.0
  %3117 = vmatprep.subr.mxu0 0.0
  %3118 = vmatpush1.msra.mxu0 0.0
  %3119 = vmatprep.subr.mxu0 0.0
  %3120 = vmatpush1.msra.mxu0 0.0
  %3121 = vmatprep.subr.mxu0 0.0
  %3122 = vmatpush1.msra.mxu0 0.0
  %3123 = vmatprep.subr.mxu0 0.0
  %3124 = vmatpush1.msra.mxu0 0.0
  %3125 = vmatprep.subr.mxu0 0.0
  %3126 = vmatpush1.msra.mxu0 0.0
  %3127 = vmatprep.subr.mxu0 %v3107
  %3128 = vmatpush1.msra.mxu0 %v3104
  %3129 = vmatprep.subr.mxu0 %v3082
  %3130 = vmatpush1.msra.mxu0 %v3081
  %3131 = vmatprep.subr.mxu0 %v3080
  %3132 = vmatpush1.msra.mxu0 %v3079
  %3133 = vmatprep.subr.mxu0 %v3078
  %3134 = vmatpush1.msra.mxu0 %v3077
  %3135 = vmatprep.subr.mxu0 %v3076
  %3136 = vmatpush1.msra.mxu0 %v3075
  %3137 = vmatprep.subr.mxu0 %v3074
  %3138 = vmatpush1.msra.mxu0 %v3073
  %3139 = vmatprep.subr.mxu0 %v3072
  %3140 = vmatpush1.msra.mxu0 %v3071
  %3141 = vmatprep.subr.mxu0 0.0
  %3142 = vmatpush2.msra.mxu0 0.0
  %3143 = vmatprep.subr.mxu0 0.0
  %3144 = vmatpush2.msra.mxu0 0.0
  %3145 = vmatprep.subr.mxu0 0.0
  %3146 = vmatpush2.msra.mxu0 0.0
  %3147 = vmatprep.subr.mxu0 0.0
  %3148 = vmatpush2.msra.mxu0 0.0
  %3149 = vmatprep.subr.mxu0 0.0
  %3150 = vmatpush2.msra.mxu0 0.0
  %3151 = vmatprep.subr.mxu0 0.0
  %3152 = vmatpush2.msra.mxu0 0.0
  %3153 = vmatprep.subr.mxu0 0.0
  %3154 = vmatpush2.msra.mxu0 0.0
  %3155 = vmatprep.subr.mxu0 0.0
  %3156 = vmatpush2.msra.mxu0 0.0
  %3157 = vmatprep.subr.mxu0 0.0
  %3158 = vmatpush2.msra.mxu0 0.0
  %3159 = vmatprep.subr.mxu0 0.0
  %3160 = vmatpush2.msra.mxu0 0.0
  %3161 = vmatprep.subr.mxu0 0.0
  %3162 = vmatpush2.msra.mxu0 0.0
  %3163 = vmatprep.subr.mxu0 0.0
  %3164 = vmatpush2.msra.mxu0 0.0
  %3165 = vmatprep.subr.mxu0 0.0
  %3166 = vmatpush2.msra.mxu0 0.0
  %3167 = vmatprep.subr.mxu0 0.0
  %3168 = vmatpush2.msra.mxu0 0.0
  %3169 = vmatprep.subr.mxu0 0.0
  %3170 = vmatpush2.msra.mxu0 0.0
  %3171 = vmatprep.subr.mxu0 0.0
  %3172 = vmatpush2.msra.mxu0 0.0
  %3173 = vmatprep.mubr.f32.mxu0 0.0
  %3174 = vmatmul.mubr.f32.gmra.mxu0 %v3086
  %v3175 = vpop.f32.mrf.mxu0
  %v3176 = vadd.f32 0.0, %v3175
  %v3177 = vpop.f32.mrf.mxu0
  %v3178 = vadd.f32 0.0, %v3177
  %3179 = vmatprep.mubr.f32.mxu0 0.0
  %3180 = vmatmul.mubr.f32.gmra.mxu0 %v3089
  %v3181 = vpop.f32.mrf.mxu0
  %v3182 = vadd.f32 0.0, %v3181
  %v3183 = vpop.f32.mrf.mxu0
  %v3184 = vadd.f32 0.0, %v3183
  %3185 = vmatprep.mubr.f32.mxu0 0.0
  %3186 = vmatmul.mubr.f32.gmra.mxu0 %v3092
  %v3187 = vpop.f32.mrf.mxu0
  %v3188 = vadd.f32 0.0, %v3187
  %v3189 = vpop.f32.mrf.mxu0
  %v3190 = vadd.f32 0.0, %v3189
  %3191 = vmatprep.mubr.f32.mxu0 0.0
  %3192 = vmatmul.mubr.f32.gmra.mxu0 %v3095
  %v3193 = vpop.f32.mrf.mxu0
  %v3194 = vadd.f32 0.0, %v3193
  %v3195 = vpop.f32.mrf.mxu0
  %v3196 = vadd.f32 0.0, %v3195
  %3197 = vmatprep.mubr.f32.mxu0 0.0
  %3198 = vmatmul.mubr.f32.gmra.mxu0 %v3098
  %v3199 = vpop.f32.mrf.mxu0
  %v3200 = vadd.f32 0.0, %v3199
  %v3201 = vpop.f32.mrf.mxu0
  %v3202 = vadd.f32 0.0, %v3201
  %3203 = vmatprep.mubr.f32.mxu0 0.0
  %3204 = vmatmul.mubr.f32.gmra.mxu0 %v3101
  %v3205 = vpop.f32.mrf.mxu0
  %v3206 = vadd.f32 0.0, %v3205
  %v3207 = vpop.f32.mrf.mxu0
  %v3208 = vadd.f32 0.0, %v3207
  %3209 = vdwg.mxu0
  %v3210 = vadd.f32 %v2931, %v3176
  %v3211 = vadd.f32 %v2932, %v3178
  %v3212 = vadd.f32 %v2933, %v3182
  %v3213 = vadd.f32 %v2934, %v3184
  %v3214 = vadd.f32 %v2935, %v3188
  %v3215 = vadd.f32 %v2936, %v3190
  %v3216 = vadd.f32 %v2937, %v3194
  %v3217 = vadd.f32 %v2938, %v3196
  %v3218 = vadd.f32 %v2939, %v3200
  %v3219 = vadd.f32 %v2940, %v3202
  %v3220 = vadd.f32 %v2941, %v3206
  %v3221 = vadd.f32 %v2942, %v3208
  %s3222 = scalar_lea.vmem %s8, 384
  %v3223 = vld [vmem:[%s3222] sm:$0xff]
  %v3224 = vld [vmem:[%s3222 + $0x8] sm:$0xff]
  %v3225 = vld [vmem:[%s3222 + $0x10] sm:$0xff]
  %v3226 = vld [vmem:[%s3222 + $0x18] sm:$0xff]
  %v3227 = vld [vmem:[%s3222 + $0x20] sm:$0xff]
  %v3228 = vld [vmem:[%s3222 + $0x28] sm:$0xff]
  %v3230 = vsel %vm755, %v3223, 0
  %v3233 = vsel %vm755, %v3224, 0
  %v3236 = vsel %vm755, %v3225, 0
  %v3239 = vsel %vm755, %v3226, 0
  %v3242 = vsel %vm755, %v3227, 0
  %v3245 = vsel %vm755, %v3228, 0
  %3247 = vmatprep.subr.mxu0 0.0
  %3248 = vmatpush1.msra.mxu0 0.0
  %3249 = vmatprep.subr.mxu0 0.0
  %3250 = vmatpush1.msra.mxu0 0.0
  %3251 = vmatprep.subr.mxu0 0.0
  %3252 = vmatpush1.msra.mxu0 0.0
  %3253 = vmatprep.subr.mxu0 0.0
  %3254 = vmatpush1.msra.mxu0 0.0
  %3255 = vmatprep.subr.mxu0 0.0
  %3256 = vmatpush1.msra.mxu0 0.0
  %3257 = vmatprep.subr.mxu0 0.0
  %3258 = vmatpush1.msra.mxu0 0.0
  %3259 = vmatprep.subr.mxu0 0.0
  %3260 = vmatpush1.msra.mxu0 0.0
  %3261 = vmatprep.subr.mxu0 0.0
  %3262 = vmatpush1.msra.mxu0 0.0
  %3263 = vmatprep.subr.mxu0 0.0
  %3264 = vmatpush1.msra.mxu0 0.0
  %3265 = vmatprep.subr.mxu0 0.0
  %3266 = vmatpush1.msra.mxu0 0.0
  %3267 = vmatprep.subr.mxu0 0.0
  %3268 = vmatpush1.msra.mxu0 0.0
  %3269 = vmatprep.subr.mxu0 0.0
  %3270 = vmatpush1.msra.mxu0 0.0
  %3271 = vmatprep.subr.mxu0 0.0
  %3272 = vmatpush1.msra.mxu0 0.0
  %3273 = vmatprep.subr.mxu0 0.0
  %3274 = vmatpush1.msra.mxu0 %v1014
  %3275 = vmatprep.subr.mxu0 0.0
  %3276 = vmatpush1.msra.mxu0 %v1013
  %3277 = vmatprep.subr.mxu0 0.0
  %3278 = vmatpush1.msra.mxu0 %v1012
  %3279 = vmatprep.subr.mxu0 0.0
  %3280 = vmatpush2.msra.mxu0 0.0
  %3281 = vmatprep.subr.mxu0 0.0
  %3282 = vmatpush2.msra.mxu0 0.0
  %3283 = vmatprep.subr.mxu0 0.0
  %3284 = vmatpush2.msra.mxu0 0.0
  %3285 = vmatprep.subr.mxu0 0.0
  %3286 = vmatpush2.msra.mxu0 0.0
  %3287 = vmatprep.subr.mxu0 0.0
  %3288 = vmatpush2.msra.mxu0 0.0
  %3289 = vmatprep.subr.mxu0 0.0
  %3290 = vmatpush2.msra.mxu0 0.0
  %3291 = vmatprep.subr.mxu0 0.0
  %3292 = vmatpush2.msra.mxu0 0.0
  %3293 = vmatprep.subr.mxu0 0.0
  %3294 = vmatpush2.msra.mxu0 0.0
  %3295 = vmatprep.subr.mxu0 0.0
  %3296 = vmatpush2.msra.mxu0 0.0
  %3297 = vmatprep.subr.mxu0 0.0
  %3298 = vmatpush2.msra.mxu0 0.0
  %3299 = vmatprep.subr.mxu0 0.0
  %3300 = vmatpush2.msra.mxu0 0.0
  %3301 = vmatprep.subr.mxu0 0.0
  %3302 = vmatpush2.msra.mxu0 0.0
  %3303 = vmatprep.subr.mxu0 0.0
  %3304 = vmatpush2.msra.mxu0 0.0
  %3305 = vmatprep.subr.mxu0 0.0
  %3306 = vmatpush2.msra.mxu0 0.0
  %3307 = vmatprep.subr.mxu0 0.0
  %3308 = vmatpush2.msra.mxu0 0.0
  %3309 = vmatprep.subr.mxu0 0.0
  %3310 = vmatpush2.msra.mxu0 0.0
  %3311 = vmatprep.mubr.f32.mxu0 0.0
  %3312 = vmatmul.mubr.f32.gmra.mxu0 %v3230
  %v3313 = vpop.f32.mrf.mxu0
  %v3314 = vadd.f32 0.0, %v3313
  %v3315 = vpop.f32.mrf.mxu0
  %3316 = vmatprep.mubr.f32.mxu0 0.0
  %3317 = vmatmul.mubr.f32.gmra.mxu0 %v3233
  %v3318 = vpop.f32.mrf.mxu0
  %v3319 = vadd.f32 0.0, %v3318
  %v3320 = vpop.f32.mrf.mxu0
  %3321 = vmatprep.mubr.f32.mxu0 0.0
  %3322 = vmatmul.mubr.f32.gmra.mxu0 %v3236
  %v3323 = vpop.f32.mrf.mxu0
  %v3324 = vadd.f32 0.0, %v3323
  %v3325 = vpop.f32.mrf.mxu0
  %3326 = vmatprep.mubr.f32.mxu0 0.0
  %3327 = vmatmul.mubr.f32.gmra.mxu0 %v3239
  %v3328 = vpop.f32.mrf.mxu0
  %v3329 = vadd.f32 0.0, %v3328
  %v3330 = vpop.f32.mrf.mxu0
  %3331 = vmatprep.mubr.f32.mxu0 0.0
  %3332 = vmatmul.mubr.f32.gmra.mxu0 %v3242
  %v3333 = vpop.f32.mrf.mxu0
  %v3334 = vadd.f32 0.0, %v3333
  %v3335 = vpop.f32.mrf.mxu0
  %3336 = vmatprep.mubr.f32.mxu0 0.0
  %3337 = vmatmul.mubr.f32.gmra.mxu0 %v3245
  %v3338 = vpop.f32.mrf.mxu0
  %v3339 = vadd.f32 0.0, %v3338
  %v3340 = vpop.f32.mrf.mxu0
  %3341 = vdwg.mxu0
  %s3342 = scalar_lea.vmem %s9, 448
  %v3343 = vld [vmem:[%s3342] sm:$0xff]
  %v3344 = vld [vmem:[%s3342 + $0x8] sm:$0xff]
  %v3345 = vld [vmem:[%s3342 + $0x10] sm:$0xff]
  %v3346 = vld [vmem:[%s3342 + $0x18] sm:$0xff]
  %v3347 = vld [vmem:[%s3342 + $0x20] sm:$0xff]
  %v3348 = vld [vmem:[%s3342 + $0x28] sm:$0xff]
  %v3349 = vld [vmem:[%s3342 + $0x30] sm:$0x11]
  %v3350 = vunpack.c.l.bf16 %v3343
  %v3351 = vunpack.c.h.bf16 %v3343
  %v3352 = vunpack.c.l.bf16 %v3344
  %v3353 = vunpack.c.h.bf16 %v3344
  %v3354 = vunpack.c.l.bf16 %v3345
  %v3355 = vunpack.c.h.bf16 %v3345
  %v3356 = vunpack.c.l.bf16 %v3346
  %v3357 = vunpack.c.h.bf16 %v3346
  %v3358 = vunpack.c.l.bf16 %v3347
  %v3359 = vunpack.c.h.bf16 %v3347
  %v3360 = vunpack.c.l.bf16 %v3348
  %v3361 = vunpack.c.h.bf16 %v3348
  %v3362 = vunpack.c.l.bf16 %v3349
  %v3363 = vunpack.c.h.bf16 %v3349
  %v3365 = vsel %vm745, %v3314, 0
  %v3368 = vsel %vm745, %v3319, 0
  %v3371 = vsel %vm745, %v3324, 0
  %v3374 = vsel %vm745, %v3329, 0
  %v3377 = vsel %vm745, %v3334, 0
  %v3380 = vsel %vm745, %v3339, 0
  %v3383 = vsel %vm1315, %v3362, 0
  %v3386 = vsel %vm1315, %v3363, 0
  %3388 = vmatprep.subr.mxu0 0.0
  %3389 = vmatpush1.msra.mxu0 0.0
  %3390 = vmatprep.subr.mxu0 0.0
  %3391 = vmatpush1.msra.mxu0 0.0
  %3392 = vmatprep.subr.mxu0 0.0
  %3393 = vmatpush1.msra.mxu0 0.0
  %3394 = vmatprep.subr.mxu0 0.0
  %3395 = vmatpush1.msra.mxu0 0.0
  %3396 = vmatprep.subr.mxu0 0.0
  %3397 = vmatpush1.msra.mxu0 0.0
  %3398 = vmatprep.subr.mxu0 0.0
  %3399 = vmatpush1.msra.mxu0 0.0
  %3400 = vmatprep.subr.mxu0 0.0
  %3401 = vmatpush1.msra.mxu0 0.0
  %3402 = vmatprep.subr.mxu0 0.0
  %3403 = vmatpush1.msra.mxu0 0.0
  %3404 = vmatprep.subr.mxu0 0.0
  %3405 = vmatpush1.msra.mxu0 0.0
  %3406 = vmatprep.subr.mxu0 %v3386
  %3407 = vmatpush1.msra.mxu0 %v3383
  %3408 = vmatprep.subr.mxu0 %v3361
  %3409 = vmatpush1.msra.mxu0 %v3360
  %3410 = vmatprep.subr.mxu0 %v3359
  %3411 = vmatpush1.msra.mxu0 %v3358
  %3412 = vmatprep.subr.mxu0 %v3357
  %3413 = vmatpush1.msra.mxu0 %v3356
  %3414 = vmatprep.subr.mxu0 %v3355
  %3415 = vmatpush1.msra.mxu0 %v3354
  %3416 = vmatprep.subr.mxu0 %v3353
  %3417 = vmatpush1.msra.mxu0 %v3352
  %3418 = vmatprep.subr.mxu0 %v3351
  %3419 = vmatpush1.msra.mxu0 %v3350
  %3420 = vmatprep.subr.mxu0 0.0
  %3421 = vmatpush2.msra.mxu0 0.0
  %3422 = vmatprep.subr.mxu0 0.0
  %3423 = vmatpush2.msra.mxu0 0.0
  %3424 = vmatprep.subr.mxu0 0.0
  %3425 = vmatpush2.msra.mxu0 0.0
  %3426 = vmatprep.subr.mxu0 0.0
  %3427 = vmatpush2.msra.mxu0 0.0
  %3428 = vmatprep.subr.mxu0 0.0
  %3429 = vmatpush2.msra.mxu0 0.0
  %3430 = vmatprep.subr.mxu0 0.0
  %3431 = vmatpush2.msra.mxu0 0.0
  %3432 = vmatprep.subr.mxu0 0.0
  %3433 = vmatpush2.msra.mxu0 0.0
  %3434 = vmatprep.subr.mxu0 0.0
  %3435 = vmatpush2.msra.mxu0 0.0
  %3436 = vmatprep.subr.mxu0 0.0
  %3437 = vmatpush2.msra.mxu0 0.0
  %3438 = vmatprep.subr.mxu0 0.0
  %3439 = vmatpush2.msra.mxu0 0.0
  %3440 = vmatprep.subr.mxu0 0.0
  %3441 = vmatpush2.msra.mxu0 0.0
  %3442 = vmatprep.subr.mxu0 0.0
  %3443 = vmatpush2.msra.mxu0 0.0
  %3444 = vmatprep.subr.mxu0 0.0
  %3445 = vmatpush2.msra.mxu0 0.0
  %3446 = vmatprep.subr.mxu0 0.0
  %3447 = vmatpush2.msra.mxu0 0.0
  %3448 = vmatprep.subr.mxu0 0.0
  %3449 = vmatpush2.msra.mxu0 0.0
  %3450 = vmatprep.subr.mxu0 0.0
  %3451 = vmatpush2.msra.mxu0 0.0
  %3452 = vmatprep.mubr.f32.mxu0 0.0
  %3453 = vmatmul.mubr.f32.gmra.mxu0 %v3365
  %v3454 = vpop.f32.mrf.mxu0
  %v3455 = vadd.f32 0.0, %v3454
  %v3456 = vpop.f32.mrf.mxu0
  %v3457 = vadd.f32 0.0, %v3456
  %3458 = vmatprep.mubr.f32.mxu0 0.0
  %3459 = vmatmul.mubr.f32.gmra.mxu0 %v3368
  %v3460 = vpop.f32.mrf.mxu0
  %v3461 = vadd.f32 0.0, %v3460
  %v3462 = vpop.f32.mrf.mxu0
  %v3463 = vadd.f32 0.0, %v3462
  %3464 = vmatprep.mubr.f32.mxu0 0.0
  %3465 = vmatmul.mubr.f32.gmra.mxu0 %v3371
  %v3466 = vpop.f32.mrf.mxu0
  %v3467 = vadd.f32 0.0, %v3466
  %v3468 = vpop.f32.mrf.mxu0
  %v3469 = vadd.f32 0.0, %v3468
  %3470 = vmatprep.mubr.f32.mxu0 0.0
  %3471 = vmatmul.mubr.f32.gmra.mxu0 %v3374
  %v3472 = vpop.f32.mrf.mxu0
  %v3473 = vadd.f32 0.0, %v3472
  %v3474 = vpop.f32.mrf.mxu0
  %v3475 = vadd.f32 0.0, %v3474
  %3476 = vmatprep.mubr.f32.mxu0 0.0
  %3477 = vmatmul.mubr.f32.gmra.mxu0 %v3377
  %v3478 = vpop.f32.mrf.mxu0
  %v3479 = vadd.f32 0.0, %v3478
  %v3480 = vpop.f32.mrf.mxu0
  %v3481 = vadd.f32 0.0, %v3480
  %3482 = vmatprep.mubr.f32.mxu0 0.0
  %3483 = vmatmul.mubr.f32.gmra.mxu0 %v3380
  %v3484 = vpop.f32.mrf.mxu0
  %v3485 = vadd.f32 0.0, %v3484
  %v3486 = vpop.f32.mrf.mxu0
  %v3487 = vadd.f32 0.0, %v3486
  %3488 = vdwg.mxu0
  %v3489 = vadd.f32 %v3210, %v3455
  %v3490 = vadd.f32 %v3211, %v3457
  %v3491 = vadd.f32 %v3212, %v3461
  %v3492 = vadd.f32 %v3213, %v3463
  %v3493 = vadd.f32 %v3214, %v3467
  %v3494 = vadd.f32 %v3215, %v3469
  %v3495 = vadd.f32 %v3216, %v3473
  %v3496 = vadd.f32 %v3217, %v3475
  %v3497 = vadd.f32 %v3218, %v3479
  %v3498 = vadd.f32 %v3219, %v3481
  %v3499 = vadd.f32 %v3220, %v3485
  %v3500 = vadd.f32 %v3221, %v3487
  %v3501 = vld [vmem:[%s10] sm:$0xff]
  %v3502 = vld [vmem:[%s10 + $0x8] sm:$0xff]
  %v3503 = vld [vmem:[%s10 + $0x10] sm:$0xff]
  %v3504 = vld [vmem:[%s10 + $0x18] sm:$0xff]
  %v3505 = vld [vmem:[%s10 + $0x20] sm:$0xff]
  %v3506 = vld [vmem:[%s10 + $0x28] sm:$0xff]
  %3508 = vset.pattern.permute.xlu0 0
  %3509 = vperm.xlu0 %3508, %v3501
  %v3510 = vpop.permute.xlu0 %3509
  %3513 = vset.pattern.permute.xlu0 0
  %3514 = vperm.xlu0 %3513, %v3502
  %v3515 = vpop.permute.xlu0 %3514
  %3518 = vset.pattern.permute.xlu0 0
  %3519 = vperm.xlu0 %3518, %v3503
  %v3520 = vpop.permute.xlu0 %3519
  %3523 = vset.pattern.permute.xlu0 0
  %3524 = vperm.xlu0 %3523, %v3504
  %v3525 = vpop.permute.xlu0 %3524
  %3528 = vset.pattern.permute.xlu0 0
  %3529 = vperm.xlu0 %3528, %v3505
  %v3530 = vpop.permute.xlu0 %3529
  %3533 = vset.pattern.permute.xlu0 0
  %3534 = vperm.xlu0 %3533, %v3506
  %v3535 = vpop.permute.xlu0 %3534
  %v3537 = vadd.f32 %v3489, %v3510
  %v3538 = vadd.f32 %v3490, %v3510
  %v3539 = vadd.f32 %v3491, %v3515
  %v3540 = vadd.f32 %v3492, %v3515
  %v3541 = vadd.f32 %v3493, %v3520
  %v3542 = vadd.f32 %v3494, %v3520
  %v3543 = vadd.f32 %v3495, %v3525
  %v3544 = vadd.f32 %v3496, %v3525
  %v3545 = vadd.f32 %v3497, %v3530
  %v3546 = vadd.f32 %v3498, %v3530
  %v3547 = vadd.f32 %v3499, %v3535
  %v3548 = vadd.f32 %v3500, %v3535
  %v3549 = vld [vmem:[%s11] sm:$0xff]
  %v3550 = vld [vmem:[%s11 + $0x8] sm:$0xff]
  %v3551 = vld [vmem:[%s11 + $0x10] sm:$0xff]
  %v3552 = vld [vmem:[%s11 + $0x18] sm:$0xff]
  %v3553 = vld [vmem:[%s11 + $0x20] sm:$0xff]
  %v3554 = vld [vmem:[%s11 + $0x28] sm:$0xff]
  %v3555 = vld [vmem:[%s12] sm:$0xff]
  %v3556 = vld [vmem:[%s12 + $0x8] sm:$0xff]
  %v3557 = vld [vmem:[%s12 + $0x10] sm:$0xff]
  %v3558 = vld [vmem:[%s12 + $0x18] sm:$0xff]
  %v3559 = vld [vmem:[%s12 + $0x20] sm:$0xff]
  %v3560 = vld [vmem:[%s12 + $0x28] sm:$0xff]
  %v3561 = vld [vmem:[%s13] sm:$0xff]
  %v3562 = vld [vmem:[%s13 + $0x8] sm:$0xff]
  %v3563 = vld [vmem:[%s13 + $0x10] sm:$0xff]
  %v3564 = vld [vmem:[%s13 + $0x18] sm:$0xff]
  %v3565 = vld [vmem:[%s13 + $0x20] sm:$0xff]
  %v3566 = vld [vmem:[%s13 + $0x28] sm:$0xff]
  %vm3567 = vcmask 793600
  %v3568 = vsel %vm3567, %v3538, 0.0
  %v3569 = vadd.f32 %v3537, %v3568
  %3570 = vadd.xlane.f32.xlu0 %v3569
  %v3571 = vpop.xlane.xlu0 %3570
  %v3572 = vsel %vm3567, %v3540, 0.0
  %v3573 = vadd.f32 %v3539, %v3572
  %3574 = vadd.xlane.f32.xlu0 %v3573
  %v3575 = vpop.xlane.xlu0 %3574
  %v3576 = vsel %vm3567, %v3542, 0.0
  %v3577 = vadd.f32 %v3541, %v3576
  %3578 = vadd.xlane.f32.xlu0 %v3577
  %v3579 = vpop.xlane.xlu0 %3578
  %v3580 = vsel %vm3567, %v3544, 0.0
  %v3581 = vadd.f32 %v3543, %v3580
  %3582 = vadd.xlane.f32.xlu0 %v3581
  %v3583 = vpop.xlane.xlu0 %3582
  %v3584 = vsel %vm3567, %v3546, 0.0
  %v3585 = vadd.f32 %v3545, %v3584
  %3586 = vadd.xlane.f32.xlu0 %v3585
  %v3587 = vpop.xlane.xlu0 %3586
  %v3588 = vsel %vm3567, %v3548, 0.0
  %v3589 = vadd.f32 %v3547, %v3588
  %3590 = vadd.xlane.f32.xlu0 %v3589
  %v3591 = vpop.xlane.xlu0 %3590
  %vm3592 = vcmask 392192
  %v3594 = vsel %vm3592, %v3549, 0
  %v3597 = vsel %vm3592, %v3550, 0
  %v3600 = vsel %vm3592, %v3551, 0
  %v3603 = vsel %vm3592, %v3552, 0
  %v3606 = vsel %vm3592, %v3553, 0
  %v3609 = vsel %vm3592, %v3554, 0
  %3611 = vmatprep.subr.mxu0 0.0
  %3612 = vmatpush1.msra.mxu0 0.0
  %3613 = vmatprep.subr.mxu0 0.0
  %3614 = vmatpush1.msra.mxu0 0.0
  %3615 = vmatprep.subr.mxu0 0.0
  %3616 = vmatpush1.msra.mxu0 0.0
  %3617 = vmatprep.subr.mxu0 0.0
  %3618 = vmatpush1.msra.mxu0 0.0
  %3619 = vmatprep.subr.mxu0 0.0
  %3620 = vmatpush1.msra.mxu0 0.0
  %3621 = vmatprep.subr.mxu0 0.0
  %3622 = vmatpush1.msra.mxu0 0.0
  %3623 = vmatprep.subr.mxu0 0.0
  %3624 = vmatpush1.msra.mxu0 0.0
  %3625 = vmatprep.subr.mxu0 0.0
  %3626 = vmatpush1.msra.mxu0 0.0
  %3627 = vmatprep.subr.mxu0 0.0
  %3628 = vmatpush1.msra.mxu0 0.0
  %3629 = vmatprep.subr.mxu0 0.0
  %3630 = vmatpush1.msra.mxu0 0.0
  %3631 = vmatprep.subr.mxu0 0.0
  %3632 = vmatpush1.msra.mxu0 %v3591
  %3633 = vmatprep.subr.mxu0 0.0
  %3634 = vmatpush1.msra.mxu0 %v3587
  %3635 = vmatprep.subr.mxu0 0.0
  %3636 = vmatpush1.msra.mxu0 %v3583
  %3637 = vmatprep.subr.mxu0 0.0
  %3638 = vmatpush1.msra.mxu0 %v3579
  %3639 = vmatprep.subr.mxu0 0.0
  %3640 = vmatpush1.msra.mxu0 %v3575
  %3641 = vmatprep.subr.mxu0 0.0
  %3642 = vmatpush1.msra.mxu0 %v3571
  %3643 = vmatprep.subr.mxu0 0.0
  %3644 = vmatpush2.msra.mxu0 0.0
  %3645 = vmatprep.subr.mxu0 0.0
  %3646 = vmatpush2.msra.mxu0 0.0
  %3647 = vmatprep.subr.mxu0 0.0
  %3648 = vmatpush2.msra.mxu0 0.0
  %3649 = vmatprep.subr.mxu0 0.0
  %3650 = vmatpush2.msra.mxu0 0.0
  %3651 = vmatprep.subr.mxu0 0.0
  %3652 = vmatpush2.msra.mxu0 0.0
  %3653 = vmatprep.subr.mxu0 0.0
  %3654 = vmatpush2.msra.mxu0 0.0
  %3655 = vmatprep.subr.mxu0 0.0
  %3656 = vmatpush2.msra.mxu0 0.0
  %3657 = vmatprep.subr.mxu0 0.0
  %3658 = vmatpush2.msra.mxu0 0.0
  %3659 = vmatprep.subr.mxu0 0.0
  %3660 = vmatpush2.msra.mxu0 0.0
  %3661 = vmatprep.subr.mxu0 0.0
  %3662 = vmatpush2.msra.mxu0 0.0
  %3663 = vmatprep.subr.mxu0 0.0
  %3664 = vmatpush2.msra.mxu0 0.0
  %3665 = vmatprep.subr.mxu0 0.0
  %3666 = vmatpush2.msra.mxu0 0.0
  %3667 = vmatprep.subr.mxu0 0.0
  %3668 = vmatpush2.msra.mxu0 0.0
  %3669 = vmatprep.subr.mxu0 0.0
  %3670 = vmatpush2.msra.mxu0 0.0
  %3671 = vmatprep.subr.mxu0 0.0
  %3672 = vmatpush2.msra.mxu0 0.0
  %3673 = vmatprep.subr.mxu0 0.0
  %3674 = vmatpush2.msra.mxu0 0.0
  %3675 = vmatprep.mubr.f32.mxu0 0.0
  %3676 = vmatmul.mubr.f32.gmra.mxu0 %v3594
  %v3677 = vpop.f32.mrf.mxu0
  %v3678 = vadd.f32 0.0, %v3677
  %v3679 = vpop.f32.mrf.mxu0
  %3680 = vmatprep.mubr.f32.mxu0 0.0
  %3681 = vmatmul.mubr.f32.gmra.mxu0 %v3597
  %v3682 = vpop.f32.mrf.mxu0
  %v3683 = vadd.f32 0.0, %v3682
  %v3684 = vpop.f32.mrf.mxu0
  %3685 = vmatprep.mubr.f32.mxu0 0.0
  %3686 = vmatmul.mubr.f32.gmra.mxu0 %v3600
  %v3687 = vpop.f32.mrf.mxu0
  %v3688 = vadd.f32 0.0, %v3687
  %v3689 = vpop.f32.mrf.mxu0
  %3690 = vmatprep.mubr.f32.mxu0 0.0
  %3691 = vmatmul.mubr.f32.gmra.mxu0 %v3603
  %v3692 = vpop.f32.mrf.mxu0
  %v3693 = vadd.f32 0.0, %v3692
  %v3694 = vpop.f32.mrf.mxu0
  %3695 = vmatprep.mubr.f32.mxu0 0.0
  %3696 = vmatmul.mubr.f32.gmra.mxu0 %v3606
  %v3697 = vpop.f32.mrf.mxu0
  %v3698 = vadd.f32 0.0, %v3697
  %v3699 = vpop.f32.mrf.mxu0
  %3700 = vmatprep.mubr.f32.mxu0 0.0
  %3701 = vmatmul.mubr.f32.gmra.mxu0 %v3609
  %v3702 = vpop.f32.mrf.mxu0
  %v3703 = vadd.f32 0.0, %v3702
  %v3704 = vpop.f32.mrf.mxu0
  %3705 = vdwg.mxu0
  %3707 = vset.pattern.permute.xlu0 0
  %3708 = vperm.xlu0 %3707, %v3678
  %v3709 = vpop.permute.xlu0 %3708
  %3712 = vset.pattern.permute.xlu0 0
  %3713 = vperm.xlu0 %3712, %v3683
  %v3714 = vpop.permute.xlu0 %3713
  %3717 = vset.pattern.permute.xlu0 0
  %3718 = vperm.xlu0 %3717, %v3688
  %v3719 = vpop.permute.xlu0 %3718
  %3722 = vset.pattern.permute.xlu0 0
  %3723 = vperm.xlu0 %3722, %v3693
  %v3724 = vpop.permute.xlu0 %3723
  %3727 = vset.pattern.permute.xlu0 0
  %3728 = vperm.xlu0 %3727, %v3698
  %v3729 = vpop.permute.xlu0 %3728
  %3732 = vset.pattern.permute.xlu0 0
  %3733 = vperm.xlu0 %3732, %v3703
  %v3734 = vpop.permute.xlu0 %3733
  %v3736 = vsub.f32 %v3537, %v3709
  %v3737 = vsub.f32 %v3538, %v3709
  %v3738 = vsub.f32 %v3539, %v3714
  %v3739 = vsub.f32 %v3540, %v3714
  %v3740 = vsub.f32 %v3541, %v3719
  %v3741 = vsub.f32 %v3542, %v3719
  %v3742 = vsub.f32 %v3543, %v3724
  %v3743 = vsub.f32 %v3544, %v3724
  %v3744 = vsub.f32 %v3545, %v3729
  %v3745 = vsub.f32 %v3546, %v3729
  %v3746 = vsub.f32 %v3547, %v3734
  %v3747 = vsub.f32 %v3548, %v3734
  %v3748 = vmul.f32 %v3736, %v3736
  %v3749 = vmul.f32 %v3737, %v3737
  %v3750 = vmul.f32 %v3738, %v3738
  %v3751 = vmul.f32 %v3739, %v3739
  %v3752 = vmul.f32 %v3740, %v3740
  %v3753 = vmul.f32 %v3741, %v3741
  %v3754 = vmul.f32 %v3742, %v3742
  %v3755 = vmul.f32 %v3743, %v3743
  %v3756 = vmul.f32 %v3744, %v3744
  %v3757 = vmul.f32 %v3745, %v3745
  %v3758 = vmul.f32 %v3746, %v3746
  %v3759 = vmul.f32 %v3747, %v3747
  %v3760 = vsel %vm3567, %v3749, 0.0
  %v3761 = vadd.f32 %v3748, %v3760
  %3762 = vadd.xlane.f32.xlu0 %v3761
  %v3763 = vpop.xlane.xlu0 %3762
  %v3764 = vsel %vm3567, %v3751, 0.0
  %v3765 = vadd.f32 %v3750, %v3764
  %3766 = vadd.xlane.f32.xlu0 %v3765
  %v3767 = vpop.xlane.xlu0 %3766
  %v3768 = vsel %vm3567, %v3753, 0.0
  %v3769 = vadd.f32 %v3752, %v3768
  %3770 = vadd.xlane.f32.xlu0 %v3769
  %v3771 = vpop.xlane.xlu0 %3770
  %v3772 = vsel %vm3567, %v3755, 0.0
  %v3773 = vadd.f32 %v3754, %v3772
  %3774 = vadd.xlane.f32.xlu0 %v3773
  %v3775 = vpop.xlane.xlu0 %3774
  %v3776 = vsel %vm3567, %v3757, 0.0
  %v3777 = vadd.f32 %v3756, %v3776
  %3778 = vadd.xlane.f32.xlu0 %v3777
  %v3779 = vpop.xlane.xlu0 %3778
  %v3780 = vsel %vm3567, %v3759, 0.0
  %v3781 = vadd.f32 %v3758, %v3780
  %3782 = vadd.xlane.f32.xlu0 %v3781
  %v3783 = vpop.xlane.xlu0 %3782
  %3784 = vmatprep.subr.mxu0 0.0
  %3785 = vmatpush1.msra.mxu0 0.0
  %3786 = vmatprep.subr.mxu0 0.0
  %3787 = vmatpush1.msra.mxu0 0.0
  %3788 = vmatprep.subr.mxu0 0.0
  %3789 = vmatpush1.msra.mxu0 0.0
  %3790 = vmatprep.subr.mxu0 0.0
  %3791 = vmatpush1.msra.mxu0 0.0
  %3792 = vmatprep.subr.mxu0 0.0
  %3793 = vmatpush1.msra.mxu0 0.0
  %3794 = vmatprep.subr.mxu0 0.0
  %3795 = vmatpush1.msra.mxu0 0.0
  %3796 = vmatprep.subr.mxu0 0.0
  %3797 = vmatpush1.msra.mxu0 0.0
  %3798 = vmatprep.subr.mxu0 0.0
  %3799 = vmatpush1.msra.mxu0 0.0
  %3800 = vmatprep.subr.mxu0 0.0
  %3801 = vmatpush1.msra.mxu0 0.0
  %3802 = vmatprep.subr.mxu0 0.0
  %3803 = vmatpush1.msra.mxu0 0.0
  %3804 = vmatprep.subr.mxu0 0.0
  %3805 = vmatpush1.msra.mxu0 %v3783
  %3806 = vmatprep.subr.mxu0 0.0
  %3807 = vmatpush1.msra.mxu0 %v3779
  %3808 = vmatprep.subr.mxu0 0.0
  %3809 = vmatpush1.msra.mxu0 %v3775
  %3810 = vmatprep.subr.mxu0 0.0
  %3811 = vmatpush1.msra.mxu0 %v3771
  %3812 = vmatprep.subr.mxu0 0.0
  %3813 = vmatpush1.msra.mxu0 %v3767
  %3814 = vmatprep.subr.mxu0 0.0
  %3815 = vmatpush1.msra.mxu0 %v3763
  %3816 = vmatprep.subr.mxu0 0.0
  %3817 = vmatpush2.msra.mxu0 0.0
  %3818 = vmatprep.subr.mxu0 0.0
  %3819 = vmatpush2.msra.mxu0 0.0
  %3820 = vmatprep.subr.mxu0 0.0
  %3821 = vmatpush2.msra.mxu0 0.0
  %3822 = vmatprep.subr.mxu0 0.0
  %3823 = vmatpush2.msra.mxu0 0.0
  %3824 = vmatprep.subr.mxu0 0.0
  %3825 = vmatpush2.msra.mxu0 0.0
  %3826 = vmatprep.subr.mxu0 0.0
  %3827 = vmatpush2.msra.mxu0 0.0
  %3828 = vmatprep.subr.mxu0 0.0
  %3829 = vmatpush2.msra.mxu0 0.0
  %3830 = vmatprep.subr.mxu0 0.0
  %3831 = vmatpush2.msra.mxu0 0.0
  %3832 = vmatprep.subr.mxu0 0.0
  %3833 = vmatpush2.msra.mxu0 0.0
  %3834 = vmatprep.subr.mxu0 0.0
  %3835 = vmatpush2.msra.mxu0 0.0
  %3836 = vmatprep.subr.mxu0 0.0
  %3837 = vmatpush2.msra.mxu0 0.0
  %3838 = vmatprep.subr.mxu0 0.0
  %3839 = vmatpush2.msra.mxu0 0.0
  %3840 = vmatprep.subr.mxu0 0.0
  %3841 = vmatpush2.msra.mxu0 0.0
  %3842 = vmatprep.subr.mxu0 0.0
  %3843 = vmatpush2.msra.mxu0 0.0
  %3844 = vmatprep.subr.mxu0 0.0
  %3845 = vmatpush2.msra.mxu0 0.0
  %3846 = vmatprep.subr.mxu0 0.0
  %3847 = vmatpush2.msra.mxu0 0.0
  %3848 = vmatprep.mubr.f32.mxu0 0.0
  %3849 = vmatmul.mubr.f32.gmra.mxu0 %v3594
  %v3850 = vpop.f32.mrf.mxu0
  %v3851 = vadd.f32 1e-05, %v3850
  %v3852 = vpop.f32.mrf.mxu0
  %3853 = vmatprep.mubr.f32.mxu0 0.0
  %3854 = vmatmul.mubr.f32.gmra.mxu0 %v3597
  %v3855 = vpop.f32.mrf.mxu0
  %v3856 = vadd.f32 1e-05, %v3855
  %v3857 = vpop.f32.mrf.mxu0
  %3858 = vmatprep.mubr.f32.mxu0 0.0
  %3859 = vmatmul.mubr.f32.gmra.mxu0 %v3600
  %v3860 = vpop.f32.mrf.mxu0
  %v3861 = vadd.f32 1e-05, %v3860
  %v3862 = vpop.f32.mrf.mxu0
  %3863 = vmatprep.mubr.f32.mxu0 0.0
  %3864 = vmatmul.mubr.f32.gmra.mxu0 %v3603
  %v3865 = vpop.f32.mrf.mxu0
  %v3866 = vadd.f32 1e-05, %v3865
  %v3867 = vpop.f32.mrf.mxu0
  %3868 = vmatprep.mubr.f32.mxu0 0.0
  %3869 = vmatmul.mubr.f32.gmra.mxu0 %v3606
  %v3870 = vpop.f32.mrf.mxu0
  %v3871 = vadd.f32 1e-05, %v3870
  %v3872 = vpop.f32.mrf.mxu0
  %3873 = vmatprep.mubr.f32.mxu0 0.0
  %3874 = vmatmul.mubr.f32.gmra.mxu0 %v3609
  %v3875 = vpop.f32.mrf.mxu0
  %v3876 = vadd.f32 1e-05, %v3875
  %v3877 = vpop.f32.mrf.mxu0
  %3878 = vdwg.mxu0
  %v3879 = vrsqrt.pop %v3851
  %v3880 = vrsqrt.pop %v3856
  %v3881 = vrsqrt.pop %v3861
  %v3882 = vrsqrt.pop %v3866
  %v3883 = vrsqrt.pop %v3871
  %v3884 = vrsqrt.pop %v3876
  %3886 = vset.pattern.permute.xlu0 0
  %3887 = vperm.xlu0 %3886, %v3879
  %v3888 = vpop.permute.xlu0 %3887
  %3891 = vset.pattern.permute.xlu0 0
  %3892 = vperm.xlu0 %3891, %v3880
  %v3893 = vpop.permute.xlu0 %3892
  %3896 = vset.pattern.permute.xlu0 0
  %3897 = vperm.xlu0 %3896, %v3881
  %v3898 = vpop.permute.xlu0 %3897
  %3901 = vset.pattern.permute.xlu0 0
  %3902 = vperm.xlu0 %3901, %v3882
  %v3903 = vpop.permute.xlu0 %3902
  %3906 = vset.pattern.permute.xlu0 0
  %3907 = vperm.xlu0 %3906, %v3883
  %v3908 = vpop.permute.xlu0 %3907
  %3911 = vset.pattern.permute.xlu0 0
  %3912 = vperm.xlu0 %3911, %v3884
  %v3913 = vpop.permute.xlu0 %3912
  %v3915 = vmul.f32 %v3736, %v3888
  %v3916 = vmul.f32 %v3737, %v3888
  %v3917 = vmul.f32 %v3738, %v3893
  %v3918 = vmul.f32 %v3739, %v3893
  %v3919 = vmul.f32 %v3740, %v3898
  %v3920 = vmul.f32 %v3741, %v3898
  %v3921 = vmul.f32 %v3742, %v3903
  %v3922 = vmul.f32 %v3743, %v3903
  %v3923 = vmul.f32 %v3744, %v3908
  %v3924 = vmul.f32 %v3745, %v3908
  %v3925 = vmul.f32 %v3746, %v3913
  %v3926 = vmul.f32 %v3747, %v3913
  %3928 = vset.pattern.permute.xlu0 0
  %3929 = vperm.xlu0 %3928, %v3555
  %v3930 = vpop.permute.xlu0 %3929
  %3933 = vset.pattern.permute.xlu0 0
  %3934 = vperm.xlu0 %3933, %v3556
  %v3935 = vpop.permute.xlu0 %3934
  %3938 = vset.pattern.permute.xlu0 0
  %3939 = vperm.xlu0 %3938, %v3557
  %v3940 = vpop.permute.xlu0 %3939
  %3943 = vset.pattern.permute.xlu0 0
  %3944 = vperm.xlu0 %3943, %v3558
  %v3945 = vpop.permute.xlu0 %3944
  %3948 = vset.pattern.permute.xlu0 0
  %3949 = vperm.xlu0 %3948, %v3559
  %v3950 = vpop.permute.xlu0 %3949
  %3953 = vset.pattern.permute.xlu0 0
  %3954 = vperm.xlu0 %3953, %v3560
  %v3955 = vpop.permute.xlu0 %3954
  %v3957 = vmul.f32 %v3915, %v3930
  %v3958 = vmul.f32 %v3916, %v3930
  %v3959 = vmul.f32 %v3917, %v3935
  %v3960 = vmul.f32 %v3918, %v3935
  %v3961 = vmul.f32 %v3919, %v3940
  %v3962 = vmul.f32 %v3920, %v3940
  %v3963 = vmul.f32 %v3921, %v3945
  %v3964 = vmul.f32 %v3922, %v3945
  %v3965 = vmul.f32 %v3923, %v3950
  %v3966 = vmul.f32 %v3924, %v3950
  %v3967 = vmul.f32 %v3925, %v3955
  %v3968 = vmul.f32 %v3926, %v3955
  %3970 = vset.pattern.permute.xlu0 0
  %3971 = vperm.xlu0 %3970, %v3561
  %v3972 = vpop.permute.xlu0 %3971
  %3975 = vset.pattern.permute.xlu0 0
  %3976 = vperm.xlu0 %3975, %v3562
  %v3977 = vpop.permute.xlu0 %3976
  %3980 = vset.pattern.permute.xlu0 0
  %3981 = vperm.xlu0 %3980, %v3563
  %v3982 = vpop.permute.xlu0 %3981
  %3985 = vset.pattern.permute.xlu0 0
  %3986 = vperm.xlu0 %3985, %v3564
  %v3987 = vpop.permute.xlu0 %3986
  %3990 = vset.pattern.permute.xlu0 0
  %3991 = vperm.xlu0 %3990, %v3565
  %v3992 = vpop.permute.xlu0 %3991
  %3995 = vset.pattern.permute.xlu0 0
  %3996 = vperm.xlu0 %3995, %v3566
  %v3997 = vpop.permute.xlu0 %3996
  %v3999 = vadd.f32 %v3957, %v3972
  %v4000 = vadd.f32 %v3958, %v3972
  %v4001 = vadd.f32 %v3959, %v3977
  %v4002 = vadd.f32 %v3960, %v3977
  %v4003 = vadd.f32 %v3961, %v3982
  %v4004 = vadd.f32 %v3962, %v3982
  %v4005 = vadd.f32 %v3963, %v3987
  %v4006 = vadd.f32 %v3964, %v3987
  %v4007 = vadd.f32 %v3965, %v3992
  %v4008 = vadd.f32 %v3966, %v3992
  %v4009 = vadd.f32 %v3967, %v3997
  %v4010 = vadd.f32 %v3968, %v3997
  %v4011 = vmax.f32 %v3999, 0.0
  %v4012 = vmax.f32 %v4000, 0.0
  %v4013 = vmax.f32 %v4001, 0.0
  %v4014 = vmax.f32 %v4002, 0.0
  %v4015 = vmax.f32 %v4003, 0.0
  %v4016 = vmax.f32 %v4004, 0.0
  %v4017 = vmax.f32 %v4005, 0.0
  %v4018 = vmax.f32 %v4006, 0.0
  %v4019 = vmax.f32 %v4007, 0.0
  %v4020 = vmax.f32 %v4008, 0.0
  %v4021 = vmax.f32 %v4009, 0.0
  %v4022 = vmax.f32 %v4010, 0.0
  %v4023 = vld [vmem:[%s14] sm:$0xff]
  %v4024 = vld [vmem:[%s14 + $0x8] sm:$0xff]
  %v4025 = vld [vmem:[%s14 + $0x10] sm:$0xff]
  %v4026 = vld [vmem:[%s14 + $0x18] sm:$0xff]
  %v4027 = vld [vmem:[%s14 + $0x20] sm:$0xff]
  %v4028 = vld [vmem:[%s14 + $0x28] sm:$0xff]
  %v4029 = vld [vmem:[%s14 + $0x30] sm:$0xff]
  %v4030 = vld [vmem:[%s14 + $0x38] sm:$0xff]
  %v4031 = vld [vmem:[%s14 + $0x40] sm:$0xff]
  %v4033 = vsel %vm3592, %v4023, 0
  %v4036 = vsel %vm3592, %v4024, 0
  %v4039 = vsel %vm3592, %v4025, 0
  %v4042 = vsel %vm3592, %v4026, 0
  %v4045 = vsel %vm3592, %v4027, 0
  %v4048 = vsel %vm3592, %v4028, 0
  %v4051 = vsel %vm3592, %v4029, 0
  %v4054 = vsel %vm3592, %v4030, 0
  %v4057 = vsel %vm3592, %v4031, 0
  %4059 = vmatprep.subr.mxu0 0.0
  %4060 = vmatpush1.msra.mxu0 0.0
  %4061 = vmatprep.subr.mxu0 0.0
  %4062 = vmatpush1.msra.mxu0 0.0
  %4063 = vmatprep.subr.mxu0 0.0
  %4064 = vmatpush1.msra.mxu0 0.0
  %4065 = vmatprep.subr.mxu0 0.0
  %4066 = vmatpush1.msra.mxu0 0.0
  %4067 = vmatprep.subr.mxu0 0.0
  %4068 = vmatpush1.msra.mxu0 0.0
  %4069 = vmatprep.subr.mxu0 0.0
  %4070 = vmatpush1.msra.mxu0 0.0
  %4071 = vmatprep.subr.mxu0 0.0
  %4072 = vmatpush1.msra.mxu0 0.0
  %4073 = vmatprep.subr.mxu0 0.0
  %4074 = vmatpush1.msra.mxu0 0.0
  %4075 = vmatprep.subr.mxu0 0.0
  %4076 = vmatpush1.msra.mxu0 0.0
  %4077 = vmatprep.subr.mxu0 0.0
  %4078 = vmatpush1.msra.mxu0 0.0
  %4079 = vmatprep.subr.mxu0 %v4022
  %4080 = vmatpush1.msra.mxu0 %v4021
  %4081 = vmatprep.subr.mxu0 %v4020
  %4082 = vmatpush1.msra.mxu0 %v4019
  %4083 = vmatprep.subr.mxu0 %v4018
  %4084 = vmatpush1.msra.mxu0 %v4017
  %4085 = vmatprep.subr.mxu0 %v4016
  %4086 = vmatpush1.msra.mxu0 %v4015
  %4087 = vmatprep.subr.mxu0 %v4014
  %4088 = vmatpush1.msra.mxu0 %v4013
  %4089 = vmatprep.subr.mxu0 %v4012
  %4090 = vmatpush1.msra.mxu0 %v4011
  %4091 = vmatprep.subr.mxu0 0.0
  %4092 = vmatpush2.msra.mxu0 0.0
  %4093 = vmatprep.subr.mxu0 0.0
  %4094 = vmatpush2.msra.mxu0 0.0
  %4095 = vmatprep.subr.mxu0 0.0
  %4096 = vmatpush2.msra.mxu0 0.0
  %4097 = vmatprep.subr.mxu0 0.0
  %4098 = vmatpush2.msra.mxu0 0.0
  %4099 = vmatprep.subr.mxu0 0.0
  %4100 = vmatpush2.msra.mxu0 0.0
  %4101 = vmatprep.subr.mxu0 0.0
  %4102 = vmatpush2.msra.mxu0 0.0
  %4103 = vmatprep.subr.mxu0 0.0
  %4104 = vmatpush2.msra.mxu0 0.0
  %4105 = vmatprep.subr.mxu0 0.0
  %4106 = vmatpush2.msra.mxu0 0.0
  %4107 = vmatprep.subr.mxu0 0.0
  %4108 = vmatpush2.msra.mxu0 0.0
  %4109 = vmatprep.subr.mxu0 0.0
  %4110 = vmatpush2.msra.mxu0 0.0
  %4111 = vmatprep.subr.mxu0 0.0
  %4112 = vmatpush2.msra.mxu0 0.0
  %4113 = vmatprep.subr.mxu0 0.0
  %4114 = vmatpush2.msra.mxu0 0.0
  %4115 = vmatprep.subr.mxu0 0.0
  %4116 = vmatpush2.msra.mxu0 0.0
  %4117 = vmatprep.subr.mxu0 0.0
  %4118 = vmatpush2.msra.mxu0 0.0
  %4119 = vmatprep.subr.mxu0 0.0
  %4120 = vmatpush2.msra.mxu0 0.0
  %4121 = vmatprep.subr.mxu0 0.0
  %4122 = vmatpush2.msra.mxu0 0.0
  %4123 = vmatprep.mubr.f32.mxu0 0.0
  %4124 = vmatmul.mubr.f32.gmra.mxu0 %v4033
  %v4125 = vpop.f32.mrf.mxu0
  %v4126 = vadd.f32 0.0, %v4125
  %v4127 = vpop.f32.mrf.mxu0
  %v4128 = vadd.f32 0.0, %v4127
  %4129 = vmatprep.mubr.f32.mxu0 0.0
  %4130 = vmatmul.mubr.f32.gmra.mxu0 %v4036
  %v4131 = vpop.f32.mrf.mxu0
  %v4132 = vadd.f32 0.0, %v4131
  %v4133 = vpop.f32.mrf.mxu0
  %v4134 = vadd.f32 0.0, %v4133
  %4135 = vmatprep.mubr.f32.mxu0 0.0
  %4136 = vmatmul.mubr.f32.gmra.mxu0 %v4039
  %v4137 = vpop.f32.mrf.mxu0
  %v4138 = vadd.f32 0.0, %v4137
  %v4139 = vpop.f32.mrf.mxu0
  %v4140 = vadd.f32 0.0, %v4139
  %4141 = vmatprep.mubr.f32.mxu0 0.0
  %4142 = vmatmul.mubr.f32.gmra.mxu0 %v4042
  %v4143 = vpop.f32.mrf.mxu0
  %v4144 = vadd.f32 0.0, %v4143
  %v4145 = vpop.f32.mrf.mxu0
  %v4146 = vadd.f32 0.0, %v4145
  %4147 = vmatprep.mubr.f32.mxu0 0.0
  %4148 = vmatmul.mubr.f32.gmra.mxu0 %v4045
  %v4149 = vpop.f32.mrf.mxu0
  %v4150 = vadd.f32 0.0, %v4149
  %v4151 = vpop.f32.mrf.mxu0
  %v4152 = vadd.f32 0.0, %v4151
  %4153 = vmatprep.mubr.f32.mxu0 0.0
  %4154 = vmatmul.mubr.f32.gmra.mxu0 %v4048
  %v4155 = vpop.f32.mrf.mxu0
  %v4156 = vadd.f32 0.0, %v4155
  %v4157 = vpop.f32.mrf.mxu0
  %v4158 = vadd.f32 0.0, %v4157
  %4159 = vmatprep.mubr.f32.mxu0 0.0
  %4160 = vmatmul.mubr.f32.gmra.mxu0 %v4051
  %v4161 = vpop.f32.mrf.mxu0
  %v4162 = vadd.f32 0.0, %v4161
  %v4163 = vpop.f32.mrf.mxu0
  %v4164 = vadd.f32 0.0, %v4163
  %4165 = vmatprep.mubr.f32.mxu0 0.0
  %4166 = vmatmul.mubr.f32.gmra.mxu0 %v4054
  %v4167 = vpop.f32.mrf.mxu0
  %v4168 = vadd.f32 0.0, %v4167
  %v4169 = vpop.f32.mrf.mxu0
  %v4170 = vadd.f32 0.0, %v4169
  %4171 = vmatprep.mubr.f32.mxu0 0.0
  %4172 = vmatmul.mubr.f32.gmra.mxu0 %v4057
  %v4173 = vpop.f32.mrf.mxu0
  %v4174 = vadd.f32 0.0, %v4173
  %v4175 = vpop.f32.mrf.mxu0
  %v4176 = vadd.f32 0.0, %v4175
  %4177 = vdwg.mxu0
  %v4178 = vld [vmem:[%s15] sm:$0xff]
  %v4179 = vld [vmem:[%s15 + $0x8] sm:$0xff]
  %v4180 = vld [vmem:[%s15 + $0x10] sm:$0xff]
  %v4181 = vld [vmem:[%s15 + $0x18] sm:$0xf]
  %v4182 = vld [vmem:[%s15 + $0x1c] sm:$0xff]
  %v4183 = vld [vmem:[%s15 + $0x24] sm:$0xff]
  %v4184 = vld [vmem:[%s15 + $0x2c] sm:$0xff]
  %v4185 = vld [vmem:[%s15 + $0x34] sm:$0xf]
  %v4186 = vld [vmem:[%s15 + $0x38] sm:$0xff]
  %v4187 = vld [vmem:[%s15 + $0x40] sm:$0xff]
  %v4188 = vld [vmem:[%s15 + $0x48] sm:$0xff]
  %v4189 = vld [vmem:[%s15 + $0x50] sm:$0xf]
  %v4190 = vld [vmem:[%s15 + $0x54] sm:$0xff]
  %v4191 = vld [vmem:[%s15 + $0x5c] sm:$0xff]
  %v4192 = vld [vmem:[%s15 + $0x64] sm:$0xff]
  %v4193 = vld [vmem:[%s15 + $0x6c] sm:$0xf]
  %v4194 = vld [vmem:[%s15 + $0x70] sm:$0xff]
  %v4195 = vld [vmem:[%s15 + $0x78] sm:$0xff]
  %v4196 = vld [vmem:[%s15 + $0x80] sm:$0xff]
  %v4197 = vld [vmem:[%s15 + $0x88] sm:$0xf]
  %v4198 = vld [vmem:[%s15 + $0x8c] sm:$0xff]
  %v4199 = vld [vmem:[%s15 + $0x94] sm:$0xff]
  %v4200 = vld [vmem:[%s15 + $0x9c] sm:$0xff]
  %v4201 = vld [vmem:[%s15 + $0xa4] sm:$0xf]
  %v4202 = vld [vmem:[%s15 + $0xa8] sm:$0xff]
  %v4203 = vld [vmem:[%s15 + $0xb0] sm:$0xff]
  %v4204 = vld [vmem:[%s15 + $0xb8] sm:$0xff]
  %v4205 = vld [vmem:[%s15 + $0xc0] sm:$0xf]
  %v4206 = vld [vmem:[%s15 + $0xc4] sm:$0xff]
  %v4207 = vld [vmem:[%s15 + $0xcc] sm:$0xff]
  %v4208 = vld [vmem:[%s15 + $0xd4] sm:$0xff]
  %v4209 = vld [vmem:[%s15 + $0xdc] sm:$0xf]
  %v4210 = vld [vmem:[%s15 + $0xe0] sm:$0xff]
  %v4211 = vld [vmem:[%s15 + $0xe8] sm:$0xff]
  %v4212 = vld [vmem:[%s15 + $0xf0] sm:$0xff]
  %v4213 = vld [vmem:[%s15 + $0xf8] sm:$0xf]
  %v4214 = vld [vmem:[%s15 + $0xfc] sm:$0xff]
  %v4215 = vld [vmem:[%s15 + $0x104] sm:$0xff]
  %v4216 = vld [vmem:[%s15 + $0x10c] sm:$0xff]
  %v4217 = vld [vmem:[%s15 + $0x114] sm:$0xf]
  %v4218 = vld [vmem:[%s15 + $0x118] sm:$0xff]
  %v4219 = vld [vmem:[%s15 + $0x120] sm:$0xff]
  %v4220 = vld [vmem:[%s15 + $0x128] sm:$0xff]
  %v4221 = vld [vmem:[%s15 + $0x130] sm:$0xf]
  %v4222 = vld [vmem:[%s15 + $0x134] sm:$0xff]
  %v4223 = vld [vmem:[%s15 + $0x13c] sm:$0xff]
  %v4224 = vld [vmem:[%s15 + $0x144] sm:$0xff]
  %v4225 = vld [vmem:[%s15 + $0x14c] sm:$0xf]
  %v4226 = vld [vmem:[%s15 + $0x150] sm:$0xff]
  %v4227 = vld [vmem:[%s15 + $0x158] sm:$0xff]
  %v4228 = vld [vmem:[%s15 + $0x160] sm:$0xff]
  %v4229 = vld [vmem:[%s15 + $0x168] sm:$0xf]
  %v4230 = vld [vmem:[%s15 + $0x16c] sm:$0xff]
  %v4231 = vld [vmem:[%s15 + $0x174] sm:$0xff]
  %v4232 = vld [vmem:[%s15 + $0x17c] sm:$0xff]
  %v4233 = vld [vmem:[%s15 + $0x184] sm:$0xf]
  %v4234 = vld [vmem:[%s15 + $0x188] sm:$0xff]
  %v4235 = vld [vmem:[%s15 + $0x190] sm:$0xff]
  %v4236 = vld [vmem:[%s15 + $0x198] sm:$0xff]
  %v4237 = vld [vmem:[%s15 + $0x1a0] sm:$0xf]
  %v4238 = vld [vmem:[%s15 + $0x1a4] sm:$0xff]
  %v4239 = vld [vmem:[%s15 + $0x1ac] sm:$0xff]
  %v4240 = vld [vmem:[%s15 + $0x1b4] sm:$0xff]
  %v4241 = vld [vmem:[%s15 + $0x1bc] sm:$0xf]
  %v4242 = vld [vmem:[%s15 + $0x1c0] sm:$0xff]
  %v4243 = vld [vmem:[%s15 + $0x1c8] sm:$0xff]
  %v4244 = vld [vmem:[%s15 + $0x1d0] sm:$0xff]
  %v4245 = vld [vmem:[%s15 + $0x1d8] sm:$0xf]
  %v4246 = vld [vmem:[%s15 + $0x1dc] sm:$0xff]
  %v4247 = vld [vmem:[%s15 + $0x1e4] sm:$0xff]
  %v4248 = vld [vmem:[%s15 + $0x1ec] sm:$0xff]
  %v4249 = vld [vmem:[%s15 + $0x1f4] sm:$0xf]
  %v4250 = vld [vmem:[%s15 + $0x1f8] sm:$0xff]
  %v4251 = vld [vmem:[%s15 + $0x200] sm:$0xff]
  %v4252 = vld [vmem:[%s15 + $0x208] sm:$0xff]
  %v4253 = vld [vmem:[%s15 + $0x210] sm:$0xf]
  %v4254 = vld [vmem:[%s15 + $0x214] sm:$0xff]
  %v4255 = vld [vmem:[%s15 + $0x21c] sm:$0xff]
  %v4256 = vld [vmem:[%s15 + $0x224] sm:$0xff]
  %v4257 = vld [vmem:[%s15 + $0x22c] sm:$0xf]
  %v4258 = vld [vmem:[%s15 + $0x230] sm:$0xff]
  %v4259 = vld [vmem:[%s15 + $0x238] sm:$0xff]
  %v4260 = vld [vmem:[%s15 + $0x240] sm:$0xff]
  %v4261 = vld [vmem:[%s15 + $0x248] sm:$0xf]
  %v4262 = vld [vmem:[%s15 + $0x24c] sm:$0xff]
  %v4263 = vld [vmem:[%s15 + $0x254] sm:$0xff]
  %v4264 = vld [vmem:[%s15 + $0x25c] sm:$0xff]
  %v4265 = vld [vmem:[%s15 + $0x264] sm:$0xf]
  %v4266 = vld [vmem:[%s15 + $0x268] sm:$0xff]
  %v4267 = vld [vmem:[%s15 + $0x270] sm:$0xff]
  %v4268 = vld [vmem:[%s15 + $0x278] sm:$0xff]
  %v4269 = vld [vmem:[%s15 + $0x280] sm:$0xf]
  %v4270 = vld [vmem:[%s15 + $0x284] sm:$0xff]
  %v4271 = vld [vmem:[%s15 + $0x28c] sm:$0xff]
  %v4272 = vld [vmem:[%s15 + $0x294] sm:$0xff]
  %v4273 = vld [vmem:[%s15 + $0x29c] sm:$0xf]
  %v4274 = vld [vmem:[%s15 + $0x2a0] sm:$0xff]
  %v4275 = vld [vmem:[%s15 + $0x2a8] sm:$0xff]
  %v4276 = vld [vmem:[%s15 + $0x2b0] sm:$0xff]
  %v4277 = vld [vmem:[%s15 + $0x2b8] sm:$0xf]
  %v4278 = vld [vmem:[%s15 + $0x2bc] sm:$0xff]
  %v4279 = vld [vmem:[%s15 + $0x2c4] sm:$0xff]
  %v4280 = vld [vmem:[%s15 + $0x2cc] sm:$0xff]
  %v4281 = vld [vmem:[%s15 + $0x2d4] sm:$0xf]
  %v4282 = vld [vmem:[%s15 + $0x2d8] sm:$0xff]
  %v4283 = vld [vmem:[%s15 + $0x2e0] sm:$0xff]
  %v4284 = vld [vmem:[%s15 + $0x2e8] sm:$0xff]
  %v4285 = vld [vmem:[%s15 + $0x2f0] sm:$0xf]
  %v4286 = vld [vmem:[%s15 + $0x2f4] sm:$0xff]
  %v4287 = vld [vmem:[%s15 + $0x2fc] sm:$0xff]
  %v4288 = vld [vmem:[%s15 + $0x304] sm:$0xff]
  %v4289 = vld [vmem:[%s15 + $0x30c] sm:$0xf]
  %v4290 = vld [vmem:[%s15 + $0x310] sm:$0x11]
  %v4291 = vld [vmem:[%s15 + $0x318] sm:$0x11]
  %v4292 = vld [vmem:[%s15 + $0x320] sm:$0x11]
  %v4293 = vld [vmem:[%s15 + $0x328] sm:$0x1]
  %v4294 = vunpack.c.l.bf16 %v4178
  %v4295 = vunpack.c.h.bf16 %v4178
  %v4296 = vunpack.c.l.bf16 %v4179
  %v4297 = vunpack.c.h.bf16 %v4179
  %v4298 = vunpack.c.l.bf16 %v4180
  %v4299 = vunpack.c.h.bf16 %v4180
  %v4300 = vunpack.c.l.bf16 %v4181
  %v4301 = vunpack.c.l.bf16 %v4182
  %v4302 = vunpack.c.h.bf16 %v4182
  %v4303 = vunpack.c.l.bf16 %v4183
  %v4304 = vunpack.c.h.bf16 %v4183
  %v4305 = vunpack.c.l.bf16 %v4184
  %v4306 = vunpack.c.h.bf16 %v4184
  %v4307 = vunpack.c.l.bf16 %v4185
  %v4308 = vunpack.c.l.bf16 %v4186
  %v4309 = vunpack.c.h.bf16 %v4186
  %v4310 = vunpack.c.l.bf16 %v4187
  %v4311 = vunpack.c.h.bf16 %v4187
  %v4312 = vunpack.c.l.bf16 %v4188
  %v4313 = vunpack.c.h.bf16 %v4188
  %v4314 = vunpack.c.l.bf16 %v4189
  %v4315 = vunpack.c.l.bf16 %v4190
  %v4316 = vunpack.c.h.bf16 %v4190
  %v4317 = vunpack.c.l.bf16 %v4191
  %v4318 = vunpack.c.h.bf16 %v4191
  %v4319 = vunpack.c.l.bf16 %v4192
  %v4320 = vunpack.c.h.bf16 %v4192
  %v4321 = vunpack.c.l.bf16 %v4193
  %v4322 = vunpack.c.l.bf16 %v4194
  %v4323 = vunpack.c.h.bf16 %v4194
  %v4324 = vunpack.c.l.bf16 %v4195
  %v4325 = vunpack.c.h.bf16 %v4195
  %v4326 = vunpack.c.l.bf16 %v4196
  %v4327 = vunpack.c.h.bf16 %v4196
  %v4328 = vunpack.c.l.bf16 %v4197
  %v4329 = vunpack.c.l.bf16 %v4198
  %v4330 = vunpack.c.h.bf16 %v4198
  %v4331 = vunpack.c.l.bf16 %v4199
  %v4332 = vunpack.c.h.bf16 %v4199
  %v4333 = vunpack.c.l.bf16 %v4200
  %v4334 = vunpack.c.h.bf16 %v4200
  %v4335 = vunpack.c.l.bf16 %v4201
  %v4336 = vunpack.c.l.bf16 %v4202
  %v4337 = vunpack.c.h.bf16 %v4202
  %v4338 = vunpack.c.l.bf16 %v4203
  %v4339 = vunpack.c.h.bf16 %v4203
  %v4340 = vunpack.c.l.bf16 %v4204
  %v4341 = vunpack.c.h.bf16 %v4204
  %v4342 = vunpack.c.l.bf16 %v4205
  %v4343 = vunpack.c.l.bf16 %v4206
  %v4344 = vunpack.c.h.bf16 %v4206
  %v4345 = vunpack.c.l.bf16 %v4207
  %v4346 = vunpack.c.h.bf16 %v4207
  %v4347 = vunpack.c.l.bf16 %v4208
  %v4348 = vunpack.c.h.bf16 %v4208
  %v4349 = vunpack.c.l.bf16 %v4209
  %v4350 = vunpack.c.l.bf16 %v4210
  %v4351 = vunpack.c.h.bf16 %v4210
  %v4352 = vunpack.c.l.bf16 %v4211
  %v4353 = vunpack.c.h.bf16 %v4211
  %v4354 = vunpack.c.l.bf16 %v4212
  %v4355 = vunpack.c.h.bf16 %v4212
  %v4356 = vunpack.c.l.bf16 %v4213
  %v4357 = vunpack.c.l.bf16 %v4214
  %v4358 = vunpack.c.h.bf16 %v4214
  %v4359 = vunpack.c.l.bf16 %v4215
  %v4360 = vunpack.c.h.bf16 %v4215
  %v4361 = vunpack.c.l.bf16 %v4216
  %v4362 = vunpack.c.h.bf16 %v4216
  %v4363 = vunpack.c.l.bf16 %v4217
  %v4364 = vunpack.c.l.bf16 %v4218
  %v4365 = vunpack.c.h.bf16 %v4218
  %v4366 = vunpack.c.l.bf16 %v4219
  %v4367 = vunpack.c.h.bf16 %v4219
  %v4368 = vunpack.c.l.bf16 %v4220
  %v4369 = vunpack.c.h.bf16 %v4220
  %v4370 = vunpack.c.l.bf16 %v4221
  %v4371 = vunpack.c.l.bf16 %v4222
  %v4372 = vunpack.c.h.bf16 %v4222
  %v4373 = vunpack.c.l.bf16 %v4223
  %v4374 = vunpack.c.h.bf16 %v4223
  %v4375 = vunpack.c.l.bf16 %v4224
  %v4376 = vunpack.c.h.bf16 %v4224
  %v4377 = vunpack.c.l.bf16 %v4225
  %v4378 = vunpack.c.l.bf16 %v4226
  %v4379 = vunpack.c.h.bf16 %v4226
  %v4380 = vunpack.c.l.bf16 %v4227
  %v4381 = vunpack.c.h.bf16 %v4227
  %v4382 = vunpack.c.l.bf16 %v4228
  %v4383 = vunpack.c.h.bf16 %v4228
  %v4384 = vunpack.c.l.bf16 %v4229
  %v4385 = vunpack.c.l.bf16 %v4230
  %v4386 = vunpack.c.h.bf16 %v4230
  %v4387 = vunpack.c.l.bf16 %v4231
  %v4388 = vunpack.c.h.bf16 %v4231
  %v4389 = vunpack.c.l.bf16 %v4232
  %v4390 = vunpack.c.h.bf16 %v4232
  %v4391 = vunpack.c.l.bf16 %v4233
  %v4392 = vunpack.c.l.bf16 %v4234
  %v4393 = vunpack.c.h.bf16 %v4234
  %v4394 = vunpack.c.l.bf16 %v4235
  %v4395 = vunpack.c.h.bf16 %v4235
  %v4396 = vunpack.c.l.bf16 %v4236
  %v4397 = vunpack.c.h.bf16 %v4236
  %v4398 = vunpack.c.l.bf16 %v4237
  %v4399 = vunpack.c.l.bf16 %v4238
  %v4400 = vunpack.c.h.bf16 %v4238
  %v4401 = vunpack.c.l.bf16 %v4239
  %v4402 = vunpack.c.h.bf16 %v4239
  %v4403 = vunpack.c.l.bf16 %v4240
  %v4404 = vunpack.c.h.bf16 %v4240
  %v4405 = vunpack.c.l.bf16 %v4241
  %v4406 = vunpack.c.l.bf16 %v4242
  %v4407 = vunpack.c.h.bf16 %v4242
  %v4408 = vunpack.c.l.bf16 %v4243
  %v4409 = vunpack.c.h.bf16 %v4243
  %v4410 = vunpack.c.l.bf16 %v4244
  %v4411 = vunpack.c.h.bf16 %v4244
  %v4412 = vunpack.c.l.bf16 %v4245
  %v4413 = vunpack.c.l.bf16 %v4246
  %v4414 = vunpack.c.h.bf16 %v4246
  %v4415 = vunpack.c.l.bf16 %v4247
  %v4416 = vunpack.c.h.bf16 %v4247
  %v4417 = vunpack.c.l.bf16 %v4248
  %v4418 = vunpack.c.h.bf16 %v4248
  %v4419 = vunpack.c.l.bf16 %v4249
  %v4420 = vunpack.c.l.bf16 %v4250
  %v4421 = vunpack.c.h.bf16 %v4250
  %v4422 = vunpack.c.l.bf16 %v4251
  %v4423 = vunpack.c.h.bf16 %v4251
  %v4424 = vunpack.c.l.bf16 %v4252
  %v4425 = vunpack.c.h.bf16 %v4252
  %v4426 = vunpack.c.l.bf16 %v4253
  %v4427 = vunpack.c.l.bf16 %v4254
  %v4428 = vunpack.c.h.bf16 %v4254
  %v4429 = vunpack.c.l.bf16 %v4255
  %v4430 = vunpack.c.h.bf16 %v4255
  %v4431 = vunpack.c.l.bf16 %v4256
  %v4432 = vunpack.c.h.bf16 %v4256
  %v4433 = vunpack.c.l.bf16 %v4257
  %v4434 = vunpack.c.l.bf16 %v4258
  %v4435 = vunpack.c.h.bf16 %v4258
  %v4436 = vunpack.c.l.bf16 %v4259
  %v4437 = vunpack.c.h.bf16 %v4259
  %v4438 = vunpack.c.l.bf16 %v4260
  %v4439 = vunpack.c.h.bf16 %v4260
  %v4440 = vunpack.c.l.bf16 %v4261
  %v4441 = vunpack.c.l.bf16 %v4262
  %v4442 = vunpack.c.h.bf16 %v4262
  %v4443 = vunpack.c.l.bf16 %v4263
  %v4444 = vunpack.c.h.bf16 %v4263
  %v4445 = vunpack.c.l.bf16 %v4264
  %v4446 = vunpack.c.h.bf16 %v4264
  %v4447 = vunpack.c.l.bf16 %v4265
  %v4448 = vunpack.c.l.bf16 %v4266
  %v4449 = vunpack.c.h.bf16 %v4266
  %v4450 = vunpack.c.l.bf16 %v4267
  %v4451 = vunpack.c.h.bf16 %v4267
  %v4452 = vunpack.c.l.bf16 %v4268
  %v4453 = vunpack.c.h.bf16 %v4268
  %v4454 = vunpack.c.l.bf16 %v4269
  %v4455 = vunpack.c.l.bf16 %v4270
  %v4456 = vunpack.c.h.bf16 %v4270
  %v4457 = vunpack.c.l.bf16 %v4271
  %v4458 = vunpack.c.h.bf16 %v4271
  %v4459 = vunpack.c.l.bf16 %v4272
  %v4460 = vunpack.c.h.bf16 %v4272
  %v4461 = vunpack.c.l.bf16 %v4273
  %v4462 = vunpack.c.l.bf16 %v4274
  %v4463 = vunpack.c.h.bf16 %v4274
  %v4464 = vunpack.c.l.bf16 %v4275
  %v4465 = vunpack.c.h.bf16 %v4275
  %v4466 = vunpack.c.l.bf16 %v4276
  %v4467 = vunpack.c.h.bf16 %v4276
  %v4468 = vunpack.c.l.bf16 %v4277
  %v4469 = vunpack.c.l.bf16 %v4278
  %v4470 = vunpack.c.h.bf16 %v4278
  %v4471 = vunpack.c.l.bf16 %v4279
  %v4472 = vunpack.c.h.bf16 %v4279
  %v4473 = vunpack.c.l.bf16 %v4280
  %v4474 = vunpack.c.h.bf16 %v4280
  %v4475 = vunpack.c.l.bf16 %v4281
  %v4476 = vunpack.c.l.bf16 %v4282
  %v4477 = vunpack.c.h.bf16 %v4282
  %v4478 = vunpack.c.l.bf16 %v4283
  %v4479 = vunpack.c.h.bf16 %v4283
  %v4480 = vunpack.c.l.bf16 %v4284
  %v4481 = vunpack.c.h.bf16 %v4284
  %v4482 = vunpack.c.l.bf16 %v4285
  %v4483 = vunpack.c.l.bf16 %v4286
  %v4484 = vunpack.c.h.bf16 %v4286
  %v4485 = vunpack.c.l.bf16 %v4287
  %v4486 = vunpack.c.h.bf16 %v4287
  %v4487 = vunpack.c.l.bf16 %v4288
  %v4488 = vunpack.c.h.bf16 %v4288
  %v4489 = vunpack.c.l.bf16 %v4289
  %v4490 = vunpack.c.l.bf16 %v4290
  %v4491 = vunpack.c.h.bf16 %v4290
  %v4492 = vunpack.c.l.bf16 %v4291
  %v4493 = vunpack.c.h.bf16 %v4291
  %v4494 = vunpack.c.l.bf16 %v4292
  %v4495 = vunpack.c.h.bf16 %v4292
  %v4496 = vunpack.c.l.bf16 %v4293
  %s4497 = scalar_lea.vmem %s14, 72
  %v4498 = vld [vmem:[%s4497] sm:$0xff]
  %v4499 = vld [vmem:[%s4497 + $0x8] sm:$0xff]
  %v4500 = vld [vmem:[%s4497 + $0x10] sm:$0xff]
  %v4501 = vld [vmem:[%s4497 + $0x18] sm:$0xff]
  %v4502 = vld [vmem:[%s4497 + $0x20] sm:$0xff]
  %v4503 = vld [vmem:[%s4497 + $0x28] sm:$0xff]
  %v4504 = vld [vmem:[%s4497 + $0x30] sm:$0xff]
  %v4505 = vld [vmem:[%s4497 + $0x38] sm:$0xff]
  %v4506 = vld [vmem:[%s4497 + $0x40] sm:$0xff]
  %v4508 = vsel %vm3592, %v4498, 0
  %v4511 = vsel %vm3592, %v4499, 0
  %v4514 = vsel %vm3592, %v4500, 0
  %v4517 = vsel %vm3592, %v4501, 0
  %v4520 = vsel %vm3592, %v4502, 0
  %v4523 = vsel %vm3592, %v4503, 0
  %v4526 = vsel %vm3592, %v4504, 0
  %v4529 = vsel %vm3592, %v4505, 0
  %v4532 = vsel %vm3592, %v4506, 0
  %4534 = vmatprep.subr.mxu0 0.0
  %4535 = vmatpush1.msra.mxu0 0.0
  %4536 = vmatprep.subr.mxu0 0.0
  %4537 = vmatpush1.msra.mxu0 0.0
  %4538 = vmatprep.subr.mxu0 0.0
  %4539 = vmatpush1.msra.mxu0 0.0
  %4540 = vmatprep.subr.mxu0 0.0
  %4541 = vmatpush1.msra.mxu0 0.0
  %4542 = vmatprep.subr.mxu0 0.0
  %4543 = vmatpush1.msra.mxu0 0.0
  %4544 = vmatprep.subr.mxu0 0.0
  %4545 = vmatpush1.msra.mxu0 0.0
  %4546 = vmatprep.subr.mxu0 0.0
  %4547 = vmatpush1.msra.mxu0 0.0
  %4548 = vmatprep.subr.mxu0 0.0
  %4549 = vmatpush1.msra.mxu0 0.0
  %4550 = vmatprep.subr.mxu0 0.0
  %4551 = vmatpush1.msra.mxu0 0.0
  %4552 = vmatprep.subr.mxu0 0.0
  %4553 = vmatpush1.msra.mxu0 0.0
  %4554 = vmatprep.subr.mxu0 %v4022
  %4555 = vmatpush1.msra.mxu0 %v4021
  %4556 = vmatprep.subr.mxu0 %v4020
  %4557 = vmatpush1.msra.mxu0 %v4019
  %4558 = vmatprep.subr.mxu0 %v4018
  %4559 = vmatpush1.msra.mxu0 %v4017
  %4560 = vmatprep.subr.mxu0 %v4016
  %4561 = vmatpush1.msra.mxu0 %v4015
  %4562 = vmatprep.subr.mxu0 %v4014
  %4563 = vmatpush1.msra.mxu0 %v4013
  %4564 = vmatprep.subr.mxu0 %v4012
  %4565 = vmatpush1.msra.mxu0 %v4011
  %4566 = vmatprep.subr.mxu0 0.0
  %4567 = vmatpush2.msra.mxu0 0.0
  %4568 = vmatprep.subr.mxu0 0.0
  %4569 = vmatpush2.msra.mxu0 0.0
  %4570 = vmatprep.subr.mxu0 0.0
  %4571 = vmatpush2.msra.mxu0 0.0
  %4572 = vmatprep.subr.mxu0 0.0
  %4573 = vmatpush2.msra.mxu0 0.0
  %4574 = vmatprep.subr.mxu0 0.0
  %4575 = vmatpush2.msra.mxu0 0.0
  %4576 = vmatprep.subr.mxu0 0.0
  %4577 = vmatpush2.msra.mxu0 0.0
  %4578 = vmatprep.subr.mxu0 0.0
  %4579 = vmatpush2.msra.mxu0 0.0
  %4580 = vmatprep.subr.mxu0 0.0
  %4581 = vmatpush2.msra.mxu0 0.0
  %4582 = vmatprep.subr.mxu0 0.0
  %4583 = vmatpush2.msra.mxu0 0.0
  %4584 = vmatprep.subr.mxu0 0.0
  %4585 = vmatpush2.msra.mxu0 0.0
  %4586 = vmatprep.subr.mxu0 0.0
  %4587 = vmatpush2.msra.mxu0 0.0
  %4588 = vmatprep.subr.mxu0 0.0
  %4589 = vmatpush2.msra.mxu0 0.0
  %4590 = vmatprep.subr.mxu0 0.0
  %4591 = vmatpush2.msra.mxu0 0.0
  %4592 = vmatprep.subr.mxu0 0.0
  %4593 = vmatpush2.msra.mxu0 0.0
  %4594 = vmatprep.subr.mxu0 0.0
  %4595 = vmatpush2.msra.mxu0 0.0
  %4596 = vmatprep.subr.mxu0 0.0
  %4597 = vmatpush2.msra.mxu0 0.0
  %4598 = vmatprep.mubr.f32.mxu0 0.0
  %4599 = vmatmul.mubr.f32.gmra.mxu0 %v4508
  %v4600 = vpop.f32.mrf.mxu0
  %v4601 = vadd.f32 0.0, %v4600
  %v4602 = vpop.f32.mrf.mxu0
  %v4603 = vadd.f32 0.0, %v4602
  %4604 = vmatprep.mubr.f32.mxu0 0.0
  %4605 = vmatmul.mubr.f32.gmra.mxu0 %v4511
  %v4606 = vpop.f32.mrf.mxu0
  %v4607 = vadd.f32 0.0, %v4606
  %v4608 = vpop.f32.mrf.mxu0
  %v4609 = vadd.f32 0.0, %v4608
  %4610 = vmatprep.mubr.f32.mxu0 0.0
  %4611 = vmatmul.mubr.f32.gmra.mxu0 %v4514
  %v4612 = vpop.f32.mrf.mxu0
  %v4613 = vadd.f32 0.0, %v4612
  %v4614 = vpop.f32.mrf.mxu0
  %v4615 = vadd.f32 0.0, %v4614
  %4616 = vmatprep.mubr.f32.mxu0 0.0
  %4617 = vmatmul.mubr.f32.gmra.mxu0 %v4517
  %v4618 = vpop.f32.mrf.mxu0
  %v4619 = vadd.f32 0.0, %v4618
  %v4620 = vpop.f32.mrf.mxu0
  %v4621 = vadd.f32 0.0, %v4620
  %4622 = vmatprep.mubr.f32.mxu0 0.0
  %4623 = vmatmul.mubr.f32.gmra.mxu0 %v4520
  %v4624 = vpop.f32.mrf.mxu0
  %v4625 = vadd.f32 0.0, %v4624
  %v4626 = vpop.f32.mrf.mxu0
  %v4627 = vadd.f32 0.0, %v4626
  %4628 = vmatprep.mubr.f32.mxu0 0.0
  %4629 = vmatmul.mubr.f32.gmra.mxu0 %v4523
  %v4630 = vpop.f32.mrf.mxu0
  %v4631 = vadd.f32 0.0, %v4630
  %v4632 = vpop.f32.mrf.mxu0
  %v4633 = vadd.f32 0.0, %v4632
  %4634 = vmatprep.mubr.f32.mxu0 0.0
  %4635 = vmatmul.mubr.f32.gmra.mxu0 %v4526
  %v4636 = vpop.f32.mrf.mxu0
  %v4637 = vadd.f32 0.0, %v4636
  %v4638 = vpop.f32.mrf.mxu0
  %v4639 = vadd.f32 0.0, %v4638
  %4640 = vmatprep.mubr.f32.mxu0 0.0
  %4641 = vmatmul.mubr.f32.gmra.mxu0 %v4529
  %v4642 = vpop.f32.mrf.mxu0
  %v4643 = vadd.f32 0.0, %v4642
  %v4644 = vpop.f32.mrf.mxu0
  %v4645 = vadd.f32 0.0, %v4644
  %4646 = vmatprep.mubr.f32.mxu0 0.0
  %4647 = vmatmul.mubr.f32.gmra.mxu0 %v4532
  %v4648 = vpop.f32.mrf.mxu0
  %v4649 = vadd.f32 0.0, %v4648
  %v4650 = vpop.f32.mrf.mxu0
  %v4651 = vadd.f32 0.0, %v4650
  %4652 = vdwg.mxu0
  %s4653 = scalar_lea.vmem %s15, 812
  %v4654 = vld [vmem:[%s4653] sm:$0xff]
  %v4655 = vld [vmem:[%s4653 + $0x8] sm:$0xff]
  %v4656 = vld [vmem:[%s4653 + $0x10] sm:$0xff]
  %v4657 = vld [vmem:[%s4653 + $0x18] sm:$0xf]
  %v4658 = vld [vmem:[%s4653 + $0x1c] sm:$0xff]
  %v4659 = vld [vmem:[%s4653 + $0x24] sm:$0xff]
  %v4660 = vld [vmem:[%s4653 + $0x2c] sm:$0xff]
  %v4661 = vld [vmem:[%s4653 + $0x34] sm:$0xf]
  %v4662 = vld [vmem:[%s4653 + $0x38] sm:$0xff]
  %v4663 = vld [vmem:[%s4653 + $0x40] sm:$0xff]
  %v4664 = vld [vmem:[%s4653 + $0x48] sm:$0xff]
  %v4665 = vld [vmem:[%s4653 + $0x50] sm:$0xf]
  %v4666 = vld [vmem:[%s4653 + $0x54] sm:$0xff]
  %v4667 = vld [vmem:[%s4653 + $0x5c] sm:$0xff]
  %v4668 = vld [vmem:[%s4653 + $0x64] sm:$0xff]
  %v4669 = vld [vmem:[%s4653 + $0x6c] sm:$0xf]
  %v4670 = vld [vmem:[%s4653 + $0x70] sm:$0xff]
  %v4671 = vld [vmem:[%s4653 + $0x78] sm:$0xff]
  %v4672 = vld [vmem:[%s4653 + $0x80] sm:$0xff]
  %v4673 = vld [vmem:[%s4653 + $0x88] sm:$0xf]
  %v4674 = vld [vmem:[%s4653 + $0x8c] sm:$0xff]
  %v4675 = vld [vmem:[%s4653 + $0x94] sm:$0xff]
  %v4676 = vld [vmem:[%s4653 + $0x9c] sm:$0xff]
  %v4677 = vld [vmem:[%s4653 + $0xa4] sm:$0xf]
  %v4678 = vld [vmem:[%s4653 + $0xa8] sm:$0xff]
  %v4679 = vld [vmem:[%s4653 + $0xb0] sm:$0xff]
  %v4680 = vld [vmem:[%s4653 + $0xb8] sm:$0xff]
  %v4681 = vld [vmem:[%s4653 + $0xc0] sm:$0xf]
  %v4682 = vld [vmem:[%s4653 + $0xc4] sm:$0xff]
  %v4683 = vld [vmem:[%s4653 + $0xcc] sm:$0xff]
  %v4684 = vld [vmem:[%s4653 + $0xd4] sm:$0xff]
  %v4685 = vld [vmem:[%s4653 + $0xdc] sm:$0xf]
  %v4686 = vld [vmem:[%s4653 + $0xe0] sm:$0xff]
  %v4687 = vld [vmem:[%s4653 + $0xe8] sm:$0xff]
  %v4688 = vld [vmem:[%s4653 + $0xf0] sm:$0xff]
  %v4689 = vld [vmem:[%s4653 + $0xf8] sm:$0xf]
  %v4690 = vld [vmem:[%s4653 + $0xfc] sm:$0xff]
  %v4691 = vld [vmem:[%s4653 + $0x104] sm:$0xff]
  %v4692 = vld [vmem:[%s4653 + $0x10c] sm:$0xff]
  %v4693 = vld [vmem:[%s4653 + $0x114] sm:$0xf]
  %v4694 = vld [vmem:[%s4653 + $0x118] sm:$0xff]
  %v4695 = vld [vmem:[%s4653 + $0x120] sm:$0xff]
  %v4696 = vld [vmem:[%s4653 + $0x128] sm:$0xff]
  %v4697 = vld [vmem:[%s4653 + $0x130] sm:$0xf]
  %v4698 = vld [vmem:[%s4653 + $0x134] sm:$0xff]
  %v4699 = vld [vmem:[%s4653 + $0x13c] sm:$0xff]
  %v4700 = vld [vmem:[%s4653 + $0x144] sm:$0xff]
  %v4701 = vld [vmem:[%s4653 + $0x14c] sm:$0xf]
  %v4702 = vld [vmem:[%s4653 + $0x150] sm:$0xff]
  %v4703 = vld [vmem:[%s4653 + $0x158] sm:$0xff]
  %v4704 = vld [vmem:[%s4653 + $0x160] sm:$0xff]
  %v4705 = vld [vmem:[%s4653 + $0x168] sm:$0xf]
  %v4706 = vld [vmem:[%s4653 + $0x16c] sm:$0xff]
  %v4707 = vld [vmem:[%s4653 + $0x174] sm:$0xff]
  %v4708 = vld [vmem:[%s4653 + $0x17c] sm:$0xff]
  %v4709 = vld [vmem:[%s4653 + $0x184] sm:$0xf]
  %v4710 = vld [vmem:[%s4653 + $0x188] sm:$0xff]
  %v4711 = vld [vmem:[%s4653 + $0x190] sm:$0xff]
  %v4712 = vld [vmem:[%s4653 + $0x198] sm:$0xff]
  %v4713 = vld [vmem:[%s4653 + $0x1a0] sm:$0xf]
  %v4714 = vld [vmem:[%s4653 + $0x1a4] sm:$0xff]
  %v4715 = vld [vmem:[%s4653 + $0x1ac] sm:$0xff]
  %v4716 = vld [vmem:[%s4653 + $0x1b4] sm:$0xff]
  %v4717 = vld [vmem:[%s4653 + $0x1bc] sm:$0xf]
  %v4718 = vld [vmem:[%s4653 + $0x1c0] sm:$0xff]
  %v4719 = vld [vmem:[%s4653 + $0x1c8] sm:$0xff]
  %v4720 = vld [vmem:[%s4653 + $0x1d0] sm:$0xff]
  %v4721 = vld [vmem:[%s4653 + $0x1d8] sm:$0xf]
  %v4722 = vld [vmem:[%s4653 + $0x1dc] sm:$0xff]
  %v4723 = vld [vmem:[%s4653 + $0x1e4] sm:$0xff]
  %v4724 = vld [vmem:[%s4653 + $0x1ec] sm:$0xff]
  %v4725 = vld [vmem:[%s4653 + $0x1f4] sm:$0xf]
  %v4726 = vld [vmem:[%s4653 + $0x1f8] sm:$0xff]
  %v4727 = vld [vmem:[%s4653 + $0x200] sm:$0xff]
  %v4728 = vld [vmem:[%s4653 + $0x208] sm:$0xff]
  %v4729 = vld [vmem:[%s4653 + $0x210] sm:$0xf]
  %v4730 = vld [vmem:[%s4653 + $0x214] sm:$0xff]
  %v4731 = vld [vmem:[%s4653 + $0x21c] sm:$0xff]
  %v4732 = vld [vmem:[%s4653 + $0x224] sm:$0xff]
  %v4733 = vld [vmem:[%s4653 + $0x22c] sm:$0xf]
  %v4734 = vld [vmem:[%s4653 + $0x230] sm:$0xff]
  %v4735 = vld [vmem:[%s4653 + $0x238] sm:$0xff]
  %v4736 = vld [vmem:[%s4653 + $0x240] sm:$0xff]
  %v4737 = vld [vmem:[%s4653 + $0x248] sm:$0xf]
  %v4738 = vld [vmem:[%s4653 + $0x24c] sm:$0xff]
  %v4739 = vld [vmem:[%s4653 + $0x254] sm:$0xff]
  %v4740 = vld [vmem:[%s4653 + $0x25c] sm:$0xff]
  %v4741 = vld [vmem:[%s4653 + $0x264] sm:$0xf]
  %v4742 = vld [vmem:[%s4653 + $0x268] sm:$0xff]
  %v4743 = vld [vmem:[%s4653 + $0x270] sm:$0xff]
  %v4744 = vld [vmem:[%s4653 + $0x278] sm:$0xff]
  %v4745 = vld [vmem:[%s4653 + $0x280] sm:$0xf]
  %v4746 = vld [vmem:[%s4653 + $0x284] sm:$0xff]
  %v4747 = vld [vmem:[%s4653 + $0x28c] sm:$0xff]
  %v4748 = vld [vmem:[%s4653 + $0x294] sm:$0xff]
  %v4749 = vld [vmem:[%s4653 + $0x29c] sm:$0xf]
  %v4750 = vld [vmem:[%s4653 + $0x2a0] sm:$0xff]
  %v4751 = vld [vmem:[%s4653 + $0x2a8] sm:$0xff]
  %v4752 = vld [vmem:[%s4653 + $0x2b0] sm:$0xff]
  %v4753 = vld [vmem:[%s4653 + $0x2b8] sm:$0xf]
  %v4754 = vld [vmem:[%s4653 + $0x2bc] sm:$0xff]
  %v4755 = vld [vmem:[%s4653 + $0x2c4] sm:$0xff]
  %v4756 = vld [vmem:[%s4653 + $0x2cc] sm:$0xff]
  %v4757 = vld [vmem:[%s4653 + $0x2d4] sm:$0xf]
  %v4758 = vld [vmem:[%s4653 + $0x2d8] sm:$0xff]
  %v4759 = vld [vmem:[%s4653 + $0x2e0] sm:$0xff]
  %v4760 = vld [vmem:[%s4653 + $0x2e8] sm:$0xff]
  %v4761 = vld [vmem:[%s4653 + $0x2f0] sm:$0xf]
  %v4762 = vld [vmem:[%s4653 + $0x2f4] sm:$0xff]
  %v4763 = vld [vmem:[%s4653 + $0x2fc] sm:$0xff]
  %v4764 = vld [vmem:[%s4653 + $0x304] sm:$0xff]
  %v4765 = vld [vmem:[%s4653 + $0x30c] sm:$0xf]
  %v4766 = vld [vmem:[%s4653 + $0x310] sm:$0x11]
  %v4767 = vld [vmem:[%s4653 + $0x318] sm:$0x11]
  %v4768 = vld [vmem:[%s4653 + $0x320] sm:$0x11]
  %v4769 = vld [vmem:[%s4653 + $0x328] sm:$0x1]
  %v4770 = vunpack.c.l.bf16 %v4654
  %v4771 = vunpack.c.h.bf16 %v4654
  %v4772 = vunpack.c.l.bf16 %v4655
  %v4773 = vunpack.c.h.bf16 %v4655
  %v4774 = vunpack.c.l.bf16 %v4656
  %v4775 = vunpack.c.h.bf16 %v4656
  %v4776 = vunpack.c.l.bf16 %v4657
  %v4777 = vunpack.c.l.bf16 %v4658
  %v4778 = vunpack.c.h.bf16 %v4658
  %v4779 = vunpack.c.l.bf16 %v4659
  %v4780 = vunpack.c.h.bf16 %v4659
  %v4781 = vunpack.c.l.bf16 %v4660
  %v4782 = vunpack.c.h.bf16 %v4660
  %v4783 = vunpack.c.l.bf16 %v4661
  %v4784 = vunpack.c.l.bf16 %v4662
  %v4785 = vunpack.c.h.bf16 %v4662
  %v4786 = vunpack.c.l.bf16 %v4663
  %v4787 = vunpack.c.h.bf16 %v4663
  %v4788 = vunpack.c.l.bf16 %v4664
  %v4789 = vunpack.c.h.bf16 %v4664
  %v4790 = vunpack.c.l.bf16 %v4665
  %v4791 = vunpack.c.l.bf16 %v4666
  %v4792 = vunpack.c.h.bf16 %v4666
  %v4793 = vunpack.c.l.bf16 %v4667
  %v4794 = vunpack.c.h.bf16 %v4667
  %v4795 = vunpack.c.l.bf16 %v4668
  %v4796 = vunpack.c.h.bf16 %v4668
  %v4797 = vunpack.c.l.bf16 %v4669
  %v4798 = vunpack.c.l.bf16 %v4670
  %v4799 = vunpack.c.h.bf16 %v4670
  %v4800 = vunpack.c.l.bf16 %v4671
  %v4801 = vunpack.c.h.bf16 %v4671
  %v4802 = vunpack.c.l.bf16 %v4672
  %v4803 = vunpack.c.h.bf16 %v4672
  %v4804 = vunpack.c.l.bf16 %v4673
  %v4805 = vunpack.c.l.bf16 %v4674
  %v4806 = vunpack.c.h.bf16 %v4674
  %v4807 = vunpack.c.l.bf16 %v4675
  %v4808 = vunpack.c.h.bf16 %v4675
  %v4809 = vunpack.c.l.bf16 %v4676
  %v4810 = vunpack.c.h.bf16 %v4676
  %v4811 = vunpack.c.l.bf16 %v4677
  %v4812 = vunpack.c.l.bf16 %v4678
  %v4813 = vunpack.c.h.bf16 %v4678
  %v4814 = vunpack.c.l.bf16 %v4679
  %v4815 = vunpack.c.h.bf16 %v4679
  %v4816 = vunpack.c.l.bf16 %v4680
  %v4817 = vunpack.c.h.bf16 %v4680
  %v4818 = vunpack.c.l.bf16 %v4681
  %v4819 = vunpack.c.l.bf16 %v4682
  %v4820 = vunpack.c.h.bf16 %v4682
  %v4821 = vunpack.c.l.bf16 %v4683
  %v4822 = vunpack.c.h.bf16 %v4683
  %v4823 = vunpack.c.l.bf16 %v4684
  %v4824 = vunpack.c.h.bf16 %v4684
  %v4825 = vunpack.c.l.bf16 %v4685
  %v4826 = vunpack.c.l.bf16 %v4686
  %v4827 = vunpack.c.h.bf16 %v4686
  %v4828 = vunpack.c.l.bf16 %v4687
  %v4829 = vunpack.c.h.bf16 %v4687
  %v4830 = vunpack.c.l.bf16 %v4688
  %v4831 = vunpack.c.h.bf16 %v4688
  %v4832 = vunpack.c.l.bf16 %v4689
  %v4833 = vunpack.c.l.bf16 %v4690
  %v4834 = vunpack.c.h.bf16 %v4690
  %v4835 = vunpack.c.l.bf16 %v4691
  %v4836 = vunpack.c.h.bf16 %v4691
  %v4837 = vunpack.c.l.bf16 %v4692
  %v4838 = vunpack.c.h.bf16 %v4692
  %v4839 = vunpack.c.l.bf16 %v4693
  %v4840 = vunpack.c.l.bf16 %v4694
  %v4841 = vunpack.c.h.bf16 %v4694
  %v4842 = vunpack.c.l.bf16 %v4695
  %v4843 = vunpack.c.h.bf16 %v4695
  %v4844 = vunpack.c.l.bf16 %v4696
  %v4845 = vunpack.c.h.bf16 %v4696
  %v4846 = vunpack.c.l.bf16 %v4697
  %v4847 = vunpack.c.l.bf16 %v4698
  %v4848 = vunpack.c.h.bf16 %v4698
  %v4849 = vunpack.c.l.bf16 %v4699
  %v4850 = vunpack.c.h.bf16 %v4699
  %v4851 = vunpack.c.l.bf16 %v4700
  %v4852 = vunpack.c.h.bf16 %v4700
  %v4853 = vunpack.c.l.bf16 %v4701
  %v4854 = vunpack.c.l.bf16 %v4702
  %v4855 = vunpack.c.h.bf16 %v4702
  %v4856 = vunpack.c.l.bf16 %v4703
  %v4857 = vunpack.c.h.bf16 %v4703
  %v4858 = vunpack.c.l.bf16 %v4704
  %v4859 = vunpack.c.h.bf16 %v4704
  %v4860 = vunpack.c.l.bf16 %v4705
  %v4861 = vunpack.c.l.bf16 %v4706
  %v4862 = vunpack.c.h.bf16 %v4706
  %v4863 = vunpack.c.l.bf16 %v4707
  %v4864 = vunpack.c.h.bf16 %v4707
  %v4865 = vunpack.c.l.bf16 %v4708
  %v4866 = vunpack.c.h.bf16 %v4708
  %v4867 = vunpack.c.l.bf16 %v4709
  %v4868 = vunpack.c.l.bf16 %v4710
  %v4869 = vunpack.c.h.bf16 %v4710
  %v4870 = vunpack.c.l.bf16 %v4711
  %v4871 = vunpack.c.h.bf16 %v4711
  %v4872 = vunpack.c.l.bf16 %v4712
  %v4873 = vunpack.c.h.bf16 %v4712
  %v4874 = vunpack.c.l.bf16 %v4713
  %v4875 = vunpack.c.l.bf16 %v4714
  %v4876 = vunpack.c.h.bf16 %v4714
  %v4877 = vunpack.c.l.bf16 %v4715
  %v4878 = vunpack.c.h.bf16 %v4715
  %v4879 = vunpack.c.l.bf16 %v4716
  %v4880 = vunpack.c.h.bf16 %v4716
  %v4881 = vunpack.c.l.bf16 %v4717
  %v4882 = vunpack.c.l.bf16 %v4718
  %v4883 = vunpack.c.h.bf16 %v4718
  %v4884 = vunpack.c.l.bf16 %v4719
  %v4885 = vunpack.c.h.bf16 %v4719
  %v4886 = vunpack.c.l.bf16 %v4720
  %v4887 = vunpack.c.h.bf16 %v4720
  %v4888 = vunpack.c.l.bf16 %v4721
  %v4889 = vunpack.c.l.bf16 %v4722
  %v4890 = vunpack.c.h.bf16 %v4722
  %v4891 = vunpack.c.l.bf16 %v4723
  %v4892 = vunpack.c.h.bf16 %v4723
  %v4893 = vunpack.c.l.bf16 %v4724
  %v4894 = vunpack.c.h.bf16 %v4724
  %v4895 = vunpack.c.l.bf16 %v4725
  %v4896 = vunpack.c.l.bf16 %v4726
  %v4897 = vunpack.c.h.bf16 %v4726
  %v4898 = vunpack.c.l.bf16 %v4727
  %v4899 = vunpack.c.h.bf16 %v4727
  %v4900 = vunpack.c.l.bf16 %v4728
  %v4901 = vunpack.c.h.bf16 %v4728
  %v4902 = vunpack.c.l.bf16 %v4729
  %v4903 = vunpack.c.l.bf16 %v4730
  %v4904 = vunpack.c.h.bf16 %v4730
  %v4905 = vunpack.c.l.bf16 %v4731
  %v4906 = vunpack.c.h.bf16 %v4731
  %v4907 = vunpack.c.l.bf16 %v4732
  %v4908 = vunpack.c.h.bf16 %v4732
  %v4909 = vunpack.c.l.bf16 %v4733
  %v4910 = vunpack.c.l.bf16 %v4734
  %v4911 = vunpack.c.h.bf16 %v4734
  %v4912 = vunpack.c.l.bf16 %v4735
  %v4913 = vunpack.c.h.bf16 %v4735
  %v4914 = vunpack.c.l.bf16 %v4736
  %v4915 = vunpack.c.h.bf16 %v4736
  %v4916 = vunpack.c.l.bf16 %v4737
  %v4917 = vunpack.c.l.bf16 %v4738
  %v4918 = vunpack.c.h.bf16 %v4738
  %v4919 = vunpack.c.l.bf16 %v4739
  %v4920 = vunpack.c.h.bf16 %v4739
  %v4921 = vunpack.c.l.bf16 %v4740
  %v4922 = vunpack.c.h.bf16 %v4740
  %v4923 = vunpack.c.l.bf16 %v4741
  %v4924 = vunpack.c.l.bf16 %v4742
  %v4925 = vunpack.c.h.bf16 %v4742
  %v4926 = vunpack.c.l.bf16 %v4743
  %v4927 = vunpack.c.h.bf16 %v4743
  %v4928 = vunpack.c.l.bf16 %v4744
  %v4929 = vunpack.c.h.bf16 %v4744
  %v4930 = vunpack.c.l.bf16 %v4745
  %v4931 = vunpack.c.l.bf16 %v4746
  %v4932 = vunpack.c.h.bf16 %v4746
  %v4933 = vunpack.c.l.bf16 %v4747
  %v4934 = vunpack.c.h.bf16 %v4747
  %v4935 = vunpack.c.l.bf16 %v4748
  %v4936 = vunpack.c.h.bf16 %v4748
  %v4937 = vunpack.c.l.bf16 %v4749
  %v4938 = vunpack.c.l.bf16 %v4750
  %v4939 = vunpack.c.h.bf16 %v4750
  %v4940 = vunpack.c.l.bf16 %v4751
  %v4941 = vunpack.c.h.bf16 %v4751
  %v4942 = vunpack.c.l.bf16 %v4752
  %v4943 = vunpack.c.h.bf16 %v4752
  %v4944 = vunpack.c.l.bf16 %v4753
  %v4945 = vunpack.c.l.bf16 %v4754
  %v4946 = vunpack.c.h.bf16 %v4754
  %v4947 = vunpack.c.l.bf16 %v4755
  %v4948 = vunpack.c.h.bf16 %v4755
  %v4949 = vunpack.c.l.bf16 %v4756
  %v4950 = vunpack.c.h.bf16 %v4756
  %v4951 = vunpack.c.l.bf16 %v4757
  %v4952 = vunpack.c.l.bf16 %v4758
  %v4953 = vunpack.c.h.bf16 %v4758
  %v4954 = vunpack.c.l.bf16 %v4759
  %v4955 = vunpack.c.h.bf16 %v4759
  %v4956 = vunpack.c.l.bf16 %v4760
  %v4957 = vunpack.c.h.bf16 %v4760
  %v4958 = vunpack.c.l.bf16 %v4761
  %v4959 = vunpack.c.l.bf16 %v4762
  %v4960 = vunpack.c.h.bf16 %v4762
  %v4961 = vunpack.c.l.bf16 %v4763
  %v4962 = vunpack.c.h.bf16 %v4763
  %v4963 = vunpack.c.l.bf16 %v4764
  %v4964 = vunpack.c.h.bf16 %v4764
  %v4965 = vunpack.c.l.bf16 %v4765
  %v4966 = vunpack.c.l.bf16 %v4766
  %v4967 = vunpack.c.h.bf16 %v4766
  %v4968 = vunpack.c.l.bf16 %v4767
  %v4969 = vunpack.c.h.bf16 %v4767
  %v4970 = vunpack.c.l.bf16 %v4768
  %v4971 = vunpack.c.h.bf16 %v4768
  %v4972 = vunpack.c.l.bf16 %v4769
  %v4974 = vsel %vm3567, %v4603, 0
  %v4977 = vsel %vm3567, %v4609, 0
  %v4980 = vsel %vm3567, %v4615, 0
  %v4983 = vsel %vm3567, %v4621, 0
  %v4986 = vsel %vm3567, %v4627, 0
  %v4989 = vsel %vm3567, %v4633, 0
  %v4992 = vsel %vm3567, %v4639, 0
  %v4995 = vsel %vm3567, %v4645, 0
  %v4998 = vsel %vm3567, %v4651, 0
  %v5001 = vsel %vm1315, %v4966, 0
  %v5004 = vsel %vm1315, %v4967, 0
  %v5007 = vsel %vm1315, %v4968, 0
  %v5010 = vsel %vm1315, %v4969, 0
  %v5013 = vsel %vm1315, %v4970, 0
  %v5016 = vsel %vm1315, %v4971, 0
  %v5019 = vsel %vm1315, %v4972, 0
  %5021 = vmatprep.subr.mxu0 %v4876
  %5022 = vmatpush1.msra.mxu0 %v4875
  %5023 = vmatprep.subr.mxu0 %v4869
  %5024 = vmatpush1.msra.mxu0 %v4868
  %5025 = vmatprep.subr.mxu0 %v4862
  %5026 = vmatpush1.msra.mxu0 %v4861
  %5027 = vmatprep.subr.mxu0 %v4855
  %5028 = vmatpush1.msra.mxu0 %v4854
  %5029 = vmatprep.subr.mxu0 %v4848
  %5030 = vmatpush1.msra.mxu0 %v4847
  %5031 = vmatprep.subr.mxu0 %v4841
  %5032 = vmatpush1.msra.mxu0 %v4840
  %5033 = vmatprep.subr.mxu0 %v4834
  %5034 = vmatpush1.msra.mxu0 %v4833
  %5035 = vmatprep.subr.mxu0 %v4827
  %5036 = vmatpush1.msra.mxu0 %v4826
  %5037 = vmatprep.subr.mxu0 %v4820
  %5038 = vmatpush1.msra.mxu0 %v4819
  %5039 = vmatprep.subr.mxu0 %v4813
  %5040 = vmatpush1.msra.mxu0 %v4812
  %5041 = vmatprep.subr.mxu0 %v4806
  %5042 = vmatpush1.msra.mxu0 %v4805
  %5043 = vmatprep.subr.mxu0 %v4799
  %5044 = vmatpush1.msra.mxu0 %v4798
  %5045 = vmatprep.subr.mxu0 %v4792
  %5046 = vmatpush1.msra.mxu0 %v4791
  %5047 = vmatprep.subr.mxu0 %v4785
  %5048 = vmatpush1.msra.mxu0 %v4784
  %5049 = vmatprep.subr.mxu0 %v4778
  %5050 = vmatpush1.msra.mxu0 %v4777
  %5051 = vmatprep.subr.mxu0 %v4771
  %5052 = vmatpush1.msra.mxu0 %v4770
  %5053 = vmatprep.subr.mxu0 0.0
  %5054 = vmatpush2.msra.mxu0 0.0
  %5055 = vmatprep.subr.mxu0 0.0
  %5056 = vmatpush2.msra.mxu0 0.0
  %5057 = vmatprep.subr.mxu0 0.0
  %5058 = vmatpush2.msra.mxu0 0.0
  %5059 = vmatprep.subr.mxu0 %v5004
  %5060 = vmatpush2.msra.mxu0 %v5001
  %5061 = vmatprep.subr.mxu0 %v4960
  %5062 = vmatpush2.msra.mxu0 %v4959
  %5063 = vmatprep.subr.mxu0 %v4953
  %5064 = vmatpush2.msra.mxu0 %v4952
  %5065 = vmatprep.subr.mxu0 %v4946
  %5066 = vmatpush2.msra.mxu0 %v4945
  %5067 = vmatprep.subr.mxu0 %v4939
  %5068 = vmatpush2.msra.mxu0 %v4938
  %5069 = vmatprep.subr.mxu0 %v4932
  %5070 = vmatpush2.msra.mxu0 %v4931
  %5071 = vmatprep.subr.mxu0 %v4925
  %5072 = vmatpush2.msra.mxu0 %v4924
  %5073 = vmatprep.subr.mxu0 %v4918
  %5074 = vmatpush2.msra.mxu0 %v4917
  %5075 = vmatprep.subr.mxu0 %v4911
  %5076 = vmatpush2.msra.mxu0 %v4910
  %5077 = vmatprep.subr.mxu0 %v4904
  %5078 = vmatpush2.msra.mxu0 %v4903
  %5079 = vmatprep.subr.mxu0 %v4897
  %5080 = vmatpush2.msra.mxu0 %v4896
  %5081 = vmatprep.subr.mxu0 %v4890
  %5082 = vmatpush2.msra.mxu0 %v4889
  %5083 = vmatprep.subr.mxu0 %v4883
  %5084 = vmatpush2.msra.mxu0 %v4882
  %5085 = vmatprep.mubr.f32.mxu0 %v4974
  %5086 = vmatmul.mubr.f32.gmra.mxu0 %v4601
  %v5087 = vpop.f32.mrf.mxu0
  %v5088 = vadd.f32 0.0, %v5087
  %v5089 = vpop.f32.mrf.mxu0
  %v5090 = vadd.f32 0.0, %v5089
  %5091 = vmatprep.mubr.f32.mxu0 %v4977
  %5092 = vmatmul.mubr.f32.gmra.mxu0 %v4607
  %v5093 = vpop.f32.mrf.mxu0
  %v5094 = vadd.f32 0.0, %v5093
  %v5095 = vpop.f32.mrf.mxu0
  %v5096 = vadd.f32 0.0, %v5095
  %5097 = vmatprep.mubr.f32.mxu0 %v4980
  %5098 = vmatmul.mubr.f32.gmra.mxu0 %v4613
  %v5099 = vpop.f32.mrf.mxu0
  %v5100 = vadd.f32 0.0, %v5099
  %v5101 = vpop.f32.mrf.mxu0
  %v5102 = vadd.f32 0.0, %v5101
  %5103 = vmatprep.mubr.f32.mxu0 %v4983
  %5104 = vmatmul.mubr.f32.gmra.mxu0 %v4619
  %v5105 = vpop.f32.mrf.mxu0
  %v5106 = vadd.f32 0.0, %v5105
  %v5107 = vpop.f32.mrf.mxu0
  %v5108 = vadd.f32 0.0, %v5107
  %5109 = vmatprep.mubr.f32.mxu0 %v4986
  %5110 = vmatmul.mubr.f32.gmra.mxu0 %v4625
  %v5111 = vpop.f32.mrf.mxu0
  %v5112 = vadd.f32 0.0, %v5111
  %v5113 = vpop.f32.mrf.mxu0
  %v5114 = vadd.f32 0.0, %v5113
  %5115 = vmatprep.mubr.f32.mxu0 %v4989
  %5116 = vmatmul.mubr.f32.gmra.mxu0 %v4631
  %v5117 = vpop.f32.mrf.mxu0
  %v5118 = vadd.f32 0.0, %v5117
  %v5119 = vpop.f32.mrf.mxu0
  %v5120 = vadd.f32 0.0, %v5119
  %5121 = vmatprep.mubr.f32.mxu0 %v4992
  %5122 = vmatmul.mubr.f32.gmra.mxu0 %v4637
  %v5123 = vpop.f32.mrf.mxu0
  %v5124 = vadd.f32 0.0, %v5123
  %v5125 = vpop.f32.mrf.mxu0
  %v5126 = vadd.f32 0.0, %v5125
  %5127 = vmatprep.mubr.f32.mxu0 %v4995
  %5128 = vmatmul.mubr.f32.gmra.mxu0 %v4643
  %v5129 = vpop.f32.mrf.mxu0
  %v5130 = vadd.f32 0.0, %v5129
  %v5131 = vpop.f32.mrf.mxu0
  %v5132 = vadd.f32 0.0, %v5131
  %5133 = vmatprep.mubr.f32.mxu0 %v4998
  %5134 = vmatmul.mubr.f32.gmra.mxu0 %v4649
  %v5135 = vpop.f32.mrf.mxu0
  %v5136 = vadd.f32 0.0, %v5135
  %v5137 = vpop.f32.mrf.mxu0
  %v5138 = vadd.f32 0.0, %v5137
  %5139 = vdwg.mxu0
  %5140 = vmatprep.subr.mxu0 %v4878
  %5141 = vmatpush1.msra.mxu0 %v4877
  %5142 = vmatprep.subr.mxu0 %v4871
  %5143 = vmatpush1.msra.mxu0 %v4870
  %5144 = vmatprep.subr.mxu0 %v4864
  %5145 = vmatpush1.msra.mxu0 %v4863
  %5146 = vmatprep.subr.mxu0 %v4857
  %5147 = vmatpush1.msra.mxu0 %v4856
  %5148 = vmatprep.subr.mxu0 %v4850
  %5149 = vmatpush1.msra.mxu0 %v4849
  %5150 = vmatprep.subr.mxu0 %v4843
  %5151 = vmatpush1.msra.mxu0 %v4842
  %5152 = vmatprep.subr.mxu0 %v4836
  %5153 = vmatpush1.msra.mxu0 %v4835
  %5154 = vmatprep.subr.mxu0 %v4829
  %5155 = vmatpush1.msra.mxu0 %v4828
  %5156 = vmatprep.subr.mxu0 %v4822
  %5157 = vmatpush1.msra.mxu0 %v4821
  %5158 = vmatprep.subr.mxu0 %v4815
  %5159 = vmatpush1.msra.mxu0 %v4814
  %5160 = vmatprep.subr.mxu0 %v4808
  %5161 = vmatpush1.msra.mxu0 %v4807
  %5162 = vmatprep.subr.mxu0 %v4801
  %5163 = vmatpush1.msra.mxu0 %v4800
  %5164 = vmatprep.subr.mxu0 %v4794
  %5165 = vmatpush1.msra.mxu0 %v4793
  %5166 = vmatprep.subr.mxu0 %v4787
  %5167 = vmatpush1.msra.mxu0 %v4786
  %5168 = vmatprep.subr.mxu0 %v4780
  %5169 = vmatpush1.msra.mxu0 %v4779
  %5170 = vmatprep.subr.mxu0 %v4773
  %5171 = vmatpush1.msra.mxu0 %v4772
  %5172 = vmatprep.subr.mxu0 0.0
  %5173 = vmatpush2.msra.mxu0 0.0
  %5174 = vmatprep.subr.mxu0 0.0
  %5175 = vmatpush2.msra.mxu0 0.0
  %5176 = vmatprep.subr.mxu0 0.0
  %5177 = vmatpush2.msra.mxu0 0.0
  %5178 = vmatprep.subr.mxu0 %v5010
  %5179 = vmatpush2.msra.mxu0 %v5007
  %5180 = vmatprep.subr.mxu0 %v4962
  %5181 = vmatpush2.msra.mxu0 %v4961
  %5182 = vmatprep.subr.mxu0 %v4955
  %5183 = vmatpush2.msra.mxu0 %v4954
  %5184 = vmatprep.subr.mxu0 %v4948
  %5185 = vmatpush2.msra.mxu0 %v4947
  %5186 = vmatprep.subr.mxu0 %v4941
  %5187 = vmatpush2.msra.mxu0 %v4940
  %5188 = vmatprep.subr.mxu0 %v4934
  %5189 = vmatpush2.msra.mxu0 %v4933
  %5190 = vmatprep.subr.mxu0 %v4927
  %5191 = vmatpush2.msra.mxu0 %v4926
  %5192 = vmatprep.subr.mxu0 %v4920
  %5193 = vmatpush2.msra.mxu0 %v4919
  %5194 = vmatprep.subr.mxu0 %v4913
  %5195 = vmatpush2.msra.mxu0 %v4912
  %5196 = vmatprep.subr.mxu0 %v4906
  %5197 = vmatpush2.msra.mxu0 %v4905
  %5198 = vmatprep.subr.mxu0 %v4899
  %5199 = vmatpush2.msra.mxu0 %v4898
  %5200 = vmatprep.subr.mxu0 %v4892
  %5201 = vmatpush2.msra.mxu0 %v4891
  %5202 = vmatprep.subr.mxu0 %v4885
  %5203 = vmatpush2.msra.mxu0 %v4884
  %5204 = vmatprep.mubr.f32.mxu0 %v4974
  %5205 = vmatmul.mubr.f32.gmra.mxu0 %v4601
  %v5206 = vpop.f32.mrf.mxu0
  %v5207 = vadd.f32 0.0, %v5206
  %v5208 = vpop.f32.mrf.mxu0
  %v5209 = vadd.f32 0.0, %v5208
  %5210 = vmatprep.mubr.f32.mxu0 %v4977
  %5211 = vmatmul.mubr.f32.gmra.mxu0 %v4607
  %v5212 = vpop.f32.mrf.mxu0
  %v5213 = vadd.f32 0.0, %v5212
  %v5214 = vpop.f32.mrf.mxu0
  %v5215 = vadd.f32 0.0, %v5214
  %5216 = vmatprep.mubr.f32.mxu0 %v4980
  %5217 = vmatmul.mubr.f32.gmra.mxu0 %v4613
  %v5218 = vpop.f32.mrf.mxu0
  %v5219 = vadd.f32 0.0, %v5218
  %v5220 = vpop.f32.mrf.mxu0
  %v5221 = vadd.f32 0.0, %v5220
  %5222 = vmatprep.mubr.f32.mxu0 %v4983
  %5223 = vmatmul.mubr.f32.gmra.mxu0 %v4619
  %v5224 = vpop.f32.mrf.mxu0
  %v5225 = vadd.f32 0.0, %v5224
  %v5226 = vpop.f32.mrf.mxu0
  %v5227 = vadd.f32 0.0, %v5226
  %5228 = vmatprep.mubr.f32.mxu0 %v4986
  %5229 = vmatmul.mubr.f32.gmra.mxu0 %v4625
  %v5230 = vpop.f32.mrf.mxu0
  %v5231 = vadd.f32 0.0, %v5230
  %v5232 = vpop.f32.mrf.mxu0
  %v5233 = vadd.f32 0.0, %v5232
  %5234 = vmatprep.mubr.f32.mxu0 %v4989
  %5235 = vmatmul.mubr.f32.gmra.mxu0 %v4631
  %v5236 = vpop.f32.mrf.mxu0
  %v5237 = vadd.f32 0.0, %v5236
  %v5238 = vpop.f32.mrf.mxu0
  %v5239 = vadd.f32 0.0, %v5238
  %5240 = vmatprep.mubr.f32.mxu0 %v4992
  %5241 = vmatmul.mubr.f32.gmra.mxu0 %v4637
  %v5242 = vpop.f32.mrf.mxu0
  %v5243 = vadd.f32 0.0, %v5242
  %v5244 = vpop.f32.mrf.mxu0
  %v5245 = vadd.f32 0.0, %v5244
  %5246 = vmatprep.mubr.f32.mxu0 %v4995
  %5247 = vmatmul.mubr.f32.gmra.mxu0 %v4643
  %v5248 = vpop.f32.mrf.mxu0
  %v5249 = vadd.f32 0.0, %v5248
  %v5250 = vpop.f32.mrf.mxu0
  %v5251 = vadd.f32 0.0, %v5250
  %5252 = vmatprep.mubr.f32.mxu0 %v4998
  %5253 = vmatmul.mubr.f32.gmra.mxu0 %v4649
  %v5254 = vpop.f32.mrf.mxu0
  %v5255 = vadd.f32 0.0, %v5254
  %v5256 = vpop.f32.mrf.mxu0
  %v5257 = vadd.f32 0.0, %v5256
  %5258 = vdwg.mxu0
  %5259 = vmatprep.subr.mxu0 %v4880
  %5260 = vmatpush1.msra.mxu0 %v4879
  %5261 = vmatprep.subr.mxu0 %v4873
  %5262 = vmatpush1.msra.mxu0 %v4872
  %5263 = vmatprep.subr.mxu0 %v4866
  %5264 = vmatpush1.msra.mxu0 %v4865
  %5265 = vmatprep.subr.mxu0 %v4859
  %5266 = vmatpush1.msra.mxu0 %v4858
  %5267 = vmatprep.subr.mxu0 %v4852
  %5268 = vmatpush1.msra.mxu0 %v4851
  %5269 = vmatprep.subr.mxu0 %v4845
  %5270 = vmatpush1.msra.mxu0 %v4844
  %5271 = vmatprep.subr.mxu0 %v4838
  %5272 = vmatpush1.msra.mxu0 %v4837
  %5273 = vmatprep.subr.mxu0 %v4831
  %5274 = vmatpush1.msra.mxu0 %v4830
  %5275 = vmatprep.subr.mxu0 %v4824
  %5276 = vmatpush1.msra.mxu0 %v4823
  %5277 = vmatprep.subr.mxu0 %v4817
  %5278 = vmatpush1.msra.mxu0 %v4816
  %5279 = vmatprep.subr.mxu0 %v4810
  %5280 = vmatpush1.msra.mxu0 %v4809
  %5281 = vmatprep.subr.mxu0 %v4803
  %5282 = vmatpush1.msra.mxu0 %v4802
  %5283 = vmatprep.subr.mxu0 %v4796
  %5284 = vmatpush1.msra.mxu0 %v4795
  %5285 = vmatprep.subr.mxu0 %v4789
  %5286 = vmatpush1.msra.mxu0 %v4788
  %5287 = vmatprep.subr.mxu0 %v4782
  %5288 = vmatpush1.msra.mxu0 %v4781
  %5289 = vmatprep.subr.mxu0 %v4775
  %5290 = vmatpush1.msra.mxu0 %v4774
  %5291 = vmatprep.subr.mxu0 0.0
  %5292 = vmatpush2.msra.mxu0 0.0
  %5293 = vmatprep.subr.mxu0 0.0
  %5294 = vmatpush2.msra.mxu0 0.0
  %5295 = vmatprep.subr.mxu0 0.0
  %5296 = vmatpush2.msra.mxu0 0.0
  %5297 = vmatprep.subr.mxu0 %v5016
  %5298 = vmatpush2.msra.mxu0 %v5013
  %5299 = vmatprep.subr.mxu0 %v4964
  %5300 = vmatpush2.msra.mxu0 %v4963
  %5301 = vmatprep.subr.mxu0 %v4957
  %5302 = vmatpush2.msra.mxu0 %v4956
  %5303 = vmatprep.subr.mxu0 %v4950
  %5304 = vmatpush2.msra.mxu0 %v4949
  %5305 = vmatprep.subr.mxu0 %v4943
  %5306 = vmatpush2.msra.mxu0 %v4942
  %5307 = vmatprep.subr.mxu0 %v4936
  %5308 = vmatpush2.msra.mxu0 %v4935
  %5309 = vmatprep.subr.mxu0 %v4929
  %5310 = vmatpush2.msra.mxu0 %v4928
  %5311 = vmatprep.subr.mxu0 %v4922
  %5312 = vmatpush2.msra.mxu0 %v4921
  %5313 = vmatprep.subr.mxu0 %v4915
  %5314 = vmatpush2.msra.mxu0 %v4914
  %5315 = vmatprep.subr.mxu0 %v4908
  %5316 = vmatpush2.msra.mxu0 %v4907
  %5317 = vmatprep.subr.mxu0 %v4901
  %5318 = vmatpush2.msra.mxu0 %v4900
  %5319 = vmatprep.subr.mxu0 %v4894
  %5320 = vmatpush2.msra.mxu0 %v4893
  %5321 = vmatprep.subr.mxu0 %v4887
  %5322 = vmatpush2.msra.mxu0 %v4886
  %5323 = vmatprep.mubr.f32.mxu0 %v4974
  %5324 = vmatmul.mubr.f32.gmra.mxu0 %v4601
  %v5325 = vpop.f32.mrf.mxu0
  %v5326 = vadd.f32 0.0, %v5325
  %v5327 = vpop.f32.mrf.mxu0
  %v5328 = vadd.f32 0.0, %v5327
  %5329 = vmatprep.mubr.f32.mxu0 %v4977
  %5330 = vmatmul.mubr.f32.gmra.mxu0 %v4607
  %v5331 = vpop.f32.mrf.mxu0
  %v5332 = vadd.f32 0.0, %v5331
  %v5333 = vpop.f32.mrf.mxu0
  %v5334 = vadd.f32 0.0, %v5333
  %5335 = vmatprep.mubr.f32.mxu0 %v4980
  %5336 = vmatmul.mubr.f32.gmra.mxu0 %v4613
  %v5337 = vpop.f32.mrf.mxu0
  %v5338 = vadd.f32 0.0, %v5337
  %v5339 = vpop.f32.mrf.mxu0
  %v5340 = vadd.f32 0.0, %v5339
  %5341 = vmatprep.mubr.f32.mxu0 %v4983
  %5342 = vmatmul.mubr.f32.gmra.mxu0 %v4619
  %v5343 = vpop.f32.mrf.mxu0
  %v5344 = vadd.f32 0.0, %v5343
  %v5345 = vpop.f32.mrf.mxu0
  %v5346 = vadd.f32 0.0, %v5345
  %5347 = vmatprep.mubr.f32.mxu0 %v4986
  %5348 = vmatmul.mubr.f32.gmra.mxu0 %v4625
  %v5349 = vpop.f32.mrf.mxu0
  %v5350 = vadd.f32 0.0, %v5349
  %v5351 = vpop.f32.mrf.mxu0
  %v5352 = vadd.f32 0.0, %v5351
  %5353 = vmatprep.mubr.f32.mxu0 %v4989
  %5354 = vmatmul.mubr.f32.gmra.mxu0 %v4631
  %v5355 = vpop.f32.mrf.mxu0
  %v5356 = vadd.f32 0.0, %v5355
  %v5357 = vpop.f32.mrf.mxu0
  %v5358 = vadd.f32 0.0, %v5357
  %5359 = vmatprep.mubr.f32.mxu0 %v4992
  %5360 = vmatmul.mubr.f32.gmra.mxu0 %v4637
  %v5361 = vpop.f32.mrf.mxu0
  %v5362 = vadd.f32 0.0, %v5361
  %v5363 = vpop.f32.mrf.mxu0
  %v5364 = vadd.f32 0.0, %v5363
  %5365 = vmatprep.mubr.f32.mxu0 %v4995
  %5366 = vmatmul.mubr.f32.gmra.mxu0 %v4643
  %v5367 = vpop.f32.mrf.mxu0
  %v5368 = vadd.f32 0.0, %v5367
  %v5369 = vpop.f32.mrf.mxu0
  %v5370 = vadd.f32 0.0, %v5369
  %5371 = vmatprep.mubr.f32.mxu0 %v4998
  %5372 = vmatmul.mubr.f32.gmra.mxu0 %v4649
  %v5373 = vpop.f32.mrf.mxu0
  %v5374 = vadd.f32 0.0, %v5373
  %v5375 = vpop.f32.mrf.mxu0
  %v5376 = vadd.f32 0.0, %v5375
  %5377 = vdwg.mxu0
  %5378 = vmatprep.subr.mxu0 0.0
  %5379 = vmatpush1.msra.mxu0 %v4881
  %5380 = vmatprep.subr.mxu0 0.0
  %5381 = vmatpush1.msra.mxu0 %v4874
  %5382 = vmatprep.subr.mxu0 0.0
  %5383 = vmatpush1.msra.mxu0 %v4867
  %5384 = vmatprep.subr.mxu0 0.0
  %5385 = vmatpush1.msra.mxu0 %v4860
  %5386 = vmatprep.subr.mxu0 0.0
  %5387 = vmatpush1.msra.mxu0 %v4853
  %5388 = vmatprep.subr.mxu0 0.0
  %5389 = vmatpush1.msra.mxu0 %v4846
  %5390 = vmatprep.subr.mxu0 0.0
  %5391 = vmatpush1.msra.mxu0 %v4839
  %5392 = vmatprep.subr.mxu0 0.0
  %5393 = vmatpush1.msra.mxu0 %v4832
  %5394 = vmatprep.subr.mxu0 0.0
  %5395 = vmatpush1.msra.mxu0 %v4825
  %5396 = vmatprep.subr.mxu0 0.0
  %5397 = vmatpush1.msra.mxu0 %v4818
  %5398 = vmatprep.subr.mxu0 0.0
  %5399 = vmatpush1.msra.mxu0 %v4811
  %5400 = vmatprep.subr.mxu0 0.0
  %5401 = vmatpush1.msra.mxu0 %v4804
  %5402 = vmatprep.subr.mxu0 0.0
  %5403 = vmatpush1.msra.mxu0 %v4797
  %5404 = vmatprep.subr.mxu0 0.0
  %5405 = vmatpush1.msra.mxu0 %v4790
  %5406 = vmatprep.subr.mxu0 0.0
  %5407 = vmatpush1.msra.mxu0 %v4783
  %5408 = vmatprep.subr.mxu0 0.0
  %5409 = vmatpush1.msra.mxu0 %v4776
  %5410 = vmatprep.subr.mxu0 0.0
  %5411 = vmatpush2.msra.mxu0 0.0
  %5412 = vmatprep.subr.mxu0 0.0
  %5413 = vmatpush2.msra.mxu0 0.0
  %5414 = vmatprep.subr.mxu0 0.0
  %5415 = vmatpush2.msra.mxu0 0.0
  %5416 = vmatprep.subr.mxu0 0.0
  %5417 = vmatpush2.msra.mxu0 %v5019
  %5418 = vmatprep.subr.mxu0 0.0
  %5419 = vmatpush2.msra.mxu0 %v4965
  %5420 = vmatprep.subr.mxu0 0.0
  %5421 = vmatpush2.msra.mxu0 %v4958
  %5422 = vmatprep.subr.mxu0 0.0
  %5423 = vmatpush2.msra.mxu0 %v4951
  %5424 = vmatprep.subr.mxu0 0.0
  %5425 = vmatpush2.msra.mxu0 %v4944
  %5426 = vmatprep.subr.mxu0 0.0
  %5427 = vmatpush2.msra.mxu0 %v4937
  %5428 = vmatprep.subr.mxu0 0.0
  %5429 = vmatpush2.msra.mxu0 %v4930
  %5430 = vmatprep.subr.mxu0 0.0
  %5431 = vmatpush2.msra.mxu0 %v4923
  %5432 = vmatprep.subr.mxu0 0.0
  %5433 = vmatpush2.msra.mxu0 %v4916
  %5434 = vmatprep.subr.mxu0 0.0
  %5435 = vmatpush2.msra.mxu0 %v4909
  %5436 = vmatprep.subr.mxu0 0.0
  %5437 = vmatpush2.msra.mxu0 %v4902
  %5438 = vmatprep.subr.mxu0 0.0
  %5439 = vmatpush2.msra.mxu0 %v4895
  %5440 = vmatprep.subr.mxu0 0.0
  %5441 = vmatpush2.msra.mxu0 %v4888
  %5442 = vmatprep.mubr.f32.mxu0 %v4974
  %5443 = vmatmul.mubr.f32.gmra.mxu0 %v4601
  %v5444 = vpop.f32.mrf.mxu0
  %v5445 = vadd.f32 0.0, %v5444
  %v5446 = vpop.f32.mrf.mxu0
  %5447 = vmatprep.mubr.f32.mxu0 %v4977
  %5448 = vmatmul.mubr.f32.gmra.mxu0 %v4607
  %v5449 = vpop.f32.mrf.mxu0
  %v5450 = vadd.f32 0.0, %v5449
  %v5451 = vpop.f32.mrf.mxu0
  %5452 = vmatprep.mubr.f32.mxu0 %v4980
  %5453 = vmatmul.mubr.f32.gmra.mxu0 %v4613
  %v5454 = vpop.f32.mrf.mxu0
  %v5455 = vadd.f32 0.0, %v5454
  %v5456 = vpop.f32.mrf.mxu0
  %5457 = vmatprep.mubr.f32.mxu0 %v4983
  %5458 = vmatmul.mubr.f32.gmra.mxu0 %v4619
  %v5459 = vpop.f32.mrf.mxu0
  %v5460 = vadd.f32 0.0, %v5459
  %v5461 = vpop.f32.mrf.mxu0
  %5462 = vmatprep.mubr.f32.mxu0 %v4986
  %5463 = vmatmul.mubr.f32.gmra.mxu0 %v4625
  %v5464 = vpop.f32.mrf.mxu0
  %v5465 = vadd.f32 0.0, %v5464
  %v5466 = vpop.f32.mrf.mxu0
  %5467 = vmatprep.mubr.f32.mxu0 %v4989
  %5468 = vmatmul.mubr.f32.gmra.mxu0 %v4631
  %v5469 = vpop.f32.mrf.mxu0
  %v5470 = vadd.f32 0.0, %v5469
  %v5471 = vpop.f32.mrf.mxu0
  %5472 = vmatprep.mubr.f32.mxu0 %v4992
  %5473 = vmatmul.mubr.f32.gmra.mxu0 %v4637
  %v5474 = vpop.f32.mrf.mxu0
  %v5475 = vadd.f32 0.0, %v5474
  %v5476 = vpop.f32.mrf.mxu0
  %5477 = vmatprep.mubr.f32.mxu0 %v4995
  %5478 = vmatmul.mubr.f32.gmra.mxu0 %v4643
  %v5479 = vpop.f32.mrf.mxu0
  %v5480 = vadd.f32 0.0, %v5479
  %v5481 = vpop.f32.mrf.mxu0
  %5482 = vmatprep.mubr.f32.mxu0 %v4998
  %5483 = vmatmul.mubr.f32.gmra.mxu0 %v4649
  %v5484 = vpop.f32.mrf.mxu0
  %v5485 = vadd.f32 0.0, %v5484
  %v5486 = vpop.f32.mrf.mxu0
  %5487 = vdwg.mxu0
  %v5489 = vsel %vm3567, %v4128, 0
  %v5492 = vsel %vm3567, %v4134, 0
  %v5495 = vsel %vm3567, %v4140, 0
  %v5498 = vsel %vm3567, %v4146, 0
  %v5501 = vsel %vm3567, %v4152, 0
  %v5504 = vsel %vm3567, %v4158, 0
  %v5507 = vsel %vm3567, %v4164, 0
  %v5510 = vsel %vm3567, %v4170, 0
  %v5513 = vsel %vm3567, %v4176, 0
  %v5516 = vsel %vm1315, %v4490, 0
  %v5519 = vsel %vm1315, %v4491, 0
  %v5522 = vsel %vm1315, %v4492, 0
  %v5525 = vsel %vm1315, %v4493, 0
  %v5528 = vsel %vm1315, %v4494, 0
  %v5531 = vsel %vm1315, %v4495, 0
  %v5534 = vsel %vm1315, %v4496, 0
  %5536 = vmatprep.subr.mxu0 %v4400
  %5537 = vmatpush1.msra.mxu0 %v4399
  %5538 = vmatprep.subr.mxu0 %v4393
  %5539 = vmatpush1.msra.mxu0 %v4392
  %5540 = vmatprep.subr.mxu0 %v4386
  %5541 = vmatpush1.msra.mxu0 %v4385
  %5542 = vmatprep.subr.mxu0 %v4379
  %5543 = vmatpush1.msra.mxu0 %v4378
  %5544 = vmatprep.subr.mxu0 %v4372
  %5545 = vmatpush1.msra.mxu0 %v4371
  %5546 = vmatprep.subr.mxu0 %v4365
  %5547 = vmatpush1.msra.mxu0 %v4364
  %5548 = vmatprep.subr.mxu0 %v4358
  %5549 = vmatpush1.msra.mxu0 %v4357
  %5550 = vmatprep.subr.mxu0 %v4351
  %5551 = vmatpush1.msra.mxu0 %v4350
  %5552 = vmatprep.subr.mxu0 %v4344
  %5553 = vmatpush1.msra.mxu0 %v4343
  %5554 = vmatprep.subr.mxu0 %v4337
  %5555 = vmatpush1.msra.mxu0 %v4336
  %5556 = vmatprep.subr.mxu0 %v4330
  %5557 = vmatpush1.msra.mxu0 %v4329
  %5558 = vmatprep.subr.mxu0 %v4323
  %5559 = vmatpush1.msra.mxu0 %v4322
  %5560 = vmatprep.subr.mxu0 %v4316
  %5561 = vmatpush1.msra.mxu0 %v4315
  %5562 = vmatprep.subr.mxu0 %v4309
  %5563 = vmatpush1.msra.mxu0 %v4308
  %5564 = vmatprep.subr.mxu0 %v4302
  %5565 = vmatpush1.msra.mxu0 %v4301
  %5566 = vmatprep.subr.mxu0 %v4295
  %5567 = vmatpush1.msra.mxu0 %v4294
  %5568 = vmatprep.subr.mxu0 0.0
  %5569 = vmatpush2.msra.mxu0 0.0
  %5570 = vmatprep.subr.mxu0 0.0
  %5571 = vmatpush2.msra.mxu0 0.0
  %5572 = vmatprep.subr.mxu0 0.0
  %5573 = vmatpush2.msra.mxu0 0.0
  %5574 = vmatprep.subr.mxu0 %v5519
  %5575 = vmatpush2.msra.mxu0 %v5516
  %5576 = vmatprep.subr.mxu0 %v4484
  %5577 = vmatpush2.msra.mxu0 %v4483
  %5578 = vmatprep.subr.mxu0 %v4477
  %5579 = vmatpush2.msra.mxu0 %v4476
  %5580 = vmatprep.subr.mxu0 %v4470
  %5581 = vmatpush2.msra.mxu0 %v4469
  %5582 = vmatprep.subr.mxu0 %v4463
  %5583 = vmatpush2.msra.mxu0 %v4462
  %5584 = vmatprep.subr.mxu0 %v4456
  %5585 = vmatpush2.msra.mxu0 %v4455
  %5586 = vmatprep.subr.mxu0 %v4449
  %5587 = vmatpush2.msra.mxu0 %v4448
  %5588 = vmatprep.subr.mxu0 %v4442
  %5589 = vmatpush2.msra.mxu0 %v4441
  %5590 = vmatprep.subr.mxu0 %v4435
  %5591 = vmatpush2.msra.mxu0 %v4434
  %5592 = vmatprep.subr.mxu0 %v4428
  %5593 = vmatpush2.msra.mxu0 %v4427
  %5594 = vmatprep.subr.mxu0 %v4421
  %5595 = vmatpush2.msra.mxu0 %v4420
  %5596 = vmatprep.subr.mxu0 %v4414
  %5597 = vmatpush2.msra.mxu0 %v4413
  %5598 = vmatprep.subr.mxu0 %v4407
  %5599 = vmatpush2.msra.mxu0 %v4406
  %5600 = vmatprep.mubr.f32.mxu0 %v5489
  %5601 = vmatmul.mubr.f32.gmra.mxu0 %v4126
  %v5602 = vpop.f32.mrf.mxu0
  %v5603 = vadd.f32 %v5088, %v5602
  %v5604 = vpop.f32.mrf.mxu0
  %v5605 = vadd.f32 %v5090, %v5604
  %5606 = vmatprep.mubr.f32.mxu0 %v5492
  %5607 = vmatmul.mubr.f32.gmra.mxu0 %v4132
  %v5608 = vpop.f32.mrf.mxu0
  %v5609 = vadd.f32 %v5094, %v5608
  %v5610 = vpop.f32.mrf.mxu0
  %v5611 = vadd.f32 %v5096, %v5610
  %5612 = vmatprep.mubr.f32.mxu0 %v5495
  %5613 = vmatmul.mubr.f32.gmra.mxu0 %v4138
  %v5614 = vpop.f32.mrf.mxu0
  %v5615 = vadd.f32 %v5100, %v5614
  %v5616 = vpop.f32.mrf.mxu0
  %v5617 = vadd.f32 %v5102, %v5616
  %5618 = vmatprep.mubr.f32.mxu0 %v5498
  %5619 = vmatmul.mubr.f32.gmra.mxu0 %v4144
  %v5620 = vpop.f32.mrf.mxu0
  %v5621 = vadd.f32 %v5106, %v5620
  %v5622 = vpop.f32.mrf.mxu0
  %v5623 = vadd.f32 %v5108, %v5622
  %5624 = vmatprep.mubr.f32.mxu0 %v5501
  %5625 = vmatmul.mubr.f32.gmra.mxu0 %v4150
  %v5626 = vpop.f32.mrf.mxu0
  %v5627 = vadd.f32 %v5112, %v5626
  %v5628 = vpop.f32.mrf.mxu0
  %v5629 = vadd.f32 %v5114, %v5628
  %5630 = vmatprep.mubr.f32.mxu0 %v5504
  %5631 = vmatmul.mubr.f32.gmra.mxu0 %v4156
  %v5632 = vpop.f32.mrf.mxu0
  %v5633 = vadd.f32 %v5118, %v5632
  %v5634 = vpop.f32.mrf.mxu0
  %v5635 = vadd.f32 %v5120, %v5634
  %5636 = vmatprep.mubr.f32.mxu0 %v5507
  %5637 = vmatmul.mubr.f32.gmra.mxu0 %v4162
  %v5638 = vpop.f32.mrf.mxu0
  %v5639 = vadd.f32 %v5124, %v5638
  %v5640 = vpop.f32.mrf.mxu0
  %v5641 = vadd.f32 %v5126, %v5640
  %5642 = vmatprep.mubr.f32.mxu0 %v5510
  %5643 = vmatmul.mubr.f32.gmra.mxu0 %v4168
  %v5644 = vpop.f32.mrf.mxu0
  %v5645 = vadd.f32 %v5130, %v5644
  %v5646 = vpop.f32.mrf.mxu0
  %v5647 = vadd.f32 %v5132, %v5646
  %5648 = vmatprep.mubr.f32.mxu0 %v5513
  %5649 = vmatmul.mubr.f32.gmra.mxu0 %v4174
  %v5650 = vpop.f32.mrf.mxu0
  %v5651 = vadd.f32 %v5136, %v5650
  %v5652 = vpop.f32.mrf.mxu0
  %v5653 = vadd.f32 %v5138, %v5652
  %5654 = vdwg.mxu0
  %5655 = vmatprep.subr.mxu0 %v4402
  %5656 = vmatpush1.msra.mxu0 %v4401
  %5657 = vmatprep.subr.mxu0 %v4395
  %5658 = vmatpush1.msra.mxu0 %v4394
  %5659 = vmatprep.subr.mxu0 %v4388
  %5660 = vmatpush1.msra.mxu0 %v4387
  %5661 = vmatprep.subr.mxu0 %v4381
  %5662 = vmatpush1.msra.mxu0 %v4380
  %5663 = vmatprep.subr.mxu0 %v4374
  %5664 = vmatpush1.msra.mxu0 %v4373
  %5665 = vmatprep.subr.mxu0 %v4367
  %5666 = vmatpush1.msra.mxu0 %v4366
  %5667 = vmatprep.subr.mxu0 %v4360
  %5668 = vmatpush1.msra.mxu0 %v4359
  %5669 = vmatprep.subr.mxu0 %v4353
  %5670 = vmatpush1.msra.mxu0 %v4352
  %5671 = vmatprep.subr.mxu0 %v4346
  %5672 = vmatpush1.msra.mxu0 %v4345
  %5673 = vmatprep.subr.mxu0 %v4339
  %5674 = vmatpush1.msra.mxu0 %v4338
  %5675 = vmatprep.subr.mxu0 %v4332
  %5676 = vmatpush1.msra.mxu0 %v4331
  %5677 = vmatprep.subr.mxu0 %v4325
  %5678 = vmatpush1.msra.mxu0 %v4324
  %5679 = vmatprep.subr.mxu0 %v4318
  %5680 = vmatpush1.msra.mxu0 %v4317
  %5681 = vmatprep.subr.mxu0 %v4311
  %5682 = vmatpush1.msra.mxu0 %v4310
  %5683 = vmatprep.subr.mxu0 %v4304
  %5684 = vmatpush1.msra.mxu0 %v4303
  %5685 = vmatprep.subr.mxu0 %v4297
  %5686 = vmatpush1.msra.mxu0 %v4296
  %5687 = vmatprep.subr.mxu0 0.0
  %5688 = vmatpush2.msra.mxu0 0.0
  %5689 = vmatprep.subr.mxu0 0.0
  %5690 = vmatpush2.msra.mxu0 0.0
  %5691 = vmatprep.subr.mxu0 0.0
  %5692 = vmatpush2.msra.mxu0 0.0
  %5693 = vmatprep.subr.mxu0 %v5525
  %5694 = vmatpush2.msra.mxu0 %v5522
  %5695 = vmatprep.subr.mxu0 %v4486
  %5696 = vmatpush2.msra.mxu0 %v4485
  %5697 = vmatprep.subr.mxu0 %v4479
  %5698 = vmatpush2.msra.mxu0 %v4478
  %5699 = vmatprep.subr.mxu0 %v4472
  %5700 = vmatpush2.msra.mxu0 %v4471
  %5701 = vmatprep.subr.mxu0 %v4465
  %5702 = vmatpush2.msra.mxu0 %v4464
  %5703 = vmatprep.subr.mxu0 %v4458
  %5704 = vmatpush2.msra.mxu0 %v4457
  %5705 = vmatprep.subr.mxu0 %v4451
  %5706 = vmatpush2.msra.mxu0 %v4450
  %5707 = vmatprep.subr.mxu0 %v4444
  %5708 = vmatpush2.msra.mxu0 %v4443
  %5709 = vmatprep.subr.mxu0 %v4437
  %5710 = vmatpush2.msra.mxu0 %v4436
  %5711 = vmatprep.subr.mxu0 %v4430
  %5712 = vmatpush2.msra.mxu0 %v4429
  %5713 = vmatprep.subr.mxu0 %v4423
  %5714 = vmatpush2.msra.mxu0 %v4422
  %5715 = vmatprep.subr.mxu0 %v4416
  %5716 = vmatpush2.msra.mxu0 %v4415
  %5717 = vmatprep.subr.mxu0 %v4409
  %5718 = vmatpush2.msra.mxu0 %v4408
  %5719 = vmatprep.mubr.f32.mxu0 %v5489
  %5720 = vmatmul.mubr.f32.gmra.mxu0 %v4126
  %v5721 = vpop.f32.mrf.mxu0
  %v5722 = vadd.f32 %v5207, %v5721
  %v5723 = vpop.f32.mrf.mxu0
  %v5724 = vadd.f32 %v5209, %v5723
  %5725 = vmatprep.mubr.f32.mxu0 %v5492
  %5726 = vmatmul.mubr.f32.gmra.mxu0 %v4132
  %v5727 = vpop.f32.mrf.mxu0
  %v5728 = vadd.f32 %v5213, %v5727
  %v5729 = vpop.f32.mrf.mxu0
  %v5730 = vadd.f32 %v5215, %v5729
  %5731 = vmatprep.mubr.f32.mxu0 %v5495
  %5732 = vmatmul.mubr.f32.gmra.mxu0 %v4138
  %v5733 = vpop.f32.mrf.mxu0
  %v5734 = vadd.f32 %v5219, %v5733
  %v5735 = vpop.f32.mrf.mxu0
  %v5736 = vadd.f32 %v5221, %v5735
  %5737 = vmatprep.mubr.f32.mxu0 %v5498
  %5738 = vmatmul.mubr.f32.gmra.mxu0 %v4144
  %v5739 = vpop.f32.mrf.mxu0
  %v5740 = vadd.f32 %v5225, %v5739
  %v5741 = vpop.f32.mrf.mxu0
  %v5742 = vadd.f32 %v5227, %v5741
  %5743 = vmatprep.mubr.f32.mxu0 %v5501
  %5744 = vmatmul.mubr.f32.gmra.mxu0 %v4150
  %v5745 = vpop.f32.mrf.mxu0
  %v5746 = vadd.f32 %v5231, %v5745
  %v5747 = vpop.f32.mrf.mxu0
  %v5748 = vadd.f32 %v5233, %v5747
  %5749 = vmatprep.mubr.f32.mxu0 %v5504
  %5750 = vmatmul.mubr.f32.gmra.mxu0 %v4156
  %v5751 = vpop.f32.mrf.mxu0
  %v5752 = vadd.f32 %v5237, %v5751
  %v5753 = vpop.f32.mrf.mxu0
  %v5754 = vadd.f32 %v5239, %v5753
  %5755 = vmatprep.mubr.f32.mxu0 %v5507
  %5756 = vmatmul.mubr.f32.gmra.mxu0 %v4162
  %v5757 = vpop.f32.mrf.mxu0
  %v5758 = vadd.f32 %v5243, %v5757
  %v5759 = vpop.f32.mrf.mxu0
  %v5760 = vadd.f32 %v5245, %v5759
  %5761 = vmatprep.mubr.f32.mxu0 %v5510
  %5762 = vmatmul.mubr.f32.gmra.mxu0 %v4168
  %v5763 = vpop.f32.mrf.mxu0
  %v5764 = vadd.f32 %v5249, %v5763
  %v5765 = vpop.f32.mrf.mxu0
  %v5766 = vadd.f32 %v5251, %v5765
  %5767 = vmatprep.mubr.f32.mxu0 %v5513
  %5768 = vmatmul.mubr.f32.gmra.mxu0 %v4174
  %v5769 = vpop.f32.mrf.mxu0
  %v5770 = vadd.f32 %v5255, %v5769
  %v5771 = vpop.f32.mrf.mxu0
  %v5772 = vadd.f32 %v5257, %v5771
  %5773 = vdwg.mxu0
  %5774 = vmatprep.subr.mxu0 %v4404
  %5775 = vmatpush1.msra.mxu0 %v4403
  %5776 = vmatprep.subr.mxu0 %v4397
  %5777 = vmatpush1.msra.mxu0 %v4396
  %5778 = vmatprep.subr.mxu0 %v4390
  %5779 = vmatpush1.msra.mxu0 %v4389
  %5780 = vmatprep.subr.mxu0 %v4383
  %5781 = vmatpush1.msra.mxu0 %v4382
  %5782 = vmatprep.subr.mxu0 %v4376
  %5783 = vmatpush1.msra.mxu0 %v4375
  %5784 = vmatprep.subr.mxu0 %v4369
  %5785 = vmatpush1.msra.mxu0 %v4368
  %5786 = vmatprep.subr.mxu0 %v4362
  %5787 = vmatpush1.msra.mxu0 %v4361
  %5788 = vmatprep.subr.mxu0 %v4355
  %5789 = vmatpush1.msra.mxu0 %v4354
  %5790 = vmatprep.subr.mxu0 %v4348
  %5791 = vmatpush1.msra.mxu0 %v4347
  %5792 = vmatprep.subr.mxu0 %v4341
  %5793 = vmatpush1.msra.mxu0 %v4340
  %5794 = vmatprep.subr.mxu0 %v4334
  %5795 = vmatpush1.msra.mxu0 %v4333
  %5796 = vmatprep.subr.mxu0 %v4327
  %5797 = vmatpush1.msra.mxu0 %v4326
  %5798 = vmatprep.subr.mxu0 %v4320
  %5799 = vmatpush1.msra.mxu0 %v4319
  %5800 = vmatprep.subr.mxu0 %v4313
  %5801 = vmatpush1.msra.mxu0 %v4312
  %5802 = vmatprep.subr.mxu0 %v4306
  %5803 = vmatpush1.msra.mxu0 %v4305
  %5804 = vmatprep.subr.mxu0 %v4299
  %5805 = vmatpush1.msra.mxu0 %v4298
  %5806 = vmatprep.subr.mxu0 0.0
  %5807 = vmatpush2.msra.mxu0 0.0
  %5808 = vmatprep.subr.mxu0 0.0
  %5809 = vmatpush2.msra.mxu0 0.0
  %5810 = vmatprep.subr.mxu0 0.0
  %5811 = vmatpush2.msra.mxu0 0.0
  %5812 = vmatprep.subr.mxu0 %v5531
  %5813 = vmatpush2.msra.mxu0 %v5528
  %5814 = vmatprep.subr.mxu0 %v4488
  %5815 = vmatpush2.msra.mxu0 %v4487
  %5816 = vmatprep.subr.mxu0 %v4481
  %5817 = vmatpush2.msra.mxu0 %v4480
  %5818 = vmatprep.subr.mxu0 %v4474
  %5819 = vmatpush2.msra.mxu0 %v4473
  %5820 = vmatprep.subr.mxu0 %v4467
  %5821 = vmatpush2.msra.mxu0 %v4466
  %5822 = vmatprep.subr.mxu0 %v4460
  %5823 = vmatpush2.msra.mxu0 %v4459
  %5824 = vmatprep.subr.mxu0 %v4453
  %5825 = vmatpush2.msra.mxu0 %v4452
  %5826 = vmatprep.subr.mxu0 %v4446
  %5827 = vmatpush2.msra.mxu0 %v4445
  %5828 = vmatprep.subr.mxu0 %v4439
  %5829 = vmatpush2.msra.mxu0 %v4438
  %5830 = vmatprep.subr.mxu0 %v4432
  %5831 = vmatpush2.msra.mxu0 %v4431
  %5832 = vmatprep.subr.mxu0 %v4425
  %5833 = vmatpush2.msra.mxu0 %v4424
  %5834 = vmatprep.subr.mxu0 %v4418
  %5835 = vmatpush2.msra.mxu0 %v4417
  %5836 = vmatprep.subr.mxu0 %v4411
  %5837 = vmatpush2.msra.mxu0 %v4410
  %5838 = vmatprep.mubr.f32.mxu0 %v5489
  %5839 = vmatmul.mubr.f32.gmra.mxu0 %v4126
  %v5840 = vpop.f32.mrf.mxu0
  %v5841 = vadd.f32 %v5326, %v5840
  %v5842 = vpop.f32.mrf.mxu0
  %v5843 = vadd.f32 %v5328, %v5842
  %5844 = vmatprep.mubr.f32.mxu0 %v5492
  %5845 = vmatmul.mubr.f32.gmra.mxu0 %v4132
  %v5846 = vpop.f32.mrf.mxu0
  %v5847 = vadd.f32 %v5332, %v5846
  %v5848 = vpop.f32.mrf.mxu0
  %v5849 = vadd.f32 %v5334, %v5848
  %5850 = vmatprep.mubr.f32.mxu0 %v5495
  %5851 = vmatmul.mubr.f32.gmra.mxu0 %v4138
  %v5852 = vpop.f32.mrf.mxu0
  %v5853 = vadd.f32 %v5338, %v5852
  %v5854 = vpop.f32.mrf.mxu0
  %v5855 = vadd.f32 %v5340, %v5854
  %5856 = vmatprep.mubr.f32.mxu0 %v5498
  %5857 = vmatmul.mubr.f32.gmra.mxu0 %v4144
  %v5858 = vpop.f32.mrf.mxu0
  %v5859 = vadd.f32 %v5344, %v5858
  %v5860 = vpop.f32.mrf.mxu0
  %v5861 = vadd.f32 %v5346, %v5860
  %5862 = vmatprep.mubr.f32.mxu0 %v5501
  %5863 = vmatmul.mubr.f32.gmra.mxu0 %v4150
  %v5864 = vpop.f32.mrf.mxu0
  %v5865 = vadd.f32 %v5350, %v5864
  %v5866 = vpop.f32.mrf.mxu0
  %v5867 = vadd.f32 %v5352, %v5866
  %5868 = vmatprep.mubr.f32.mxu0 %v5504
  %5869 = vmatmul.mubr.f32.gmra.mxu0 %v4156
  %v5870 = vpop.f32.mrf.mxu0
  %v5871 = vadd.f32 %v5356, %v5870
  %v5872 = vpop.f32.mrf.mxu0
  %v5873 = vadd.f32 %v5358, %v5872
  %5874 = vmatprep.mubr.f32.mxu0 %v5507
  %5875 = vmatmul.mubr.f32.gmra.mxu0 %v4162
  %v5876 = vpop.f32.mrf.mxu0
  %v5877 = vadd.f32 %v5362, %v5876
  %v5878 = vpop.f32.mrf.mxu0
  %v5879 = vadd.f32 %v5364, %v5878
  %5880 = vmatprep.mubr.f32.mxu0 %v5510
  %5881 = vmatmul.mubr.f32.gmra.mxu0 %v4168
  %v5882 = vpop.f32.mrf.mxu0
  %v5883 = vadd.f32 %v5368, %v5882
  %v5884 = vpop.f32.mrf.mxu0
  %v5885 = vadd.f32 %v5370, %v5884
  %5886 = vmatprep.mubr.f32.mxu0 %v5513
  %5887 = vmatmul.mubr.f32.gmra.mxu0 %v4174
  %v5888 = vpop.f32.mrf.mxu0
  %v5889 = vadd.f32 %v5374, %v5888
  %v5890 = vpop.f32.mrf.mxu0
  %v5891 = vadd.f32 %v5376, %v5890
  %5892 = vdwg.mxu0
  %5893 = vmatprep.subr.mxu0 0.0
  %5894 = vmatpush1.msra.mxu0 %v4405
  %5895 = vmatprep.subr.mxu0 0.0
  %5896 = vmatpush1.msra.mxu0 %v4398
  %5897 = vmatprep.subr.mxu0 0.0
  %5898 = vmatpush1.msra.mxu0 %v4391
  %5899 = vmatprep.subr.mxu0 0.0
  %5900 = vmatpush1.msra.mxu0 %v4384
  %5901 = vmatprep.subr.mxu0 0.0
  %5902 = vmatpush1.msra.mxu0 %v4377
  %5903 = vmatprep.subr.mxu0 0.0
  %5904 = vmatpush1.msra.mxu0 %v4370
  %5905 = vmatprep.subr.mxu0 0.0
  %5906 = vmatpush1.msra.mxu0 %v4363
  %5907 = vmatprep.subr.mxu0 0.0
  %5908 = vmatpush1.msra.mxu0 %v4356
  %5909 = vmatprep.subr.mxu0 0.0
  %5910 = vmatpush1.msra.mxu0 %v4349
  %5911 = vmatprep.subr.mxu0 0.0
  %5912 = vmatpush1.msra.mxu0 %v4342
  %5913 = vmatprep.subr.mxu0 0.0
  %5914 = vmatpush1.msra.mxu0 %v4335
  %5915 = vmatprep.subr.mxu0 0.0
  %5916 = vmatpush1.msra.mxu0 %v4328
  %5917 = vmatprep.subr.mxu0 0.0
  %5918 = vmatpush1.msra.mxu0 %v4321
  %5919 = vmatprep.subr.mxu0 0.0
  %5920 = vmatpush1.msra.mxu0 %v4314
  %5921 = vmatprep.subr.mxu0 0.0
  %5922 = vmatpush1.msra.mxu0 %v4307
  %5923 = vmatprep.subr.mxu0 0.0
  %5924 = vmatpush1.msra.mxu0 %v4300
  %5925 = vmatprep.subr.mxu0 0.0
  %5926 = vmatpush2.msra.mxu0 0.0
  %5927 = vmatprep.subr.mxu0 0.0
  %5928 = vmatpush2.msra.mxu0 0.0
  %5929 = vmatprep.subr.mxu0 0.0
  %5930 = vmatpush2.msra.mxu0 0.0
  %5931 = vmatprep.subr.mxu0 0.0
  %5932 = vmatpush2.msra.mxu0 %v5534
  %5933 = vmatprep.subr.mxu0 0.0
  %5934 = vmatpush2.msra.mxu0 %v4489
  %5935 = vmatprep.subr.mxu0 0.0
  %5936 = vmatpush2.msra.mxu0 %v4482
  %5937 = vmatprep.subr.mxu0 0.0
  %5938 = vmatpush2.msra.mxu0 %v4475
  %5939 = vmatprep.subr.mxu0 0.0
  %5940 = vmatpush2.msra.mxu0 %v4468
  %5941 = vmatprep.subr.mxu0 0.0
  %5942 = vmatpush2.msra.mxu0 %v4461
  %5943 = vmatprep.subr.mxu0 0.0
  %5944 = vmatpush2.msra.mxu0 %v4454
  %5945 = vmatprep.subr.mxu0 0.0
  %5946 = vmatpush2.msra.mxu0 %v4447
  %5947 = vmatprep.subr.mxu0 0.0
  %5948 = vmatpush2.msra.mxu0 %v4440
  %5949 = vmatprep.subr.mxu0 0.0
  %5950 = vmatpush2.msra.mxu0 %v4433
  %5951 = vmatprep.subr.mxu0 0.0
  %5952 = vmatpush2.msra.mxu0 %v4426
  %5953 = vmatprep.subr.mxu0 0.0
  %5954 = vmatpush2.msra.mxu0 %v4419
  %5955 = vmatprep.subr.mxu0 0.0
  %5956 = vmatpush2.msra.mxu0 %v4412
  %5957 = vmatprep.mubr.f32.mxu0 %v5489
  %5958 = vmatmul.mubr.f32.gmra.mxu0 %v4126
  %v5959 = vpop.f32.mrf.mxu0
  %v5960 = vadd.f32 %v5445, %v5959
  %v5961 = vpop.f32.mrf.mxu0
  %5962 = vmatprep.mubr.f32.mxu0 %v5492
  %5963 = vmatmul.mubr.f32.gmra.mxu0 %v4132
  %v5964 = vpop.f32.mrf.mxu0
  %v5965 = vadd.f32 %v5450, %v5964
  %v5966 = vpop.f32.mrf.mxu0
  %5967 = vmatprep.mubr.f32.mxu0 %v5495
  %5968 = vmatmul.mubr.f32.gmra.mxu0 %v4138
  %v5969 = vpop.f32.mrf.mxu0
  %v5970 = vadd.f32 %v5455, %v5969
  %v5971 = vpop.f32.mrf.mxu0
  %5972 = vmatprep.mubr.f32.mxu0 %v5498
  %5973 = vmatmul.mubr.f32.gmra.mxu0 %v4144
  %v5974 = vpop.f32.mrf.mxu0
  %v5975 = vadd.f32 %v5460, %v5974
  %v5976 = vpop.f32.mrf.mxu0
  %5977 = vmatprep.mubr.f32.mxu0 %v5501
  %5978 = vmatmul.mubr.f32.gmra.mxu0 %v4150
  %v5979 = vpop.f32.mrf.mxu0
  %v5980 = vadd.f32 %v5465, %v5979
  %v5981 = vpop.f32.mrf.mxu0
  %5982 = vmatprep.mubr.f32.mxu0 %v5504
  %5983 = vmatmul.mubr.f32.gmra.mxu0 %v4156
  %v5984 = vpop.f32.mrf.mxu0
  %v5985 = vadd.f32 %v5470, %v5984
  %v5986 = vpop.f32.mrf.mxu0
  %5987 = vmatprep.mubr.f32.mxu0 %v5507
  %5988 = vmatmul.mubr.f32.gmra.mxu0 %v4162
  %v5989 = vpop.f32.mrf.mxu0
  %v5990 = vadd.f32 %v5475, %v5989
  %v5991 = vpop.f32.mrf.mxu0
  %5992 = vmatprep.mubr.f32.mxu0 %v5510
  %5993 = vmatmul.mubr.f32.gmra.mxu0 %v4168
  %v5994 = vpop.f32.mrf.mxu0
  %v5995 = vadd.f32 %v5480, %v5994
  %v5996 = vpop.f32.mrf.mxu0
  %5997 = vmatprep.mubr.f32.mxu0 %v5513
  %5998 = vmatmul.mubr.f32.gmra.mxu0 %v4174
  %v5999 = vpop.f32.mrf.mxu0
  %v6000 = vadd.f32 %v5485, %v5999
  %v6001 = vpop.f32.mrf.mxu0
  %6002 = vdwg.mxu0
  %s6003 = scalar_lea.vmem %s14, 144
  %v6004 = vld [vmem:[%s6003] sm:$0xff]
  %v6005 = vld [vmem:[%s6003 + $0x8] sm:$0xff]
  %v6006 = vld [vmem:[%s6003 + $0x10] sm:$0xff]
  %v6007 = vld [vmem:[%s6003 + $0x18] sm:$0xff]
  %v6008 = vld [vmem:[%s6003 + $0x20] sm:$0xff]
  %v6009 = vld [vmem:[%s6003 + $0x28] sm:$0xff]
  %v6010 = vld [vmem:[%s6003 + $0x30] sm:$0xff]
  %v6011 = vld [vmem:[%s6003 + $0x38] sm:$0xff]
  %v6012 = vld [vmem:[%s6003 + $0x40] sm:$0xff]
  %v6014 = vsel %vm3592, %v6004, 0
  %v6017 = vsel %vm3592, %v6005, 0
  %v6020 = vsel %vm3592, %v6006, 0
  %v6023 = vsel %vm3592, %v6007, 0
  %v6026 = vsel %vm3592, %v6008, 0
  %v6029 = vsel %vm3592, %v6009, 0
  %v6032 = vsel %vm3592, %v6010, 0
  %v6035 = vsel %vm3592, %v6011, 0
  %v6038 = vsel %vm3592, %v6012, 0
  %6040 = vmatprep.subr.mxu0 0.0
  %6041 = vmatpush1.msra.mxu0 0.0
  %6042 = vmatprep.subr.mxu0 0.0
  %6043 = vmatpush1.msra.mxu0 0.0
  %6044 = vmatprep.subr.mxu0 0.0
  %6045 = vmatpush1.msra.mxu0 0.0
  %6046 = vmatprep.subr.mxu0 0.0
  %6047 = vmatpush1.msra.mxu0 0.0
  %6048 = vmatprep.subr.mxu0 0.0
  %6049 = vmatpush1.msra.mxu0 0.0
  %6050 = vmatprep.subr.mxu0 0.0
  %6051 = vmatpush1.msra.mxu0 0.0
  %6052 = vmatprep.subr.mxu0 0.0
  %6053 = vmatpush1.msra.mxu0 0.0
  %6054 = vmatprep.subr.mxu0 0.0
  %6055 = vmatpush1.msra.mxu0 0.0
  %6056 = vmatprep.subr.mxu0 0.0
  %6057 = vmatpush1.msra.mxu0 0.0
  %6058 = vmatprep.subr.mxu0 0.0
  %6059 = vmatpush1.msra.mxu0 0.0
  %6060 = vmatprep.subr.mxu0 %v4022
  %6061 = vmatpush1.msra.mxu0 %v4021
  %6062 = vmatprep.subr.mxu0 %v4020
  %6063 = vmatpush1.msra.mxu0 %v4019
  %6064 = vmatprep.subr.mxu0 %v4018
  %6065 = vmatpush1.msra.mxu0 %v4017
  %6066 = vmatprep.subr.mxu0 %v4016
  %6067 = vmatpush1.msra.mxu0 %v4015
  %6068 = vmatprep.subr.mxu0 %v4014
  %6069 = vmatpush1.msra.mxu0 %v4013
  %6070 = vmatprep.subr.mxu0 %v4012
  %6071 = vmatpush1.msra.mxu0 %v4011
  %6072 = vmatprep.subr.mxu0 0.0
  %6073 = vmatpush2.msra.mxu0 0.0
  %6074 = vmatprep.subr.mxu0 0.0
  %6075 = vmatpush2.msra.mxu0 0.0
  %6076 = vmatprep.subr.mxu0 0.0
  %6077 = vmatpush2.msra.mxu0 0.0
  %6078 = vmatprep.subr.mxu0 0.0
  %6079 = vmatpush2.msra.mxu0 0.0
  %6080 = vmatprep.subr.mxu0 0.0
  %6081 = vmatpush2.msra.mxu0 0.0
  %6082 = vmatprep.subr.mxu0 0.0
  %6083 = vmatpush2.msra.mxu0 0.0
  %6084 = vmatprep.subr.mxu0 0.0
  %6085 = vmatpush2.msra.mxu0 0.0
  %6086 = vmatprep.subr.mxu0 0.0
  %6087 = vmatpush2.msra.mxu0 0.0
  %6088 = vmatprep.subr.mxu0 0.0
  %6089 = vmatpush2.msra.mxu0 0.0
  %6090 = vmatprep.subr.mxu0 0.0
  %6091 = vmatpush2.msra.mxu0 0.0
  %6092 = vmatprep.subr.mxu0 0.0
  %6093 = vmatpush2.msra.mxu0 0.0
  %6094 = vmatprep.subr.mxu0 0.0
  %6095 = vmatpush2.msra.mxu0 0.0
  %6096 = vmatprep.subr.mxu0 0.0
  %6097 = vmatpush2.msra.mxu0 0.0
  %6098 = vmatprep.subr.mxu0 0.0
  %6099 = vmatpush2.msra.mxu0 0.0
  %6100 = vmatprep.subr.mxu0 0.0
  %6101 = vmatpush2.msra.mxu0 0.0
  %6102 = vmatprep.subr.mxu0 0.0
  %6103 = vmatpush2.msra.mxu0 0.0
  %6104 = vmatprep.mubr.f32.mxu0 0.0
  %6105 = vmatmul.mubr.f32.gmra.mxu0 %v6014
  %v6106 = vpop.f32.mrf.mxu0
  %v6107 = vadd.f32 0.0, %v6106
  %v6108 = vpop.f32.mrf.mxu0
  %v6109 = vadd.f32 0.0, %v6108
  %6110 = vmatprep.mubr.f32.mxu0 0.0
  %6111 = vmatmul.mubr.f32.gmra.mxu0 %v6017
  %v6112 = vpop.f32.mrf.mxu0
  %v6113 = vadd.f32 0.0, %v6112
  %v6114 = vpop.f32.mrf.mxu0
  %v6115 = vadd.f32 0.0, %v6114
  %6116 = vmatprep.mubr.f32.mxu0 0.0
  %6117 = vmatmul.mubr.f32.gmra.mxu0 %v6020
  %v6118 = vpop.f32.mrf.mxu0
  %v6119 = vadd.f32 0.0, %v6118
  %v6120 = vpop.f32.mrf.mxu0
  %v6121 = vadd.f32 0.0, %v6120
  %6122 = vmatprep.mubr.f32.mxu0 0.0
  %6123 = vmatmul.mubr.f32.gmra.mxu0 %v6023
  %v6124 = vpop.f32.mrf.mxu0
  %v6125 = vadd.f32 0.0, %v6124
  %v6126 = vpop.f32.mrf.mxu0
  %v6127 = vadd.f32 0.0, %v6126
  %6128 = vmatprep.mubr.f32.mxu0 0.0
  %6129 = vmatmul.mubr.f32.gmra.mxu0 %v6026
  %v6130 = vpop.f32.mrf.mxu0
  %v6131 = vadd.f32 0.0, %v6130
  %v6132 = vpop.f32.mrf.mxu0
  %v6133 = vadd.f32 0.0, %v6132
  %6134 = vmatprep.mubr.f32.mxu0 0.0
  %6135 = vmatmul.mubr.f32.gmra.mxu0 %v6029
  %v6136 = vpop.f32.mrf.mxu0
  %v6137 = vadd.f32 0.0, %v6136
  %v6138 = vpop.f32.mrf.mxu0
  %v6139 = vadd.f32 0.0, %v6138
  %6140 = vmatprep.mubr.f32.mxu0 0.0
  %6141 = vmatmul.mubr.f32.gmra.mxu0 %v6032
  %v6142 = vpop.f32.mrf.mxu0
  %v6143 = vadd.f32 0.0, %v6142
  %v6144 = vpop.f32.mrf.mxu0
  %v6145 = vadd.f32 0.0, %v6144
  %6146 = vmatprep.mubr.f32.mxu0 0.0
  %6147 = vmatmul.mubr.f32.gmra.mxu0 %v6035
  %v6148 = vpop.f32.mrf.mxu0
  %v6149 = vadd.f32 0.0, %v6148
  %v6150 = vpop.f32.mrf.mxu0
  %v6151 = vadd.f32 0.0, %v6150
  %6152 = vmatprep.mubr.f32.mxu0 0.0
  %6153 = vmatmul.mubr.f32.gmra.mxu0 %v6038
  %v6154 = vpop.f32.mrf.mxu0
  %v6155 = vadd.f32 0.0, %v6154
  %v6156 = vpop.f32.mrf.mxu0
  %v6157 = vadd.f32 0.0, %v6156
  %6158 = vdwg.mxu0
  %s6159 = scalar_lea.vmem %s15, 1624
  %v6160 = vld [vmem:[%s6159] sm:$0xff]
  %v6161 = vld [vmem:[%s6159 + $0x8] sm:$0xff]
  %v6162 = vld [vmem:[%s6159 + $0x10] sm:$0xff]
  %v6163 = vld [vmem:[%s6159 + $0x18] sm:$0xf]
  %v6164 = vld [vmem:[%s6159 + $0x1c] sm:$0xff]
  %v6165 = vld [vmem:[%s6159 + $0x24] sm:$0xff]
  %v6166 = vld [vmem:[%s6159 + $0x2c] sm:$0xff]
  %v6167 = vld [vmem:[%s6159 + $0x34] sm:$0xf]
  %v6168 = vld [vmem:[%s6159 + $0x38] sm:$0xff]
  %v6169 = vld [vmem:[%s6159 + $0x40] sm:$0xff]
  %v6170 = vld [vmem:[%s6159 + $0x48] sm:$0xff]
  %v6171 = vld [vmem:[%s6159 + $0x50] sm:$0xf]
  %v6172 = vld [vmem:[%s6159 + $0x54] sm:$0xff]
  %v6173 = vld [vmem:[%s6159 + $0x5c] sm:$0xff]
  %v6174 = vld [vmem:[%s6159 + $0x64] sm:$0xff]
  %v6175 = vld [vmem:[%s6159 + $0x6c] sm:$0xf]
  %v6176 = vld [vmem:[%s6159 + $0x70] sm:$0xff]
  %v6177 = vld [vmem:[%s6159 + $0x78] sm:$0xff]
  %v6178 = vld [vmem:[%s6159 + $0x80] sm:$0xff]
  %v6179 = vld [vmem:[%s6159 + $0x88] sm:$0xf]
  %v6180 = vld [vmem:[%s6159 + $0x8c] sm:$0xff]
  %v6181 = vld [vmem:[%s6159 + $0x94] sm:$0xff]
  %v6182 = vld [vmem:[%s6159 + $0x9c] sm:$0xff]
  %v6183 = vld [vmem:[%s6159 + $0xa4] sm:$0xf]
  %v6184 = vld [vmem:[%s6159 + $0xa8] sm:$0xff]
  %v6185 = vld [vmem:[%s6159 + $0xb0] sm:$0xff]
  %v6186 = vld [vmem:[%s6159 + $0xb8] sm:$0xff]
  %v6187 = vld [vmem:[%s6159 + $0xc0] sm:$0xf]
  %v6188 = vld [vmem:[%s6159 + $0xc4] sm:$0xff]
  %v6189 = vld [vmem:[%s6159 + $0xcc] sm:$0xff]
  %v6190 = vld [vmem:[%s6159 + $0xd4] sm:$0xff]
  %v6191 = vld [vmem:[%s6159 + $0xdc] sm:$0xf]
  %v6192 = vld [vmem:[%s6159 + $0xe0] sm:$0xff]
  %v6193 = vld [vmem:[%s6159 + $0xe8] sm:$0xff]
  %v6194 = vld [vmem:[%s6159 + $0xf0] sm:$0xff]
  %v6195 = vld [vmem:[%s6159 + $0xf8] sm:$0xf]
  %v6196 = vld [vmem:[%s6159 + $0xfc] sm:$0xff]
  %v6197 = vld [vmem:[%s6159 + $0x104] sm:$0xff]
  %v6198 = vld [vmem:[%s6159 + $0x10c] sm:$0xff]
  %v6199 = vld [vmem:[%s6159 + $0x114] sm:$0xf]
  %v6200 = vld [vmem:[%s6159 + $0x118] sm:$0xff]
  %v6201 = vld [vmem:[%s6159 + $0x120] sm:$0xff]
  %v6202 = vld [vmem:[%s6159 + $0x128] sm:$0xff]
  %v6203 = vld [vmem:[%s6159 + $0x130] sm:$0xf]
  %v6204 = vld [vmem:[%s6159 + $0x134] sm:$0xff]
  %v6205 = vld [vmem:[%s6159 + $0x13c] sm:$0xff]
  %v6206 = vld [vmem:[%s6159 + $0x144] sm:$0xff]
  %v6207 = vld [vmem:[%s6159 + $0x14c] sm:$0xf]
  %v6208 = vld [vmem:[%s6159 + $0x150] sm:$0xff]
  %v6209 = vld [vmem:[%s6159 + $0x158] sm:$0xff]
  %v6210 = vld [vmem:[%s6159 + $0x160] sm:$0xff]
  %v6211 = vld [vmem:[%s6159 + $0x168] sm:$0xf]
  %v6212 = vld [vmem:[%s6159 + $0x16c] sm:$0xff]
  %v6213 = vld [vmem:[%s6159 + $0x174] sm:$0xff]
  %v6214 = vld [vmem:[%s6159 + $0x17c] sm:$0xff]
  %v6215 = vld [vmem:[%s6159 + $0x184] sm:$0xf]
  %v6216 = vld [vmem:[%s6159 + $0x188] sm:$0xff]
  %v6217 = vld [vmem:[%s6159 + $0x190] sm:$0xff]
  %v6218 = vld [vmem:[%s6159 + $0x198] sm:$0xff]
  %v6219 = vld [vmem:[%s6159 + $0x1a0] sm:$0xf]
  %v6220 = vld [vmem:[%s6159 + $0x1a4] sm:$0xff]
  %v6221 = vld [vmem:[%s6159 + $0x1ac] sm:$0xff]
  %v6222 = vld [vmem:[%s6159 + $0x1b4] sm:$0xff]
  %v6223 = vld [vmem:[%s6159 + $0x1bc] sm:$0xf]
  %v6224 = vld [vmem:[%s6159 + $0x1c0] sm:$0xff]
  %v6225 = vld [vmem:[%s6159 + $0x1c8] sm:$0xff]
  %v6226 = vld [vmem:[%s6159 + $0x1d0] sm:$0xff]
  %v6227 = vld [vmem:[%s6159 + $0x1d8] sm:$0xf]
  %v6228 = vld [vmem:[%s6159 + $0x1dc] sm:$0xff]
  %v6229 = vld [vmem:[%s6159 + $0x1e4] sm:$0xff]
  %v6230 = vld [vmem:[%s6159 + $0x1ec] sm:$0xff]
  %v6231 = vld [vmem:[%s6159 + $0x1f4] sm:$0xf]
  %v6232 = vld [vmem:[%s6159 + $0x1f8] sm:$0xff]
  %v6233 = vld [vmem:[%s6159 + $0x200] sm:$0xff]
  %v6234 = vld [vmem:[%s6159 + $0x208] sm:$0xff]
  %v6235 = vld [vmem:[%s6159 + $0x210] sm:$0xf]
  %v6236 = vld [vmem:[%s6159 + $0x214] sm:$0xff]
  %v6237 = vld [vmem:[%s6159 + $0x21c] sm:$0xff]
  %v6238 = vld [vmem:[%s6159 + $0x224] sm:$0xff]
  %v6239 = vld [vmem:[%s6159 + $0x22c] sm:$0xf]
  %v6240 = vld [vmem:[%s6159 + $0x230] sm:$0xff]
  %v6241 = vld [vmem:[%s6159 + $0x238] sm:$0xff]
  %v6242 = vld [vmem:[%s6159 + $0x240] sm:$0xff]
  %v6243 = vld [vmem:[%s6159 + $0x248] sm:$0xf]
  %v6244 = vld [vmem:[%s6159 + $0x24c] sm:$0xff]
  %v6245 = vld [vmem:[%s6159 + $0x254] sm:$0xff]
  %v6246 = vld [vmem:[%s6159 + $0x25c] sm:$0xff]
  %v6247 = vld [vmem:[%s6159 + $0x264] sm:$0xf]
  %v6248 = vld [vmem:[%s6159 + $0x268] sm:$0xff]
  %v6249 = vld [vmem:[%s6159 + $0x270] sm:$0xff]
  %v6250 = vld [vmem:[%s6159 + $0x278] sm:$0xff]
  %v6251 = vld [vmem:[%s6159 + $0x280] sm:$0xf]
  %v6252 = vld [vmem:[%s6159 + $0x284] sm:$0xff]
  %v6253 = vld [vmem:[%s6159 + $0x28c] sm:$0xff]
  %v6254 = vld [vmem:[%s6159 + $0x294] sm:$0xff]
  %v6255 = vld [vmem:[%s6159 + $0x29c] sm:$0xf]
  %v6256 = vld [vmem:[%s6159 + $0x2a0] sm:$0xff]
  %v6257 = vld [vmem:[%s6159 + $0x2a8] sm:$0xff]
  %v6258 = vld [vmem:[%s6159 + $0x2b0] sm:$0xff]
  %v6259 = vld [vmem:[%s6159 + $0x2b8] sm:$0xf]
  %v6260 = vld [vmem:[%s6159 + $0x2bc] sm:$0xff]
  %v6261 = vld [vmem:[%s6159 + $0x2c4] sm:$0xff]
  %v6262 = vld [vmem:[%s6159 + $0x2cc] sm:$0xff]
  %v6263 = vld [vmem:[%s6159 + $0x2d4] sm:$0xf]
  %v6264 = vld [vmem:[%s6159 + $0x2d8] sm:$0xff]
  %v6265 = vld [vmem:[%s6159 + $0x2e0] sm:$0xff]
  %v6266 = vld [vmem:[%s6159 + $0x2e8] sm:$0xff]
  %v6267 = vld [vmem:[%s6159 + $0x2f0] sm:$0xf]
  %v6268 = vld [vmem:[%s6159 + $0x2f4] sm:$0xff]
  %v6269 = vld [vmem:[%s6159 + $0x2fc] sm:$0xff]
  %v6270 = vld [vmem:[%s6159 + $0x304] sm:$0xff]
  %v6271 = vld [vmem:[%s6159 + $0x30c] sm:$0xf]
  %v6272 = vld [vmem:[%s6159 + $0x310] sm:$0x11]
  %v6273 = vld [vmem:[%s6159 + $0x318] sm:$0x11]
  %v6274 = vld [vmem:[%s6159 + $0x320] sm:$0x11]
  %v6275 = vld [vmem:[%s6159 + $0x328] sm:$0x1]
  %v6276 = vunpack.c.l.bf16 %v6160
  %v6277 = vunpack.c.h.bf16 %v6160
  %v6278 = vunpack.c.l.bf16 %v6161
  %v6279 = vunpack.c.h.bf16 %v6161
  %v6280 = vunpack.c.l.bf16 %v6162
  %v6281 = vunpack.c.h.bf16 %v6162
  %v6282 = vunpack.c.l.bf16 %v6163
  %v6283 = vunpack.c.l.bf16 %v6164
  %v6284 = vunpack.c.h.bf16 %v6164
  %v6285 = vunpack.c.l.bf16 %v6165
  %v6286 = vunpack.c.h.bf16 %v6165
  %v6287 = vunpack.c.l.bf16 %v6166
  %v6288 = vunpack.c.h.bf16 %v6166
  %v6289 = vunpack.c.l.bf16 %v6167
  %v6290 = vunpack.c.l.bf16 %v6168
  %v6291 = vunpack.c.h.bf16 %v6168
  %v6292 = vunpack.c.l.bf16 %v6169
  %v6293 = vunpack.c.h.bf16 %v6169
  %v6294 = vunpack.c.l.bf16 %v6170
  %v6295 = vunpack.c.h.bf16 %v6170
  %v6296 = vunpack.c.l.bf16 %v6171
  %v6297 = vunpack.c.l.bf16 %v6172
  %v6298 = vunpack.c.h.bf16 %v6172
  %v6299 = vunpack.c.l.bf16 %v6173
  %v6300 = vunpack.c.h.bf16 %v6173
  %v6301 = vunpack.c.l.bf16 %v6174
  %v6302 = vunpack.c.h.bf16 %v6174
  %v6303 = vunpack.c.l.bf16 %v6175
  %v6304 = vunpack.c.l.bf16 %v6176
  %v6305 = vunpack.c.h.bf16 %v6176
  %v6306 = vunpack.c.l.bf16 %v6177
  %v6307 = vunpack.c.h.bf16 %v6177
  %v6308 = vunpack.c.l.bf16 %v6178
  %v6309 = vunpack.c.h.bf16 %v6178
  %v6310 = vunpack.c.l.bf16 %v6179
  %v6311 = vunpack.c.l.bf16 %v6180
  %v6312 = vunpack.c.h.bf16 %v6180
  %v6313 = vunpack.c.l.bf16 %v6181
  %v6314 = vunpack.c.h.bf16 %v6181
  %v6315 = vunpack.c.l.bf16 %v6182
  %v6316 = vunpack.c.h.bf16 %v6182
  %v6317 = vunpack.c.l.bf16 %v6183
  %v6318 = vunpack.c.l.bf16 %v6184
  %v6319 = vunpack.c.h.bf16 %v6184
  %v6320 = vunpack.c.l.bf16 %v6185
  %v6321 = vunpack.c.h.bf16 %v6185
  %v6322 = vunpack.c.l.bf16 %v6186
  %v6323 = vunpack.c.h.bf16 %v6186
  %v6324 = vunpack.c.l.bf16 %v6187
  %v6325 = vunpack.c.l.bf16 %v6188
  %v6326 = vunpack.c.h.bf16 %v6188
  %v6327 = vunpack.c.l.bf16 %v6189
  %v6328 = vunpack.c.h.bf16 %v6189
  %v6329 = vunpack.c.l.bf16 %v6190
  %v6330 = vunpack.c.h.bf16 %v6190
  %v6331 = vunpack.c.l.bf16 %v6191
  %v6332 = vunpack.c.l.bf16 %v6192
  %v6333 = vunpack.c.h.bf16 %v6192
  %v6334 = vunpack.c.l.bf16 %v6193
  %v6335 = vunpack.c.h.bf16 %v6193
  %v6336 = vunpack.c.l.bf16 %v6194
  %v6337 = vunpack.c.h.bf16 %v6194
  %v6338 = vunpack.c.l.bf16 %v6195
  %v6339 = vunpack.c.l.bf16 %v6196
  %v6340 = vunpack.c.h.bf16 %v6196
  %v6341 = vunpack.c.l.bf16 %v6197
  %v6342 = vunpack.c.h.bf16 %v6197
  %v6343 = vunpack.c.l.bf16 %v6198
  %v6344 = vunpack.c.h.bf16 %v6198
  %v6345 = vunpack.c.l.bf16 %v6199
  %v6346 = vunpack.c.l.bf16 %v6200
  %v6347 = vunpack.c.h.bf16 %v6200
  %v6348 = vunpack.c.l.bf16 %v6201
  %v6349 = vunpack.c.h.bf16 %v6201
  %v6350 = vunpack.c.l.bf16 %v6202
  %v6351 = vunpack.c.h.bf16 %v6202
  %v6352 = vunpack.c.l.bf16 %v6203
  %v6353 = vunpack.c.l.bf16 %v6204
  %v6354 = vunpack.c.h.bf16 %v6204
  %v6355 = vunpack.c.l.bf16 %v6205
  %v6356 = vunpack.c.h.bf16 %v6205
  %v6357 = vunpack.c.l.bf16 %v6206
  %v6358 = vunpack.c.h.bf16 %v6206
  %v6359 = vunpack.c.l.bf16 %v6207
  %v6360 = vunpack.c.l.bf16 %v6208
  %v6361 = vunpack.c.h.bf16 %v6208
  %v6362 = vunpack.c.l.bf16 %v6209
  %v6363 = vunpack.c.h.bf16 %v6209
  %v6364 = vunpack.c.l.bf16 %v6210
  %v6365 = vunpack.c.h.bf16 %v6210
  %v6366 = vunpack.c.l.bf16 %v6211
  %v6367 = vunpack.c.l.bf16 %v6212
  %v6368 = vunpack.c.h.bf16 %v6212
  %v6369 = vunpack.c.l.bf16 %v6213
  %v6370 = vunpack.c.h.bf16 %v6213
  %v6371 = vunpack.c.l.bf16 %v6214
  %v6372 = vunpack.c.h.bf16 %v6214
  %v6373 = vunpack.c.l.bf16 %v6215
  %v6374 = vunpack.c.l.bf16 %v6216
  %v6375 = vunpack.c.h.bf16 %v6216
  %v6376 = vunpack.c.l.bf16 %v6217
  %v6377 = vunpack.c.h.bf16 %v6217
  %v6378 = vunpack.c.l.bf16 %v6218
  %v6379 = vunpack.c.h.bf16 %v6218
  %v6380 = vunpack.c.l.bf16 %v6219
  %v6381 = vunpack.c.l.bf16 %v6220
  %v6382 = vunpack.c.h.bf16 %v6220
  %v6383 = vunpack.c.l.bf16 %v6221
  %v6384 = vunpack.c.h.bf16 %v6221
  %v6385 = vunpack.c.l.bf16 %v6222
  %v6386 = vunpack.c.h.bf16 %v6222
  %v6387 = vunpack.c.l.bf16 %v6223
  %v6388 = vunpack.c.l.bf16 %v6224
  %v6389 = vunpack.c.h.bf16 %v6224
  %v6390 = vunpack.c.l.bf16 %v6225
  %v6391 = vunpack.c.h.bf16 %v6225
  %v6392 = vunpack.c.l.bf16 %v6226
  %v6393 = vunpack.c.h.bf16 %v6226
  %v6394 = vunpack.c.l.bf16 %v6227
  %v6395 = vunpack.c.l.bf16 %v6228
  %v6396 = vunpack.c.h.bf16 %v6228
  %v6397 = vunpack.c.l.bf16 %v6229
  %v6398 = vunpack.c.h.bf16 %v6229
  %v6399 = vunpack.c.l.bf16 %v6230
  %v6400 = vunpack.c.h.bf16 %v6230
  %v6401 = vunpack.c.l.bf16 %v6231
  %v6402 = vunpack.c.l.bf16 %v6232
  %v6403 = vunpack.c.h.bf16 %v6232
  %v6404 = vunpack.c.l.bf16 %v6233
  %v6405 = vunpack.c.h.bf16 %v6233
  %v6406 = vunpack.c.l.bf16 %v6234
  %v6407 = vunpack.c.h.bf16 %v6234
  %v6408 = vunpack.c.l.bf16 %v6235
  %v6409 = vunpack.c.l.bf16 %v6236
  %v6410 = vunpack.c.h.bf16 %v6236
  %v6411 = vunpack.c.l.bf16 %v6237
  %v6412 = vunpack.c.h.bf16 %v6237
  %v6413 = vunpack.c.l.bf16 %v6238
  %v6414 = vunpack.c.h.bf16 %v6238
  %v6415 = vunpack.c.l.bf16 %v6239
  %v6416 = vunpack.c.l.bf16 %v6240
  %v6417 = vunpack.c.h.bf16 %v6240
  %v6418 = vunpack.c.l.bf16 %v6241
  %v6419 = vunpack.c.h.bf16 %v6241
  %v6420 = vunpack.c.l.bf16 %v6242
  %v6421 = vunpack.c.h.bf16 %v6242
  %v6422 = vunpack.c.l.bf16 %v6243
  %v6423 = vunpack.c.l.bf16 %v6244
  %v6424 = vunpack.c.h.bf16 %v6244
  %v6425 = vunpack.c.l.bf16 %v6245
  %v6426 = vunpack.c.h.bf16 %v6245
  %v6427 = vunpack.c.l.bf16 %v6246
  %v6428 = vunpack.c.h.bf16 %v6246
  %v6429 = vunpack.c.l.bf16 %v6247
  %v6430 = vunpack.c.l.bf16 %v6248
  %v6431 = vunpack.c.h.bf16 %v6248
  %v6432 = vunpack.c.l.bf16 %v6249
  %v6433 = vunpack.c.h.bf16 %v6249
  %v6434 = vunpack.c.l.bf16 %v6250
  %v6435 = vunpack.c.h.bf16 %v6250
  %v6436 = vunpack.c.l.bf16 %v6251
  %v6437 = vunpack.c.l.bf16 %v6252
  %v6438 = vunpack.c.h.bf16 %v6252
  %v6439 = vunpack.c.l.bf16 %v6253
  %v6440 = vunpack.c.h.bf16 %v6253
  %v6441 = vunpack.c.l.bf16 %v6254
  %v6442 = vunpack.c.h.bf16 %v6254
  %v6443 = vunpack.c.l.bf16 %v6255
  %v6444 = vunpack.c.l.bf16 %v6256
  %v6445 = vunpack.c.h.bf16 %v6256
  %v6446 = vunpack.c.l.bf16 %v6257
  %v6447 = vunpack.c.h.bf16 %v6257
  %v6448 = vunpack.c.l.bf16 %v6258
  %v6449 = vunpack.c.h.bf16 %v6258
  %v6450 = vunpack.c.l.bf16 %v6259
  %v6451 = vunpack.c.l.bf16 %v6260
  %v6452 = vunpack.c.h.bf16 %v6260
  %v6453 = vunpack.c.l.bf16 %v6261
  %v6454 = vunpack.c.h.bf16 %v6261
  %v6455 = vunpack.c.l.bf16 %v6262
  %v6456 = vunpack.c.h.bf16 %v6262
  %v6457 = vunpack.c.l.bf16 %v6263
  %v6458 = vunpack.c.l.bf16 %v6264
  %v6459 = vunpack.c.h.bf16 %v6264
  %v6460 = vunpack.c.l.bf16 %v6265
  %v6461 = vunpack.c.h.bf16 %v6265
  %v6462 = vunpack.c.l.bf16 %v6266
  %v6463 = vunpack.c.h.bf16 %v6266
  %v6464 = vunpack.c.l.bf16 %v6267
  %v6465 = vunpack.c.l.bf16 %v6268
  %v6466 = vunpack.c.h.bf16 %v6268
  %v6467 = vunpack.c.l.bf16 %v6269
  %v6468 = vunpack.c.h.bf16 %v6269
  %v6469 = vunpack.c.l.bf16 %v6270
  %v6470 = vunpack.c.h.bf16 %v6270
  %v6471 = vunpack.c.l.bf16 %v6271
  %v6472 = vunpack.c.l.bf16 %v6272
  %v6473 = vunpack.c.h.bf16 %v6272
  %v6474 = vunpack.c.l.bf16 %v6273
  %v6475 = vunpack.c.h.bf16 %v6273
  %v6476 = vunpack.c.l.bf16 %v6274
  %v6477 = vunpack.c.h.bf16 %v6274
  %v6478 = vunpack.c.l.bf16 %v6275
  %v6480 = vsel %vm3567, %v6109, 0
  %v6483 = vsel %vm3567, %v6115, 0
  %v6486 = vsel %vm3567, %v6121, 0
  %v6489 = vsel %vm3567, %v6127, 0
  %v6492 = vsel %vm3567, %v6133, 0
  %v6495 = vsel %vm3567, %v6139, 0
  %v6498 = vsel %vm3567, %v6145, 0
  %v6501 = vsel %vm3567, %v6151, 0
  %v6504 = vsel %vm3567, %v6157, 0
  %v6507 = vsel %vm1315, %v6472, 0
  %v6510 = vsel %vm1315, %v6473, 0
  %v6513 = vsel %vm1315, %v6474, 0
  %v6516 = vsel %vm1315, %v6475, 0
  %v6519 = vsel %vm1315, %v6476, 0
  %v6522 = vsel %vm1315, %v6477, 0
  %v6525 = vsel %vm1315, %v6478, 0
  %6527 = vmatprep.subr.mxu0 %v6382
  %6528 = vmatpush1.msra.mxu0 %v6381
  %6529 = vmatprep.subr.mxu0 %v6375
  %6530 = vmatpush1.msra.mxu0 %v6374
  %6531 = vmatprep.subr.mxu0 %v6368
  %6532 = vmatpush1.msra.mxu0 %v6367
  %6533 = vmatprep.subr.mxu0 %v6361
  %6534 = vmatpush1.msra.mxu0 %v6360
  %6535 = vmatprep.subr.mxu0 %v6354
  %6536 = vmatpush1.msra.mxu0 %v6353
  %6537 = vmatprep.subr.mxu0 %v6347
  %6538 = vmatpush1.msra.mxu0 %v6346
  %6539 = vmatprep.subr.mxu0 %v6340
  %6540 = vmatpush1.msra.mxu0 %v6339
  %6541 = vmatprep.subr.mxu0 %v6333
  %6542 = vmatpush1.msra.mxu0 %v6332
  %6543 = vmatprep.subr.mxu0 %v6326
  %6544 = vmatpush1.msra.mxu0 %v6325
  %6545 = vmatprep.subr.mxu0 %v6319
  %6546 = vmatpush1.msra.mxu0 %v6318
  %6547 = vmatprep.subr.mxu0 %v6312
  %6548 = vmatpush1.msra.mxu0 %v6311
  %6549 = vmatprep.subr.mxu0 %v6305
  %6550 = vmatpush1.msra.mxu0 %v6304
  %6551 = vmatprep.subr.mxu0 %v6298
  %6552 = vmatpush1.msra.mxu0 %v6297
  %6553 = vmatprep.subr.mxu0 %v6291
  %6554 = vmatpush1.msra.mxu0 %v6290
  %6555 = vmatprep.subr.mxu0 %v6284
  %6556 = vmatpush1.msra.mxu0 %v6283
  %6557 = vmatprep.subr.mxu0 %v6277
  %6558 = vmatpush1.msra.mxu0 %v6276
  %6559 = vmatprep.subr.mxu0 0.0
  %6560 = vmatpush2.msra.mxu0 0.0
  %6561 = vmatprep.subr.mxu0 0.0
  %6562 = vmatpush2.msra.mxu0 0.0
  %6563 = vmatprep.subr.mxu0 0.0
  %6564 = vmatpush2.msra.mxu0 0.0
  %6565 = vmatprep.subr.mxu0 %v6510
  %6566 = vmatpush2.msra.mxu0 %v6507
  %6567 = vmatprep.subr.mxu0 %v6466
  %6568 = vmatpush2.msra.mxu0 %v6465
  %6569 = vmatprep.subr.mxu0 %v6459
  %6570 = vmatpush2.msra.mxu0 %v6458
  %6571 = vmatprep.subr.mxu0 %v6452
  %6572 = vmatpush2.msra.mxu0 %v6451
  %6573 = vmatprep.subr.mxu0 %v6445
  %6574 = vmatpush2.msra.mxu0 %v6444
  %6575 = vmatprep.subr.mxu0 %v6438
  %6576 = vmatpush2.msra.mxu0 %v6437
  %6577 = vmatprep.subr.mxu0 %v6431
  %6578 = vmatpush2.msra.mxu0 %v6430
  %6579 = vmatprep.subr.mxu0 %v6424
  %6580 = vmatpush2.msra.mxu0 %v6423
  %6581 = vmatprep.subr.mxu0 %v6417
  %6582 = vmatpush2.msra.mxu0 %v6416
  %6583 = vmatprep.subr.mxu0 %v6410
  %6584 = vmatpush2.msra.mxu0 %v6409
  %6585 = vmatprep.subr.mxu0 %v6403
  %6586 = vmatpush2.msra.mxu0 %v6402
  %6587 = vmatprep.subr.mxu0 %v6396
  %6588 = vmatpush2.msra.mxu0 %v6395
  %6589 = vmatprep.subr.mxu0 %v6389
  %6590 = vmatpush2.msra.mxu0 %v6388
  %6591 = vmatprep.mubr.f32.mxu0 %v6480
  %6592 = vmatmul.mubr.f32.gmra.mxu0 %v6107
  %v6593 = vpop.f32.mrf.mxu0
  %v6594 = vadd.f32 0.0, %v6593
  %v6595 = vpop.f32.mrf.mxu0
  %v6596 = vadd.f32 0.0, %v6595
  %6597 = vmatprep.mubr.f32.mxu0 %v6483
  %6598 = vmatmul.mubr.f32.gmra.mxu0 %v6113
  %v6599 = vpop.f32.mrf.mxu0
  %v6600 = vadd.f32 0.0, %v6599
  %v6601 = vpop.f32.mrf.mxu0
  %v6602 = vadd.f32 0.0, %v6601
  %6603 = vmatprep.mubr.f32.mxu0 %v6486
  %6604 = vmatmul.mubr.f32.gmra.mxu0 %v6119
  %v6605 = vpop.f32.mrf.mxu0
  %v6606 = vadd.f32 0.0, %v6605
  %v6607 = vpop.f32.mrf.mxu0
  %v6608 = vadd.f32 0.0, %v6607
  %6609 = vmatprep.mubr.f32.mxu0 %v6489
  %6610 = vmatmul.mubr.f32.gmra.mxu0 %v6125
  %v6611 = vpop.f32.mrf.mxu0
  %v6612 = vadd.f32 0.0, %v6611
  %v6613 = vpop.f32.mrf.mxu0
  %v6614 = vadd.f32 0.0, %v6613
  %6615 = vmatprep.mubr.f32.mxu0 %v6492
  %6616 = vmatmul.mubr.f32.gmra.mxu0 %v6131
  %v6617 = vpop.f32.mrf.mxu0
  %v6618 = vadd.f32 0.0, %v6617
  %v6619 = vpop.f32.mrf.mxu0
  %v6620 = vadd.f32 0.0, %v6619
  %6621 = vmatprep.mubr.f32.mxu0 %v6495
  %6622 = vmatmul.mubr.f32.gmra.mxu0 %v6137
  %v6623 = vpop.f32.mrf.mxu0
  %v6624 = vadd.f32 0.0, %v6623
  %v6625 = vpop.f32.mrf.mxu0
  %v6626 = vadd.f32 0.0, %v6625
  %6627 = vmatprep.mubr.f32.mxu0 %v6498
  %6628 = vmatmul.mubr.f32.gmra.mxu0 %v6143
  %v6629 = vpop.f32.mrf.mxu0
  %v6630 = vadd.f32 0.0, %v6629
  %v6631 = vpop.f32.mrf.mxu0
  %v6632 = vadd.f32 0.0, %v6631
  %6633 = vmatprep.mubr.f32.mxu0 %v6501
  %6634 = vmatmul.mubr.f32.gmra.mxu0 %v6149
  %v6635 = vpop.f32.mrf.mxu0
  %v6636 = vadd.f32 0.0, %v6635
  %v6637 = vpop.f32.mrf.mxu0
  %v6638 = vadd.f32 0.0, %v6637
  %6639 = vmatprep.mubr.f32.mxu0 %v6504
  %6640 = vmatmul.mubr.f32.gmra.mxu0 %v6155
  %v6641 = vpop.f32.mrf.mxu0
  %v6642 = vadd.f32 0.0, %v6641
  %v6643 = vpop.f32.mrf.mxu0
  %v6644 = vadd.f32 0.0, %v6643
  %6645 = vdwg.mxu0
  %6646 = vmatprep.subr.mxu0 %v6384
  %6647 = vmatpush1.msra.mxu0 %v6383
  %6648 = vmatprep.subr.mxu0 %v6377
  %6649 = vmatpush1.msra.mxu0 %v6376
  %6650 = vmatprep.subr.mxu0 %v6370
  %6651 = vmatpush1.msra.mxu0 %v6369
  %6652 = vmatprep.subr.mxu0 %v6363
  %6653 = vmatpush1.msra.mxu0 %v6362
  %6654 = vmatprep.subr.mxu0 %v6356
  %6655 = vmatpush1.msra.mxu0 %v6355
  %6656 = vmatprep.subr.mxu0 %v6349
  %6657 = vmatpush1.msra.mxu0 %v6348
  %6658 = vmatprep.subr.mxu0 %v6342
  %6659 = vmatpush1.msra.mxu0 %v6341
  %6660 = vmatprep.subr.mxu0 %v6335
  %6661 = vmatpush1.msra.mxu0 %v6334
  %6662 = vmatprep.subr.mxu0 %v6328
  %6663 = vmatpush1.msra.mxu0 %v6327
  %6664 = vmatprep.subr.mxu0 %v6321
  %6665 = vmatpush1.msra.mxu0 %v6320
  %6666 = vmatprep.subr.mxu0 %v6314
  %6667 = vmatpush1.msra.mxu0 %v6313
  %6668 = vmatprep.subr.mxu0 %v6307
  %6669 = vmatpush1.msra.mxu0 %v6306
  %6670 = vmatprep.subr.mxu0 %v6300
  %6671 = vmatpush1.msra.mxu0 %v6299
  %6672 = vmatprep.subr.mxu0 %v6293
  %6673 = vmatpush1.msra.mxu0 %v6292
  %6674 = vmatprep.subr.mxu0 %v6286
  %6675 = vmatpush1.msra.mxu0 %v6285
  %6676 = vmatprep.subr.mxu0 %v6279
  %6677 = vmatpush1.msra.mxu0 %v6278
  %6678 = vmatprep.subr.mxu0 0.0
  %6679 = vmatpush2.msra.mxu0 0.0
  %6680 = vmatprep.subr.mxu0 0.0
  %6681 = vmatpush2.msra.mxu0 0.0
  %6682 = vmatprep.subr.mxu0 0.0
  %6683 = vmatpush2.msra.mxu0 0.0
  %6684 = vmatprep.subr.mxu0 %v6516
  %6685 = vmatpush2.msra.mxu0 %v6513
  %6686 = vmatprep.subr.mxu0 %v6468
  %6687 = vmatpush2.msra.mxu0 %v6467
  %6688 = vmatprep.subr.mxu0 %v6461
  %6689 = vmatpush2.msra.mxu0 %v6460
  %6690 = vmatprep.subr.mxu0 %v6454
  %6691 = vmatpush2.msra.mxu0 %v6453
  %6692 = vmatprep.subr.mxu0 %v6447
  %6693 = vmatpush2.msra.mxu0 %v6446
  %6694 = vmatprep.subr.mxu0 %v6440
  %6695 = vmatpush2.msra.mxu0 %v6439
  %6696 = vmatprep.subr.mxu0 %v6433
  %6697 = vmatpush2.msra.mxu0 %v6432
  %6698 = vmatprep.subr.mxu0 %v6426
  %6699 = vmatpush2.msra.mxu0 %v6425
  %6700 = vmatprep.subr.mxu0 %v6419
  %6701 = vmatpush2.msra.mxu0 %v6418
  %6702 = vmatprep.subr.mxu0 %v6412
  %6703 = vmatpush2.msra.mxu0 %v6411
  %6704 = vmatprep.subr.mxu0 %v6405
  %6705 = vmatpush2.msra.mxu0 %v6404
  %6706 = vmatprep.subr.mxu0 %v6398
  %6707 = vmatpush2.msra.mxu0 %v6397
  %6708 = vmatprep.subr.mxu0 %v6391
  %6709 = vmatpush2.msra.mxu0 %v6390
  %6710 = vmatprep.mubr.f32.mxu0 %v6480
  %6711 = vmatmul.mubr.f32.gmra.mxu0 %v6107
  %v6712 = vpop.f32.mrf.mxu0
  %v6713 = vadd.f32 0.0, %v6712
  %v6714 = vpop.f32.mrf.mxu0
  %v6715 = vadd.f32 0.0, %v6714
  %6716 = vmatprep.mubr.f32.mxu0 %v6483
  %6717 = vmatmul.mubr.f32.gmra.mxu0 %v6113
  %v6718 = vpop.f32.mrf.mxu0
  %v6719 = vadd.f32 0.0, %v6718
  %v6720 = vpop.f32.mrf.mxu0
  %v6721 = vadd.f32 0.0, %v6720
  %6722 = vmatprep.mubr.f32.mxu0 %v6486
  %6723 = vmatmul.mubr.f32.gmra.mxu0 %v6119
  %v6724 = vpop.f32.mrf.mxu0
  %v6725 = vadd.f32 0.0, %v6724
  %v6726 = vpop.f32.mrf.mxu0
  %v6727 = vadd.f32 0.0, %v6726
  %6728 = vmatprep.mubr.f32.mxu0 %v6489
  %6729 = vmatmul.mubr.f32.gmra.mxu0 %v6125
  %v6730 = vpop.f32.mrf.mxu0
  %v6731 = vadd.f32 0.0, %v6730
  %v6732 = vpop.f32.mrf.mxu0
  %v6733 = vadd.f32 0.0, %v6732
  %6734 = vmatprep.mubr.f32.mxu0 %v6492
  %6735 = vmatmul.mubr.f32.gmra.mxu0 %v6131
  %v6736 = vpop.f32.mrf.mxu0
  %v6737 = vadd.f32 0.0, %v6736
  %v6738 = vpop.f32.mrf.mxu0
  %v6739 = vadd.f32 0.0, %v6738
  %6740 = vmatprep.mubr.f32.mxu0 %v6495
  %6741 = vmatmul.mubr.f32.gmra.mxu0 %v6137
  %v6742 = vpop.f32.mrf.mxu0
  %v6743 = vadd.f32 0.0, %v6742
  %v6744 = vpop.f32.mrf.mxu0
  %v6745 = vadd.f32 0.0, %v6744
  %6746 = vmatprep.mubr.f32.mxu0 %v6498
  %6747 = vmatmul.mubr.f32.gmra.mxu0 %v6143
  %v6748 = vpop.f32.mrf.mxu0
  %v6749 = vadd.f32 0.0, %v6748
  %v6750 = vpop.f32.mrf.mxu0
  %v6751 = vadd.f32 0.0, %v6750
  %6752 = vmatprep.mubr.f32.mxu0 %v6501
  %6753 = vmatmul.mubr.f32.gmra.mxu0 %v6149
  %v6754 = vpop.f32.mrf.mxu0
  %v6755 = vadd.f32 0.0, %v6754
  %v6756 = vpop.f32.mrf.mxu0
  %v6757 = vadd.f32 0.0, %v6756
  %6758 = vmatprep.mubr.f32.mxu0 %v6504
  %6759 = vmatmul.mubr.f32.gmra.mxu0 %v6155
  %v6760 = vpop.f32.mrf.mxu0
  %v6761 = vadd.f32 0.0, %v6760
  %v6762 = vpop.f32.mrf.mxu0
  %v6763 = vadd.f32 0.0, %v6762
  %6764 = vdwg.mxu0
  %6765 = vmatprep.subr.mxu0 %v6386
  %6766 = vmatpush1.msra.mxu0 %v6385
  %6767 = vmatprep.subr.mxu0 %v6379
  %6768 = vmatpush1.msra.mxu0 %v6378
  %6769 = vmatprep.subr.mxu0 %v6372
  %6770 = vmatpush1.msra.mxu0 %v6371
  %6771 = vmatprep.subr.mxu0 %v6365
  %6772 = vmatpush1.msra.mxu0 %v6364
  %6773 = vmatprep.subr.mxu0 %v6358
  %6774 = vmatpush1.msra.mxu0 %v6357
  %6775 = vmatprep.subr.mxu0 %v6351
  %6776 = vmatpush1.msra.mxu0 %v6350
  %6777 = vmatprep.subr.mxu0 %v6344
  %6778 = vmatpush1.msra.mxu0 %v6343
  %6779 = vmatprep.subr.mxu0 %v6337
  %6780 = vmatpush1.msra.mxu0 %v6336
  %6781 = vmatprep.subr.mxu0 %v6330
  %6782 = vmatpush1.msra.mxu0 %v6329
  %6783 = vmatprep.subr.mxu0 %v6323
  %6784 = vmatpush1.msra.mxu0 %v6322
  %6785 = vmatprep.subr.mxu0 %v6316
  %6786 = vmatpush1.msra.mxu0 %v6315
  %6787 = vmatprep.subr.mxu0 %v6309
  %6788 = vmatpush1.msra.mxu0 %v6308
  %6789 = vmatprep.subr.mxu0 %v6302
  %6790 = vmatpush1.msra.mxu0 %v6301
  %6791 = vmatprep.subr.mxu0 %v6295
  %6792 = vmatpush1.msra.mxu0 %v6294
  %6793 = vmatprep.subr.mxu0 %v6288
  %6794 = vmatpush1.msra.mxu0 %v6287
  %6795 = vmatprep.subr.mxu0 %v6281
  %6796 = vmatpush1.msra.mxu0 %v6280
  %6797 = vmatprep.subr.mxu0 0.0
  %6798 = vmatpush2.msra.mxu0 0.0
  %6799 = vmatprep.subr.mxu0 0.0
  %6800 = vmatpush2.msra.mxu0 0.0
  %6801 = vmatprep.subr.mxu0 0.0
  %6802 = vmatpush2.msra.mxu0 0.0
  %6803 = vmatprep.subr.mxu0 %v6522
  %6804 = vmatpush2.msra.mxu0 %v6519
  %6805 = vmatprep.subr.mxu0 %v6470
  %6806 = vmatpush2.msra.mxu0 %v6469
  %6807 = vmatprep.subr.mxu0 %v6463
  %6808 = vmatpush2.msra.mxu0 %v6462
  %6809 = vmatprep.subr.mxu0 %v6456
  %6810 = vmatpush2.msra.mxu0 %v6455
  %6811 = vmatprep.subr.mxu0 %v6449
  %6812 = vmatpush2.msra.mxu0 %v6448
  %6813 = vmatprep.subr.mxu0 %v6442
  %6814 = vmatpush2.msra.mxu0 %v6441
  %6815 = vmatprep.subr.mxu0 %v6435
  %6816 = vmatpush2.msra.mxu0 %v6434
  %6817 = vmatprep.subr.mxu0 %v6428
  %6818 = vmatpush2.msra.mxu0 %v6427
  %6819 = vmatprep.subr.mxu0 %v6421
  %6820 = vmatpush2.msra.mxu0 %v6420
  %6821 = vmatprep.subr.mxu0 %v6414
  %6822 = vmatpush2.msra.mxu0 %v6413
  %6823 = vmatprep.subr.mxu0 %v6407
  %6824 = vmatpush2.msra.mxu0 %v6406
  %6825 = vmatprep.subr.mxu0 %v6400
  %6826 = vmatpush2.msra.mxu0 %v6399
  %6827 = vmatprep.subr.mxu0 %v6393
  %6828 = vmatpush2.msra.mxu0 %v6392
  %6829 = vmatprep.mubr.f32.mxu0 %v6480
  %6830 = vmatmul.mubr.f32.gmra.mxu0 %v6107
  %v6831 = vpop.f32.mrf.mxu0
  %v6832 = vadd.f32 0.0, %v6831
  %v6833 = vpop.f32.mrf.mxu0
  %v6834 = vadd.f32 0.0, %v6833
  %6835 = vmatprep.mubr.f32.mxu0 %v6483
  %6836 = vmatmul.mubr.f32.gmra.mxu0 %v6113
  %v6837 = vpop.f32.mrf.mxu0
  %v6838 = vadd.f32 0.0, %v6837
  %v6839 = vpop.f32.mrf.mxu0
  %v6840 = vadd.f32 0.0, %v6839
  %6841 = vmatprep.mubr.f32.mxu0 %v6486
  %6842 = vmatmul.mubr.f32.gmra.mxu0 %v6119
  %v6843 = vpop.f32.mrf.mxu0
  %v6844 = vadd.f32 0.0, %v6843
  %v6845 = vpop.f32.mrf.mxu0
  %v6846 = vadd.f32 0.0, %v6845
  %6847 = vmatprep.mubr.f32.mxu0 %v6489
  %6848 = vmatmul.mubr.f32.gmra.mxu0 %v6125
  %v6849 = vpop.f32.mrf.mxu0
  %v6850 = vadd.f32 0.0, %v6849
  %v6851 = vpop.f32.mrf.mxu0
  %v6852 = vadd.f32 0.0, %v6851
  %6853 = vmatprep.mubr.f32.mxu0 %v6492
  %6854 = vmatmul.mubr.f32.gmra.mxu0 %v6131
  %v6855 = vpop.f32.mrf.mxu0
  %v6856 = vadd.f32 0.0, %v6855
  %v6857 = vpop.f32.mrf.mxu0
  %v6858 = vadd.f32 0.0, %v6857
  %6859 = vmatprep.mubr.f32.mxu0 %v6495
  %6860 = vmatmul.mubr.f32.gmra.mxu0 %v6137
  %v6861 = vpop.f32.mrf.mxu0
  %v6862 = vadd.f32 0.0, %v6861
  %v6863 = vpop.f32.mrf.mxu0
  %v6864 = vadd.f32 0.0, %v6863
  %6865 = vmatprep.mubr.f32.mxu0 %v6498
  %6866 = vmatmul.mubr.f32.gmra.mxu0 %v6143
  %v6867 = vpop.f32.mrf.mxu0
  %v6868 = vadd.f32 0.0, %v6867
  %v6869 = vpop.f32.mrf.mxu0
  %v6870 = vadd.f32 0.0, %v6869
  %6871 = vmatprep.mubr.f32.mxu0 %v6501
  %6872 = vmatmul.mubr.f32.gmra.mxu0 %v6149
  %v6873 = vpop.f32.mrf.mxu0
  %v6874 = vadd.f32 0.0, %v6873
  %v6875 = vpop.f32.mrf.mxu0
  %v6876 = vadd.f32 0.0, %v6875
  %6877 = vmatprep.mubr.f32.mxu0 %v6504
  %6878 = vmatmul.mubr.f32.gmra.mxu0 %v6155
  %v6879 = vpop.f32.mrf.mxu0
  %v6880 = vadd.f32 0.0, %v6879
  %v6881 = vpop.f32.mrf.mxu0
  %v6882 = vadd.f32 0.0, %v6881
  %6883 = vdwg.mxu0
  %6884 = vmatprep.subr.mxu0 0.0
  %6885 = vmatpush1.msra.mxu0 %v6387
  %6886 = vmatprep.subr.mxu0 0.0
  %6887 = vmatpush1.msra.mxu0 %v6380
  %6888 = vmatprep.subr.mxu0 0.0
  %6889 = vmatpush1.msra.mxu0 %v6373
  %6890 = vmatprep.subr.mxu0 0.0
  %6891 = vmatpush1.msra.mxu0 %v6366
  %6892 = vmatprep.subr.mxu0 0.0
  %6893 = vmatpush1.msra.mxu0 %v6359
  %6894 = vmatprep.subr.mxu0 0.0
  %6895 = vmatpush1.msra.mxu0 %v6352
  %6896 = vmatprep.subr.mxu0 0.0
  %6897 = vmatpush1.msra.mxu0 %v6345
  %6898 = vmatprep.subr.mxu0 0.0
  %6899 = vmatpush1.msra.mxu0 %v6338
  %6900 = vmatprep.subr.mxu0 0.0
  %6901 = vmatpush1.msra.mxu0 %v6331
  %6902 = vmatprep.subr.mxu0 0.0
  %6903 = vmatpush1.msra.mxu0 %v6324
  %6904 = vmatprep.subr.mxu0 0.0
  %6905 = vmatpush1.msra.mxu0 %v6317
  %6906 = vmatprep.subr.mxu0 0.0
  %6907 = vmatpush1.msra.mxu0 %v6310
  %6908 = vmatprep.subr.mxu0 0.0
  %6909 = vmatpush1.msra.mxu0 %v6303
  %6910 = vmatprep.subr.mxu0 0.0
  %6911 = vmatpush1.msra.mxu0 %v6296
  %6912 = vmatprep.subr.mxu0 0.0
  %6913 = vmatpush1.msra.mxu0 %v6289
  %6914 = vmatprep.subr.mxu0 0.0
  %6915 = vmatpush1.msra.mxu0 %v6282
  %6916 = vmatprep.subr.mxu0 0.0
  %6917 = vmatpush2.msra.mxu0 0.0
  %6918 = vmatprep.subr.mxu0 0.0
  %6919 = vmatpush2.msra.mxu0 0.0
  %6920 = vmatprep.subr.mxu0 0.0
  %6921 = vmatpush2.msra.mxu0 0.0
  %6922 = vmatprep.subr.mxu0 0.0
  %6923 = vmatpush2.msra.mxu0 %v6525
  %6924 = vmatprep.subr.mxu0 0.0
  %6925 = vmatpush2.msra.mxu0 %v6471
  %6926 = vmatprep.subr.mxu0 0.0
  %6927 = vmatpush2.msra.mxu0 %v6464
  %6928 = vmatprep.subr.mxu0 0.0
  %6929 = vmatpush2.msra.mxu0 %v6457
  %6930 = vmatprep.subr.mxu0 0.0
  %6931 = vmatpush2.msra.mxu0 %v6450
  %6932 = vmatprep.subr.mxu0 0.0
  %6933 = vmatpush2.msra.mxu0 %v6443
  %6934 = vmatprep.subr.mxu0 0.0
  %6935 = vmatpush2.msra.mxu0 %v6436
  %6936 = vmatprep.subr.mxu0 0.0
  %6937 = vmatpush2.msra.mxu0 %v6429
  %6938 = vmatprep.subr.mxu0 0.0
  %6939 = vmatpush2.msra.mxu0 %v6422
  %6940 = vmatprep.subr.mxu0 0.0
  %6941 = vmatpush2.msra.mxu0 %v6415
  %6942 = vmatprep.subr.mxu0 0.0
  %6943 = vmatpush2.msra.mxu0 %v6408
  %6944 = vmatprep.subr.mxu0 0.0
  %6945 = vmatpush2.msra.mxu0 %v6401
  %6946 = vmatprep.subr.mxu0 0.0
  %6947 = vmatpush2.msra.mxu0 %v6394
  %6948 = vmatprep.mubr.f32.mxu0 %v6480
  %6949 = vmatmul.mubr.f32.gmra.mxu0 %v6107
  %v6950 = vpop.f32.mrf.mxu0
  %v6951 = vadd.f32 0.0, %v6950
  %v6952 = vpop.f32.mrf.mxu0
  %6953 = vmatprep.mubr.f32.mxu0 %v6483
  %6954 = vmatmul.mubr.f32.gmra.mxu0 %v6113
  %v6955 = vpop.f32.mrf.mxu0
  %v6956 = vadd.f32 0.0, %v6955
  %v6957 = vpop.f32.mrf.mxu0
  %6958 = vmatprep.mubr.f32.mxu0 %v6486
  %6959 = vmatmul.mubr.f32.gmra.mxu0 %v6119
  %v6960 = vpop.f32.mrf.mxu0
  %v6961 = vadd.f32 0.0, %v6960
  %v6962 = vpop.f32.mrf.mxu0
  %6963 = vmatprep.mubr.f32.mxu0 %v6489
  %6964 = vmatmul.mubr.f32.gmra.mxu0 %v6125
  %v6965 = vpop.f32.mrf.mxu0
  %v6966 = vadd.f32 0.0, %v6965
  %v6967 = vpop.f32.mrf.mxu0
  %6968 = vmatprep.mubr.f32.mxu0 %v6492
  %6969 = vmatmul.mubr.f32.gmra.mxu0 %v6131
  %v6970 = vpop.f32.mrf.mxu0
  %v6971 = vadd.f32 0.0, %v6970
  %v6972 = vpop.f32.mrf.mxu0
  %6973 = vmatprep.mubr.f32.mxu0 %v6495
  %6974 = vmatmul.mubr.f32.gmra.mxu0 %v6137
  %v6975 = vpop.f32.mrf.mxu0
  %v6976 = vadd.f32 0.0, %v6975
  %v6977 = vpop.f32.mrf.mxu0
  %6978 = vmatprep.mubr.f32.mxu0 %v6498
  %6979 = vmatmul.mubr.f32.gmra.mxu0 %v6143
  %v6980 = vpop.f32.mrf.mxu0
  %v6981 = vadd.f32 0.0, %v6980
  %v6982 = vpop.f32.mrf.mxu0
  %6983 = vmatprep.mubr.f32.mxu0 %v6501
  %6984 = vmatmul.mubr.f32.gmra.mxu0 %v6149
  %v6985 = vpop.f32.mrf.mxu0
  %v6986 = vadd.f32 0.0, %v6985
  %v6987 = vpop.f32.mrf.mxu0
  %6988 = vmatprep.mubr.f32.mxu0 %v6504
  %6989 = vmatmul.mubr.f32.gmra.mxu0 %v6155
  %v6990 = vpop.f32.mrf.mxu0
  %v6991 = vadd.f32 0.0, %v6990
  %v6992 = vpop.f32.mrf.mxu0
  %6993 = vdwg.mxu0
  %v6994 = vadd.f32 %v5603, %v6594
  %v6995 = vadd.f32 %v5605, %v6596
  %v6996 = vadd.f32 %v5722, %v6713
  %v6997 = vadd.f32 %v5724, %v6715
  %v6998 = vadd.f32 %v5841, %v6832
  %v6999 = vadd.f32 %v5843, %v6834
  %v7000 = vadd.f32 %v5960, %v6951
  %v7001 = vadd.f32 %v5609, %v6600
  %v7002 = vadd.f32 %v5611, %v6602
  %v7003 = vadd.f32 %v5728, %v6719
  %v7004 = vadd.f32 %v5730, %v6721
  %v7005 = vadd.f32 %v5847, %v6838
  %v7006 = vadd.f32 %v5849, %v6840
  %v7007 = vadd.f32 %v5965, %v6956
  %v7008 = vadd.f32 %v5615, %v6606
  %v7009 = vadd.f32 %v5617, %v6608
  %v7010 = vadd.f32 %v5734, %v6725
  %v7011 = vadd.f32 %v5736, %v6727
  %v7012 = vadd.f32 %v5853, %v6844
  %v7013 = vadd.f32 %v5855, %v6846
  %v7014 = vadd.f32 %v5970, %v6961
  %v7015 = vadd.f32 %v5621, %v6612
  %v7016 = vadd.f32 %v5623, %v6614
  %v7017 = vadd.f32 %v5740, %v6731
  %v7018 = vadd.f32 %v5742, %v6733
  %v7019 = vadd.f32 %v5859, %v6850
  %v7020 = vadd.f32 %v5861, %v6852
  %v7021 = vadd.f32 %v5975, %v6966
  %v7022 = vadd.f32 %v5627, %v6618
  %v7023 = vadd.f32 %v5629, %v6620
  %v7024 = vadd.f32 %v5746, %v6737
  %v7025 = vadd.f32 %v5748, %v6739
  %v7026 = vadd.f32 %v5865, %v6856
  %v7027 = vadd.f32 %v5867, %v6858
  %v7028 = vadd.f32 %v5980, %v6971
  %v7029 = vadd.f32 %v5633, %v6624
  %v7030 = vadd.f32 %v5635, %v6626
  %v7031 = vadd.f32 %v5752, %v6743
  %v7032 = vadd.f32 %v5754, %v6745
  %v7033 = vadd.f32 %v5871, %v6862
  %v7034 = vadd.f32 %v5873, %v6864
  %v7035 = vadd.f32 %v5985, %v6976
  %v7036 = vadd.f32 %v5639, %v6630
  %v7037 = vadd.f32 %v5641, %v6632
  %v7038 = vadd.f32 %v5758, %v6749
  %v7039 = vadd.f32 %v5760, %v6751
  %v7040 = vadd.f32 %v5877, %v6868
  %v7041 = vadd.f32 %v5879, %v6870
  %v7042 = vadd.f32 %v5990, %v6981
  %v7043 = vadd.f32 %v5645, %v6636
  %v7044 = vadd.f32 %v5647, %v6638
  %v7045 = vadd.f32 %v5764, %v6755
  %v7046 = vadd.f32 %v5766, %v6757
  %v7047 = vadd.f32 %v5883, %v6874
  %v7048 = vadd.f32 %v5885, %v6876
  %v7049 = vadd.f32 %v5995, %v6986
  %v7050 = vadd.f32 %v5651, %v6642
  %v7051 = vadd.f32 %v5653, %v6644
  %v7052 = vadd.f32 %v5770, %v6761
  %v7053 = vadd.f32 %v5772, %v6763
  %v7054 = vadd.f32 %v5889, %v6880
  %v7055 = vadd.f32 %v5891, %v6882
  %v7056 = vadd.f32 %v6000, %v6991
  %s7057 = scalar_lea.vmem %s14, 216
  %v7058 = vld [vmem:[%s7057] sm:$0xff]
  %v7059 = vld [vmem:[%s7057 + $0x8] sm:$0xff]
  %v7060 = vld [vmem:[%s7057 + $0x10] sm:$0xff]
  %v7061 = vld [vmem:[%s7057 + $0x18] sm:$0xff]
  %v7062 = vld [vmem:[%s7057 + $0x20] sm:$0xff]
  %v7063 = vld [vmem:[%s7057 + $0x28] sm:$0xff]
  %v7064 = vld [vmem:[%s7057 + $0x30] sm:$0xff]
  %v7065 = vld [vmem:[%s7057 + $0x38] sm:$0xff]
  %v7066 = vld [vmem:[%s7057 + $0x40] sm:$0xff]
  %v7068 = vsel %vm3592, %v7058, 0
  %v7071 = vsel %vm3592, %v7059, 0
  %v7074 = vsel %vm3592, %v7060, 0
  %v7077 = vsel %vm3592, %v7061, 0
  %v7080 = vsel %vm3592, %v7062, 0
  %v7083 = vsel %vm3592, %v7063, 0
  %v7086 = vsel %vm3592, %v7064, 0
  %v7089 = vsel %vm3592, %v7065, 0
  %v7092 = vsel %vm3592, %v7066, 0
  %7094 = vmatprep.subr.mxu0 0.0
  %7095 = vmatpush1.msra.mxu0 0.0
  %7096 = vmatprep.subr.mxu0 0.0
  %7097 = vmatpush1.msra.mxu0 0.0
  %7098 = vmatprep.subr.mxu0 0.0
  %7099 = vmatpush1.msra.mxu0 0.0
  %7100 = vmatprep.subr.mxu0 0.0
  %7101 = vmatpush1.msra.mxu0 0.0
  %7102 = vmatprep.subr.mxu0 0.0
  %7103 = vmatpush1.msra.mxu0 0.0
  %7104 = vmatprep.subr.mxu0 0.0
  %7105 = vmatpush1.msra.mxu0 0.0
  %7106 = vmatprep.subr.mxu0 0.0
  %7107 = vmatpush1.msra.mxu0 0.0
  %7108 = vmatprep.subr.mxu0 0.0
  %7109 = vmatpush1.msra.mxu0 0.0
  %7110 = vmatprep.subr.mxu0 0.0
  %7111 = vmatpush1.msra.mxu0 0.0
  %7112 = vmatprep.subr.mxu0 0.0
  %7113 = vmatpush1.msra.mxu0 0.0
  %7114 = vmatprep.subr.mxu0 %v4022
  %7115 = vmatpush1.msra.mxu0 %v4021
  %7116 = vmatprep.subr.mxu0 %v4020
  %7117 = vmatpush1.msra.mxu0 %v4019
  %7118 = vmatprep.subr.mxu0 %v4018
  %7119 = vmatpush1.msra.mxu0 %v4017
  %7120 = vmatprep.subr.mxu0 %v4016
  %7121 = vmatpush1.msra.mxu0 %v4015
  %7122 = vmatprep.subr.mxu0 %v4014
  %7123 = vmatpush1.msra.mxu0 %v4013
  %7124 = vmatprep.subr.mxu0 %v4012
  %7125 = vmatpush1.msra.mxu0 %v4011
  %7126 = vmatprep.subr.mxu0 0.0
  %7127 = vmatpush2.msra.mxu0 0.0
  %7128 = vmatprep.subr.mxu0 0.0
  %7129 = vmatpush2.msra.mxu0 0.0
  %7130 = vmatprep.subr.mxu0 0.0
  %7131 = vmatpush2.msra.mxu0 0.0
  %7132 = vmatprep.subr.mxu0 0.0
  %7133 = vmatpush2.msra.mxu0 0.0
  %7134 = vmatprep.subr.mxu0 0.0
  %7135 = vmatpush2.msra.mxu0 0.0
  %7136 = vmatprep.subr.mxu0 0.0
  %7137 = vmatpush2.msra.mxu0 0.0
  %7138 = vmatprep.subr.mxu0 0.0
  %7139 = vmatpush2.msra.mxu0 0.0
  %7140 = vmatprep.subr.mxu0 0.0
  %7141 = vmatpush2.msra.mxu0 0.0
  %7142 = vmatprep.subr.mxu0 0.0
  %7143 = vmatpush2.msra.mxu0 0.0
  %7144 = vmatprep.subr.mxu0 0.0
  %7145 = vmatpush2.msra.mxu0 0.0
  %7146 = vmatprep.subr.mxu0 0.0
  %7147 = vmatpush2.msra.mxu0 0.0
  %7148 = vmatprep.subr.mxu0 0.0
  %7149 = vmatpush2.msra.mxu0 0.0
  %7150 = vmatprep.subr.mxu0 0.0
  %7151 = vmatpush2.msra.mxu0 0.0
  %7152 = vmatprep.subr.mxu0 0.0
  %7153 = vmatpush2.msra.mxu0 0.0
  %7154 = vmatprep.subr.mxu0 0.0
  %7155 = vmatpush2.msra.mxu0 0.0
  %7156 = vmatprep.subr.mxu0 0.0
  %7157 = vmatpush2.msra.mxu0 0.0
  %7158 = vmatprep.mubr.f32.mxu0 0.0
  %7159 = vmatmul.mubr.f32.gmra.mxu0 %v7068
  %v7160 = vpop.f32.mrf.mxu0
  %v7161 = vadd.f32 0.0, %v7160
  %v7162 = vpop.f32.mrf.mxu0
  %v7163 = vadd.f32 0.0, %v7162
  %7164 = vmatprep.mubr.f32.mxu0 0.0
  %7165 = vmatmul.mubr.f32.gmra.mxu0 %v7071
  %v7166 = vpop.f32.mrf.mxu0
  %v7167 = vadd.f32 0.0, %v7166
  %v7168 = vpop.f32.mrf.mxu0
  %v7169 = vadd.f32 0.0, %v7168
  %7170 = vmatprep.mubr.f32.mxu0 0.0
  %7171 = vmatmul.mubr.f32.gmra.mxu0 %v7074
  %v7172 = vpop.f32.mrf.mxu0
  %v7173 = vadd.f32 0.0, %v7172
  %v7174 = vpop.f32.mrf.mxu0
  %v7175 = vadd.f32 0.0, %v7174
  %7176 = vmatprep.mubr.f32.mxu0 0.0
  %7177 = vmatmul.mubr.f32.gmra.mxu0 %v7077
  %v7178 = vpop.f32.mrf.mxu0
  %v7179 = vadd.f32 0.0, %v7178
  %v7180 = vpop.f32.mrf.mxu0
  %v7181 = vadd.f32 0.0, %v7180
  %7182 = vmatprep.mubr.f32.mxu0 0.0
  %7183 = vmatmul.mubr.f32.gmra.mxu0 %v7080
  %v7184 = vpop.f32.mrf.mxu0
  %v7185 = vadd.f32 0.0, %v7184
  %v7186 = vpop.f32.mrf.mxu0
  %v7187 = vadd.f32 0.0, %v7186
  %7188 = vmatprep.mubr.f32.mxu0 0.0
  %7189 = vmatmul.mubr.f32.gmra.mxu0 %v7083
  %v7190 = vpop.f32.mrf.mxu0
  %v7191 = vadd.f32 0.0, %v7190
  %v7192 = vpop.f32.mrf.mxu0
  %v7193 = vadd.f32 0.0, %v7192
  %7194 = vmatprep.mubr.f32.mxu0 0.0
  %7195 = vmatmul.mubr.f32.gmra.mxu0 %v7086
  %v7196 = vpop.f32.mrf.mxu0
  %v7197 = vadd.f32 0.0, %v7196
  %v7198 = vpop.f32.mrf.mxu0
  %v7199 = vadd.f32 0.0, %v7198
  %7200 = vmatprep.mubr.f32.mxu0 0.0
  %7201 = vmatmul.mubr.f32.gmra.mxu0 %v7089
  %v7202 = vpop.f32.mrf.mxu0
  %v7203 = vadd.f32 0.0, %v7202
  %v7204 = vpop.f32.mrf.mxu0
  %v7205 = vadd.f32 0.0, %v7204
  %7206 = vmatprep.mubr.f32.mxu0 0.0
  %7207 = vmatmul.mubr.f32.gmra.mxu0 %v7092
  %v7208 = vpop.f32.mrf.mxu0
  %v7209 = vadd.f32 0.0, %v7208
  %v7210 = vpop.f32.mrf.mxu0
  %v7211 = vadd.f32 0.0, %v7210
  %7212 = vdwg.mxu0
  %s7213 = scalar_lea.vmem %s15, 2436
  %v7214 = vld [vmem:[%s7213] sm:$0xff]
  %v7215 = vld [vmem:[%s7213 + $0x8] sm:$0xff]
  %v7216 = vld [vmem:[%s7213 + $0x10] sm:$0xff]
  %v7217 = vld [vmem:[%s7213 + $0x18] sm:$0xf]
  %v7218 = vld [vmem:[%s7213 + $0x1c] sm:$0xff]
  %v7219 = vld [vmem:[%s7213 + $0x24] sm:$0xff]
  %v7220 = vld [vmem:[%s7213 + $0x2c] sm:$0xff]
  %v7221 = vld [vmem:[%s7213 + $0x34] sm:$0xf]
  %v7222 = vld [vmem:[%s7213 + $0x38] sm:$0xff]
  %v7223 = vld [vmem:[%s7213 + $0x40] sm:$0xff]
  %v7224 = vld [vmem:[%s7213 + $0x48] sm:$0xff]
  %v7225 = vld [vmem:[%s7213 + $0x50] sm:$0xf]
  %v7226 = vld [vmem:[%s7213 + $0x54] sm:$0xff]
  %v7227 = vld [vmem:[%s7213 + $0x5c] sm:$0xff]
  %v7228 = vld [vmem:[%s7213 + $0x64] sm:$0xff]
  %v7229 = vld [vmem:[%s7213 + $0x6c] sm:$0xf]
  %v7230 = vld [vmem:[%s7213 + $0x70] sm:$0xff]
  %v7231 = vld [vmem:[%s7213 + $0x78] sm:$0xff]
  %v7232 = vld [vmem:[%s7213 + $0x80] sm:$0xff]
  %v7233 = vld [vmem:[%s7213 + $0x88] sm:$0xf]
  %v7234 = vld [vmem:[%s7213 + $0x8c] sm:$0xff]
  %v7235 = vld [vmem:[%s7213 + $0x94] sm:$0xff]
  %v7236 = vld [vmem:[%s7213 + $0x9c] sm:$0xff]
  %v7237 = vld [vmem:[%s7213 + $0xa4] sm:$0xf]
  %v7238 = vld [vmem:[%s7213 + $0xa8] sm:$0xff]
  %v7239 = vld [vmem:[%s7213 + $0xb0] sm:$0xff]
  %v7240 = vld [vmem:[%s7213 + $0xb8] sm:$0xff]
  %v7241 = vld [vmem:[%s7213 + $0xc0] sm:$0xf]
  %v7242 = vld [vmem:[%s7213 + $0xc4] sm:$0xff]
  %v7243 = vld [vmem:[%s7213 + $0xcc] sm:$0xff]
  %v7244 = vld [vmem:[%s7213 + $0xd4] sm:$0xff]
  %v7245 = vld [vmem:[%s7213 + $0xdc] sm:$0xf]
  %v7246 = vld [vmem:[%s7213 + $0xe0] sm:$0xff]
  %v7247 = vld [vmem:[%s7213 + $0xe8] sm:$0xff]
  %v7248 = vld [vmem:[%s7213 + $0xf0] sm:$0xff]
  %v7249 = vld [vmem:[%s7213 + $0xf8] sm:$0xf]
  %v7250 = vld [vmem:[%s7213 + $0xfc] sm:$0xff]
  %v7251 = vld [vmem:[%s7213 + $0x104] sm:$0xff]
  %v7252 = vld [vmem:[%s7213 + $0x10c] sm:$0xff]
  %v7253 = vld [vmem:[%s7213 + $0x114] sm:$0xf]
  %v7254 = vld [vmem:[%s7213 + $0x118] sm:$0xff]
  %v7255 = vld [vmem:[%s7213 + $0x120] sm:$0xff]
  %v7256 = vld [vmem:[%s7213 + $0x128] sm:$0xff]
  %v7257 = vld [vmem:[%s7213 + $0x130] sm:$0xf]
  %v7258 = vld [vmem:[%s7213 + $0x134] sm:$0xff]
  %v7259 = vld [vmem:[%s7213 + $0x13c] sm:$0xff]
  %v7260 = vld [vmem:[%s7213 + $0x144] sm:$0xff]
  %v7261 = vld [vmem:[%s7213 + $0x14c] sm:$0xf]
  %v7262 = vld [vmem:[%s7213 + $0x150] sm:$0xff]
  %v7263 = vld [vmem:[%s7213 + $0x158] sm:$0xff]
  %v7264 = vld [vmem:[%s7213 + $0x160] sm:$0xff]
  %v7265 = vld [vmem:[%s7213 + $0x168] sm:$0xf]
  %v7266 = vld [vmem:[%s7213 + $0x16c] sm:$0xff]
  %v7267 = vld [vmem:[%s7213 + $0x174] sm:$0xff]
  %v7268 = vld [vmem:[%s7213 + $0x17c] sm:$0xff]
  %v7269 = vld [vmem:[%s7213 + $0x184] sm:$0xf]
  %v7270 = vld [vmem:[%s7213 + $0x188] sm:$0xff]
  %v7271 = vld [vmem:[%s7213 + $0x190] sm:$0xff]
  %v7272 = vld [vmem:[%s7213 + $0x198] sm:$0xff]
  %v7273 = vld [vmem:[%s7213 + $0x1a0] sm:$0xf]
  %v7274 = vld [vmem:[%s7213 + $0x1a4] sm:$0xff]
  %v7275 = vld [vmem:[%s7213 + $0x1ac] sm:$0xff]
  %v7276 = vld [vmem:[%s7213 + $0x1b4] sm:$0xff]
  %v7277 = vld [vmem:[%s7213 + $0x1bc] sm:$0xf]
  %v7278 = vld [vmem:[%s7213 + $0x1c0] sm:$0xff]
  %v7279 = vld [vmem:[%s7213 + $0x1c8] sm:$0xff]
  %v7280 = vld [vmem:[%s7213 + $0x1d0] sm:$0xff]
  %v7281 = vld [vmem:[%s7213 + $0x1d8] sm:$0xf]
  %v7282 = vld [vmem:[%s7213 + $0x1dc] sm:$0xff]
  %v7283 = vld [vmem:[%s7213 + $0x1e4] sm:$0xff]
  %v7284 = vld [vmem:[%s7213 + $0x1ec] sm:$0xff]
  %v7285 = vld [vmem:[%s7213 + $0x1f4] sm:$0xf]
  %v7286 = vld [vmem:[%s7213 + $0x1f8] sm:$0xff]
  %v7287 = vld [vmem:[%s7213 + $0x200] sm:$0xff]
  %v7288 = vld [vmem:[%s7213 + $0x208] sm:$0xff]
  %v7289 = vld [vmem:[%s7213 + $0x210] sm:$0xf]
  %v7290 = vld [vmem:[%s7213 + $0x214] sm:$0xff]
  %v7291 = vld [vmem:[%s7213 + $0x21c] sm:$0xff]
  %v7292 = vld [vmem:[%s7213 + $0x224] sm:$0xff]
  %v7293 = vld [vmem:[%s7213 + $0x22c] sm:$0xf]
  %v7294 = vld [vmem:[%s7213 + $0x230] sm:$0xff]
  %v7295 = vld [vmem:[%s7213 + $0x238] sm:$0xff]
  %v7296 = vld [vmem:[%s7213 + $0x240] sm:$0xff]
  %v7297 = vld [vmem:[%s7213 + $0x248] sm:$0xf]
  %v7298 = vld [vmem:[%s7213 + $0x24c] sm:$0xff]
  %v7299 = vld [vmem:[%s7213 + $0x254] sm:$0xff]
  %v7300 = vld [vmem:[%s7213 + $0x25c] sm:$0xff]
  %v7301 = vld [vmem:[%s7213 + $0x264] sm:$0xf]
  %v7302 = vld [vmem:[%s7213 + $0x268] sm:$0xff]
  %v7303 = vld [vmem:[%s7213 + $0x270] sm:$0xff]
  %v7304 = vld [vmem:[%s7213 + $0x278] sm:$0xff]
  %v7305 = vld [vmem:[%s7213 + $0x280] sm:$0xf]
  %v7306 = vld [vmem:[%s7213 + $0x284] sm:$0xff]
  %v7307 = vld [vmem:[%s7213 + $0x28c] sm:$0xff]
  %v7308 = vld [vmem:[%s7213 + $0x294] sm:$0xff]
  %v7309 = vld [vmem:[%s7213 + $0x29c] sm:$0xf]
  %v7310 = vld [vmem:[%s7213 + $0x2a0] sm:$0xff]
  %v7311 = vld [vmem:[%s7213 + $0x2a8] sm:$0xff]
  %v7312 = vld [vmem:[%s7213 + $0x2b0] sm:$0xff]
  %v7313 = vld [vmem:[%s7213 + $0x2b8] sm:$0xf]
  %v7314 = vld [vmem:[%s7213 + $0x2bc] sm:$0xff]
  %v7315 = vld [vmem:[%s7213 + $0x2c4] sm:$0xff]
  %v7316 = vld [vmem:[%s7213 + $0x2cc] sm:$0xff]
  %v7317 = vld [vmem:[%s7213 + $0x2d4] sm:$0xf]
  %v7318 = vld [vmem:[%s7213 + $0x2d8] sm:$0xff]
  %v7319 = vld [vmem:[%s7213 + $0x2e0] sm:$0xff]
  %v7320 = vld [vmem:[%s7213 + $0x2e8] sm:$0xff]
  %v7321 = vld [vmem:[%s7213 + $0x2f0] sm:$0xf]
  %v7322 = vld [vmem:[%s7213 + $0x2f4] sm:$0xff]
  %v7323 = vld [vmem:[%s7213 + $0x2fc] sm:$0xff]
  %v7324 = vld [vmem:[%s7213 + $0x304] sm:$0xff]
  %v7325 = vld [vmem:[%s7213 + $0x30c] sm:$0xf]
  %v7326 = vld [vmem:[%s7213 + $0x310] sm:$0x11]
  %v7327 = vld [vmem:[%s7213 + $0x318] sm:$0x11]
  %v7328 = vld [vmem:[%s7213 + $0x320] sm:$0x11]
  %v7329 = vld [vmem:[%s7213 + $0x328] sm:$0x1]
  %v7330 = vunpack.c.l.bf16 %v7214
  %v7331 = vunpack.c.h.bf16 %v7214
  %v7332 = vunpack.c.l.bf16 %v7215
  %v7333 = vunpack.c.h.bf16 %v7215
  %v7334 = vunpack.c.l.bf16 %v7216
  %v7335 = vunpack.c.h.bf16 %v7216
  %v7336 = vunpack.c.l.bf16 %v7217
  %v7337 = vunpack.c.l.bf16 %v7218
  %v7338 = vunpack.c.h.bf16 %v7218
  %v7339 = vunpack.c.l.bf16 %v7219
  %v7340 = vunpack.c.h.bf16 %v7219
  %v7341 = vunpack.c.l.bf16 %v7220
  %v7342 = vunpack.c.h.bf16 %v7220
  %v7343 = vunpack.c.l.bf16 %v7221
  %v7344 = vunpack.c.l.bf16 %v7222
  %v7345 = vunpack.c.h.bf16 %v7222
  %v7346 = vunpack.c.l.bf16 %v7223
  %v7347 = vunpack.c.h.bf16 %v7223
  %v7348 = vunpack.c.l.bf16 %v7224
  %v7349 = vunpack.c.h.bf16 %v7224
  %v7350 = vunpack.c.l.bf16 %v7225
  %v7351 = vunpack.c.l.bf16 %v7226
  %v7352 = vunpack.c.h.bf16 %v7226
  %v7353 = vunpack.c.l.bf16 %v7227
  %v7354 = vunpack.c.h.bf16 %v7227
  %v7355 = vunpack.c.l.bf16 %v7228
  %v7356 = vunpack.c.h.bf16 %v7228
  %v7357 = vunpack.c.l.bf16 %v7229
  %v7358 = vunpack.c.l.bf16 %v7230
  %v7359 = vunpack.c.h.bf16 %v7230
  %v7360 = vunpack.c.l.bf16 %v7231
  %v7361 = vunpack.c.h.bf16 %v7231
  %v7362 = vunpack.c.l.bf16 %v7232
  %v7363 = vunpack.c.h.bf16 %v7232
  %v7364 = vunpack.c.l.bf16 %v7233
  %v7365 = vunpack.c.l.bf16 %v7234
  %v7366 = vunpack.c.h.bf16 %v7234
  %v7367 = vunpack.c.l.bf16 %v7235
  %v7368 = vunpack.c.h.bf16 %v7235
  %v7369 = vunpack.c.l.bf16 %v7236
  %v7370 = vunpack.c.h.bf16 %v7236
  %v7371 = vunpack.c.l.bf16 %v7237
  %v7372 = vunpack.c.l.bf16 %v7238
  %v7373 = vunpack.c.h.bf16 %v7238
  %v7374 = vunpack.c.l.bf16 %v7239
  %v7375 = vunpack.c.h.bf16 %v7239
  %v7376 = vunpack.c.l.bf16 %v7240
  %v7377 = vunpack.c.h.bf16 %v7240
  %v7378 = vunpack.c.l.bf16 %v7241
  %v7379 = vunpack.c.l.bf16 %v7242
  %v7380 = vunpack.c.h.bf16 %v7242
  %v7381 = vunpack.c.l.bf16 %v7243
  %v7382 = vunpack.c.h.bf16 %v7243
  %v7383 = vunpack.c.l.bf16 %v7244
  %v7384 = vunpack.c.h.bf16 %v7244
  %v7385 = vunpack.c.l.bf16 %v7245
  %v7386 = vunpack.c.l.bf16 %v7246
  %v7387 = vunpack.c.h.bf16 %v7246
  %v7388 = vunpack.c.l.bf16 %v7247
  %v7389 = vunpack.c.h.bf16 %v7247
  %v7390 = vunpack.c.l.bf16 %v7248
  %v7391 = vunpack.c.h.bf16 %v7248
  %v7392 = vunpack.c.l.bf16 %v7249
  %v7393 = vunpack.c.l.bf16 %v7250
  %v7394 = vunpack.c.h.bf16 %v7250
  %v7395 = vunpack.c.l.bf16 %v7251
  %v7396 = vunpack.c.h.bf16 %v7251
  %v7397 = vunpack.c.l.bf16 %v7252
  %v7398 = vunpack.c.h.bf16 %v7252
  %v7399 = vunpack.c.l.bf16 %v7253
  %v7400 = vunpack.c.l.bf16 %v7254
  %v7401 = vunpack.c.h.bf16 %v7254
  %v7402 = vunpack.c.l.bf16 %v7255
  %v7403 = vunpack.c.h.bf16 %v7255
  %v7404 = vunpack.c.l.bf16 %v7256
  %v7405 = vunpack.c.h.bf16 %v7256
  %v7406 = vunpack.c.l.bf16 %v7257
  %v7407 = vunpack.c.l.bf16 %v7258
  %v7408 = vunpack.c.h.bf16 %v7258
  %v7409 = vunpack.c.l.bf16 %v7259
  %v7410 = vunpack.c.h.bf16 %v7259
  %v7411 = vunpack.c.l.bf16 %v7260
  %v7412 = vunpack.c.h.bf16 %v7260
  %v7413 = vunpack.c.l.bf16 %v7261
  %v7414 = vunpack.c.l.bf16 %v7262
  %v7415 = vunpack.c.h.bf16 %v7262
  %v7416 = vunpack.c.l.bf16 %v7263
  %v7417 = vunpack.c.h.bf16 %v7263
  %v7418 = vunpack.c.l.bf16 %v7264
  %v7419 = vunpack.c.h.bf16 %v7264
  %v7420 = vunpack.c.l.bf16 %v7265
  %v7421 = vunpack.c.l.bf16 %v7266
  %v7422 = vunpack.c.h.bf16 %v7266
  %v7423 = vunpack.c.l.bf16 %v7267
  %v7424 = vunpack.c.h.bf16 %v7267
  %v7425 = vunpack.c.l.bf16 %v7268
  %v7426 = vunpack.c.h.bf16 %v7268
  %v7427 = vunpack.c.l.bf16 %v7269
  %v7428 = vunpack.c.l.bf16 %v7270
  %v7429 = vunpack.c.h.bf16 %v7270
  %v7430 = vunpack.c.l.bf16 %v7271
  %v7431 = vunpack.c.h.bf16 %v7271
  %v7432 = vunpack.c.l.bf16 %v7272
  %v7433 = vunpack.c.h.bf16 %v7272
  %v7434 = vunpack.c.l.bf16 %v7273
  %v7435 = vunpack.c.l.bf16 %v7274
  %v7436 = vunpack.c.h.bf16 %v7274
  %v7437 = vunpack.c.l.bf16 %v7275
  %v7438 = vunpack.c.h.bf16 %v7275
  %v7439 = vunpack.c.l.bf16 %v7276
  %v7440 = vunpack.c.h.bf16 %v7276
  %v7441 = vunpack.c.l.bf16 %v7277
  %v7442 = vunpack.c.l.bf16 %v7278
  %v7443 = vunpack.c.h.bf16 %v7278
  %v7444 = vunpack.c.l.bf16 %v7279
  %v7445 = vunpack.c.h.bf16 %v7279
  %v7446 = vunpack.c.l.bf16 %v7280
  %v7447 = vunpack.c.h.bf16 %v7280
  %v7448 = vunpack.c.l.bf16 %v7281
  %v7449 = vunpack.c.l.bf16 %v7282
  %v7450 = vunpack.c.h.bf16 %v7282
  %v7451 = vunpack.c.l.bf16 %v7283
  %v7452 = vunpack.c.h.bf16 %v7283
  %v7453 = vunpack.c.l.bf16 %v7284
  %v7454 = vunpack.c.h.bf16 %v7284
  %v7455 = vunpack.c.l.bf16 %v7285
  %v7456 = vunpack.c.l.bf16 %v7286
  %v7457 = vunpack.c.h.bf16 %v7286
  %v7458 = vunpack.c.l.bf16 %v7287
  %v7459 = vunpack.c.h.bf16 %v7287
  %v7460 = vunpack.c.l.bf16 %v7288
  %v7461 = vunpack.c.h.bf16 %v7288
  %v7462 = vunpack.c.l.bf16 %v7289
  %v7463 = vunpack.c.l.bf16 %v7290
  %v7464 = vunpack.c.h.bf16 %v7290
  %v7465 = vunpack.c.l.bf16 %v7291
  %v7466 = vunpack.c.h.bf16 %v7291
  %v7467 = vunpack.c.l.bf16 %v7292
  %v7468 = vunpack.c.h.bf16 %v7292
  %v7469 = vunpack.c.l.bf16 %v7293
  %v7470 = vunpack.c.l.bf16 %v7294
  %v7471 = vunpack.c.h.bf16 %v7294
  %v7472 = vunpack.c.l.bf16 %v7295
  %v7473 = vunpack.c.h.bf16 %v7295
  %v7474 = vunpack.c.l.bf16 %v7296
  %v7475 = vunpack.c.h.bf16 %v7296
  %v7476 = vunpack.c.l.bf16 %v7297
  %v7477 = vunpack.c.l.bf16 %v7298
  %v7478 = vunpack.c.h.bf16 %v7298
  %v7479 = vunpack.c.l.bf16 %v7299
  %v7480 = vunpack.c.h.bf16 %v7299
  %v7481 = vunpack.c.l.bf16 %v7300
  %v7482 = vunpack.c.h.bf16 %v7300
  %v7483 = vunpack.c.l.bf16 %v7301
  %v7484 = vunpack.c.l.bf16 %v7302
  %v7485 = vunpack.c.h.bf16 %v7302
  %v7486 = vunpack.c.l.bf16 %v7303
  %v7487 = vunpack.c.h.bf16 %v7303
  %v7488 = vunpack.c.l.bf16 %v7304
  %v7489 = vunpack.c.h.bf16 %v7304
  %v7490 = vunpack.c.l.bf16 %v7305
  %v7491 = vunpack.c.l.bf16 %v7306
  %v7492 = vunpack.c.h.bf16 %v7306
  %v7493 = vunpack.c.l.bf16 %v7307
  %v7494 = vunpack.c.h.bf16 %v7307
  %v7495 = vunpack.c.l.bf16 %v7308
  %v7496 = vunpack.c.h.bf16 %v7308
  %v7497 = vunpack.c.l.bf16 %v7309
  %v7498 = vunpack.c.l.bf16 %v7310
  %v7499 = vunpack.c.h.bf16 %v7310
  %v7500 = vunpack.c.l.bf16 %v7311
  %v7501 = vunpack.c.h.bf16 %v7311
  %v7502 = vunpack.c.l.bf16 %v7312
  %v7503 = vunpack.c.h.bf16 %v7312
  %v7504 = vunpack.c.l.bf16 %v7313
  %v7505 = vunpack.c.l.bf16 %v7314
  %v7506 = vunpack.c.h.bf16 %v7314
  %v7507 = vunpack.c.l.bf16 %v7315
  %v7508 = vunpack.c.h.bf16 %v7315
  %v7509 = vunpack.c.l.bf16 %v7316
  %v7510 = vunpack.c.h.bf16 %v7316
  %v7511 = vunpack.c.l.bf16 %v7317
  %v7512 = vunpack.c.l.bf16 %v7318
  %v7513 = vunpack.c.h.bf16 %v7318
  %v7514 = vunpack.c.l.bf16 %v7319
  %v7515 = vunpack.c.h.bf16 %v7319
  %v7516 = vunpack.c.l.bf16 %v7320
  %v7517 = vunpack.c.h.bf16 %v7320
  %v7518 = vunpack.c.l.bf16 %v7321
  %v7519 = vunpack.c.l.bf16 %v7322
  %v7520 = vunpack.c.h.bf16 %v7322
  %v7521 = vunpack.c.l.bf16 %v7323
  %v7522 = vunpack.c.h.bf16 %v7323
  %v7523 = vunpack.c.l.bf16 %v7324
  %v7524 = vunpack.c.h.bf16 %v7324
  %v7525 = vunpack.c.l.bf16 %v7325
  %v7526 = vunpack.c.l.bf16 %v7326
  %v7527 = vunpack.c.h.bf16 %v7326
  %v7528 = vunpack.c.l.bf16 %v7327
  %v7529 = vunpack.c.h.bf16 %v7327
  %v7530 = vunpack.c.l.bf16 %v7328
  %v7531 = vunpack.c.h.bf16 %v7328
  %v7532 = vunpack.c.l.bf16 %v7329
  %v7534 = vsel %vm3567, %v7163, 0
  %v7537 = vsel %vm3567, %v7169, 0
  %v7540 = vsel %vm3567, %v7175, 0
  %v7543 = vsel %vm3567, %v7181, 0
  %v7546 = vsel %vm3567, %v7187, 0
  %v7549 = vsel %vm3567, %v7193, 0
  %v7552 = vsel %vm3567, %v7199, 0
  %v7555 = vsel %vm3567, %v7205, 0
  %v7558 = vsel %vm3567, %v7211, 0
  %v7561 = vsel %vm1315, %v7526, 0
  %v7564 = vsel %vm1315, %v7527, 0
  %v7567 = vsel %vm1315, %v7528, 0
  %v7570 = vsel %vm1315, %v7529, 0
  %v7573 = vsel %vm1315, %v7530, 0
  %v7576 = vsel %vm1315, %v7531, 0
  %v7579 = vsel %vm1315, %v7532, 0
  %7581 = vmatprep.subr.mxu0 %v7436
  %7582 = vmatpush1.msra.mxu0 %v7435
  %7583 = vmatprep.subr.mxu0 %v7429
  %7584 = vmatpush1.msra.mxu0 %v7428
  %7585 = vmatprep.subr.mxu0 %v7422
  %7586 = vmatpush1.msra.mxu0 %v7421
  %7587 = vmatprep.subr.mxu0 %v7415
  %7588 = vmatpush1.msra.mxu0 %v7414
  %7589 = vmatprep.subr.mxu0 %v7408
  %7590 = vmatpush1.msra.mxu0 %v7407
  %7591 = vmatprep.subr.mxu0 %v7401
  %7592 = vmatpush1.msra.mxu0 %v7400
  %7593 = vmatprep.subr.mxu0 %v7394
  %7594 = vmatpush1.msra.mxu0 %v7393
  %7595 = vmatprep.subr.mxu0 %v7387
  %7596 = vmatpush1.msra.mxu0 %v7386
  %7597 = vmatprep.subr.mxu0 %v7380
  %7598 = vmatpush1.msra.mxu0 %v7379
  %7599 = vmatprep.subr.mxu0 %v7373
  %7600 = vmatpush1.msra.mxu0 %v7372
  %7601 = vmatprep.subr.mxu0 %v7366
  %7602 = vmatpush1.msra.mxu0 %v7365
  %7603 = vmatprep.subr.mxu0 %v7359
  %7604 = vmatpush1.msra.mxu0 %v7358
  %7605 = vmatprep.subr.mxu0 %v7352
  %7606 = vmatpush1.msra.mxu0 %v7351
  %7607 = vmatprep.subr.mxu0 %v7345
  %7608 = vmatpush1.msra.mxu0 %v7344
  %7609 = vmatprep.subr.mxu0 %v7338
  %7610 = vmatpush1.msra.mxu0 %v7337
  %7611 = vmatprep.subr.mxu0 %v7331
  %7612 = vmatpush1.msra.mxu0 %v7330
  %7613 = vmatprep.subr.mxu0 0.0
  %7614 = vmatpush2.msra.mxu0 0.0
  %7615 = vmatprep.subr.mxu0 0.0
  %7616 = vmatpush2.msra.mxu0 0.0
  %7617 = vmatprep.subr.mxu0 0.0
  %7618 = vmatpush2.msra.mxu0 0.0
  %7619 = vmatprep.subr.mxu0 %v7564
  %7620 = vmatpush2.msra.mxu0 %v7561
  %7621 = vmatprep.subr.mxu0 %v7520
  %7622 = vmatpush2.msra.mxu0 %v7519
  %7623 = vmatprep.subr.mxu0 %v7513
  %7624 = vmatpush2.msra.mxu0 %v7512
  %7625 = vmatprep.subr.mxu0 %v7506
  %7626 = vmatpush2.msra.mxu0 %v7505
  %7627 = vmatprep.subr.mxu0 %v7499
  %7628 = vmatpush2.msra.mxu0 %v7498
  %7629 = vmatprep.subr.mxu0 %v7492
  %7630 = vmatpush2.msra.mxu0 %v7491
  %7631 = vmatprep.subr.mxu0 %v7485
  %7632 = vmatpush2.msra.mxu0 %v7484
  %7633 = vmatprep.subr.mxu0 %v7478
  %7634 = vmatpush2.msra.mxu0 %v7477
  %7635 = vmatprep.subr.mxu0 %v7471
  %7636 = vmatpush2.msra.mxu0 %v7470
  %7637 = vmatprep.subr.mxu0 %v7464
  %7638 = vmatpush2.msra.mxu0 %v7463
  %7639 = vmatprep.subr.mxu0 %v7457
  %7640 = vmatpush2.msra.mxu0 %v7456
  %7641 = vmatprep.subr.mxu0 %v7450
  %7642 = vmatpush2.msra.mxu0 %v7449
  %7643 = vmatprep.subr.mxu0 %v7443
  %7644 = vmatpush2.msra.mxu0 %v7442
  %7645 = vmatprep.mubr.f32.mxu0 %v7534
  %7646 = vmatmul.mubr.f32.gmra.mxu0 %v7161
  %v7647 = vpop.f32.mrf.mxu0
  %v7648 = vadd.f32 0.0, %v7647
  %v7649 = vpop.f32.mrf.mxu0
  %v7650 = vadd.f32 0.0, %v7649
  %7651 = vmatprep.mubr.f32.mxu0 %v7537
  %7652 = vmatmul.mubr.f32.gmra.mxu0 %v7167
  %v7653 = vpop.f32.mrf.mxu0
  %v7654 = vadd.f32 0.0, %v7653
  %v7655 = vpop.f32.mrf.mxu0
  %v7656 = vadd.f32 0.0, %v7655
  %7657 = vmatprep.mubr.f32.mxu0 %v7540
  %7658 = vmatmul.mubr.f32.gmra.mxu0 %v7173
  %v7659 = vpop.f32.mrf.mxu0
  %v7660 = vadd.f32 0.0, %v7659
  %v7661 = vpop.f32.mrf.mxu0
  %v7662 = vadd.f32 0.0, %v7661
  %7663 = vmatprep.mubr.f32.mxu0 %v7543
  %7664 = vmatmul.mubr.f32.gmra.mxu0 %v7179
  %v7665 = vpop.f32.mrf.mxu0
  %v7666 = vadd.f32 0.0, %v7665
  %v7667 = vpop.f32.mrf.mxu0
  %v7668 = vadd.f32 0.0, %v7667
  %7669 = vmatprep.mubr.f32.mxu0 %v7546
  %7670 = vmatmul.mubr.f32.gmra.mxu0 %v7185
  %v7671 = vpop.f32.mrf.mxu0
  %v7672 = vadd.f32 0.0, %v7671
  %v7673 = vpop.f32.mrf.mxu0
  %v7674 = vadd.f32 0.0, %v7673
  %7675 = vmatprep.mubr.f32.mxu0 %v7549
  %7676 = vmatmul.mubr.f32.gmra.mxu0 %v7191
  %v7677 = vpop.f32.mrf.mxu0
  %v7678 = vadd.f32 0.0, %v7677
  %v7679 = vpop.f32.mrf.mxu0
  %v7680 = vadd.f32 0.0, %v7679
  %7681 = vmatprep.mubr.f32.mxu0 %v7552
  %7682 = vmatmul.mubr.f32.gmra.mxu0 %v7197
  %v7683 = vpop.f32.mrf.mxu0
  %v7684 = vadd.f32 0.0, %v7683
  %v7685 = vpop.f32.mrf.mxu0
  %v7686 = vadd.f32 0.0, %v7685
  %7687 = vmatprep.mubr.f32.mxu0 %v7555
  %7688 = vmatmul.mubr.f32.gmra.mxu0 %v7203
  %v7689 = vpop.f32.mrf.mxu0
  %v7690 = vadd.f32 0.0, %v7689
  %v7691 = vpop.f32.mrf.mxu0
  %v7692 = vadd.f32 0.0, %v7691
  %7693 = vmatprep.mubr.f32.mxu0 %v7558
  %7694 = vmatmul.mubr.f32.gmra.mxu0 %v7209
  %v7695 = vpop.f32.mrf.mxu0
  %v7696 = vadd.f32 0.0, %v7695
  %v7697 = vpop.f32.mrf.mxu0
  %v7698 = vadd.f32 0.0, %v7697
  %7699 = vdwg.mxu0
  %7700 = vmatprep.subr.mxu0 %v7438
  %7701 = vmatpush1.msra.mxu0 %v7437
  %7702 = vmatprep.subr.mxu0 %v7431
  %7703 = vmatpush1.msra.mxu0 %v7430
  %7704 = vmatprep.subr.mxu0 %v7424
  %7705 = vmatpush1.msra.mxu0 %v7423
  %7706 = vmatprep.subr.mxu0 %v7417
  %7707 = vmatpush1.msra.mxu0 %v7416
  %7708 = vmatprep.subr.mxu0 %v7410
  %7709 = vmatpush1.msra.mxu0 %v7409
  %7710 = vmatprep.subr.mxu0 %v7403
  %7711 = vmatpush1.msra.mxu0 %v7402
  %7712 = vmatprep.subr.mxu0 %v7396
  %7713 = vmatpush1.msra.mxu0 %v7395
  %7714 = vmatprep.subr.mxu0 %v7389
  %7715 = vmatpush1.msra.mxu0 %v7388
  %7716 = vmatprep.subr.mxu0 %v7382
  %7717 = vmatpush1.msra.mxu0 %v7381
  %7718 = vmatprep.subr.mxu0 %v7375
  %7719 = vmatpush1.msra.mxu0 %v7374
  %7720 = vmatprep.subr.mxu0 %v7368
  %7721 = vmatpush1.msra.mxu0 %v7367
  %7722 = vmatprep.subr.mxu0 %v7361
  %7723 = vmatpush1.msra.mxu0 %v7360
  %7724 = vmatprep.subr.mxu0 %v7354
  %7725 = vmatpush1.msra.mxu0 %v7353
  %7726 = vmatprep.subr.mxu0 %v7347
  %7727 = vmatpush1.msra.mxu0 %v7346
  %7728 = vmatprep.subr.mxu0 %v7340
  %7729 = vmatpush1.msra.mxu0 %v7339
  %7730 = vmatprep.subr.mxu0 %v7333
  %7731 = vmatpush1.msra.mxu0 %v7332
  %7732 = vmatprep.subr.mxu0 0.0
  %7733 = vmatpush2.msra.mxu0 0.0
  %7734 = vmatprep.subr.mxu0 0.0
  %7735 = vmatpush2.msra.mxu0 0.0
  %7736 = vmatprep.subr.mxu0 0.0
  %7737 = vmatpush2.msra.mxu0 0.0
  %7738 = vmatprep.subr.mxu0 %v7570
  %7739 = vmatpush2.msra.mxu0 %v7567
  %7740 = vmatprep.subr.mxu0 %v7522
  %7741 = vmatpush2.msra.mxu0 %v7521
  %7742 = vmatprep.subr.mxu0 %v7515
  %7743 = vmatpush2.msra.mxu0 %v7514
  %7744 = vmatprep.subr.mxu0 %v7508
  %7745 = vmatpush2.msra.mxu0 %v7507
  %7746 = vmatprep.subr.mxu0 %v7501
  %7747 = vmatpush2.msra.mxu0 %v7500
  %7748 = vmatprep.subr.mxu0 %v7494
  %7749 = vmatpush2.msra.mxu0 %v7493
  %7750 = vmatprep.subr.mxu0 %v7487
  %7751 = vmatpush2.msra.mxu0 %v7486
  %7752 = vmatprep.subr.mxu0 %v7480
  %7753 = vmatpush2.msra.mxu0 %v7479
  %7754 = vmatprep.subr.mxu0 %v7473
  %7755 = vmatpush2.msra.mxu0 %v7472
  %7756 = vmatprep.subr.mxu0 %v7466
  %7757 = vmatpush2.msra.mxu0 %v7465
  %7758 = vmatprep.subr.mxu0 %v7459
  %7759 = vmatpush2.msra.mxu0 %v7458
  %7760 = vmatprep.subr.mxu0 %v7452
  %7761 = vmatpush2.msra.mxu0 %v7451
  %7762 = vmatprep.subr.mxu0 %v7445
  %7763 = vmatpush2.msra.mxu0 %v7444
  %7764 = vmatprep.mubr.f32.mxu0 %v7534
  %7765 = vmatmul.mubr.f32.gmra.mxu0 %v7161
  %v7766 = vpop.f32.mrf.mxu0
  %v7767 = vadd.f32 0.0, %v7766
  %v7768 = vpop.f32.mrf.mxu0
  %v7769 = vadd.f32 0.0, %v7768
  %7770 = vmatprep.mubr.f32.mxu0 %v7537
  %7771 = vmatmul.mubr.f32.gmra.mxu0 %v7167
  %v7772 = vpop.f32.mrf.mxu0
  %v7773 = vadd.f32 0.0, %v7772
  %v7774 = vpop.f32.mrf.mxu0
  %v7775 = vadd.f32 0.0, %v7774
  %7776 = vmatprep.mubr.f32.mxu0 %v7540
  %7777 = vmatmul.mubr.f32.gmra.mxu0 %v7173
  %v7778 = vpop.f32.mrf.mxu0
  %v7779 = vadd.f32 0.0, %v7778
  %v7780 = vpop.f32.mrf.mxu0
  %v7781 = vadd.f32 0.0, %v7780
  %7782 = vmatprep.mubr.f32.mxu0 %v7543
  %7783 = vmatmul.mubr.f32.gmra.mxu0 %v7179
  %v7784 = vpop.f32.mrf.mxu0
  %v7785 = vadd.f32 0.0, %v7784
  %v7786 = vpop.f32.mrf.mxu0
  %v7787 = vadd.f32 0.0, %v7786
  %7788 = vmatprep.mubr.f32.mxu0 %v7546
  %7789 = vmatmul.mubr.f32.gmra.mxu0 %v7185
  %v7790 = vpop.f32.mrf.mxu0
  %v7791 = vadd.f32 0.0, %v7790
  %v7792 = vpop.f32.mrf.mxu0
  %v7793 = vadd.f32 0.0, %v7792
  %7794 = vmatprep.mubr.f32.mxu0 %v7549
  %7795 = vmatmul.mubr.f32.gmra.mxu0 %v7191
  %v7796 = vpop.f32.mrf.mxu0
  %v7797 = vadd.f32 0.0, %v7796
  %v7798 = vpop.f32.mrf.mxu0
  %v7799 = vadd.f32 0.0, %v7798
  %7800 = vmatprep.mubr.f32.mxu0 %v7552
  %7801 = vmatmul.mubr.f32.gmra.mxu0 %v7197
  %v7802 = vpop.f32.mrf.mxu0
  %v7803 = vadd.f32 0.0, %v7802
  %v7804 = vpop.f32.mrf.mxu0
  %v7805 = vadd.f32 0.0, %v7804
  %7806 = vmatprep.mubr.f32.mxu0 %v7555
  %7807 = vmatmul.mubr.f32.gmra.mxu0 %v7203
  %v7808 = vpop.f32.mrf.mxu0
  %v7809 = vadd.f32 0.0, %v7808
  %v7810 = vpop.f32.mrf.mxu0
  %v7811 = vadd.f32 0.0, %v7810
  %7812 = vmatprep.mubr.f32.mxu0 %v7558
  %7813 = vmatmul.mubr.f32.gmra.mxu0 %v7209
  %v7814 = vpop.f32.mrf.mxu0
  %v7815 = vadd.f32 0.0, %v7814
  %v7816 = vpop.f32.mrf.mxu0
  %v7817 = vadd.f32 0.0, %v7816
  %7818 = vdwg.mxu0
  %7819 = vmatprep.subr.mxu0 %v7440
  %7820 = vmatpush1.msra.mxu0 %v7439
  %7821 = vmatprep.subr.mxu0 %v7433
  %7822 = vmatpush1.msra.mxu0 %v7432
  %7823 = vmatprep.subr.mxu0 %v7426
  %7824 = vmatpush1.msra.mxu0 %v7425
  %7825 = vmatprep.subr.mxu0 %v7419
  %7826 = vmatpush1.msra.mxu0 %v7418
  %7827 = vmatprep.subr.mxu0 %v7412
  %7828 = vmatpush1.msra.mxu0 %v7411
  %7829 = vmatprep.subr.mxu0 %v7405
  %7830 = vmatpush1.msra.mxu0 %v7404
  %7831 = vmatprep.subr.mxu0 %v7398
  %7832 = vmatpush1.msra.mxu0 %v7397
  %7833 = vmatprep.subr.mxu0 %v7391
  %7834 = vmatpush1.msra.mxu0 %v7390
  %7835 = vmatprep.subr.mxu0 %v7384
  %7836 = vmatpush1.msra.mxu0 %v7383
  %7837 = vmatprep.subr.mxu0 %v7377
  %7838 = vmatpush1.msra.mxu0 %v7376
  %7839 = vmatprep.subr.mxu0 %v7370
  %7840 = vmatpush1.msra.mxu0 %v7369
  %7841 = vmatprep.subr.mxu0 %v7363
  %7842 = vmatpush1.msra.mxu0 %v7362
  %7843 = vmatprep.subr.mxu0 %v7356
  %7844 = vmatpush1.msra.mxu0 %v7355
  %7845 = vmatprep.subr.mxu0 %v7349
  %7846 = vmatpush1.msra.mxu0 %v7348
  %7847 = vmatprep.subr.mxu0 %v7342
  %7848 = vmatpush1.msra.mxu0 %v7341
  %7849 = vmatprep.subr.mxu0 %v7335
  %7850 = vmatpush1.msra.mxu0 %v7334
  %7851 = vmatprep.subr.mxu0 0.0
  %7852 = vmatpush2.msra.mxu0 0.0
  %7853 = vmatprep.subr.mxu0 0.0
  %7854 = vmatpush2.msra.mxu0 0.0
  %7855 = vmatprep.subr.mxu0 0.0
  %7856 = vmatpush2.msra.mxu0 0.0
  %7857 = vmatprep.subr.mxu0 %v7576
  %7858 = vmatpush2.msra.mxu0 %v7573
  %7859 = vmatprep.subr.mxu0 %v7524
  %7860 = vmatpush2.msra.mxu0 %v7523
  %7861 = vmatprep.subr.mxu0 %v7517
  %7862 = vmatpush2.msra.mxu0 %v7516
  %7863 = vmatprep.subr.mxu0 %v7510
  %7864 = vmatpush2.msra.mxu0 %v7509
  %7865 = vmatprep.subr.mxu0 %v7503
  %7866 = vmatpush2.msra.mxu0 %v7502
  %7867 = vmatprep.subr.mxu0 %v7496
  %7868 = vmatpush2.msra.mxu0 %v7495
  %7869 = vmatprep.subr.mxu0 %v7489
  %7870 = vmatpush2.msra.mxu0 %v7488
  %7871 = vmatprep.subr.mxu0 %v7482
  %7872 = vmatpush2.msra.mxu0 %v7481
  %7873 = vmatprep.subr.mxu0 %v7475
  %7874 = vmatpush2.msra.mxu0 %v7474
  %7875 = vmatprep.subr.mxu0 %v7468
  %7876 = vmatpush2.msra.mxu0 %v7467
  %7877 = vmatprep.subr.mxu0 %v7461
  %7878 = vmatpush2.msra.mxu0 %v7460
  %7879 = vmatprep.subr.mxu0 %v7454
  %7880 = vmatpush2.msra.mxu0 %v7453
  %7881 = vmatprep.subr.mxu0 %v7447
  %7882 = vmatpush2.msra.mxu0 %v7446
  %7883 = vmatprep.mubr.f32.mxu0 %v7534
  %7884 = vmatmul.mubr.f32.gmra.mxu0 %v7161
  %v7885 = vpop.f32.mrf.mxu0
  %v7886 = vadd.f32 0.0, %v7885
  %v7887 = vpop.f32.mrf.mxu0
  %v7888 = vadd.f32 0.0, %v7887
  %7889 = vmatprep.mubr.f32.mxu0 %v7537
  %7890 = vmatmul.mubr.f32.gmra.mxu0 %v7167
  %v7891 = vpop.f32.mrf.mxu0
  %v7892 = vadd.f32 0.0, %v7891
  %v7893 = vpop.f32.mrf.mxu0
  %v7894 = vadd.f32 0.0, %v7893
  %7895 = vmatprep.mubr.f32.mxu0 %v7540
  %7896 = vmatmul.mubr.f32.gmra.mxu0 %v7173
  %v7897 = vpop.f32.mrf.mxu0
  %v7898 = vadd.f32 0.0, %v7897
  %v7899 = vpop.f32.mrf.mxu0
  %v7900 = vadd.f32 0.0, %v7899
  %7901 = vmatprep.mubr.f32.mxu0 %v7543
  %7902 = vmatmul.mubr.f32.gmra.mxu0 %v7179
  %v7903 = vpop.f32.mrf.mxu0
  %v7904 = vadd.f32 0.0, %v7903
  %v7905 = vpop.f32.mrf.mxu0
  %v7906 = vadd.f32 0.0, %v7905
  %7907 = vmatprep.mubr.f32.mxu0 %v7546
  %7908 = vmatmul.mubr.f32.gmra.mxu0 %v7185
  %v7909 = vpop.f32.mrf.mxu0
  %v7910 = vadd.f32 0.0, %v7909
  %v7911 = vpop.f32.mrf.mxu0
  %v7912 = vadd.f32 0.0, %v7911
  %7913 = vmatprep.mubr.f32.mxu0 %v7549
  %7914 = vmatmul.mubr.f32.gmra.mxu0 %v7191
  %v7915 = vpop.f32.mrf.mxu0
  %v7916 = vadd.f32 0.0, %v7915
  %v7917 = vpop.f32.mrf.mxu0
  %v7918 = vadd.f32 0.0, %v7917
  %7919 = vmatprep.mubr.f32.mxu0 %v7552
  %7920 = vmatmul.mubr.f32.gmra.mxu0 %v7197
  %v7921 = vpop.f32.mrf.mxu0
  %v7922 = vadd.f32 0.0, %v7921
  %v7923 = vpop.f32.mrf.mxu0
  %v7924 = vadd.f32 0.0, %v7923
  %7925 = vmatprep.mubr.f32.mxu0 %v7555
  %7926 = vmatmul.mubr.f32.gmra.mxu0 %v7203
  %v7927 = vpop.f32.mrf.mxu0
  %v7928 = vadd.f32 0.0, %v7927
  %v7929 = vpop.f32.mrf.mxu0
  %v7930 = vadd.f32 0.0, %v7929
  %7931 = vmatprep.mubr.f32.mxu0 %v7558
  %7932 = vmatmul.mubr.f32.gmra.mxu0 %v7209
  %v7933 = vpop.f32.mrf.mxu0
  %v7934 = vadd.f32 0.0, %v7933
  %v7935 = vpop.f32.mrf.mxu0
  %v7936 = vadd.f32 0.0, %v7935
  %7937 = vdwg.mxu0
  %7938 = vmatprep.subr.mxu0 0.0
  %7939 = vmatpush1.msra.mxu0 %v7441
  %7940 = vmatprep.subr.mxu0 0.0
  %7941 = vmatpush1.msra.mxu0 %v7434
  %7942 = vmatprep.subr.mxu0 0.0
  %7943 = vmatpush1.msra.mxu0 %v7427
  %7944 = vmatprep.subr.mxu0 0.0
  %7945 = vmatpush1.msra.mxu0 %v7420
  %7946 = vmatprep.subr.mxu0 0.0
  %7947 = vmatpush1.msra.mxu0 %v7413
  %7948 = vmatprep.subr.mxu0 0.0
  %7949 = vmatpush1.msra.mxu0 %v7406
  %7950 = vmatprep.subr.mxu0 0.0
  %7951 = vmatpush1.msra.mxu0 %v7399
  %7952 = vmatprep.subr.mxu0 0.0
  %7953 = vmatpush1.msra.mxu0 %v7392
  %7954 = vmatprep.subr.mxu0 0.0
  %7955 = vmatpush1.msra.mxu0 %v7385
  %7956 = vmatprep.subr.mxu0 0.0
  %7957 = vmatpush1.msra.mxu0 %v7378
  %7958 = vmatprep.subr.mxu0 0.0
  %7959 = vmatpush1.msra.mxu0 %v7371
  %7960 = vmatprep.subr.mxu0 0.0
  %7961 = vmatpush1.msra.mxu0 %v7364
  %7962 = vmatprep.subr.mxu0 0.0
  %7963 = vmatpush1.msra.mxu0 %v7357
  %7964 = vmatprep.subr.mxu0 0.0
  %7965 = vmatpush1.msra.mxu0 %v7350
  %7966 = vmatprep.subr.mxu0 0.0
  %7967 = vmatpush1.msra.mxu0 %v7343
  %7968 = vmatprep.subr.mxu0 0.0
  %7969 = vmatpush1.msra.mxu0 %v7336
  %7970 = vmatprep.subr.mxu0 0.0
  %7971 = vmatpush2.msra.mxu0 0.0
  %7972 = vmatprep.subr.mxu0 0.0
  %7973 = vmatpush2.msra.mxu0 0.0
  %7974 = vmatprep.subr.mxu0 0.0
  %7975 = vmatpush2.msra.mxu0 0.0
  %7976 = vmatprep.subr.mxu0 0.0
  %7977 = vmatpush2.msra.mxu0 %v7579
  %7978 = vmatprep.subr.mxu0 0.0
  %7979 = vmatpush2.msra.mxu0 %v7525
  %7980 = vmatprep.subr.mxu0 0.0
  %7981 = vmatpush2.msra.mxu0 %v7518
  %7982 = vmatprep.subr.mxu0 0.0
  %7983 = vmatpush2.msra.mxu0 %v7511
  %7984 = vmatprep.subr.mxu0 0.0
  %7985 = vmatpush2.msra.mxu0 %v7504
  %7986 = vmatprep.subr.mxu0 0.0
  %7987 = vmatpush2.msra.mxu0 %v7497
  %7988 = vmatprep.subr.mxu0 0.0
  %7989 = vmatpush2.msra.mxu0 %v7490
  %7990 = vmatprep.subr.mxu0 0.0
  %7991 = vmatpush2.msra.mxu0 %v7483
  %7992 = vmatprep.subr.mxu0 0.0
  %7993 = vmatpush2.msra.mxu0 %v7476
  %7994 = vmatprep.subr.mxu0 0.0
  %7995 = vmatpush2.msra.mxu0 %v7469
  %7996 = vmatprep.subr.mxu0 0.0
  %7997 = vmatpush2.msra.mxu0 %v7462
  %7998 = vmatprep.subr.mxu0 0.0
  %7999 = vmatpush2.msra.mxu0 %v7455
  %8000 = vmatprep.subr.mxu0 0.0
  %8001 = vmatpush2.msra.mxu0 %v7448
  %8002 = vmatprep.mubr.f32.mxu0 %v7534
  %8003 = vmatmul.mubr.f32.gmra.mxu0 %v7161
  %v8004 = vpop.f32.mrf.mxu0
  %v8005 = vadd.f32 0.0, %v8004
  %v8006 = vpop.f32.mrf.mxu0
  %8007 = vmatprep.mubr.f32.mxu0 %v7537
  %8008 = vmatmul.mubr.f32.gmra.mxu0 %v7167
  %v8009 = vpop.f32.mrf.mxu0
  %v8010 = vadd.f32 0.0, %v8009
  %v8011 = vpop.f32.mrf.mxu0
  %8012 = vmatprep.mubr.f32.mxu0 %v7540
  %8013 = vmatmul.mubr.f32.gmra.mxu0 %v7173
  %v8014 = vpop.f32.mrf.mxu0
  %v8015 = vadd.f32 0.0, %v8014
  %v8016 = vpop.f32.mrf.mxu0
  %8017 = vmatprep.mubr.f32.mxu0 %v7543
  %8018 = vmatmul.mubr.f32.gmra.mxu0 %v7179
  %v8019 = vpop.f32.mrf.mxu0
  %v8020 = vadd.f32 0.0, %v8019
  %v8021 = vpop.f32.mrf.mxu0
  %8022 = vmatprep.mubr.f32.mxu0 %v7546
  %8023 = vmatmul.mubr.f32.gmra.mxu0 %v7185
  %v8024 = vpop.f32.mrf.mxu0
  %v8025 = vadd.f32 0.0, %v8024
  %v8026 = vpop.f32.mrf.mxu0
  %8027 = vmatprep.mubr.f32.mxu0 %v7549
  %8028 = vmatmul.mubr.f32.gmra.mxu0 %v7191
  %v8029 = vpop.f32.mrf.mxu0
  %v8030 = vadd.f32 0.0, %v8029
  %v8031 = vpop.f32.mrf.mxu0
  %8032 = vmatprep.mubr.f32.mxu0 %v7552
  %8033 = vmatmul.mubr.f32.gmra.mxu0 %v7197
  %v8034 = vpop.f32.mrf.mxu0
  %v8035 = vadd.f32 0.0, %v8034
  %v8036 = vpop.f32.mrf.mxu0
  %8037 = vmatprep.mubr.f32.mxu0 %v7555
  %8038 = vmatmul.mubr.f32.gmra.mxu0 %v7203
  %v8039 = vpop.f32.mrf.mxu0
  %v8040 = vadd.f32 0.0, %v8039
  %v8041 = vpop.f32.mrf.mxu0
  %8042 = vmatprep.mubr.f32.mxu0 %v7558
  %8043 = vmatmul.mubr.f32.gmra.mxu0 %v7209
  %v8044 = vpop.f32.mrf.mxu0
  %v8045 = vadd.f32 0.0, %v8044
  %v8046 = vpop.f32.mrf.mxu0
  %8047 = vdwg.mxu0
  %v8048 = vadd.f32 %v6994, %v7648
  %v8049 = vadd.f32 %v6995, %v7650
  %v8050 = vadd.f32 %v6996, %v7767
  %v8051 = vadd.f32 %v6997, %v7769
  %v8052 = vadd.f32 %v6998, %v7886
  %v8053 = vadd.f32 %v6999, %v7888
  %v8054 = vadd.f32 %v7000, %v8005
  %v8055 = vadd.f32 %v7001, %v7654
  %v8056 = vadd.f32 %v7002, %v7656
  %v8057 = vadd.f32 %v7003, %v7773
  %v8058 = vadd.f32 %v7004, %v7775
  %v8059 = vadd.f32 %v7005, %v7892
  %v8060 = vadd.f32 %v7006, %v7894
  %v8061 = vadd.f32 %v7007, %v8010
  %v8062 = vadd.f32 %v7008, %v7660
  %v8063 = vadd.f32 %v7009, %v7662
  %v8064 = vadd.f32 %v7010, %v7779
  %v8065 = vadd.f32 %v7011, %v7781
  %v8066 = vadd.f32 %v7012, %v7898
  %v8067 = vadd.f32 %v7013, %v7900
  %v8068 = vadd.f32 %v7014, %v8015
  %v8069 = vadd.f32 %v7015, %v7666
  %v8070 = vadd.f32 %v7016, %v7668
  %v8071 = vadd.f32 %v7017, %v7785
  %v8072 = vadd.f32 %v7018, %v7787
  %v8073 = vadd.f32 %v7019, %v7904
  %v8074 = vadd.f32 %v7020, %v7906
  %v8075 = vadd.f32 %v7021, %v8020
  %v8076 = vadd.f32 %v7022, %v7672
  %v8077 = vadd.f32 %v7023, %v7674
  %v8078 = vadd.f32 %v7024, %v7791
  %v8079 = vadd.f32 %v7025, %v7793
  %v8080 = vadd.f32 %v7026, %v7910
  %v8081 = vadd.f32 %v7027, %v7912
  %v8082 = vadd.f32 %v7028, %v8025
  %v8083 = vadd.f32 %v7029, %v7678
  %v8084 = vadd.f32 %v7030, %v7680
  %v8085 = vadd.f32 %v7031, %v7797
  %v8086 = vadd.f32 %v7032, %v7799
  %v8087 = vadd.f32 %v7033, %v7916
  %v8088 = vadd.f32 %v7034, %v7918
  %v8089 = vadd.f32 %v7035, %v8030
  %v8090 = vadd.f32 %v7036, %v7684
  %v8091 = vadd.f32 %v7037, %v7686
  %v8092 = vadd.f32 %v7038, %v7803
  %v8093 = vadd.f32 %v7039, %v7805
  %v8094 = vadd.f32 %v7040, %v7922
  %v8095 = vadd.f32 %v7041, %v7924
  %v8096 = vadd.f32 %v7042, %v8035
  %v8097 = vadd.f32 %v7043, %v7690
  %v8098 = vadd.f32 %v7044, %v7692
  %v8099 = vadd.f32 %v7045, %v7809
  %v8100 = vadd.f32 %v7046, %v7811
  %v8101 = vadd.f32 %v7047, %v7928
  %v8102 = vadd.f32 %v7048, %v7930
  %v8103 = vadd.f32 %v7049, %v8040
  %v8104 = vadd.f32 %v7050, %v7696
  %v8105 = vadd.f32 %v7051, %v7698
  %v8106 = vadd.f32 %v7052, %v7815
  %v8107 = vadd.f32 %v7053, %v7817
  %v8108 = vadd.f32 %v7054, %v7934
  %v8109 = vadd.f32 %v7055, %v7936
  %v8110 = vadd.f32 %v7056, %v8045
  %v8111 = vld [vmem:[%s16] sm:$0xff]
  %v8112 = vld [vmem:[%s16 + $0x8] sm:$0xff]
  %v8113 = vld [vmem:[%s16 + $0x10] sm:$0xff]
  %v8114 = vld [vmem:[%s16 + $0x18] sm:$0xff]
  %v8115 = vld [vmem:[%s16 + $0x20] sm:$0xff]
  %v8116 = vld [vmem:[%s16 + $0x28] sm:$0xff]
  %v8117 = vld [vmem:[%s16 + $0x30] sm:$0xff]
  %v8118 = vld [vmem:[%s16 + $0x38] sm:$0xff]
  %v8119 = vld [vmem:[%s16 + $0x40] sm:$0xff]
  %8121 = vset.pattern.permute.xlu0 0
  %8122 = vperm.xlu0 %8121, %v8111
  %v8123 = vpop.permute.xlu0 %8122
  %8126 = vset.pattern.permute.xlu0 0
  %8127 = vperm.xlu0 %8126, %v8112
  %v8128 = vpop.permute.xlu0 %8127
  %8131 = vset.pattern.permute.xlu0 0
  %8132 = vperm.xlu0 %8131, %v8113
  %v8133 = vpop.permute.xlu0 %8132
  %8136 = vset.pattern.permute.xlu0 0
  %8137 = vperm.xlu0 %8136, %v8114
  %v8138 = vpop.permute.xlu0 %8137
  %8141 = vset.pattern.permute.xlu0 0
  %8142 = vperm.xlu0 %8141, %v8115
  %v8143 = vpop.permute.xlu0 %8142
  %8146 = vset.pattern.permute.xlu0 0
  %8147 = vperm.xlu0 %8146, %v8116
  %v8148 = vpop.permute.xlu0 %8147
  %8151 = vset.pattern.permute.xlu0 0
  %8152 = vperm.xlu0 %8151, %v8117
  %v8153 = vpop.permute.xlu0 %8152
  %8156 = vset.pattern.permute.xlu0 0
  %8157 = vperm.xlu0 %8156, %v8118
  %v8158 = vpop.permute.xlu0 %8157
  %8161 = vset.pattern.permute.xlu0 0
  %8162 = vperm.xlu0 %8161, %v8119
  %v8163 = vpop.permute.xlu0 %8162
  %v8165 = vadd.f32 %v8048, %v8123
  %v8166 = vadd.f32 %v8049, %v8123
  %v8167 = vadd.f32 %v8050, %v8123
  %v8168 = vadd.f32 %v8051, %v8123
  %v8169 = vadd.f32 %v8052, %v8123
  %v8170 = vadd.f32 %v8053, %v8123
  %v8171 = vadd.f32 %v8054, %v8123
  %v8172 = vadd.f32 %v8055, %v8128
  %v8173 = vadd.f32 %v8056, %v8128
  %v8174 = vadd.f32 %v8057, %v8128
  %v8175 = vadd.f32 %v8058, %v8128
  %v8176 = vadd.f32 %v8059, %v8128
  %v8177 = vadd.f32 %v8060, %v8128
  %v8178 = vadd.f32 %v8061, %v8128
  %v8179 = vadd.f32 %v8062, %v8133
  %v8180 = vadd.f32 %v8063, %v8133
  %v8181 = vadd.f32 %v8064, %v8133
  %v8182 = vadd.f32 %v8065, %v8133
  %v8183 = vadd.f32 %v8066, %v8133
  %v8184 = vadd.f32 %v8067, %v8133
  %v8185 = vadd.f32 %v8068, %v8133
  %v8186 = vadd.f32 %v8069, %v8138
  %v8187 = vadd.f32 %v8070, %v8138
  %v8188 = vadd.f32 %v8071, %v8138
  %v8189 = vadd.f32 %v8072, %v8138
  %v8190 = vadd.f32 %v8073, %v8138
  %v8191 = vadd.f32 %v8074, %v8138
  %v8192 = vadd.f32 %v8075, %v8138
  %v8193 = vadd.f32 %v8076, %v8143
  %v8194 = vadd.f32 %v8077, %v8143
  %v8195 = vadd.f32 %v8078, %v8143
  %v8196 = vadd.f32 %v8079, %v8143
  %v8197 = vadd.f32 %v8080, %v8143
  %v8198 = vadd.f32 %v8081, %v8143
  %v8199 = vadd.f32 %v8082, %v8143
  %v8200 = vadd.f32 %v8083, %v8148
  %v8201 = vadd.f32 %v8084, %v8148
  %v8202 = vadd.f32 %v8085, %v8148
  %v8203 = vadd.f32 %v8086, %v8148
  %v8204 = vadd.f32 %v8087, %v8148
  %v8205 = vadd.f32 %v8088, %v8148
  %v8206 = vadd.f32 %v8089, %v8148
  %v8207 = vadd.f32 %v8090, %v8153
  %v8208 = vadd.f32 %v8091, %v8153
  %v8209 = vadd.f32 %v8092, %v8153
  %v8210 = vadd.f32 %v8093, %v8153
  %v8211 = vadd.f32 %v8094, %v8153
  %v8212 = vadd.f32 %v8095, %v8153
  %v8213 = vadd.f32 %v8096, %v8153
  %v8214 = vadd.f32 %v8097, %v8158
  %v8215 = vadd.f32 %v8098, %v8158
  %v8216 = vadd.f32 %v8099, %v8158
  %v8217 = vadd.f32 %v8100, %v8158
  %v8218 = vadd.f32 %v8101, %v8158
  %v8219 = vadd.f32 %v8102, %v8158
  %v8220 = vadd.f32 %v8103, %v8158
  %v8221 = vadd.f32 %v8104, %v8163
  %v8222 = vadd.f32 %v8105, %v8163
  %v8223 = vadd.f32 %v8106, %v8163
  %v8224 = vadd.f32 %v8107, %v8163
  %v8225 = vadd.f32 %v8108, %v8163
  %v8226 = vadd.f32 %v8109, %v8163
  %v8227 = vadd.f32 %v8110, %v8163
  %v8228 = vld [vmem:[%s17] sm:$0xff]
  %v8229 = vld [vmem:[%s17 + $0x8] sm:$0xff]
  %v8230 = vld [vmem:[%s17 + $0x10] sm:$0xff]
  %v8231 = vld [vmem:[%s17 + $0x18] sm:$0xff]
  %v8232 = vld [vmem:[%s17 + $0x20] sm:$0xff]
  %v8233 = vld [vmem:[%s17 + $0x28] sm:$0xff]
  %v8234 = vld [vmem:[%s17 + $0x30] sm:$0xff]
  %v8235 = vld [vmem:[%s17 + $0x38] sm:$0xff]
  %v8236 = vld [vmem:[%s17 + $0x40] sm:$0xff]
  %v8237 = vld [vmem:[%s18] sm:$0xff]
  %v8238 = vld [vmem:[%s18 + $0x8] sm:$0xff]
  %v8239 = vld [vmem:[%s18 + $0x10] sm:$0xff]
  %v8240 = vld [vmem:[%s18 + $0x18] sm:$0xff]
  %v8241 = vld [vmem:[%s18 + $0x20] sm:$0xff]
  %v8242 = vld [vmem:[%s18 + $0x28] sm:$0xff]
  %v8243 = vld [vmem:[%s18 + $0x30] sm:$0xff]
  %v8244 = vld [vmem:[%s18 + $0x38] sm:$0xff]
  %v8245 = vld [vmem:[%s18 + $0x40] sm:$0xff]
  %v8246 = vld [vmem:[%s19] sm:$0xff]
  %v8247 = vld [vmem:[%s19 + $0x8] sm:$0xff]
  %v8248 = vld [vmem:[%s19 + $0x10] sm:$0xff]
  %v8249 = vld [vmem:[%s19 + $0x18] sm:$0xff]
  %v8250 = vld [vmem:[%s19 + $0x20] sm:$0xff]
  %v8251 = vld [vmem:[%s19 + $0x28] sm:$0xff]
  %v8252 = vld [vmem:[%s19 + $0x30] sm:$0xff]
  %v8253 = vld [vmem:[%s19 + $0x38] sm:$0xff]
  %v8254 = vld [vmem:[%s19 + $0x40] sm:$0xff]
  %v8255 = vadd.f32 %v8165, %v8166
  %v8256 = vadd.f32 %v8255, %v8167
  %v8257 = vadd.f32 %v8256, %v8168
  %v8258 = vadd.f32 %v8257, %v8169
  %v8259 = vadd.f32 %v8258, %v8170
  %vm8260 = vcmask 130048
  %v8261 = vsel %vm8260, %v8171, 0.0
  %v8262 = vadd.f32 %v8259, %v8261
  %8263 = vadd.xlane.f32.xlu0 %v8262
  %v8264 = vpop.xlane.xlu0 %8263
  %v8265 = vadd.f32 %v8172, %v8173
  %v8266 = vadd.f32 %v8265, %v8174
  %v8267 = vadd.f32 %v8266, %v8175
  %v8268 = vadd.f32 %v8267, %v8176
  %v8269 = vadd.f32 %v8268, %v8177
  %v8270 = vsel %vm8260, %v8178, 0.0
  %v8271 = vadd.f32 %v8269, %v8270
  %8272 = vadd.xlane.f32.xlu0 %v8271
  %v8273 = vpop.xlane.xlu0 %8272
  %v8274 = vadd.f32 %v8179, %v8180
  %v8275 = vadd.f32 %v8274, %v8181
  %v8276 = vadd.f32 %v8275, %v8182
  %v8277 = vadd.f32 %v8276, %v8183
  %v8278 = vadd.f32 %v8277, %v8184
  %v8279 = vsel %vm8260, %v8185, 0.0
  %v8280 = vadd.f32 %v8278, %v8279
  %8281 = vadd.xlane.f32.xlu0 %v8280
  %v8282 = vpop.xlane.xlu0 %8281
  %v8283 = vadd.f32 %v8186, %v8187
  %v8284 = vadd.f32 %v8283, %v8188
  %v8285 = vadd.f32 %v8284, %v8189
  %v8286 = vadd.f32 %v8285, %v8190
  %v8287 = vadd.f32 %v8286, %v8191
  %v8288 = vsel %vm8260, %v8192, 0.0
  %v8289 = vadd.f32 %v8287, %v8288
  %8290 = vadd.xlane.f32.xlu0 %v8289
  %v8291 = vpop.xlane.xlu0 %8290
  %v8292 = vadd.f32 %v8193, %v8194
  %v8293 = vadd.f32 %v8292, %v8195
  %v8294 = vadd.f32 %v8293, %v8196
  %v8295 = vadd.f32 %v8294, %v8197
  %v8296 = vadd.f32 %v8295, %v8198
  %v8297 = vsel %vm8260, %v8199, 0.0
  %v8298 = vadd.f32 %v8296, %v8297
  %8299 = vadd.xlane.f32.xlu0 %v8298
  %v8300 = vpop.xlane.xlu0 %8299
  %v8301 = vadd.f32 %v8200, %v8201
  %v8302 = vadd.f32 %v8301, %v8202
  %v8303 = vadd.f32 %v8302, %v8203
  %v8304 = vadd.f32 %v8303, %v8204
  %v8305 = vadd.f32 %v8304, %v8205
  %v8306 = vsel %vm8260, %v8206, 0.0
  %v8307 = vadd.f32 %v8305, %v8306
  %8308 = vadd.xlane.f32.xlu0 %v8307
  %v8309 = vpop.xlane.xlu0 %8308
  %v8310 = vadd.f32 %v8207, %v8208
  %v8311 = vadd.f32 %v8310, %v8209
  %v8312 = vadd.f32 %v8311, %v8210
  %v8313 = vadd.f32 %v8312, %v8211
  %v8314 = vadd.f32 %v8313, %v8212
  %v8315 = vsel %vm8260, %v8213, 0.0
  %v8316 = vadd.f32 %v8314, %v8315
  %8317 = vadd.xlane.f32.xlu0 %v8316
  %v8318 = vpop.xlane.xlu0 %8317
  %v8319 = vadd.f32 %v8214, %v8215
  %v8320 = vadd.f32 %v8319, %v8216
  %v8321 = vadd.f32 %v8320, %v8217
  %v8322 = vadd.f32 %v8321, %v8218
  %v8323 = vadd.f32 %v8322, %v8219
  %v8324 = vsel %vm8260, %v8220, 0.0
  %v8325 = vadd.f32 %v8323, %v8324
  %8326 = vadd.xlane.f32.xlu0 %v8325
  %v8327 = vpop.xlane.xlu0 %8326
  %v8328 = vadd.f32 %v8221, %v8222
  %v8329 = vadd.f32 %v8328, %v8223
  %v8330 = vadd.f32 %v8329, %v8224
  %v8331 = vadd.f32 %v8330, %v8225
  %v8332 = vadd.f32 %v8331, %v8226
  %v8333 = vsel %vm8260, %v8227, 0.0
  %v8334 = vadd.f32 %v8332, %v8333
  %8335 = vadd.xlane.f32.xlu0 %v8334
  %v8336 = vpop.xlane.xlu0 %8335
  %vm8337 = vcmask 588800
  %v8339 = vsel %vm8337, %v8228, 0
  %v8342 = vsel %vm8337, %v8229, 0
  %v8345 = vsel %vm8337, %v8230, 0
  %v8348 = vsel %vm8337, %v8231, 0
  %v8351 = vsel %vm8337, %v8232, 0
  %v8354 = vsel %vm8337, %v8233, 0
  %v8357 = vsel %vm8337, %v8234, 0
  %v8360 = vsel %vm8337, %v8235, 0
  %v8363 = vsel %vm8337, %v8236, 0
  %8365 = vmatprep.subr.mxu0 0.0
  %8366 = vmatpush1.msra.mxu0 0.0
  %8367 = vmatprep.subr.mxu0 0.0
  %8368 = vmatpush1.msra.mxu0 0.0
  %8369 = vmatprep.subr.mxu0 0.0
  %8370 = vmatpush1.msra.mxu0 0.0
  %8371 = vmatprep.subr.mxu0 0.0
  %8372 = vmatpush1.msra.mxu0 0.0
  %8373 = vmatprep.subr.mxu0 0.0
  %8374 = vmatpush1.msra.mxu0 0.0
  %8375 = vmatprep.subr.mxu0 0.0
  %8376 = vmatpush1.msra.mxu0 0.0
  %8377 = vmatprep.subr.mxu0 0.0
  %8378 = vmatpush1.msra.mxu0 0.0
  %8379 = vmatprep.subr.mxu0 0.0
  %8380 = vmatpush1.msra.mxu0 %v8336
  %8381 = vmatprep.subr.mxu0 0.0
  %8382 = vmatpush1.msra.mxu0 %v8327
  %8383 = vmatprep.subr.mxu0 0.0
  %8384 = vmatpush1.msra.mxu0 %v8318
  %8385 = vmatprep.subr.mxu0 0.0
  %8386 = vmatpush1.msra.mxu0 %v8309
  %8387 = vmatprep.subr.mxu0 0.0
  %8388 = vmatpush1.msra.mxu0 %v8300
  %8389 = vmatprep.subr.mxu0 0.0
  %8390 = vmatpush1.msra.mxu0 %v8291
  %8391 = vmatprep.subr.mxu0 0.0
  %8392 = vmatpush1.msra.mxu0 %v8282
  %8393 = vmatprep.subr.mxu0 0.0
  %8394 = vmatpush1.msra.mxu0 %v8273
  %8395 = vmatprep.subr.mxu0 0.0
  %8396 = vmatpush1.msra.mxu0 %v8264
  %8397 = vmatprep.subr.mxu0 0.0
  %8398 = vmatpush2.msra.mxu0 0.0
  %8399 = vmatprep.subr.mxu0 0.0
  %8400 = vmatpush2.msra.mxu0 0.0
  %8401 = vmatprep.subr.mxu0 0.0
  %8402 = vmatpush2.msra.mxu0 0.0
  %8403 = vmatprep.subr.mxu0 0.0
  %8404 = vmatpush2.msra.mxu0 0.0
  %8405 = vmatprep.subr.mxu0 0.0
  %8406 = vmatpush2.msra.mxu0 0.0
  %8407 = vmatprep.subr.mxu0 0.0
  %8408 = vmatpush2.msra.mxu0 0.0
  %8409 = vmatprep.subr.mxu0 0.0
  %8410 = vmatpush2.msra.mxu0 0.0
  %8411 = vmatprep.subr.mxu0 0.0
  %8412 = vmatpush2.msra.mxu0 0.0
  %8413 = vmatprep.subr.mxu0 0.0
  %8414 = vmatpush2.msra.mxu0 0.0
  %8415 = vmatprep.subr.mxu0 0.0
  %8416 = vmatpush2.msra.mxu0 0.0
  %8417 = vmatprep.subr.mxu0 0.0
  %8418 = vmatpush2.msra.mxu0 0.0
  %8419 = vmatprep.subr.mxu0 0.0
  %8420 = vmatpush2.msra.mxu0 0.0
  %8421 = vmatprep.subr.mxu0 0.0
  %8422 = vmatpush2.msra.mxu0 0.0
  %8423 = vmatprep.subr.mxu0 0.0
  %8424 = vmatpush2.msra.mxu0 0.0
  %8425 = vmatprep.subr.mxu0 0.0
  %8426 = vmatpush2.msra.mxu0 0.0
  %8427 = vmatprep.subr.mxu0 0.0
  %8428 = vmatpush2.msra.mxu0 0.0
  %8429 = vmatprep.mubr.f32.mxu0 0.0
  %8430 = vmatmul.mubr.f32.gmra.mxu0 %v8339
  %v8431 = vpop.f32.mrf.mxu0
  %v8432 = vadd.f32 0.0, %v8431
  %v8433 = vpop.f32.mrf.mxu0
  %8434 = vmatprep.mubr.f32.mxu0 0.0
  %8435 = vmatmul.mubr.f32.gmra.mxu0 %v8342
  %v8436 = vpop.f32.mrf.mxu0
  %v8437 = vadd.f32 0.0, %v8436
  %v8438 = vpop.f32.mrf.mxu0
  %8439 = vmatprep.mubr.f32.mxu0 0.0
  %8440 = vmatmul.mubr.f32.gmra.mxu0 %v8345
  %v8441 = vpop.f32.mrf.mxu0
  %v8442 = vadd.f32 0.0, %v8441
  %v8443 = vpop.f32.mrf.mxu0
  %8444 = vmatprep.mubr.f32.mxu0 0.0
  %8445 = vmatmul.mubr.f32.gmra.mxu0 %v8348
  %v8446 = vpop.f32.mrf.mxu0
  %v8447 = vadd.f32 0.0, %v8446
  %v8448 = vpop.f32.mrf.mxu0
  %8449 = vmatprep.mubr.f32.mxu0 0.0
  %8450 = vmatmul.mubr.f32.gmra.mxu0 %v8351
  %v8451 = vpop.f32.mrf.mxu0
  %v8452 = vadd.f32 0.0, %v8451
  %v8453 = vpop.f32.mrf.mxu0
  %8454 = vmatprep.mubr.f32.mxu0 0.0
  %8455 = vmatmul.mubr.f32.gmra.mxu0 %v8354
  %v8456 = vpop.f32.mrf.mxu0
  %v8457 = vadd.f32 0.0, %v8456
  %v8458 = vpop.f32.mrf.mxu0
  %8459 = vmatprep.mubr.f32.mxu0 0.0
  %8460 = vmatmul.mubr.f32.gmra.mxu0 %v8357
  %v8461 = vpop.f32.mrf.mxu0
  %v8462 = vadd.f32 0.0, %v8461
  %v8463 = vpop.f32.mrf.mxu0
  %8464 = vmatprep.mubr.f32.mxu0 0.0
  %8465 = vmatmul.mubr.f32.gmra.mxu0 %v8360
  %v8466 = vpop.f32.mrf.mxu0
  %v8467 = vadd.f32 0.0, %v8466
  %v8468 = vpop.f32.mrf.mxu0
  %8469 = vmatprep.mubr.f32.mxu0 0.0
  %8470 = vmatmul.mubr.f32.gmra.mxu0 %v8363
  %v8471 = vpop.f32.mrf.mxu0
  %v8472 = vadd.f32 0.0, %v8471
  %v8473 = vpop.f32.mrf.mxu0
  %8474 = vdwg.mxu0
  %8476 = vset.pattern.permute.xlu0 0
  %8477 = vperm.xlu0 %8476, %v8432
  %v8478 = vpop.permute.xlu0 %8477
  %8481 = vset.pattern.permute.xlu0 0
  %8482 = vperm.xlu0 %8481, %v8437
  %v8483 = vpop.permute.xlu0 %8482
  %8486 = vset.pattern.permute.xlu0 0
  %8487 = vperm.xlu0 %8486, %v8442
  %v8488 = vpop.permute.xlu0 %8487
  %8491 = vset.pattern.permute.xlu0 0
  %8492 = vperm.xlu0 %8491, %v8447
  %v8493 = vpop.permute.xlu0 %8492
  %8496 = vset.pattern.permute.xlu0 0
  %8497 = vperm.xlu0 %8496, %v8452
  %v8498 = vpop.permute.xlu0 %8497
  %8501 = vset.pattern.permute.xlu0 0
  %8502 = vperm.xlu0 %8501, %v8457
  %v8503 = vpop.permute.xlu0 %8502
  %8506 = vset.pattern.permute.xlu0 0
  %8507 = vperm.xlu0 %8506, %v8462
  %v8508 = vpop.permute.xlu0 %8507
  %8511 = vset.pattern.permute.xlu0 0
  %8512 = vperm.xlu0 %8511, %v8467
  %v8513 = vpop.permute.xlu0 %8512
  %8516 = vset.pattern.permute.xlu0 0
  %8517 = vperm.xlu0 %8516, %v8472
  %v8518 = vpop.permute.xlu0 %8517
  %v8520 = vsub.f32 %v8165, %v8478
  %v8521 = vsub.f32 %v8166, %v8478
  %v8522 = vsub.f32 %v8167, %v8478
  %v8523 = vsub.f32 %v8168, %v8478
  %v8524 = vsub.f32 %v8169, %v8478
  %v8525 = vsub.f32 %v8170, %v8478
  %v8526 = vsub.f32 %v8171, %v8478
  %v8527 = vsub.f32 %v8172, %v8483
  %v8528 = vsub.f32 %v8173, %v8483
  %v8529 = vsub.f32 %v8174, %v8483
  %v8530 = vsub.f32 %v8175, %v8483
  %v8531 = vsub.f32 %v8176, %v8483
  %v8532 = vsub.f32 %v8177, %v8483
  %v8533 = vsub.f32 %v8178, %v8483
  %v8534 = vsub.f32 %v8179, %v8488
  %v8535 = vsub.f32 %v8180, %v8488
  %v8536 = vsub.f32 %v8181, %v8488
  %v8537 = vsub.f32 %v8182, %v8488
  %v8538 = vsub.f32 %v8183, %v8488
  %v8539 = vsub.f32 %v8184, %v8488
  %v8540 = vsub.f32 %v8185, %v8488
  %v8541 = vsub.f32 %v8186, %v8493
  %v8542 = vsub.f32 %v8187, %v8493
  %v8543 = vsub.f32 %v8188, %v8493
  %v8544 = vsub.f32 %v8189, %v8493
  %v8545 = vsub.f32 %v8190, %v8493
  %v8546 = vsub.f32 %v8191, %v8493
  %v8547 = vsub.f32 %v8192, %v8493
  %v8548 = vsub.f32 %v8193, %v8498
  %v8549 = vsub.f32 %v8194, %v8498
  %v8550 = vsub.f32 %v8195, %v8498
  %v8551 = vsub.f32 %v8196, %v8498
  %v8552 = vsub.f32 %v8197, %v8498
  %v8553 = vsub.f32 %v8198, %v8498
  %v8554 = vsub.f32 %v8199, %v8498
  %v8555 = vsub.f32 %v8200, %v8503
  %v8556 = vsub.f32 %v8201, %v8503
  %v8557 = vsub.f32 %v8202, %v8503
  %v8558 = vsub.f32 %v8203, %v8503
  %v8559 = vsub.f32 %v8204, %v8503
  %v8560 = vsub.f32 %v8205, %v8503
  %v8561 = vsub.f32 %v8206, %v8503
  %v8562 = vsub.f32 %v8207, %v8508
  %v8563 = vsub.f32 %v8208, %v8508
  %v8564 = vsub.f32 %v8209, %v8508
  %v8565 = vsub.f32 %v8210, %v8508
  %v8566 = vsub.f32 %v8211, %v8508
  %v8567 = vsub.f32 %v8212, %v8508
  %v8568 = vsub.f32 %v8213, %v8508
  %v8569 = vsub.f32 %v8214, %v8513
  %v8570 = vsub.f32 %v8215, %v8513
  %v8571 = vsub.f32 %v8216, %v8513
  %v8572 = vsub.f32 %v8217, %v8513
  %v8573 = vsub.f32 %v8218, %v8513
  %v8574 = vsub.f32 %v8219, %v8513
  %v8575 = vsub.f32 %v8220, %v8513
  %v8576 = vsub.f32 %v8221, %v8518
  %v8577 = vsub.f32 %v8222, %v8518
  %v8578 = vsub.f32 %v8223, %v8518
  %v8579 = vsub.f32 %v8224, %v8518
  %v8580 = vsub.f32 %v8225, %v8518
  %v8581 = vsub.f32 %v8226, %v8518
  %v8582 = vsub.f32 %v8227, %v8518
  %v8583 = vmul.f32 %v8520, %v8520
  %v8584 = vmul.f32 %v8521, %v8521
  %v8585 = vmul.f32 %v8522, %v8522
  %v8586 = vmul.f32 %v8523, %v8523
  %v8587 = vmul.f32 %v8524, %v8524
  %v8588 = vmul.f32 %v8525, %v8525
  %v8589 = vmul.f32 %v8526, %v8526
  %v8590 = vmul.f32 %v8527, %v8527
  %v8591 = vmul.f32 %v8528, %v8528
  %v8592 = vmul.f32 %v8529, %v8529
  %v8593 = vmul.f32 %v8530, %v8530
  %v8594 = vmul.f32 %v8531, %v8531
  %v8595 = vmul.f32 %v8532, %v8532
  %v8596 = vmul.f32 %v8533, %v8533
  %v8597 = vmul.f32 %v8534, %v8534
  %v8598 = vmul.f32 %v8535, %v8535
  %v8599 = vmul.f32 %v8536, %v8536
  %v8600 = vmul.f32 %v8537, %v8537
  %v8601 = vmul.f32 %v8538, %v8538
  %v8602 = vmul.f32 %v8539, %v8539
  %v8603 = vmul.f32 %v8540, %v8540
  %v8604 = vmul.f32 %v8541, %v8541
  %v8605 = vmul.f32 %v8542, %v8542
  %v8606 = vmul.f32 %v8543, %v8543
  %v8607 = vmul.f32 %v8544, %v8544
  %v8608 = vmul.f32 %v8545, %v8545
  %v8609 = vmul.f32 %v8546, %v8546
  %v8610 = vmul.f32 %v8547, %v8547
  %v8611 = vmul.f32 %v8548, %v8548
  %v8612 = vmul.f32 %v8549, %v8549
  %v8613 = vmul.f32 %v8550, %v8550
  %v8614 = vmul.f32 %v8551, %v8551
  %v8615 = vmul.f32 %v8552, %v8552
  %v8616 = vmul.f32 %v8553, %v8553
  %v8617 = vmul.f32 %v8554, %v8554
  %v8618 = vmul.f32 %v8555, %v8555
  %v8619 = vmul.f32 %v8556, %v8556
  %v8620 = vmul.f32 %v8557, %v8557
  %v8621 = vmul.f32 %v8558, %v8558
  %v8622 = vmul.f32 %v8559, %v8559
  %v8623 = vmul.f32 %v8560, %v8560
  %v8624 = vmul.f32 %v8561, %v8561
  %v8625 = vmul.f32 %v8562, %v8562
  %v8626 = vmul.f32 %v8563, %v8563
  %v8627 = vmul.f32 %v8564, %v8564
  %v8628 = vmul.f32 %v8565, %v8565
  %v8629 = vmul.f32 %v8566, %v8566
  %v8630 = vmul.f32 %v8567, %v8567
  %v8631 = vmul.f32 %v8568, %v8568
  %v8632 = vmul.f32 %v8569, %v8569
  %v8633 = vmul.f32 %v8570, %v8570
  %v8634 = vmul.f32 %v8571, %v8571
  %v8635 = vmul.f32 %v8572, %v8572
  %v8636 = vmul.f32 %v8573, %v8573
  %v8637 = vmul.f32 %v8574, %v8574
  %v8638 = vmul.f32 %v8575, %v8575
  %v8639 = vmul.f32 %v8576, %v8576
  %v8640 = vmul.f32 %v8577, %v8577
  %v8641 = vmul.f32 %v8578, %v8578
  %v8642 = vmul.f32 %v8579, %v8579
  %v8643 = vmul.f32 %v8580, %v8580
  %v8644 = vmul.f32 %v8581, %v8581
  %v8645 = vmul.f32 %v8582, %v8582
  %v8646 = vadd.f32 %v8583, %v8584
  %v8647 = vadd.f32 %v8646, %v8585
  %v8648 = vadd.f32 %v8647, %v8586
  %v8649 = vadd.f32 %v8648, %v8587
  %v8650 = vadd.f32 %v8649, %v8588
  %v8651 = vsel %vm8260, %v8589, 0.0
  %v8652 = vadd.f32 %v8650, %v8651
  %8653 = vadd.xlane.f32.xlu0 %v8652
  %v8654 = vpop.xlane.xlu0 %8653
  %v8655 = vadd.f32 %v8590, %v8591
  %v8656 = vadd.f32 %v8655, %v8592
  %v8657 = vadd.f32 %v8656, %v8593
  %v8658 = vadd.f32 %v8657, %v8594
  %v8659 = vadd.f32 %v8658, %v8595
  %v8660 = vsel %vm8260, %v8596, 0.0
  %v8661 = vadd.f32 %v8659, %v8660
  %8662 = vadd.xlane.f32.xlu0 %v8661
  %v8663 = vpop.xlane.xlu0 %8662
  %v8664 = vadd.f32 %v8597, %v8598
  %v8665 = vadd.f32 %v8664, %v8599
  %v8666 = vadd.f32 %v8665, %v8600
  %v8667 = vadd.f32 %v8666, %v8601
  %v8668 = vadd.f32 %v8667, %v8602
  %v8669 = vsel %vm8260, %v8603, 0.0
  %v8670 = vadd.f32 %v8668, %v8669
  %8671 = vadd.xlane.f32.xlu0 %v8670
  %v8672 = vpop.xlane.xlu0 %8671
  %v8673 = vadd.f32 %v8604, %v8605
  %v8674 = vadd.f32 %v8673, %v8606
  %v8675 = vadd.f32 %v8674, %v8607
  %v8676 = vadd.f32 %v8675, %v8608
  %v8677 = vadd.f32 %v8676, %v8609
  %v8678 = vsel %vm8260, %v8610, 0.0
  %v8679 = vadd.f32 %v8677, %v8678
  %8680 = vadd.xlane.f32.xlu0 %v8679
  %v8681 = vpop.xlane.xlu0 %8680
  %v8682 = vadd.f32 %v8611, %v8612
  %v8683 = vadd.f32 %v8682, %v8613
  %v8684 = vadd.f32 %v8683, %v8614
  %v8685 = vadd.f32 %v8684, %v8615
  %v8686 = vadd.f32 %v8685, %v8616
  %v8687 = vsel %vm8260, %v8617, 0.0
  %v8688 = vadd.f32 %v8686, %v8687
  %8689 = vadd.xlane.f32.xlu0 %v8688
  %v8690 = vpop.xlane.xlu0 %8689
  %v8691 = vadd.f32 %v8618, %v8619
  %v8692 = vadd.f32 %v8691, %v8620
  %v8693 = vadd.f32 %v8692, %v8621
  %v8694 = vadd.f32 %v8693, %v8622
  %v8695 = vadd.f32 %v8694, %v8623
  %v8696 = vsel %vm8260, %v8624, 0.0
  %v8697 = vadd.f32 %v8695, %v8696
  %8698 = vadd.xlane.f32.xlu0 %v8697
  %v8699 = vpop.xlane.xlu0 %8698
  %v8700 = vadd.f32 %v8625, %v8626
  %v8701 = vadd.f32 %v8700, %v8627
  %v8702 = vadd.f32 %v8701, %v8628
  %v8703 = vadd.f32 %v8702, %v8629
  %v8704 = vadd.f32 %v8703, %v8630
  %v8705 = vsel %vm8260, %v8631, 0.0
  %v8706 = vadd.f32 %v8704, %v8705
  %8707 = vadd.xlane.f32.xlu0 %v8706
  %v8708 = vpop.xlane.xlu0 %8707
  %v8709 = vadd.f32 %v8632, %v8633
  %v8710 = vadd.f32 %v8709, %v8634
  %v8711 = vadd.f32 %v8710, %v8635
  %v8712 = vadd.f32 %v8711, %v8636
  %v8713 = vadd.f32 %v8712, %v8637
  %v8714 = vsel %vm8260, %v8638, 0.0
  %v8715 = vadd.f32 %v8713, %v8714
  %8716 = vadd.xlane.f32.xlu0 %v8715
  %v8717 = vpop.xlane.xlu0 %8716
  %v8718 = vadd.f32 %v8639, %v8640
  %v8719 = vadd.f32 %v8718, %v8641
  %v8720 = vadd.f32 %v8719, %v8642
  %v8721 = vadd.f32 %v8720, %v8643
  %v8722 = vadd.f32 %v8721, %v8644
  %v8723 = vsel %vm8260, %v8645, 0.0
  %v8724 = vadd.f32 %v8722, %v8723
  %8725 = vadd.xlane.f32.xlu0 %v8724
  %v8726 = vpop.xlane.xlu0 %8725
  %8727 = vmatprep.subr.mxu0 0.0
  %8728 = vmatpush1.msra.mxu0 0.0
  %8729 = vmatprep.subr.mxu0 0.0
  %8730 = vmatpush1.msra.mxu0 0.0
  %8731 = vmatprep.subr.mxu0 0.0
  %8732 = vmatpush1.msra.mxu0 0.0
  %8733 = vmatprep.subr.mxu0 0.0
  %8734 = vmatpush1.msra.mxu0 0.0
  %8735 = vmatprep.subr.mxu0 0.0
  %8736 = vmatpush1.msra.mxu0 0.0
  %8737 = vmatprep.subr.mxu0 0.0
  %8738 = vmatpush1.msra.mxu0 0.0
  %8739 = vmatprep.subr.mxu0 0.0
  %8740 = vmatpush1.msra.mxu0 0.0
  %8741 = vmatprep.subr.mxu0 0.0
  %8742 = vmatpush1.msra.mxu0 %v8726
  %8743 = vmatprep.subr.mxu0 0.0
  %8744 = vmatpush1.msra.mxu0 %v8717
  %8745 = vmatprep.subr.mxu0 0.0
  %8746 = vmatpush1.msra.mxu0 %v8708
  %8747 = vmatprep.subr.mxu0 0.0
  %8748 = vmatpush1.msra.mxu0 %v8699
  %8749 = vmatprep.subr.mxu0 0.0
  %8750 = vmatpush1.msra.mxu0 %v8690
  %8751 = vmatprep.subr.mxu0 0.0
  %8752 = vmatpush1.msra.mxu0 %v8681
  %8753 = vmatprep.subr.mxu0 0.0
  %8754 = vmatpush1.msra.mxu0 %v8672
  %8755 = vmatprep.subr.mxu0 0.0
  %8756 = vmatpush1.msra.mxu0 %v8663
  %8757 = vmatprep.subr.mxu0 0.0
  %8758 = vmatpush1.msra.mxu0 %v8654
  %8759 = vmatprep.subr.mxu0 0.0
  %8760 = vmatpush2.msra.mxu0 0.0
  %8761 = vmatprep.subr.mxu0 0.0
  %8762 = vmatpush2.msra.mxu0 0.0
  %8763 = vmatprep.subr.mxu0 0.0
  %8764 = vmatpush2.msra.mxu0 0.0
  %8765 = vmatprep.subr.mxu0 0.0
  %8766 = vmatpush2.msra.mxu0 0.0
  %8767 = vmatprep.subr.mxu0 0.0
  %8768 = vmatpush2.msra.mxu0 0.0
  %8769 = vmatprep.subr.mxu0 0.0
  %8770 = vmatpush2.msra.mxu0 0.0
  %8771 = vmatprep.subr.mxu0 0.0
  %8772 = vmatpush2.msra.mxu0 0.0
  %8773 = vmatprep.subr.mxu0 0.0
  %8774 = vmatpush2.msra.mxu0 0.0
  %8775 = vmatprep.subr.mxu0 0.0
  %8776 = vmatpush2.msra.mxu0 0.0
  %8777 = vmatprep.subr.mxu0 0.0
  %8778 = vmatpush2.msra.mxu0 0.0
  %8779 = vmatprep.subr.mxu0 0.0
  %8780 = vmatpush2.msra.mxu0 0.0
  %8781 = vmatprep.subr.mxu0 0.0
  %8782 = vmatpush2.msra.mxu0 0.0
  %8783 = vmatprep.subr.mxu0 0.0
  %8784 = vmatpush2.msra.mxu0 0.0
  %8785 = vmatprep.subr.mxu0 0.0
  %8786 = vmatpush2.msra.mxu0 0.0
  %8787 = vmatprep.subr.mxu0 0.0
  %8788 = vmatpush2.msra.mxu0 0.0
  %8789 = vmatprep.subr.mxu0 0.0
  %8790 = vmatpush2.msra.mxu0 0.0
  %8791 = vmatprep.mubr.f32.mxu0 0.0
  %8792 = vmatmul.mubr.f32.gmra.mxu0 %v8339
  %v8793 = vpop.f32.mrf.mxu0
  %v8794 = vadd.f32 1e-05, %v8793
  %v8795 = vpop.f32.mrf.mxu0
  %8796 = vmatprep.mubr.f32.mxu0 0.0
  %8797 = vmatmul.mubr.f32.gmra.mxu0 %v8342
  %v8798 = vpop.f32.mrf.mxu0
  %v8799 = vadd.f32 1e-05, %v8798
  %v8800 = vpop.f32.mrf.mxu0
  %8801 = vmatprep.mubr.f32.mxu0 0.0
  %8802 = vmatmul.mubr.f32.gmra.mxu0 %v8345
  %v8803 = vpop.f32.mrf.mxu0
  %v8804 = vadd.f32 1e-05, %v8803
  %v8805 = vpop.f32.mrf.mxu0
  %8806 = vmatprep.mubr.f32.mxu0 0.0
  %8807 = vmatmul.mubr.f32.gmra.mxu0 %v8348
  %v8808 = vpop.f32.mrf.mxu0
  %v8809 = vadd.f32 1e-05, %v8808
  %v8810 = vpop.f32.mrf.mxu0
  %8811 = vmatprep.mubr.f32.mxu0 0.0
  %8812 = vmatmul.mubr.f32.gmra.mxu0 %v8351
  %v8813 = vpop.f32.mrf.mxu0
  %v8814 = vadd.f32 1e-05, %v8813
  %v8815 = vpop.f32.mrf.mxu0
  %8816 = vmatprep.mubr.f32.mxu0 0.0
  %8817 = vmatmul.mubr.f32.gmra.mxu0 %v8354
  %v8818 = vpop.f32.mrf.mxu0
  %v8819 = vadd.f32 1e-05, %v8818
  %v8820 = vpop.f32.mrf.mxu0
  %8821 = vmatprep.mubr.f32.mxu0 0.0
  %8822 = vmatmul.mubr.f32.gmra.mxu0 %v8357
  %v8823 = vpop.f32.mrf.mxu0
  %v8824 = vadd.f32 1e-05, %v8823
  %v8825 = vpop.f32.mrf.mxu0
  %8826 = vmatprep.mubr.f32.mxu0 0.0
  %8827 = vmatmul.mubr.f32.gmra.mxu0 %v8360
  %v8828 = vpop.f32.mrf.mxu0
  %v8829 = vadd.f32 1e-05, %v8828
  %v8830 = vpop.f32.mrf.mxu0
  %8831 = vmatprep.mubr.f32.mxu0 0.0
  %8832 = vmatmul.mubr.f32.gmra.mxu0 %v8363
  %v8833 = vpop.f32.mrf.mxu0
  %v8834 = vadd.f32 1e-05, %v8833
  %v8835 = vpop.f32.mrf.mxu0
  %8836 = vdwg.mxu0
  %v8837 = vrsqrt.pop %v8794
  %v8838 = vrsqrt.pop %v8799
  %v8839 = vrsqrt.pop %v8804
  %v8840 = vrsqrt.pop %v8809
  %v8841 = vrsqrt.pop %v8814
  %v8842 = vrsqrt.pop %v8819
  %v8843 = vrsqrt.pop %v8824
  %v8844 = vrsqrt.pop %v8829
  %v8845 = vrsqrt.pop %v8834
  %8847 = vset.pattern.permute.xlu0 0
  %8848 = vperm.xlu0 %8847, %v8837
  %v8849 = vpop.permute.xlu0 %8848
  %8852 = vset.pattern.permute.xlu0 0
  %8853 = vperm.xlu0 %8852, %v8838
  %v8854 = vpop.permute.xlu0 %8853
  %8857 = vset.pattern.permute.xlu0 0
  %8858 = vperm.xlu0 %8857, %v8839
  %v8859 = vpop.permute.xlu0 %8858
  %8862 = vset.pattern.permute.xlu0 0
  %8863 = vperm.xlu0 %8862, %v8840
  %v8864 = vpop.permute.xlu0 %8863
  %8867 = vset.pattern.permute.xlu0 0
  %8868 = vperm.xlu0 %8867, %v8841
  %v8869 = vpop.permute.xlu0 %8868
  %8872 = vset.pattern.permute.xlu0 0
  %8873 = vperm.xlu0 %8872, %v8842
  %v8874 = vpop.permute.xlu0 %8873
  %8877 = vset.pattern.permute.xlu0 0
  %8878 = vperm.xlu0 %8877, %v8843
  %v8879 = vpop.permute.xlu0 %8878
  %8882 = vset.pattern.permute.xlu0 0
  %8883 = vperm.xlu0 %8882, %v8844
  %v8884 = vpop.permute.xlu0 %8883
  %8887 = vset.pattern.permute.xlu0 0
  %8888 = vperm.xlu0 %8887, %v8845
  %v8889 = vpop.permute.xlu0 %8888
  %v8891 = vmul.f32 %v8520, %v8849
  %v8892 = vmul.f32 %v8521, %v8849
  %v8893 = vmul.f32 %v8522, %v8849
  %v8894 = vmul.f32 %v8523, %v8849
  %v8895 = vmul.f32 %v8524, %v8849
  %v8896 = vmul.f32 %v8525, %v8849
  %v8897 = vmul.f32 %v8526, %v8849
  %v8898 = vmul.f32 %v8527, %v8854
  %v8899 = vmul.f32 %v8528, %v8854
  %v8900 = vmul.f32 %v8529, %v8854
  %v8901 = vmul.f32 %v8530, %v8854
  %v8902 = vmul.f32 %v8531, %v8854
  %v8903 = vmul.f32 %v8532, %v8854
  %v8904 = vmul.f32 %v8533, %v8854
  %v8905 = vmul.f32 %v8534, %v8859
  %v8906 = vmul.f32 %v8535, %v8859
  %v8907 = vmul.f32 %v8536, %v8859
  %v8908 = vmul.f32 %v8537, %v8859
  %v8909 = vmul.f32 %v8538, %v8859
  %v8910 = vmul.f32 %v8539, %v8859
  %v8911 = vmul.f32 %v8540, %v8859
  %v8912 = vmul.f32 %v8541, %v8864
  %v8913 = vmul.f32 %v8542, %v8864
  %v8914 = vmul.f32 %v8543, %v8864
  %v8915 = vmul.f32 %v8544, %v8864
  %v8916 = vmul.f32 %v8545, %v8864
  %v8917 = vmul.f32 %v8546, %v8864
  %v8918 = vmul.f32 %v8547, %v8864
  %v8919 = vmul.f32 %v8548, %v8869
  %v8920 = vmul.f32 %v8549, %v8869
  %v8921 = vmul.f32 %v8550, %v8869
  %v8922 = vmul.f32 %v8551, %v8869
  %v8923 = vmul.f32 %v8552, %v8869
  %v8924 = vmul.f32 %v8553, %v8869
  %v8925 = vmul.f32 %v8554, %v8869
  %v8926 = vmul.f32 %v8555, %v8874
  %v8927 = vmul.f32 %v8556, %v8874
  %v8928 = vmul.f32 %v8557, %v8874
  %v8929 = vmul.f32 %v8558, %v8874
  %v8930 = vmul.f32 %v8559, %v8874
  %v8931 = vmul.f32 %v8560, %v8874
  %v8932 = vmul.f32 %v8561, %v8874
  %v8933 = vmul.f32 %v8562, %v8879
  %v8934 = vmul.f32 %v8563, %v8879
  %v8935 = vmul.f32 %v8564, %v8879
  %v8936 = vmul.f32 %v8565, %v8879
  %v8937 = vmul.f32 %v8566, %v8879
  %v8938 = vmul.f32 %v8567, %v8879
  %v8939 = vmul.f32 %v8568, %v8879
  %v8940 = vmul.f32 %v8569, %v8884
  %v8941 = vmul.f32 %v8570, %v8884
  %v8942 = vmul.f32 %v8571, %v8884
  %v8943 = vmul.f32 %v8572, %v8884
  %v8944 = vmul.f32 %v8573, %v8884
  %v8945 = vmul.f32 %v8574, %v8884
  %v8946 = vmul.f32 %v8575, %v8884
  %v8947 = vmul.f32 %v8576, %v8889
  %v8948 = vmul.f32 %v8577, %v8889
  %v8949 = vmul.f32 %v8578, %v8889
  %v8950 = vmul.f32 %v8579, %v8889
  %v8951 = vmul.f32 %v8580, %v8889
  %v8952 = vmul.f32 %v8581, %v8889
  %v8953 = vmul.f32 %v8582, %v8889
  %8955 = vset.pattern.permute.xlu0 0
  %8956 = vperm.xlu0 %8955, %v8237
  %v8957 = vpop.permute.xlu0 %8956
  %8960 = vset.pattern.permute.xlu0 0
  %8961 = vperm.xlu0 %8960, %v8238
  %v8962 = vpop.permute.xlu0 %8961
  %8965 = vset.pattern.permute.xlu0 0
  %8966 = vperm.xlu0 %8965, %v8239
  %v8967 = vpop.permute.xlu0 %8966
  %8970 = vset.pattern.permute.xlu0 0
  %8971 = vperm.xlu0 %8970, %v8240
  %v8972 = vpop.permute.xlu0 %8971
  %8975 = vset.pattern.permute.xlu0 0
  %8976 = vperm.xlu0 %8975, %v8241
  %v8977 = vpop.permute.xlu0 %8976
  %8980 = vset.pattern.permute.xlu0 0
  %8981 = vperm.xlu0 %8980, %v8242
  %v8982 = vpop.permute.xlu0 %8981
  %8985 = vset.pattern.permute.xlu0 0
  %8986 = vperm.xlu0 %8985, %v8243
  %v8987 = vpop.permute.xlu0 %8986
  %8990 = vset.pattern.permute.xlu0 0
  %8991 = vperm.xlu0 %8990, %v8244
  %v8992 = vpop.permute.xlu0 %8991
  %8995 = vset.pattern.permute.xlu0 0
  %8996 = vperm.xlu0 %8995, %v8245
  %v8997 = vpop.permute.xlu0 %8996
  %v8999 = vmul.f32 %v8891, %v8957
  %v9000 = vmul.f32 %v8892, %v8957
  %v9001 = vmul.f32 %v8893, %v8957
  %v9002 = vmul.f32 %v8894, %v8957
  %v9003 = vmul.f32 %v8895, %v8957
  %v9004 = vmul.f32 %v8896, %v8957
  %v9005 = vmul.f32 %v8897, %v8957
  %v9006 = vmul.f32 %v8898, %v8962
  %v9007 = vmul.f32 %v8899, %v8962
  %v9008 = vmul.f32 %v8900, %v8962
  %v9009 = vmul.f32 %v8901, %v8962
  %v9010 = vmul.f32 %v8902, %v8962
  %v9011 = vmul.f32 %v8903, %v8962
  %v9012 = vmul.f32 %v8904, %v8962
  %v9013 = vmul.f32 %v8905, %v8967
  %v9014 = vmul.f32 %v8906, %v8967
  %v9015 = vmul.f32 %v8907, %v8967
  %v9016 = vmul.f32 %v8908, %v8967
  %v9017 = vmul.f32 %v8909, %v8967
  %v9018 = vmul.f32 %v8910, %v8967
  %v9019 = vmul.f32 %v8911, %v8967
  %v9020 = vmul.f32 %v8912, %v8972
  %v9021 = vmul.f32 %v8913, %v8972
  %v9022 = vmul.f32 %v8914, %v8972
  %v9023 = vmul.f32 %v8915, %v8972
  %v9024 = vmul.f32 %v8916, %v8972
  %v9025 = vmul.f32 %v8917, %v8972
  %v9026 = vmul.f32 %v8918, %v8972
  %v9027 = vmul.f32 %v8919, %v8977
  %v9028 = vmul.f32 %v8920, %v8977
  %v9029 = vmul.f32 %v8921, %v8977
  %v9030 = vmul.f32 %v8922, %v8977
  %v9031 = vmul.f32 %v8923, %v8977
  %v9032 = vmul.f32 %v8924, %v8977
  %v9033 = vmul.f32 %v8925, %v8977
  %v9034 = vmul.f32 %v8926, %v8982
  %v9035 = vmul.f32 %v8927, %v8982
  %v9036 = vmul.f32 %v8928, %v8982
  %v9037 = vmul.f32 %v8929, %v8982
  %v9038 = vmul.f32 %v8930, %v8982
  %v9039 = vmul.f32 %v8931, %v8982
  %v9040 = vmul.f32 %v8932, %v8982
  %v9041 = vmul.f32 %v8933, %v8987
  %v9042 = vmul.f32 %v8934, %v8987
  %v9043 = vmul.f32 %v8935, %v8987
  %v9044 = vmul.f32 %v8936, %v8987
  %v9045 = vmul.f32 %v8937, %v8987
  %v9046 = vmul.f32 %v8938, %v8987
  %v9047 = vmul.f32 %v8939, %v8987
  %v9048 = vmul.f32 %v8940, %v8992
  %v9049 = vmul.f32 %v8941, %v8992
  %v9050 = vmul.f32 %v8942, %v8992
  %v9051 = vmul.f32 %v8943, %v8992
  %v9052 = vmul.f32 %v8944, %v8992
  %v9053 = vmul.f32 %v8945, %v8992
  %v9054 = vmul.f32 %v8946, %v8992
  %v9055 = vmul.f32 %v8947, %v8997
  %v9056 = vmul.f32 %v8948, %v8997
  %v9057 = vmul.f32 %v8949, %v8997
  %v9058 = vmul.f32 %v8950, %v8997
  %v9059 = vmul.f32 %v8951, %v8997
  %v9060 = vmul.f32 %v8952, %v8997
  %v9061 = vmul.f32 %v8953, %v8997
  %9063 = vset.pattern.permute.xlu0 0
  %9064 = vperm.xlu0 %9063, %v8246
  %v9065 = vpop.permute.xlu0 %9064
  %9068 = vset.pattern.permute.xlu0 0
  %9069 = vperm.xlu0 %9068, %v8247
  %v9070 = vpop.permute.xlu0 %9069
  %9073 = vset.pattern.permute.xlu0 0
  %9074 = vperm.xlu0 %9073, %v8248
  %v9075 = vpop.permute.xlu0 %9074
  %9078 = vset.pattern.permute.xlu0 0
  %9079 = vperm.xlu0 %9078, %v8249
  %v9080 = vpop.permute.xlu0 %9079
  %9083 = vset.pattern.permute.xlu0 0
  %9084 = vperm.xlu0 %9083, %v8250
  %v9085 = vpop.permute.xlu0 %9084
  %9088 = vset.pattern.permute.xlu0 0
  %9089 = vperm.xlu0 %9088, %v8251
  %v9090 = vpop.permute.xlu0 %9089
  %9093 = vset.pattern.permute.xlu0 0
  %9094 = vperm.xlu0 %9093, %v8252
  %v9095 = vpop.permute.xlu0 %9094
  %9098 = vset.pattern.permute.xlu0 0
  %9099 = vperm.xlu0 %9098, %v8253
  %v9100 = vpop.permute.xlu0 %9099
  %9103 = vset.pattern.permute.xlu0 0
  %9104 = vperm.xlu0 %9103, %v8254
  %v9105 = vpop.permute.xlu0 %9104
  %v9107 = vadd.f32 %v8999, %v9065
  %v9108 = vadd.f32 %v9000, %v9065
  %v9109 = vadd.f32 %v9001, %v9065
  %v9110 = vadd.f32 %v9002, %v9065
  %v9111 = vadd.f32 %v9003, %v9065
  %v9112 = vadd.f32 %v9004, %v9065
  %v9113 = vadd.f32 %v9005, %v9065
  %v9114 = vadd.f32 %v9006, %v9070
  %v9115 = vadd.f32 %v9007, %v9070
  %v9116 = vadd.f32 %v9008, %v9070
  %v9117 = vadd.f32 %v9009, %v9070
  %v9118 = vadd.f32 %v9010, %v9070
  %v9119 = vadd.f32 %v9011, %v9070
  %v9120 = vadd.f32 %v9012, %v9070
  %v9121 = vadd.f32 %v9013, %v9075
  %v9122 = vadd.f32 %v9014, %v9075
  %v9123 = vadd.f32 %v9015, %v9075
  %v9124 = vadd.f32 %v9016, %v9075
  %v9125 = vadd.f32 %v9017, %v9075
  %v9126 = vadd.f32 %v9018, %v9075
  %v9127 = vadd.f32 %v9019, %v9075
  %v9128 = vadd.f32 %v9020, %v9080
  %v9129 = vadd.f32 %v9021, %v9080
  %v9130 = vadd.f32 %v9022, %v9080
  %v9131 = vadd.f32 %v9023, %v9080
  %v9132 = vadd.f32 %v9024, %v9080
  %v9133 = vadd.f32 %v9025, %v9080
  %v9134 = vadd.f32 %v9026, %v9080
  %v9135 = vadd.f32 %v9027, %v9085
  %v9136 = vadd.f32 %v9028, %v9085
  %v9137 = vadd.f32 %v9029, %v9085
  %v9138 = vadd.f32 %v9030, %v9085
  %v9139 = vadd.f32 %v9031, %v9085
  %v9140 = vadd.f32 %v9032, %v9085
  %v9141 = vadd.f32 %v9033, %v9085
  %v9142 = vadd.f32 %v9034, %v9090
  %v9143 = vadd.f32 %v9035, %v9090
  %v9144 = vadd.f32 %v9036, %v9090
  %v9145 = vadd.f32 %v9037, %v9090
  %v9146 = vadd.f32 %v9038, %v9090
  %v9147 = vadd.f32 %v9039, %v9090
  %v9148 = vadd.f32 %v9040, %v9090
  %v9149 = vadd.f32 %v9041, %v9095
  %v9150 = vadd.f32 %v9042, %v9095
  %v9151 = vadd.f32 %v9043, %v9095
  %v9152 = vadd.f32 %v9044, %v9095
  %v9153 = vadd.f32 %v9045, %v9095
  %v9154 = vadd.f32 %v9046, %v9095
  %v9155 = vadd.f32 %v9047, %v9095
  %v9156 = vadd.f32 %v9048, %v9100
  %v9157 = vadd.f32 %v9049, %v9100
  %v9158 = vadd.f32 %v9050, %v9100
  %v9159 = vadd.f32 %v9051, %v9100
  %v9160 = vadd.f32 %v9052, %v9100
  %v9161 = vadd.f32 %v9053, %v9100
  %v9162 = vadd.f32 %v9054, %v9100
  %v9163 = vadd.f32 %v9055, %v9105
  %v9164 = vadd.f32 %v9056, %v9105
  %v9165 = vadd.f32 %v9057, %v9105
  %v9166 = vadd.f32 %v9058, %v9105
  %v9167 = vadd.f32 %v9059, %v9105
  %v9168 = vadd.f32 %v9060, %v9105
  %v9169 = vadd.f32 %v9061, %v9105
  %v9170 = vld [vmem:[%s20] sm:$0x3]
  %v9172 = vsel %vm8337, %v9170, 0
  %9174 = vmatprep.subr.mxu0 0.0
  %9175 = vmatpush1.msra.mxu0 0.0
  %9176 = vmatprep.subr.mxu0 0.0
  %9177 = vmatpush1.msra.mxu0 0.0
  %9178 = vmatprep.subr.mxu0 0.0
  %9179 = vmatpush1.msra.mxu0 0.0
  %9180 = vmatprep.subr.mxu0 0.0
  %9181 = vmatpush1.msra.mxu0 0.0
  %9182 = vmatprep.subr.mxu0 0.0
  %9183 = vmatpush1.msra.mxu0 0.0
  %9184 = vmatprep.subr.mxu0 0.0
  %9185 = vmatpush1.msra.mxu0 0.0
  %9186 = vmatprep.subr.mxu0 0.0
  %9187 = vmatpush1.msra.mxu0 0.0
  %9188 = vmatprep.subr.mxu0 %v9164
  %9189 = vmatpush1.msra.mxu0 %v9163
  %9190 = vmatprep.subr.mxu0 %v9157
  %9191 = vmatpush1.msra.mxu0 %v9156
  %9192 = vmatprep.subr.mxu0 %v9150
  %9193 = vmatpush1.msra.mxu0 %v9149
  %9194 = vmatprep.subr.mxu0 %v9143
  %9195 = vmatpush1.msra.mxu0 %v9142
  %9196 = vmatprep.subr.mxu0 %v9136
  %9197 = vmatpush1.msra.mxu0 %v9135
  %9198 = vmatprep.subr.mxu0 %v9129
  %9199 = vmatpush1.msra.mxu0 %v9128
  %9200 = vmatprep.subr.mxu0 %v9122
  %9201 = vmatpush1.msra.mxu0 %v9121
  %9202 = vmatprep.subr.mxu0 %v9115
  %9203 = vmatpush1.msra.mxu0 %v9114
  %9204 = vmatprep.subr.mxu0 %v9108
  %9205 = vmatpush1.msra.mxu0 %v9107
  %9206 = vmatprep.subr.mxu0 0.0
  %9207 = vmatpush2.msra.mxu0 0.0
  %9208 = vmatprep.subr.mxu0 0.0
  %9209 = vmatpush2.msra.mxu0 0.0
  %9210 = vmatprep.subr.mxu0 0.0
  %9211 = vmatpush2.msra.mxu0 0.0
  %9212 = vmatprep.subr.mxu0 0.0
  %9213 = vmatpush2.msra.mxu0 0.0
  %9214 = vmatprep.subr.mxu0 0.0
  %9215 = vmatpush2.msra.mxu0 0.0
  %9216 = vmatprep.subr.mxu0 0.0
  %9217 = vmatpush2.msra.mxu0 0.0
  %9218 = vmatprep.subr.mxu0 0.0
  %9219 = vmatpush2.msra.mxu0 0.0
  %9220 = vmatprep.subr.mxu0 0.0
  %9221 = vmatpush2.msra.mxu0 0.0
  %9222 = vmatprep.subr.mxu0 0.0
  %9223 = vmatpush2.msra.mxu0 0.0
  %9224 = vmatprep.subr.mxu0 0.0
  %9225 = vmatpush2.msra.mxu0 0.0
  %9226 = vmatprep.subr.mxu0 0.0
  %9227 = vmatpush2.msra.mxu0 0.0
  %9228 = vmatprep.subr.mxu0 0.0
  %9229 = vmatpush2.msra.mxu0 0.0
  %9230 = vmatprep.subr.mxu0 0.0
  %9231 = vmatpush2.msra.mxu0 0.0
  %9232 = vmatprep.subr.mxu0 0.0
  %9233 = vmatpush2.msra.mxu0 0.0
  %9234 = vmatprep.subr.mxu0 0.0
  %9235 = vmatpush2.msra.mxu0 0.0
  %9236 = vmatprep.subr.mxu0 0.0
  %9237 = vmatpush2.msra.mxu0 0.0
  %9238 = vmatprep.mubr.f32.mxu0 0.0
  %9239 = vmatmul.mubr.f32.gmra.mxu0 %v9172
  %v9240 = vpop.f32.mrf.mxu0
  %v9241 = vadd.f32 0.0, %v9240
  %v9242 = vpop.f32.mrf.mxu0
  %v9243 = vadd.f32 0.0, %v9242
  %9244 = vdwg.mxu0
  %9245 = vmatprep.subr.mxu0 0.0
  %9246 = vmatpush1.msra.mxu0 0.0
  %9247 = vmatprep.subr.mxu0 0.0
  %9248 = vmatpush1.msra.mxu0 0.0
  %9249 = vmatprep.subr.mxu0 0.0
  %9250 = vmatpush1.msra.mxu0 0.0
  %9251 = vmatprep.subr.mxu0 0.0
  %9252 = vmatpush1.msra.mxu0 0.0
  %9253 = vmatprep.subr.mxu0 0.0
  %9254 = vmatpush1.msra.mxu0 0.0
  %9255 = vmatprep.subr.mxu0 0.0
  %9256 = vmatpush1.msra.mxu0 0.0
  %9257 = vmatprep.subr.mxu0 0.0
  %9258 = vmatpush1.msra.mxu0 0.0
  %9259 = vmatprep.subr.mxu0 %v9166
  %9260 = vmatpush1.msra.mxu0 %v9165
  %9261 = vmatprep.subr.mxu0 %v9159
  %9262 = vmatpush1.msra.mxu0 %v9158
  %9263 = vmatprep.subr.mxu0 %v9152
  %9264 = vmatpush1.msra.mxu0 %v9151
  %9265 = vmatprep.subr.mxu0 %v9145
  %9266 = vmatpush1.msra.mxu0 %v9144
  %9267 = vmatprep.subr.mxu0 %v9138
  %9268 = vmatpush1.msra.mxu0 %v9137
  %9269 = vmatprep.subr.mxu0 %v9131
  %9270 = vmatpush1.msra.mxu0 %v9130
  %9271 = vmatprep.subr.mxu0 %v9124
  %9272 = vmatpush1.msra.mxu0 %v9123
  %9273 = vmatprep.subr.mxu0 %v9117
  %9274 = vmatpush1.msra.mxu0 %v9116
  %9275 = vmatprep.subr.mxu0 %v9110
  %9276 = vmatpush1.msra.mxu0 %v9109
  %9277 = vmatprep.subr.mxu0 0.0
  %9278 = vmatpush2.msra.mxu0 0.0
  %9279 = vmatprep.subr.mxu0 0.0
  %9280 = vmatpush2.msra.mxu0 0.0
  %9281 = vmatprep.subr.mxu0 0.0
  %9282 = vmatpush2.msra.mxu0 0.0
  %9283 = vmatprep.subr.mxu0 0.0
  %9284 = vmatpush2.msra.mxu0 0.0
  %9285 = vmatprep.subr.mxu0 0.0
  %9286 = vmatpush2.msra.mxu0 0.0
  %9287 = vmatprep.subr.mxu0 0.0
  %9288 = vmatpush2.msra.mxu0 0.0
  %9289 = vmatprep.subr.mxu0 0.0
  %9290 = vmatpush2.msra.mxu0 0.0
  %9291 = vmatprep.subr.mxu0 0.0
  %9292 = vmatpush2.msra.mxu0 0.0
  %9293 = vmatprep.subr.mxu0 0.0
  %9294 = vmatpush2.msra.mxu0 0.0
  %9295 = vmatprep.subr.mxu0 0.0
  %9296 = vmatpush2.msra.mxu0 0.0
  %9297 = vmatprep.subr.mxu0 0.0
  %9298 = vmatpush2.msra.mxu0 0.0
  %9299 = vmatprep.subr.mxu0 0.0
  %9300 = vmatpush2.msra.mxu0 0.0
  %9301 = vmatprep.subr.mxu0 0.0
  %9302 = vmatpush2.msra.mxu0 0.0
  %9303 = vmatprep.subr.mxu0 0.0
  %9304 = vmatpush2.msra.mxu0 0.0
  %9305 = vmatprep.subr.mxu0 0.0
  %9306 = vmatpush2.msra.mxu0 0.0
  %9307 = vmatprep.subr.mxu0 0.0
  %9308 = vmatpush2.msra.mxu0 0.0
  %9309 = vmatprep.mubr.f32.mxu0 0.0
  %9310 = vmatmul.mubr.f32.gmra.mxu0 %v9172
  %v9311 = vpop.f32.mrf.mxu0
  %v9312 = vadd.f32 0.0, %v9311
  %v9313 = vpop.f32.mrf.mxu0
  %v9314 = vadd.f32 0.0, %v9313
  %9315 = vdwg.mxu0
  %9316 = vmatprep.subr.mxu0 0.0
  %9317 = vmatpush1.msra.mxu0 0.0
  %9318 = vmatprep.subr.mxu0 0.0
  %9319 = vmatpush1.msra.mxu0 0.0
  %9320 = vmatprep.subr.mxu0 0.0
  %9321 = vmatpush1.msra.mxu0 0.0
  %9322 = vmatprep.subr.mxu0 0.0
  %9323 = vmatpush1.msra.mxu0 0.0
  %9324 = vmatprep.subr.mxu0 0.0
  %9325 = vmatpush1.msra.mxu0 0.0
  %9326 = vmatprep.subr.mxu0 0.0
  %9327 = vmatpush1.msra.mxu0 0.0
  %9328 = vmatprep.subr.mxu0 0.0
  %9329 = vmatpush1.msra.mxu0 0.0
  %9330 = vmatprep.subr.mxu0 %v9168
  %9331 = vmatpush1.msra.mxu0 %v9167
  %9332 = vmatprep.subr.mxu0 %v9161
  %9333 = vmatpush1.msra.mxu0 %v9160
  %9334 = vmatprep.subr.mxu0 %v9154
  %9335 = vmatpush1.msra.mxu0 %v9153
  %9336 = vmatprep.subr.mxu0 %v9147
  %9337 = vmatpush1.msra.mxu0 %v9146
  %9338 = vmatprep.subr.mxu0 %v9140
  %9339 = vmatpush1.msra.mxu0 %v9139
  %9340 = vmatprep.subr.mxu0 %v9133
  %9341 = vmatpush1.msra.mxu0 %v9132
  %9342 = vmatprep.subr.mxu0 %v9126
  %9343 = vmatpush1.msra.mxu0 %v9125
  %9344 = vmatprep.subr.mxu0 %v9119
  %9345 = vmatpush1.msra.mxu0 %v9118
  %9346 = vmatprep.subr.mxu0 %v9112
  %9347 = vmatpush1.msra.mxu0 %v9111
  %9348 = vmatprep.subr.mxu0 0.0
  %9349 = vmatpush2.msra.mxu0 0.0
  %9350 = vmatprep.subr.mxu0 0.0
  %9351 = vmatpush2.msra.mxu0 0.0
  %9352 = vmatprep.subr.mxu0 0.0
  %9353 = vmatpush2.msra.mxu0 0.0
  %9354 = vmatprep.subr.mxu0 0.0
  %9355 = vmatpush2.msra.mxu0 0.0
  %9356 = vmatprep.subr.mxu0 0.0
  %9357 = vmatpush2.msra.mxu0 0.0
  %9358 = vmatprep.subr.mxu0 0.0
  %9359 = vmatpush2.msra.mxu0 0.0
  %9360 = vmatprep.subr.mxu0 0.0
  %9361 = vmatpush2.msra.mxu0 0.0
  %9362 = vmatprep.subr.mxu0 0.0
  %9363 = vmatpush2.msra.mxu0 0.0
  %9364 = vmatprep.subr.mxu0 0.0
  %9365 = vmatpush2.msra.mxu0 0.0
  %9366 = vmatprep.subr.mxu0 0.0
  %9367 = vmatpush2.msra.mxu0 0.0
  %9368 = vmatprep.subr.mxu0 0.0
  %9369 = vmatpush2.msra.mxu0 0.0
  %9370 = vmatprep.subr.mxu0 0.0
  %9371 = vmatpush2.msra.mxu0 0.0
  %9372 = vmatprep.subr.mxu0 0.0
  %9373 = vmatpush2.msra.mxu0 0.0
  %9374 = vmatprep.subr.mxu0 0.0
  %9375 = vmatpush2.msra.mxu0 0.0
  %9376 = vmatprep.subr.mxu0 0.0
  %9377 = vmatpush2.msra.mxu0 0.0
  %9378 = vmatprep.subr.mxu0 0.0
  %9379 = vmatpush2.msra.mxu0 0.0
  %9380 = vmatprep.mubr.f32.mxu0 0.0
  %9381 = vmatmul.mubr.f32.gmra.mxu0 %v9172
  %v9382 = vpop.f32.mrf.mxu0
  %v9383 = vadd.f32 0.0, %v9382
  %v9384 = vpop.f32.mrf.mxu0
  %v9385 = vadd.f32 0.0, %v9384
  %9386 = vdwg.mxu0
  %9387 = vmatprep.subr.mxu0 0.0
  %9388 = vmatpush1.msra.mxu0 0.0
  %9389 = vmatprep.subr.mxu0 0.0
  %9390 = vmatpush1.msra.mxu0 0.0
  %9391 = vmatprep.subr.mxu0 0.0
  %9392 = vmatpush1.msra.mxu0 0.0
  %9393 = vmatprep.subr.mxu0 0.0
  %9394 = vmatpush1.msra.mxu0 0.0
  %9395 = vmatprep.subr.mxu0 0.0
  %9396 = vmatpush1.msra.mxu0 0.0
  %9397 = vmatprep.subr.mxu0 0.0
  %9398 = vmatpush1.msra.mxu0 0.0
  %9399 = vmatprep.subr.mxu0 0.0
  %9400 = vmatpush1.msra.mxu0 0.0
  %9401 = vmatprep.subr.mxu0 0.0
  %9402 = vmatpush1.msra.mxu0 %v9169
  %9403 = vmatprep.subr.mxu0 0.0
  %9404 = vmatpush1.msra.mxu0 %v9162
  %9405 = vmatprep.subr.mxu0 0.0
  %9406 = vmatpush1.msra.mxu0 %v9155
  %9407 = vmatprep.subr.mxu0 0.0
  %9408 = vmatpush1.msra.mxu0 %v9148
  %9409 = vmatprep.subr.mxu0 0.0
  %9410 = vmatpush1.msra.mxu0 %v9141
  %9411 = vmatprep.subr.mxu0 0.0
  %9412 = vmatpush1.msra.mxu0 %v9134
  %9413 = vmatprep.subr.mxu0 0.0
  %9414 = vmatpush1.msra.mxu0 %v9127
  %9415 = vmatprep.subr.mxu0 0.0
  %9416 = vmatpush1.msra.mxu0 %v9120
  %9417 = vmatprep.subr.mxu0 0.0
  %9418 = vmatpush1.msra.mxu0 %v9113
  %9419 = vmatprep.subr.mxu0 0.0
  %9420 = vmatpush2.msra.mxu0 0.0
  %9421 = vmatprep.subr.mxu0 0.0
  %9422 = vmatpush2.msra.mxu0 0.0
  %9423 = vmatprep.subr.mxu0 0.0
  %9424 = vmatpush2.msra.mxu0 0.0
  %9425 = vmatprep.subr.mxu0 0.0
  %9426 = vmatpush2.msra.mxu0 0.0
  %9427 = vmatprep.subr.mxu0 0.0
  %9428 = vmatpush2.msra.mxu0 0.0
  %9429 = vmatprep.subr.mxu0 0.0
  %9430 = vmatpush2.msra.mxu0 0.0
  %9431 = vmatprep.subr.mxu0 0.0
  %9432 = vmatpush2.msra.mxu0 0.0
  %9433 = vmatprep.subr.mxu0 0.0
  %9434 = vmatpush2.msra.mxu0 0.0
  %9435 = vmatprep.subr.mxu0 0.0
  %9436 = vmatpush2.msra.mxu0 0.0
  %9437 = vmatprep.subr.mxu0 0.0
  %9438 = vmatpush2.msra.mxu0 0.0
  %9439 = vmatprep.subr.mxu0 0.0
  %9440 = vmatpush2.msra.mxu0 0.0
  %9441 = vmatprep.subr.mxu0 0.0
  %9442 = vmatpush2.msra.mxu0 0.0
  %9443 = vmatprep.subr.mxu0 0.0
  %9444 = vmatpush2.msra.mxu0 0.0
  %9445 = vmatprep.subr.mxu0 0.0
  %9446 = vmatpush2.msra.mxu0 0.0
  %9447 = vmatprep.subr.mxu0 0.0
  %9448 = vmatpush2.msra.mxu0 0.0
  %9449 = vmatprep.subr.mxu0 0.0
  %9450 = vmatpush2.msra.mxu0 0.0
  %9451 = vmatprep.mubr.f32.mxu0 0.0
  %9452 = vmatmul.mubr.f32.gmra.mxu0 %v9172
  %v9453 = vpop.f32.mrf.mxu0
  %v9454 = vadd.f32 0.0, %v9453
  %v9455 = vpop.f32.mrf.mxu0
  %9456 = vdwg.mxu0
  %9464 = vrot.lane.b32.xlu0 %v9241, 99
  %v9465 = vpop.permute.xlu0 %9464
  %9466 = vrot.lane.b32.xlu0 %v9243, 99
  %v9467 = vpop.permute.xlu0 %9466
  %9468 = vrot.lane.b32.xlu0 %v9312, 99
  %v9469 = vpop.permute.xlu0 %9468
  %9470 = vrot.lane.b32.xlu0 %v9314, 99
  %v9471 = vpop.permute.xlu0 %9470
  %9472 = vrot.lane.b32.xlu0 %v9383, 99
  %v9473 = vpop.permute.xlu0 %9472
  %9474 = vrot.lane.b32.xlu0 %v9385, 99
  %v9475 = vpop.permute.xlu0 %9474
  %9476 = vrot.lane.b32.xlu0 %v9454, 99
  %v9477 = vpop.permute.xlu0 %9476
  %vm9478 = vcmask 809984
  %v9479 = vsel %vm9478, %v9465, %v9467
  %v9480 = vsel %vm9478, %v9467, %v9469
  %v9481 = vsel %vm9478, %v9469, %v9471
  %v9482 = vsel %vm9478, %v9471, %v9473
  %v9483 = vsel %vm9478, %v9473, %v9475
  %v9484 = vsel %vm9478, %v9475, %v9477
  %vm9491 = vcmask 941056
  %v9492 = vsel %vm9491, %v9484, 0.0
  %v9493 = vld [vmem:[%s21] sm:$0x7f]
  %v9495 = vlaneseq
  %v9496 = vshrl.u32 %v9495, 7
  %v9497 = vsub.s32 0, %v9496
  %v9498 = vrot.slane %v9493, %v9497
  %v9499 = vlaneseq
  %v9500 = vshrl.u32 %v9499, 7
  %v9501 = vsub.s32 1, %v9500
  %v9502 = vrot.slane %v9493, %v9501
  %v9503 = vlaneseq
  %v9504 = vshrl.u32 %v9503, 7
  %v9505 = vsub.s32 2, %v9504
  %v9506 = vrot.slane %v9493, %v9505
  %v9507 = vlaneseq
  %v9508 = vshrl.u32 %v9507, 7
  %v9509 = vsub.s32 3, %v9508
  %v9510 = vrot.slane %v9493, %v9509
  %v9511 = vlaneseq
  %v9512 = vshrl.u32 %v9511, 7
  %v9513 = vsub.s32 4, %v9512
  %v9514 = vrot.slane %v9493, %v9513
  %v9515 = vlaneseq
  %v9516 = vshrl.u32 %v9515, 7
  %v9517 = vsub.s32 5, %v9516
  %v9518 = vrot.slane %v9493, %v9517
  %v9519 = vlaneseq
  %v9520 = vshrl.u32 %v9519, 7
  %v9521 = vsub.s32 6, %v9520
  %v9522 = vrot.slane %v9493, %v9521
  %v9530 = vmul.f32 %v9479, %v9498
  %v9531 = vmul.f32 %v9480, %v9502
  %v9532 = vmul.f32 %v9481, %v9506
  %v9533 = vmul.f32 %v9482, %v9510
  %v9534 = vmul.f32 %v9483, %v9514
  %v9535 = vmul.f32 %v9492, %v9518
  %v9536 = vmul.f32 %v9522, 0.0
  %s9537 = scalar_lea.vmem %s20, 2
  %v9538 = vld [vmem:[%s9537] sm:$0x3]
  %v9540 = vsel %vm8337, %v9538, 0
  %9542 = vmatprep.subr.mxu0 0.0
  %9543 = vmatpush1.msra.mxu0 0.0
  %9544 = vmatprep.subr.mxu0 0.0
  %9545 = vmatpush1.msra.mxu0 0.0
  %9546 = vmatprep.subr.mxu0 0.0
  %9547 = vmatpush1.msra.mxu0 0.0
  %9548 = vmatprep.subr.mxu0 0.0
  %9549 = vmatpush1.msra.mxu0 0.0
  %9550 = vmatprep.subr.mxu0 0.0
  %9551 = vmatpush1.msra.mxu0 0.0
  %9552 = vmatprep.subr.mxu0 0.0
  %9553 = vmatpush1.msra.mxu0 0.0
  %9554 = vmatprep.subr.mxu0 0.0
  %9555 = vmatpush1.msra.mxu0 0.0
  %9556 = vmatprep.subr.mxu0 %v9164
  %9557 = vmatpush1.msra.mxu0 %v9163
  %9558 = vmatprep.subr.mxu0 %v9157
  %9559 = vmatpush1.msra.mxu0 %v9156
  %9560 = vmatprep.subr.mxu0 %v9150
  %9561 = vmatpush1.msra.mxu0 %v9149
  %9562 = vmatprep.subr.mxu0 %v9143
  %9563 = vmatpush1.msra.mxu0 %v9142
  %9564 = vmatprep.subr.mxu0 %v9136
  %9565 = vmatpush1.msra.mxu0 %v9135
  %9566 = vmatprep.subr.mxu0 %v9129
  %9567 = vmatpush1.msra.mxu0 %v9128
  %9568 = vmatprep.subr.mxu0 %v9122
  %9569 = vmatpush1.msra.mxu0 %v9121
  %9570 = vmatprep.subr.mxu0 %v9115
  %9571 = vmatpush1.msra.mxu0 %v9114
  %9572 = vmatprep.subr.mxu0 %v9108
  %9573 = vmatpush1.msra.mxu0 %v9107
  %9574 = vmatprep.subr.mxu0 0.0
  %9575 = vmatpush2.msra.mxu0 0.0
  %9576 = vmatprep.subr.mxu0 0.0
  %9577 = vmatpush2.msra.mxu0 0.0
  %9578 = vmatprep.subr.mxu0 0.0
  %9579 = vmatpush2.msra.mxu0 0.0
  %9580 = vmatprep.subr.mxu0 0.0
  %9581 = vmatpush2.msra.mxu0 0.0
  %9582 = vmatprep.subr.mxu0 0.0
  %9583 = vmatpush2.msra.mxu0 0.0
  %9584 = vmatprep.subr.mxu0 0.0
  %9585 = vmatpush2.msra.mxu0 0.0
  %9586 = vmatprep.subr.mxu0 0.0
  %9587 = vmatpush2.msra.mxu0 0.0
  %9588 = vmatprep.subr.mxu0 0.0
  %9589 = vmatpush2.msra.mxu0 0.0
  %9590 = vmatprep.subr.mxu0 0.0
  %9591 = vmatpush2.msra.mxu0 0.0
  %9592 = vmatprep.subr.mxu0 0.0
  %9593 = vmatpush2.msra.mxu0 0.0
  %9594 = vmatprep.subr.mxu0 0.0
  %9595 = vmatpush2.msra.mxu0 0.0
  %9596 = vmatprep.subr.mxu0 0.0
  %9597 = vmatpush2.msra.mxu0 0.0
  %9598 = vmatprep.subr.mxu0 0.0
  %9599 = vmatpush2.msra.mxu0 0.0
  %9600 = vmatprep.subr.mxu0 0.0
  %9601 = vmatpush2.msra.mxu0 0.0
  %9602 = vmatprep.subr.mxu0 0.0
  %9603 = vmatpush2.msra.mxu0 0.0
  %9604 = vmatprep.subr.mxu0 0.0
  %9605 = vmatpush2.msra.mxu0 0.0
  %9606 = vmatprep.mubr.f32.mxu0 0.0
  %9607 = vmatmul.mubr.f32.gmra.mxu0 %v9540
  %v9608 = vpop.f32.mrf.mxu0
  %v9609 = vadd.f32 0.0, %v9608
  %v9610 = vpop.f32.mrf.mxu0
  %v9611 = vadd.f32 0.0, %v9610
  %9612 = vdwg.mxu0
  %9613 = vmatprep.subr.mxu0 0.0
  %9614 = vmatpush1.msra.mxu0 0.0
  %9615 = vmatprep.subr.mxu0 0.0
  %9616 = vmatpush1.msra.mxu0 0.0
  %9617 = vmatprep.subr.mxu0 0.0
  %9618 = vmatpush1.msra.mxu0 0.0
  %9619 = vmatprep.subr.mxu0 0.0
  %9620 = vmatpush1.msra.mxu0 0.0
  %9621 = vmatprep.subr.mxu0 0.0
  %9622 = vmatpush1.msra.mxu0 0.0
  %9623 = vmatprep.subr.mxu0 0.0
  %9624 = vmatpush1.msra.mxu0 0.0
  %9625 = vmatprep.subr.mxu0 0.0
  %9626 = vmatpush1.msra.mxu0 0.0
  %9627 = vmatprep.subr.mxu0 %v9166
  %9628 = vmatpush1.msra.mxu0 %v9165
  %9629 = vmatprep.subr.mxu0 %v9159
  %9630 = vmatpush1.msra.mxu0 %v9158
  %9631 = vmatprep.subr.mxu0 %v9152
  %9632 = vmatpush1.msra.mxu0 %v9151
  %9633 = vmatprep.subr.mxu0 %v9145
  %9634 = vmatpush1.msra.mxu0 %v9144
  %9635 = vmatprep.subr.mxu0 %v9138
  %9636 = vmatpush1.msra.mxu0 %v9137
  %9637 = vmatprep.subr.mxu0 %v9131
  %9638 = vmatpush1.msra.mxu0 %v9130
  %9639 = vmatprep.subr.mxu0 %v9124
  %9640 = vmatpush1.msra.mxu0 %v9123
  %9641 = vmatprep.subr.mxu0 %v9117
  %9642 = vmatpush1.msra.mxu0 %v9116
  %9643 = vmatprep.subr.mxu0 %v9110
  %9644 = vmatpush1.msra.mxu0 %v9109
  %9645 = vmatprep.subr.mxu0 0.0
  %9646 = vmatpush2.msra.mxu0 0.0
  %9647 = vmatprep.subr.mxu0 0.0
  %9648 = vmatpush2.msra.mxu0 0.0
  %9649 = vmatprep.subr.mxu0 0.0
  %9650 = vmatpush2.msra.mxu0 0.0
  %9651 = vmatprep.subr.mxu0 0.0
  %9652 = vmatpush2.msra.mxu0 0.0
  %9653 = vmatprep.subr.mxu0 0.0
  %9654 = vmatpush2.msra.mxu0 0.0
  %9655 = vmatprep.subr.mxu0 0.0
  %9656 = vmatpush2.msra.mxu0 0.0
  %9657 = vmatprep.subr.mxu0 0.0
  %9658 = vmatpush2.msra.mxu0 0.0
  %9659 = vmatprep.subr.mxu0 0.0
  %9660 = vmatpush2.msra.mxu0 0.0
  %9661 = vmatprep.subr.mxu0 0.0
  %9662 = vmatpush2.msra.mxu0 0.0
  %9663 = vmatprep.subr.mxu0 0.0
  %9664 = vmatpush2.msra.mxu0 0.0
  %9665 = vmatprep.subr.mxu0 0.0
  %9666 = vmatpush2.msra.mxu0 0.0
  %9667 = vmatprep.subr.mxu0 0.0
  %9668 = vmatpush2.msra.mxu0 0.0
  %9669 = vmatprep.subr.mxu0 0.0
  %9670 = vmatpush2.msra.mxu0 0.0
  %9671 = vmatprep.subr.mxu0 0.0
  %9672 = vmatpush2.msra.mxu0 0.0
  %9673 = vmatprep.subr.mxu0 0.0
  %9674 = vmatpush2.msra.mxu0 0.0
  %9675 = vmatprep.subr.mxu0 0.0
  %9676 = vmatpush2.msra.mxu0 0.0
  %9677 = vmatprep.mubr.f32.mxu0 0.0
  %9678 = vmatmul.mubr.f32.gmra.mxu0 %v9540
  %v9679 = vpop.f32.mrf.mxu0
  %v9680 = vadd.f32 0.0, %v9679
  %v9681 = vpop.f32.mrf.mxu0
  %v9682 = vadd.f32 0.0, %v9681
  %9683 = vdwg.mxu0
  %9684 = vmatprep.subr.mxu0 0.0
  %9685 = vmatpush1.msra.mxu0 0.0
  %9686 = vmatprep.subr.mxu0 0.0
  %9687 = vmatpush1.msra.mxu0 0.0
  %9688 = vmatprep.subr.mxu0 0.0
  %9689 = vmatpush1.msra.mxu0 0.0
  %9690 = vmatprep.subr.mxu0 0.0
  %9691 = vmatpush1.msra.mxu0 0.0
  %9692 = vmatprep.subr.mxu0 0.0
  %9693 = vmatpush1.msra.mxu0 0.0
  %9694 = vmatprep.subr.mxu0 0.0
  %9695 = vmatpush1.msra.mxu0 0.0
  %9696 = vmatprep.subr.mxu0 0.0
  %9697 = vmatpush1.msra.mxu0 0.0
  %9698 = vmatprep.subr.mxu0 %v9168
  %9699 = vmatpush1.msra.mxu0 %v9167
  %9700 = vmatprep.subr.mxu0 %v9161
  %9701 = vmatpush1.msra.mxu0 %v9160
  %9702 = vmatprep.subr.mxu0 %v9154
  %9703 = vmatpush1.msra.mxu0 %v9153
  %9704 = vmatprep.subr.mxu0 %v9147
  %9705 = vmatpush1.msra.mxu0 %v9146
  %9706 = vmatprep.subr.mxu0 %v9140
  %9707 = vmatpush1.msra.mxu0 %v9139
  %9708 = vmatprep.subr.mxu0 %v9133
  %9709 = vmatpush1.msra.mxu0 %v9132
  %9710 = vmatprep.subr.mxu0 %v9126
  %9711 = vmatpush1.msra.mxu0 %v9125
  %9712 = vmatprep.subr.mxu0 %v9119
  %9713 = vmatpush1.msra.mxu0 %v9118
  %9714 = vmatprep.subr.mxu0 %v9112
  %9715 = vmatpush1.msra.mxu0 %v9111
  %9716 = vmatprep.subr.mxu0 0.0
  %9717 = vmatpush2.msra.mxu0 0.0
  %9718 = vmatprep.subr.mxu0 0.0
  %9719 = vmatpush2.msra.mxu0 0.0
  %9720 = vmatprep.subr.mxu0 0.0
  %9721 = vmatpush2.msra.mxu0 0.0
  %9722 = vmatprep.subr.mxu0 0.0
  %9723 = vmatpush2.msra.mxu0 0.0
  %9724 = vmatprep.subr.mxu0 0.0
  %9725 = vmatpush2.msra.mxu0 0.0
  %9726 = vmatprep.subr.mxu0 0.0
  %9727 = vmatpush2.msra.mxu0 0.0
  %9728 = vmatprep.subr.mxu0 0.0
  %9729 = vmatpush2.msra.mxu0 0.0
  %9730 = vmatprep.subr.mxu0 0.0
  %9731 = vmatpush2.msra.mxu0 0.0
  %9732 = vmatprep.subr.mxu0 0.0
  %9733 = vmatpush2.msra.mxu0 0.0
  %9734 = vmatprep.subr.mxu0 0.0
  %9735 = vmatpush2.msra.mxu0 0.0
  %9736 = vmatprep.subr.mxu0 0.0
  %9737 = vmatpush2.msra.mxu0 0.0
  %9738 = vmatprep.subr.mxu0 0.0
  %9739 = vmatpush2.msra.mxu0 0.0
  %9740 = vmatprep.subr.mxu0 0.0
  %9741 = vmatpush2.msra.mxu0 0.0
  %9742 = vmatprep.subr.mxu0 0.0
  %9743 = vmatpush2.msra.mxu0 0.0
  %9744 = vmatprep.subr.mxu0 0.0
  %9745 = vmatpush2.msra.mxu0 0.0
  %9746 = vmatprep.subr.mxu0 0.0
  %9747 = vmatpush2.msra.mxu0 0.0
  %9748 = vmatprep.mubr.f32.mxu0 0.0
  %9749 = vmatmul.mubr.f32.gmra.mxu0 %v9540
  %v9750 = vpop.f32.mrf.mxu0
  %v9751 = vadd.f32 0.0, %v9750
  %v9752 = vpop.f32.mrf.mxu0
  %v9753 = vadd.f32 0.0, %v9752
  %9754 = vdwg.mxu0
  %9755 = vmatprep.subr.mxu0 0.0
  %9756 = vmatpush1.msra.mxu0 0.0
  %9757 = vmatprep.subr.mxu0 0.0
  %9758 = vmatpush1.msra.mxu0 0.0
  %9759 = vmatprep.subr.mxu0 0.0
  %9760 = vmatpush1.msra.mxu0 0.0
  %9761 = vmatprep.subr.mxu0 0.0
  %9762 = vmatpush1.msra.mxu0 0.0
  %9763 = vmatprep.subr.mxu0 0.0
  %9764 = vmatpush1.msra.mxu0 0.0
  %9765 = vmatprep.subr.mxu0 0.0
  %9766 = vmatpush1.msra.mxu0 0.0
  %9767 = vmatprep.subr.mxu0 0.0
  %9768 = vmatpush1.msra.mxu0 0.0
  %9769 = vmatprep.subr.mxu0 0.0
  %9770 = vmatpush1.msra.mxu0 %v9169
  %9771 = vmatprep.subr.mxu0 0.0
  %9772 = vmatpush1.msra.mxu0 %v9162
  %9773 = vmatprep.subr.mxu0 0.0
  %9774 = vmatpush1.msra.mxu0 %v9155
  %9775 = vmatprep.subr.mxu0 0.0
  %9776 = vmatpush1.msra.mxu0 %v9148
  %9777 = vmatprep.subr.mxu0 0.0
  %9778 = vmatpush1.msra.mxu0 %v9141
  %9779 = vmatprep.subr.mxu0 0.0
  %9780 = vmatpush1.msra.mxu0 %v9134
  %9781 = vmatprep.subr.mxu0 0.0
  %9782 = vmatpush1.msra.mxu0 %v9127
  %9783 = vmatprep.subr.mxu0 0.0
  %9784 = vmatpush1.msra.mxu0 %v9120
  %9785 = vmatprep.subr.mxu0 0.0
  %9786 = vmatpush1.msra.mxu0 %v9113
  %9787 = vmatprep.subr.mxu0 0.0
  %9788 = vmatpush2.msra.mxu0 0.0
  %9789 = vmatprep.subr.mxu0 0.0
  %9790 = vmatpush2.msra.mxu0 0.0
  %9791 = vmatprep.subr.mxu0 0.0
  %9792 = vmatpush2.msra.mxu0 0.0
  %9793 = vmatprep.subr.mxu0 0.0
  %9794 = vmatpush2.msra.mxu0 0.0
  %9795 = vmatprep.subr.mxu0 0.0
  %9796 = vmatpush2.msra.mxu0 0.0
  %9797 = vmatprep.subr.mxu0 0.0
  %9798 = vmatpush2.msra.mxu0 0.0
  %9799 = vmatprep.subr.mxu0 0.0
  %9800 = vmatpush2.msra.mxu0 0.0
  %9801 = vmatprep.subr.mxu0 0.0
  %9802 = vmatpush2.msra.mxu0 0.0
  %9803 = vmatprep.subr.mxu0 0.0
  %9804 = vmatpush2.msra.mxu0 0.0
  %9805 = vmatprep.subr.mxu0 0.0
  %9806 = vmatpush2.msra.mxu0 0.0
  %9807 = vmatprep.subr.mxu0 0.0
  %9808 = vmatpush2.msra.mxu0 0.0
  %9809 = vmatprep.subr.mxu0 0.0
  %9810 = vmatpush2.msra.mxu0 0.0
  %9811 = vmatprep.subr.mxu0 0.0
  %9812 = vmatpush2.msra.mxu0 0.0
  %9813 = vmatprep.subr.mxu0 0.0
  %9814 = vmatpush2.msra.mxu0 0.0
  %9815 = vmatprep.subr.mxu0 0.0
  %9816 = vmatpush2.msra.mxu0 0.0
  %9817 = vmatprep.subr.mxu0 0.0
  %9818 = vmatpush2.msra.mxu0 0.0
  %9819 = vmatprep.mubr.f32.mxu0 0.0
  %9820 = vmatmul.mubr.f32.gmra.mxu0 %v9540
  %v9821 = vpop.f32.mrf.mxu0
  %v9822 = vadd.f32 0.0, %v9821
  %v9823 = vpop.f32.mrf.mxu0
  %9824 = vdwg.mxu0
  %9832 = vrot.lane.b32.xlu0 %v9609, 100
  %v9833 = vpop.permute.xlu0 %9832
  %9834 = vrot.lane.b32.xlu0 %v9611, 100
  %v9835 = vpop.permute.xlu0 %9834
  %9836 = vrot.lane.b32.xlu0 %v9680, 100
  %v9837 = vpop.permute.xlu0 %9836
  %9838 = vrot.lane.b32.xlu0 %v9682, 100
  %v9839 = vpop.permute.xlu0 %9838
  %9840 = vrot.lane.b32.xlu0 %v9751, 100
  %v9841 = vpop.permute.xlu0 %9840
  %9842 = vrot.lane.b32.xlu0 %v9753, 100
  %v9843 = vpop.permute.xlu0 %9842
  %9844 = vrot.lane.b32.xlu0 %v9822, 100
  %v9845 = vpop.permute.xlu0 %9844
  %vm9846 = vcmask 818176
  %v9847 = vsel %vm9846, %v9833, %v9835
  %v9848 = vsel %vm9846, %v9835, %v9837
  %v9849 = vsel %vm9846, %v9837, %v9839
  %v9850 = vsel %vm9846, %v9839, %v9841
  %v9851 = vsel %vm9846, %v9841, %v9843
  %v9852 = vsel %vm9846, %v9843, %v9845
  %vm9859 = vcmask 949248
  %v9860 = vsel %vm9859, %v9852, 0.0
  %s9861 = scalar_lea.vmem %s21, 7
  %v9862 = vld [vmem:[%s9861] sm:$0x7f]
  %v9864 = vlaneseq
  %v9865 = vshrl.u32 %v9864, 7
  %v9866 = vsub.s32 0, %v9865
  %v9867 = vrot.slane %v9862, %v9866
  %v9868 = vlaneseq
  %v9869 = vshrl.u32 %v9868, 7
  %v9870 = vsub.s32 1, %v9869
  %v9871 = vrot.slane %v9862, %v9870
  %v9872 = vlaneseq
  %v9873 = vshrl.u32 %v9872, 7
  %v9874 = vsub.s32 2, %v9873
  %v9875 = vrot.slane %v9862, %v9874
  %v9876 = vlaneseq
  %v9877 = vshrl.u32 %v9876, 7
  %v9878 = vsub.s32 3, %v9877
  %v9879 = vrot.slane %v9862, %v9878
  %v9880 = vlaneseq
  %v9881 = vshrl.u32 %v9880, 7
  %v9882 = vsub.s32 4, %v9881
  %v9883 = vrot.slane %v9862, %v9882
  %v9884 = vlaneseq
  %v9885 = vshrl.u32 %v9884, 7
  %v9886 = vsub.s32 5, %v9885
  %v9887 = vrot.slane %v9862, %v9886
  %v9888 = vlaneseq
  %v9889 = vshrl.u32 %v9888, 7
  %v9890 = vsub.s32 6, %v9889
  %v9891 = vrot.slane %v9862, %v9890
  %v9899 = vmul.f32 %v9847, %v9867
  %v9900 = vmul.f32 %v9848, %v9871
  %v9901 = vmul.f32 %v9849, %v9875
  %v9902 = vmul.f32 %v9850, %v9879
  %v9903 = vmul.f32 %v9851, %v9883
  %v9904 = vmul.f32 %v9860, %v9887
  %v9905 = vmul.f32 %v9891, 0.0
  %v9906 = vadd.f32 %v9530, %v9899
  %v9907 = vadd.f32 %v9531, %v9900
  %v9908 = vadd.f32 %v9532, %v9901
  %v9909 = vadd.f32 %v9533, %v9902
  %v9910 = vadd.f32 %v9534, %v9903
  %v9911 = vadd.f32 %v9535, %v9904
  %v9912 = vadd.f32 %v9536, %v9905
  %s9913 = scalar_lea.vmem %s20, 4
  %v9914 = vld [vmem:[%s9913] sm:$0x3]
  %v9916 = vsel %vm8337, %v9914, 0
  %9918 = vmatprep.subr.mxu0 0.0
  %9919 = vmatpush1.msra.mxu0 0.0
  %9920 = vmatprep.subr.mxu0 0.0
  %9921 = vmatpush1.msra.mxu0 0.0
  %9922 = vmatprep.subr.mxu0 0.0
  %9923 = vmatpush1.msra.mxu0 0.0
  %9924 = vmatprep.subr.mxu0 0.0
  %9925 = vmatpush1.msra.mxu0 0.0
  %9926 = vmatprep.subr.mxu0 0.0
  %9927 = vmatpush1.msra.mxu0 0.0
  %9928 = vmatprep.subr.mxu0 0.0
  %9929 = vmatpush1.msra.mxu0 0.0
  %9930 = vmatprep.subr.mxu0 0.0
  %9931 = vmatpush1.msra.mxu0 0.0
  %9932 = vmatprep.subr.mxu0 %v9164
  %9933 = vmatpush1.msra.mxu0 %v9163
  %9934 = vmatprep.subr.mxu0 %v9157
  %9935 = vmatpush1.msra.mxu0 %v9156
  %9936 = vmatprep.subr.mxu0 %v9150
  %9937 = vmatpush1.msra.mxu0 %v9149
  %9938 = vmatprep.subr.mxu0 %v9143
  %9939 = vmatpush1.msra.mxu0 %v9142
  %9940 = vmatprep.subr.mxu0 %v9136
  %9941 = vmatpush1.msra.mxu0 %v9135
  %9942 = vmatprep.subr.mxu0 %v9129
  %9943 = vmatpush1.msra.mxu0 %v9128
  %9944 = vmatprep.subr.mxu0 %v9122
  %9945 = vmatpush1.msra.mxu0 %v9121
  %9946 = vmatprep.subr.mxu0 %v9115
  %9947 = vmatpush1.msra.mxu0 %v9114
  %9948 = vmatprep.subr.mxu0 %v9108
  %9949 = vmatpush1.msra.mxu0 %v9107
  %9950 = vmatprep.subr.mxu0 0.0
  %9951 = vmatpush2.msra.mxu0 0.0
  %9952 = vmatprep.subr.mxu0 0.0
  %9953 = vmatpush2.msra.mxu0 0.0
  %9954 = vmatprep.subr.mxu0 0.0
  %9955 = vmatpush2.msra.mxu0 0.0
  %9956 = vmatprep.subr.mxu0 0.0
  %9957 = vmatpush2.msra.mxu0 0.0
  %9958 = vmatprep.subr.mxu0 0.0
  %9959 = vmatpush2.msra.mxu0 0.0
  %9960 = vmatprep.subr.mxu0 0.0
  %9961 = vmatpush2.msra.mxu0 0.0
  %9962 = vmatprep.subr.mxu0 0.0
  %9963 = vmatpush2.msra.mxu0 0.0
  %9964 = vmatprep.subr.mxu0 0.0
  %9965 = vmatpush2.msra.mxu0 0.0
  %9966 = vmatprep.subr.mxu0 0.0
  %9967 = vmatpush2.msra.mxu0 0.0
  %9968 = vmatprep.subr.mxu0 0.0
  %9969 = vmatpush2.msra.mxu0 0.0
  %9970 = vmatprep.subr.mxu0 0.0
  %9971 = vmatpush2.msra.mxu0 0.0
  %9972 = vmatprep.subr.mxu0 0.0
  %9973 = vmatpush2.msra.mxu0 0.0
  %9974 = vmatprep.subr.mxu0 0.0
  %9975 = vmatpush2.msra.mxu0 0.0
  %9976 = vmatprep.subr.mxu0 0.0
  %9977 = vmatpush2.msra.mxu0 0.0
  %9978 = vmatprep.subr.mxu0 0.0
  %9979 = vmatpush2.msra.mxu0 0.0
  %9980 = vmatprep.subr.mxu0 0.0
  %9981 = vmatpush2.msra.mxu0 0.0
  %9982 = vmatprep.mubr.f32.mxu0 0.0
  %9983 = vmatmul.mubr.f32.gmra.mxu0 %v9916
  %v9984 = vpop.f32.mrf.mxu0
  %v9985 = vadd.f32 0.0, %v9984
  %v9986 = vpop.f32.mrf.mxu0
  %v9987 = vadd.f32 0.0, %v9986
  %9988 = vdwg.mxu0
  %9989 = vmatprep.subr.mxu0 0.0
  %9990 = vmatpush1.msra.mxu0 0.0
  %9991 = vmatprep.subr.mxu0 0.0
  %9992 = vmatpush1.msra.mxu0 0.0
  %9993 = vmatprep.subr.mxu0 0.0
  %9994 = vmatpush1.msra.mxu0 0.0
  %9995 = vmatprep.subr.mxu0 0.0
  %9996 = vmatpush1.msra.mxu0 0.0
  %9997 = vmatprep.subr.mxu0 0.0
  %9998 = vmatpush1.msra.mxu0 0.0
  %9999 = vmatprep.subr.mxu0 0.0
  %10000 = vmatpush1.msra.mxu0 0.0
  %10001 = vmatprep.subr.mxu0 0.0
  %10002 = vmatpush1.msra.mxu0 0.0
  %10003 = vmatprep.subr.mxu0 %v9166
  %10004 = vmatpush1.msra.mxu0 %v9165
  %10005 = vmatprep.subr.mxu0 %v9159
  %10006 = vmatpush1.msra.mxu0 %v9158
  %10007 = vmatprep.subr.mxu0 %v9152
  %10008 = vmatpush1.msra.mxu0 %v9151
  %10009 = vmatprep.subr.mxu0 %v9145
  %10010 = vmatpush1.msra.mxu0 %v9144
  %10011 = vmatprep.subr.mxu0 %v9138
  %10012 = vmatpush1.msra.mxu0 %v9137
  %10013 = vmatprep.subr.mxu0 %v9131
  %10014 = vmatpush1.msra.mxu0 %v9130
  %10015 = vmatprep.subr.mxu0 %v9124
  %10016 = vmatpush1.msra.mxu0 %v9123
  %10017 = vmatprep.subr.mxu0 %v9117
  %10018 = vmatpush1.msra.mxu0 %v9116
  %10019 = vmatprep.subr.mxu0 %v9110
  %10020 = vmatpush1.msra.mxu0 %v9109
  %10021 = vmatprep.subr.mxu0 0.0
  %10022 = vmatpush2.msra.mxu0 0.0
  %10023 = vmatprep.subr.mxu0 0.0
  %10024 = vmatpush2.msra.mxu0 0.0
  %10025 = vmatprep.subr.mxu0 0.0
  %10026 = vmatpush2.msra.mxu0 0.0
  %10027 = vmatprep.subr.mxu0 0.0
  %10028 = vmatpush2.msra.mxu0 0.0
  %10029 = vmatprep.subr.mxu0 0.0
  %10030 = vmatpush2.msra.mxu0 0.0
  %10031 = vmatprep.subr.mxu0 0.0
  %10032 = vmatpush2.msra.mxu0 0.0
  %10033 = vmatprep.subr.mxu0 0.0
  %10034 = vmatpush2.msra.mxu0 0.0
  %10035 = vmatprep.subr.mxu0 0.0
  %10036 = vmatpush2.msra.mxu0 0.0
  %10037 = vmatprep.subr.mxu0 0.0
  %10038 = vmatpush2.msra.mxu0 0.0
  %10039 = vmatprep.subr.mxu0 0.0
  %10040 = vmatpush2.msra.mxu0 0.0
  %10041 = vmatprep.subr.mxu0 0.0
  %10042 = vmatpush2.msra.mxu0 0.0
  %10043 = vmatprep.subr.mxu0 0.0
  %10044 = vmatpush2.msra.mxu0 0.0
  %10045 = vmatprep.subr.mxu0 0.0
  %10046 = vmatpush2.msra.mxu0 0.0
  %10047 = vmatprep.subr.mxu0 0.0
  %10048 = vmatpush2.msra.mxu0 0.0
  %10049 = vmatprep.subr.mxu0 0.0
  %10050 = vmatpush2.msra.mxu0 0.0
  %10051 = vmatprep.subr.mxu0 0.0
  %10052 = vmatpush2.msra.mxu0 0.0
  %10053 = vmatprep.mubr.f32.mxu0 0.0
  %10054 = vmatmul.mubr.f32.gmra.mxu0 %v9916
  %v10055 = vpop.f32.mrf.mxu0
  %v10056 = vadd.f32 0.0, %v10055
  %v10057 = vpop.f32.mrf.mxu0
  %v10058 = vadd.f32 0.0, %v10057
  %10059 = vdwg.mxu0
  %10060 = vmatprep.subr.mxu0 0.0
  %10061 = vmatpush1.msra.mxu0 0.0
  %10062 = vmatprep.subr.mxu0 0.0
  %10063 = vmatpush1.msra.mxu0 0.0
  %10064 = vmatprep.subr.mxu0 0.0
  %10065 = vmatpush1.msra.mxu0 0.0
  %10066 = vmatprep.subr.mxu0 0.0
  %10067 = vmatpush1.msra.mxu0 0.0
  %10068 = vmatprep.subr.mxu0 0.0
  %10069 = vmatpush1.msra.mxu0 0.0
  %10070 = vmatprep.subr.mxu0 0.0
  %10071 = vmatpush1.msra.mxu0 0.0
  %10072 = vmatprep.subr.mxu0 0.0
  %10073 = vmatpush1.msra.mxu0 0.0
  %10074 = vmatprep.subr.mxu0 %v9168
  %10075 = vmatpush1.msra.mxu0 %v9167
  %10076 = vmatprep.subr.mxu0 %v9161
  %10077 = vmatpush1.msra.mxu0 %v9160
  %10078 = vmatprep.subr.mxu0 %v9154
  %10079 = vmatpush1.msra.mxu0 %v9153
  %10080 = vmatprep.subr.mxu0 %v9147
  %10081 = vmatpush1.msra.mxu0 %v9146
  %10082 = vmatprep.subr.mxu0 %v9140
  %10083 = vmatpush1.msra.mxu0 %v9139
  %10084 = vmatprep.subr.mxu0 %v9133
  %10085 = vmatpush1.msra.mxu0 %v9132
  %10086 = vmatprep.subr.mxu0 %v9126
  %10087 = vmatpush1.msra.mxu0 %v9125
  %10088 = vmatprep.subr.mxu0 %v9119
  %10089 = vmatpush1.msra.mxu0 %v9118
  %10090 = vmatprep.subr.mxu0 %v9112
  %10091 = vmatpush1.msra.mxu0 %v9111
  %10092 = vmatprep.subr.mxu0 0.0
  %10093 = vmatpush2.msra.mxu0 0.0
  %10094 = vmatprep.subr.mxu0 0.0
  %10095 = vmatpush2.msra.mxu0 0.0
  %10096 = vmatprep.subr.mxu0 0.0
  %10097 = vmatpush2.msra.mxu0 0.0
  %10098 = vmatprep.subr.mxu0 0.0
  %10099 = vmatpush2.msra.mxu0 0.0
  %10100 = vmatprep.subr.mxu0 0.0
  %10101 = vmatpush2.msra.mxu0 0.0
  %10102 = vmatprep.subr.mxu0 0.0
  %10103 = vmatpush2.msra.mxu0 0.0
  %10104 = vmatprep.subr.mxu0 0.0
  %10105 = vmatpush2.msra.mxu0 0.0
  %10106 = vmatprep.subr.mxu0 0.0
  %10107 = vmatpush2.msra.mxu0 0.0
  %10108 = vmatprep.subr.mxu0 0.0
  %10109 = vmatpush2.msra.mxu0 0.0
  %10110 = vmatprep.subr.mxu0 0.0
  %10111 = vmatpush2.msra.mxu0 0.0
  %10112 = vmatprep.subr.mxu0 0.0
  %10113 = vmatpush2.msra.mxu0 0.0
  %10114 = vmatprep.subr.mxu0 0.0
  %10115 = vmatpush2.msra.mxu0 0.0
  %10116 = vmatprep.subr.mxu0 0.0
  %10117 = vmatpush2.msra.mxu0 0.0
  %10118 = vmatprep.subr.mxu0 0.0
  %10119 = vmatpush2.msra.mxu0 0.0
  %10120 = vmatprep.subr.mxu0 0.0
  %10121 = vmatpush2.msra.mxu0 0.0
  %10122 = vmatprep.subr.mxu0 0.0
  %10123 = vmatpush2.msra.mxu0 0.0
  %10124 = vmatprep.mubr.f32.mxu0 0.0
  %10125 = vmatmul.mubr.f32.gmra.mxu0 %v9916
  %v10126 = vpop.f32.mrf.mxu0
  %v10127 = vadd.f32 0.0, %v10126
  %v10128 = vpop.f32.mrf.mxu0
  %v10129 = vadd.f32 0.0, %v10128
  %10130 = vdwg.mxu0
  %10131 = vmatprep.subr.mxu0 0.0
  %10132 = vmatpush1.msra.mxu0 0.0
  %10133 = vmatprep.subr.mxu0 0.0
  %10134 = vmatpush1.msra.mxu0 0.0
  %10135 = vmatprep.subr.mxu0 0.0
  %10136 = vmatpush1.msra.mxu0 0.0
  %10137 = vmatprep.subr.mxu0 0.0
  %10138 = vmatpush1.msra.mxu0 0.0
  %10139 = vmatprep.subr.mxu0 0.0
  %10140 = vmatpush1.msra.mxu0 0.0
  %10141 = vmatprep.subr.mxu0 0.0
  %10142 = vmatpush1.msra.mxu0 0.0
  %10143 = vmatprep.subr.mxu0 0.0
  %10144 = vmatpush1.msra.mxu0 0.0
  %10145 = vmatprep.subr.mxu0 0.0
  %10146 = vmatpush1.msra.mxu0 %v9169
  %10147 = vmatprep.subr.mxu0 0.0
  %10148 = vmatpush1.msra.mxu0 %v9162
  %10149 = vmatprep.subr.mxu0 0.0
  %10150 = vmatpush1.msra.mxu0 %v9155
  %10151 = vmatprep.subr.mxu0 0.0
  %10152 = vmatpush1.msra.mxu0 %v9148
  %10153 = vmatprep.subr.mxu0 0.0
  %10154 = vmatpush1.msra.mxu0 %v9141
  %10155 = vmatprep.subr.mxu0 0.0
  %10156 = vmatpush1.msra.mxu0 %v9134
  %10157 = vmatprep.subr.mxu0 0.0
  %10158 = vmatpush1.msra.mxu0 %v9127
  %10159 = vmatprep.subr.mxu0 0.0
  %10160 = vmatpush1.msra.mxu0 %v9120
  %10161 = vmatprep.subr.mxu0 0.0
  %10162 = vmatpush1.msra.mxu0 %v9113
  %10163 = vmatprep.subr.mxu0 0.0
  %10164 = vmatpush2.msra.mxu0 0.0
  %10165 = vmatprep.subr.mxu0 0.0
  %10166 = vmatpush2.msra.mxu0 0.0
  %10167 = vmatprep.subr.mxu0 0.0
  %10168 = vmatpush2.msra.mxu0 0.0
  %10169 = vmatprep.subr.mxu0 0.0
  %10170 = vmatpush2.msra.mxu0 0.0
  %10171 = vmatprep.subr.mxu0 0.0
  %10172 = vmatpush2.msra.mxu0 0.0
  %10173 = vmatprep.subr.mxu0 0.0
  %10174 = vmatpush2.msra.mxu0 0.0
  %10175 = vmatprep.subr.mxu0 0.0
  %10176 = vmatpush2.msra.mxu0 0.0
  %10177 = vmatprep.subr.mxu0 0.0
  %10178 = vmatpush2.msra.mxu0 0.0
  %10179 = vmatprep.subr.mxu0 0.0
  %10180 = vmatpush2.msra.mxu0 0.0
  %10181 = vmatprep.subr.mxu0 0.0
  %10182 = vmatpush2.msra.mxu0 0.0
  %10183 = vmatprep.subr.mxu0 0.0
  %10184 = vmatpush2.msra.mxu0 0.0
  %10185 = vmatprep.subr.mxu0 0.0
  %10186 = vmatpush2.msra.mxu0 0.0
  %10187 = vmatprep.subr.mxu0 0.0
  %10188 = vmatpush2.msra.mxu0 0.0
  %10189 = vmatprep.subr.mxu0 0.0
  %10190 = vmatpush2.msra.mxu0 0.0
  %10191 = vmatprep.subr.mxu0 0.0
  %10192 = vmatpush2.msra.mxu0 0.0
  %10193 = vmatprep.subr.mxu0 0.0
  %10194 = vmatpush2.msra.mxu0 0.0
  %10195 = vmatprep.mubr.f32.mxu0 0.0
  %10196 = vmatmul.mubr.f32.gmra.mxu0 %v9916
  %v10197 = vpop.f32.mrf.mxu0
  %v10198 = vadd.f32 0.0, %v10197
  %v10199 = vpop.f32.mrf.mxu0
  %10200 = vdwg.mxu0
  %10208 = vrot.lane.b32.xlu0 %v9985, 101
  %v10209 = vpop.permute.xlu0 %10208
  %10210 = vrot.lane.b32.xlu0 %v9987, 101
  %v10211 = vpop.permute.xlu0 %10210
  %10212 = vrot.lane.b32.xlu0 %v10056, 101
  %v10213 = vpop.permute.xlu0 %10212
  %10214 = vrot.lane.b32.xlu0 %v10058, 101
  %v10215 = vpop.permute.xlu0 %10214
  %10216 = vrot.lane.b32.xlu0 %v10127, 101
  %v10217 = vpop.permute.xlu0 %10216
  %10218 = vrot.lane.b32.xlu0 %v10129, 101
  %v10219 = vpop.permute.xlu0 %10218
  %10220 = vrot.lane.b32.xlu0 %v10198, 101
  %v10221 = vpop.permute.xlu0 %10220
  %vm10222 = vcmask 826368
  %v10223 = vsel %vm10222, %v10209, %v10211
  %v10224 = vsel %vm10222, %v10211, %v10213
  %v10225 = vsel %vm10222, %v10213, %v10215
  %v10226 = vsel %vm10222, %v10215, %v10217
  %v10227 = vsel %vm10222, %v10217, %v10219
  %v10228 = vsel %vm10222, %v10219, %v10221
  %vm10235 = vcmask 957440
  %v10236 = vsel %vm10235, %v10228, 0.0
  %s10237 = scalar_lea.vmem %s21, 14
  %v10238 = vld [vmem:[%s10237] sm:$0x7f]
  %v10240 = vlaneseq
  %v10241 = vshrl.u32 %v10240, 7
  %v10242 = vsub.s32 0, %v10241
  %v10243 = vrot.slane %v10238, %v10242
  %v10244 = vlaneseq
  %v10245 = vshrl.u32 %v10244, 7
  %v10246 = vsub.s32 1, %v10245
  %v10247 = vrot.slane %v10238, %v10246
  %v10248 = vlaneseq
  %v10249 = vshrl.u32 %v10248, 7
  %v10250 = vsub.s32 2, %v10249
  %v10251 = vrot.slane %v10238, %v10250
  %v10252 = vlaneseq
  %v10253 = vshrl.u32 %v10252, 7
  %v10254 = vsub.s32 3, %v10253
  %v10255 = vrot.slane %v10238, %v10254
  %v10256 = vlaneseq
  %v10257 = vshrl.u32 %v10256, 7
  %v10258 = vsub.s32 4, %v10257
  %v10259 = vrot.slane %v10238, %v10258
  %v10260 = vlaneseq
  %v10261 = vshrl.u32 %v10260, 7
  %v10262 = vsub.s32 5, %v10261
  %v10263 = vrot.slane %v10238, %v10262
  %v10264 = vlaneseq
  %v10265 = vshrl.u32 %v10264, 7
  %v10266 = vsub.s32 6, %v10265
  %v10267 = vrot.slane %v10238, %v10266
  %v10275 = vmul.f32 %v10223, %v10243
  %v10276 = vmul.f32 %v10224, %v10247
  %v10277 = vmul.f32 %v10225, %v10251
  %v10278 = vmul.f32 %v10226, %v10255
  %v10279 = vmul.f32 %v10227, %v10259
  %v10280 = vmul.f32 %v10236, %v10263
  %v10281 = vmul.f32 %v10267, 0.0
  %v10282 = vadd.f32 %v9906, %v10275
  %v10283 = vadd.f32 %v9907, %v10276
  %v10284 = vadd.f32 %v9908, %v10277
  %v10285 = vadd.f32 %v9909, %v10278
  %v10286 = vadd.f32 %v9910, %v10279
  %v10287 = vadd.f32 %v9911, %v10280
  %v10288 = vadd.f32 %v9912, %v10281
  %s10289 = scalar_lea.vmem %s20, 6
  %v10290 = vld [vmem:[%s10289] sm:$0x3]
  %v10292 = vsel %vm8337, %v10290, 0
  %10294 = vmatprep.subr.mxu0 0.0
  %10295 = vmatpush1.msra.mxu0 0.0
  %10296 = vmatprep.subr.mxu0 0.0
  %10297 = vmatpush1.msra.mxu0 0.0
  %10298 = vmatprep.subr.mxu0 0.0
  %10299 = vmatpush1.msra.mxu0 0.0
  %10300 = vmatprep.subr.mxu0 0.0
  %10301 = vmatpush1.msra.mxu0 0.0
  %10302 = vmatprep.subr.mxu0 0.0
  %10303 = vmatpush1.msra.mxu0 0.0
  %10304 = vmatprep.subr.mxu0 0.0
  %10305 = vmatpush1.msra.mxu0 0.0
  %10306 = vmatprep.subr.mxu0 0.0
  %10307 = vmatpush1.msra.mxu0 0.0
  %10308 = vmatprep.subr.mxu0 %v9164
  %10309 = vmatpush1.msra.mxu0 %v9163
  %10310 = vmatprep.subr.mxu0 %v9157
  %10311 = vmatpush1.msra.mxu0 %v9156
  %10312 = vmatprep.subr.mxu0 %v9150
  %10313 = vmatpush1.msra.mxu0 %v9149
  %10314 = vmatprep.subr.mxu0 %v9143
  %10315 = vmatpush1.msra.mxu0 %v9142
  %10316 = vmatprep.subr.mxu0 %v9136
  %10317 = vmatpush1.msra.mxu0 %v9135
  %10318 = vmatprep.subr.mxu0 %v9129
  %10319 = vmatpush1.msra.mxu0 %v9128
  %10320 = vmatprep.subr.mxu0 %v9122
  %10321 = vmatpush1.msra.mxu0 %v9121
  %10322 = vmatprep.subr.mxu0 %v9115
  %10323 = vmatpush1.msra.mxu0 %v9114
  %10324 = vmatprep.subr.mxu0 %v9108
  %10325 = vmatpush1.msra.mxu0 %v9107
  %10326 = vmatprep.subr.mxu0 0.0
  %10327 = vmatpush2.msra.mxu0 0.0
  %10328 = vmatprep.subr.mxu0 0.0
  %10329 = vmatpush2.msra.mxu0 0.0
  %10330 = vmatprep.subr.mxu0 0.0
  %10331 = vmatpush2.msra.mxu0 0.0
  %10332 = vmatprep.subr.mxu0 0.0
  %10333 = vmatpush2.msra.mxu0 0.0
  %10334 = vmatprep.subr.mxu0 0.0
  %10335 = vmatpush2.msra.mxu0 0.0
  %10336 = vmatprep.subr.mxu0 0.0
  %10337 = vmatpush2.msra.mxu0 0.0
  %10338 = vmatprep.subr.mxu0 0.0
  %10339 = vmatpush2.msra.mxu0 0.0
  %10340 = vmatprep.subr.mxu0 0.0
  %10341 = vmatpush2.msra.mxu0 0.0
  %10342 = vmatprep.subr.mxu0 0.0
  %10343 = vmatpush2.msra.mxu0 0.0
  %10344 = vmatprep.subr.mxu0 0.0
  %10345 = vmatpush2.msra.mxu0 0.0
  %10346 = vmatprep.subr.mxu0 0.0
  %10347 = vmatpush2.msra.mxu0 0.0
  %10348 = vmatprep.subr.mxu0 0.0
  %10349 = vmatpush2.msra.mxu0 0.0
  %10350 = vmatprep.subr.mxu0 0.0
  %10351 = vmatpush2.msra.mxu0 0.0
  %10352 = vmatprep.subr.mxu0 0.0
  %10353 = vmatpush2.msra.mxu0 0.0
  %10354 = vmatprep.subr.mxu0 0.0
  %10355 = vmatpush2.msra.mxu0 0.0
  %10356 = vmatprep.subr.mxu0 0.0
  %10357 = vmatpush2.msra.mxu0 0.0
  %10358 = vmatprep.mubr.f32.mxu0 0.0
  %10359 = vmatmul.mubr.f32.gmra.mxu0 %v10292
  %v10360 = vpop.f32.mrf.mxu0
  %v10361 = vadd.f32 0.0, %v10360
  %v10362 = vpop.f32.mrf.mxu0
  %v10363 = vadd.f32 0.0, %v10362
  %10364 = vdwg.mxu0
  %10365 = vmatprep.subr.mxu0 0.0
  %10366 = vmatpush1.msra.mxu0 0.0
  %10367 = vmatprep.subr.mxu0 0.0
  %10368 = vmatpush1.msra.mxu0 0.0
  %10369 = vmatprep.subr.mxu0 0.0
  %10370 = vmatpush1.msra.mxu0 0.0
  %10371 = vmatprep.subr.mxu0 0.0
  %10372 = vmatpush1.msra.mxu0 0.0
  %10373 = vmatprep.subr.mxu0 0.0
  %10374 = vmatpush1.msra.mxu0 0.0
  %10375 = vmatprep.subr.mxu0 0.0
  %10376 = vmatpush1.msra.mxu0 0.0
  %10377 = vmatprep.subr.mxu0 0.0
  %10378 = vmatpush1.msra.mxu0 0.0
  %10379 = vmatprep.subr.mxu0 %v9166
  %10380 = vmatpush1.msra.mxu0 %v9165
  %10381 = vmatprep.subr.mxu0 %v9159
  %10382 = vmatpush1.msra.mxu0 %v9158
  %10383 = vmatprep.subr.mxu0 %v9152
  %10384 = vmatpush1.msra.mxu0 %v9151
  %10385 = vmatprep.subr.mxu0 %v9145
  %10386 = vmatpush1.msra.mxu0 %v9144
  %10387 = vmatprep.subr.mxu0 %v9138
  %10388 = vmatpush1.msra.mxu0 %v9137
  %10389 = vmatprep.subr.mxu0 %v9131
  %10390 = vmatpush1.msra.mxu0 %v9130
  %10391 = vmatprep.subr.mxu0 %v9124
  %10392 = vmatpush1.msra.mxu0 %v9123
  %10393 = vmatprep.subr.mxu0 %v9117
  %10394 = vmatpush1.msra.mxu0 %v9116
  %10395 = vmatprep.subr.mxu0 %v9110
  %10396 = vmatpush1.msra.mxu0 %v9109
  %10397 = vmatprep.subr.mxu0 0.0
  %10398 = vmatpush2.msra.mxu0 0.0
  %10399 = vmatprep.subr.mxu0 0.0
  %10400 = vmatpush2.msra.mxu0 0.0
  %10401 = vmatprep.subr.mxu0 0.0
  %10402 = vmatpush2.msra.mxu0 0.0
  %10403 = vmatprep.subr.mxu0 0.0
  %10404 = vmatpush2.msra.mxu0 0.0
  %10405 = vmatprep.subr.mxu0 0.0
  %10406 = vmatpush2.msra.mxu0 0.0
  %10407 = vmatprep.subr.mxu0 0.0
  %10408 = vmatpush2.msra.mxu0 0.0
  %10409 = vmatprep.subr.mxu0 0.0
  %10410 = vmatpush2.msra.mxu0 0.0
  %10411 = vmatprep.subr.mxu0 0.0
  %10412 = vmatpush2.msra.mxu0 0.0
  %10413 = vmatprep.subr.mxu0 0.0
  %10414 = vmatpush2.msra.mxu0 0.0
  %10415 = vmatprep.subr.mxu0 0.0
  %10416 = vmatpush2.msra.mxu0 0.0
  %10417 = vmatprep.subr.mxu0 0.0
  %10418 = vmatpush2.msra.mxu0 0.0
  %10419 = vmatprep.subr.mxu0 0.0
  %10420 = vmatpush2.msra.mxu0 0.0
  %10421 = vmatprep.subr.mxu0 0.0
  %10422 = vmatpush2.msra.mxu0 0.0
  %10423 = vmatprep.subr.mxu0 0.0
  %10424 = vmatpush2.msra.mxu0 0.0
  %10425 = vmatprep.subr.mxu0 0.0
  %10426 = vmatpush2.msra.mxu0 0.0
  %10427 = vmatprep.subr.mxu0 0.0
  %10428 = vmatpush2.msra.mxu0 0.0
  %10429 = vmatprep.mubr.f32.mxu0 0.0
  %10430 = vmatmul.mubr.f32.gmra.mxu0 %v10292
  %v10431 = vpop.f32.mrf.mxu0
  %v10432 = vadd.f32 0.0, %v10431
  %v10433 = vpop.f32.mrf.mxu0
  %v10434 = vadd.f32 0.0, %v10433
  %10435 = vdwg.mxu0
  %10436 = vmatprep.subr.mxu0 0.0
  %10437 = vmatpush1.msra.mxu0 0.0
  %10438 = vmatprep.subr.mxu0 0.0
  %10439 = vmatpush1.msra.mxu0 0.0
  %10440 = vmatprep.subr.mxu0 0.0
  %10441 = vmatpush1.msra.mxu0 0.0
  %10442 = vmatprep.subr.mxu0 0.0
  %10443 = vmatpush1.msra.mxu0 0.0
  %10444 = vmatprep.subr.mxu0 0.0
  %10445 = vmatpush1.msra.mxu0 0.0
  %10446 = vmatprep.subr.mxu0 0.0
  %10447 = vmatpush1.msra.mxu0 0.0
  %10448 = vmatprep.subr.mxu0 0.0
  %10449 = vmatpush1.msra.mxu0 0.0
  %10450 = vmatprep.subr.mxu0 %v9168
  %10451 = vmatpush1.msra.mxu0 %v9167
  %10452 = vmatprep.subr.mxu0 %v9161
  %10453 = vmatpush1.msra.mxu0 %v9160
  %10454 = vmatprep.subr.mxu0 %v9154
  %10455 = vmatpush1.msra.mxu0 %v9153
  %10456 = vmatprep.subr.mxu0 %v9147
  %10457 = vmatpush1.msra.mxu0 %v9146
  %10458 = vmatprep.subr.mxu0 %v9140
  %10459 = vmatpush1.msra.mxu0 %v9139
  %10460 = vmatprep.subr.mxu0 %v9133
  %10461 = vmatpush1.msra.mxu0 %v9132
  %10462 = vmatprep.subr.mxu0 %v9126
  %10463 = vmatpush1.msra.mxu0 %v9125
  %10464 = vmatprep.subr.mxu0 %v9119
  %10465 = vmatpush1.msra.mxu0 %v9118
  %10466 = vmatprep.subr.mxu0 %v9112
  %10467 = vmatpush1.msra.mxu0 %v9111
  %10468 = vmatprep.subr.mxu0 0.0
  %10469 = vmatpush2.msra.mxu0 0.0
  %10470 = vmatprep.subr.mxu0 0.0
  %10471 = vmatpush2.msra.mxu0 0.0
  %10472 = vmatprep.subr.mxu0 0.0
  %10473 = vmatpush2.msra.mxu0 0.0
  %10474 = vmatprep.subr.mxu0 0.0
  %10475 = vmatpush2.msra.mxu0 0.0
  %10476 = vmatprep.subr.mxu0 0.0
  %10477 = vmatpush2.msra.mxu0 0.0
  %10478 = vmatprep.subr.mxu0 0.0
  %10479 = vmatpush2.msra.mxu0 0.0
  %10480 = vmatprep.subr.mxu0 0.0
  %10481 = vmatpush2.msra.mxu0 0.0
  %10482 = vmatprep.subr.mxu0 0.0
  %10483 = vmatpush2.msra.mxu0 0.0
  %10484 = vmatprep.subr.mxu0 0.0
  %10485 = vmatpush2.msra.mxu0 0.0
  %10486 = vmatprep.subr.mxu0 0.0
  %10487 = vmatpush2.msra.mxu0 0.0
  %10488 = vmatprep.subr.mxu0 0.0
  %10489 = vmatpush2.msra.mxu0 0.0
  %10490 = vmatprep.subr.mxu0 0.0
  %10491 = vmatpush2.msra.mxu0 0.0
  %10492 = vmatprep.subr.mxu0 0.0
  %10493 = vmatpush2.msra.mxu0 0.0
  %10494 = vmatprep.subr.mxu0 0.0
  %10495 = vmatpush2.msra.mxu0 0.0
  %10496 = vmatprep.subr.mxu0 0.0
  %10497 = vmatpush2.msra.mxu0 0.0
  %10498 = vmatprep.subr.mxu0 0.0
  %10499 = vmatpush2.msra.mxu0 0.0
  %10500 = vmatprep.mubr.f32.mxu0 0.0
  %10501 = vmatmul.mubr.f32.gmra.mxu0 %v10292
  %v10502 = vpop.f32.mrf.mxu0
  %v10503 = vadd.f32 0.0, %v10502
  %v10504 = vpop.f32.mrf.mxu0
  %v10505 = vadd.f32 0.0, %v10504
  %10506 = vdwg.mxu0
  %10507 = vmatprep.subr.mxu0 0.0
  %10508 = vmatpush1.msra.mxu0 0.0
  %10509 = vmatprep.subr.mxu0 0.0
  %10510 = vmatpush1.msra.mxu0 0.0
  %10511 = vmatprep.subr.mxu0 0.0
  %10512 = vmatpush1.msra.mxu0 0.0
  %10513 = vmatprep.subr.mxu0 0.0
  %10514 = vmatpush1.msra.mxu0 0.0
  %10515 = vmatprep.subr.mxu0 0.0
  %10516 = vmatpush1.msra.mxu0 0.0
  %10517 = vmatprep.subr.mxu0 0.0
  %10518 = vmatpush1.msra.mxu0 0.0
  %10519 = vmatprep.subr.mxu0 0.0
  %10520 = vmatpush1.msra.mxu0 0.0
  %10521 = vmatprep.subr.mxu0 0.0
  %10522 = vmatpush1.msra.mxu0 %v9169
  %10523 = vmatprep.subr.mxu0 0.0
  %10524 = vmatpush1.msra.mxu0 %v9162
  %10525 = vmatprep.subr.mxu0 0.0
  %10526 = vmatpush1.msra.mxu0 %v9155
  %10527 = vmatprep.subr.mxu0 0.0
  %10528 = vmatpush1.msra.mxu0 %v9148
  %10529 = vmatprep.subr.mxu0 0.0
  %10530 = vmatpush1.msra.mxu0 %v9141
  %10531 = vmatprep.subr.mxu0 0.0
  %10532 = vmatpush1.msra.mxu0 %v9134
  %10533 = vmatprep.subr.mxu0 0.0
  %10534 = vmatpush1.msra.mxu0 %v9127
  %10535 = vmatprep.subr.mxu0 0.0
  %10536 = vmatpush1.msra.mxu0 %v9120
  %10537 = vmatprep.subr.mxu0 0.0
  %10538 = vmatpush1.msra.mxu0 %v9113
  %10539 = vmatprep.subr.mxu0 0.0
  %10540 = vmatpush2.msra.mxu0 0.0
  %10541 = vmatprep.subr.mxu0 0.0
  %10542 = vmatpush2.msra.mxu0 0.0
  %10543 = vmatprep.subr.mxu0 0.0
  %10544 = vmatpush2.msra.mxu0 0.0
  %10545 = vmatprep.subr.mxu0 0.0
  %10546 = vmatpush2.msra.mxu0 0.0
  %10547 = vmatprep.subr.mxu0 0.0
  %10548 = vmatpush2.msra.mxu0 0.0
  %10549 = vmatprep.subr.mxu0 0.0
  %10550 = vmatpush2.msra.mxu0 0.0
  %10551 = vmatprep.subr.mxu0 0.0
  %10552 = vmatpush2.msra.mxu0 0.0
  %10553 = vmatprep.subr.mxu0 0.0
  %10554 = vmatpush2.msra.mxu0 0.0
  %10555 = vmatprep.subr.mxu0 0.0
  %10556 = vmatpush2.msra.mxu0 0.0
  %10557 = vmatprep.subr.mxu0 0.0
  %10558 = vmatpush2.msra.mxu0 0.0
  %10559 = vmatprep.subr.mxu0 0.0
  %10560 = vmatpush2.msra.mxu0 0.0
  %10561 = vmatprep.subr.mxu0 0.0
  %10562 = vmatpush2.msra.mxu0 0.0
  %10563 = vmatprep.subr.mxu0 0.0
  %10564 = vmatpush2.msra.mxu0 0.0
  %10565 = vmatprep.subr.mxu0 0.0
  %10566 = vmatpush2.msra.mxu0 0.0
  %10567 = vmatprep.subr.mxu0 0.0
  %10568 = vmatpush2.msra.mxu0 0.0
  %10569 = vmatprep.subr.mxu0 0.0
  %10570 = vmatpush2.msra.mxu0 0.0
  %10571 = vmatprep.mubr.f32.mxu0 0.0
  %10572 = vmatmul.mubr.f32.gmra.mxu0 %v10292
  %v10573 = vpop.f32.mrf.mxu0
  %v10574 = vadd.f32 0.0, %v10573
  %v10575 = vpop.f32.mrf.mxu0
  %10576 = vdwg.mxu0
  %10584 = vrot.lane.b32.xlu0 %v10361, 127
  %v10585 = vpop.permute.xlu0 %10584
  %10586 = vrot.lane.b32.xlu0 %v10363, 127
  %v10587 = vpop.permute.xlu0 %10586
  %10588 = vrot.lane.b32.xlu0 %v10432, 127
  %v10589 = vpop.permute.xlu0 %10588
  %10590 = vrot.lane.b32.xlu0 %v10434, 127
  %v10591 = vpop.permute.xlu0 %10590
  %10592 = vrot.lane.b32.xlu0 %v10503, 127
  %v10593 = vpop.permute.xlu0 %10592
  %10594 = vrot.lane.b32.xlu0 %v10505, 127
  %v10595 = vpop.permute.xlu0 %10594
  %10596 = vrot.lane.b32.xlu0 %v10574, 127
  %v10597 = vpop.permute.xlu0 %10596
  %vm10598 = vcmask 1039360
  %v10599 = vsel %vm10598, %v10585, %v10587
  %v10600 = vsel %vm10598, %v10587, %v10589
  %v10601 = vsel %vm10598, %v10589, %v10591
  %v10602 = vsel %vm10598, %v10591, %v10593
  %v10603 = vsel %vm10598, %v10593, %v10595
  %v10604 = vsel %vm10598, %v10595, %v10597
  %vm10612 = vcmask 121856
  %v10613 = vsel %vm10612, %v10597, 0.0
  %s10614 = scalar_lea.vmem %s21, 21
  %v10615 = vld [vmem:[%s10614] sm:$0x7f]
  %v10617 = vlaneseq
  %v10618 = vshrl.u32 %v10617, 7
  %v10619 = vsub.s32 0, %v10618
  %v10620 = vrot.slane %v10615, %v10619
  %v10621 = vlaneseq
  %v10622 = vshrl.u32 %v10621, 7
  %v10623 = vsub.s32 1, %v10622
  %v10624 = vrot.slane %v10615, %v10623
  %v10625 = vlaneseq
  %v10626 = vshrl.u32 %v10625, 7
  %v10627 = vsub.s32 2, %v10626
  %v10628 = vrot.slane %v10615, %v10627
  %v10629 = vlaneseq
  %v10630 = vshrl.u32 %v10629, 7
  %v10631 = vsub.s32 3, %v10630
  %v10632 = vrot.slane %v10615, %v10631
  %v10633 = vlaneseq
  %v10634 = vshrl.u32 %v10633, 7
  %v10635 = vsub.s32 4, %v10634
  %v10636 = vrot.slane %v10615, %v10635
  %v10637 = vlaneseq
  %v10638 = vshrl.u32 %v10637, 7
  %v10639 = vsub.s32 5, %v10638
  %v10640 = vrot.slane %v10615, %v10639
  %v10641 = vlaneseq
  %v10642 = vshrl.u32 %v10641, 7
  %v10643 = vsub.s32 6, %v10642
  %v10644 = vrot.slane %v10615, %v10643
  %v10652 = vmul.f32 %v10599, %v10620
  %v10653 = vmul.f32 %v10600, %v10624
  %v10654 = vmul.f32 %v10601, %v10628
  %v10655 = vmul.f32 %v10602, %v10632
  %v10656 = vmul.f32 %v10603, %v10636
  %v10657 = vmul.f32 %v10604, %v10640
  %v10658 = vmul.f32 %v10613, %v10644
  %v10659 = vadd.f32 %v10282, %v10652
  %v10660 = vadd.f32 %v10283, %v10653
  %v10661 = vadd.f32 %v10284, %v10654
  %v10662 = vadd.f32 %v10285, %v10655
  %v10663 = vadd.f32 %v10286, %v10656
  %v10664 = vadd.f32 %v10287, %v10657
  %v10665 = vadd.f32 %v10288, %v10658
  %s10666 = scalar_lea.vmem %s20, 8
  %v10667 = vld [vmem:[%s10666] sm:$0x3]
  %v10669 = vsel %vm8337, %v10667, 0
  %10671 = vmatprep.subr.mxu0 0.0
  %10672 = vmatpush1.msra.mxu0 0.0
  %10673 = vmatprep.subr.mxu0 0.0
  %10674 = vmatpush1.msra.mxu0 0.0
  %10675 = vmatprep.subr.mxu0 0.0
  %10676 = vmatpush1.msra.mxu0 0.0
  %10677 = vmatprep.subr.mxu0 0.0
  %10678 = vmatpush1.msra.mxu0 0.0
  %10679 = vmatprep.subr.mxu0 0.0
  %10680 = vmatpush1.msra.mxu0 0.0
  %10681 = vmatprep.subr.mxu0 0.0
  %10682 = vmatpush1.msra.mxu0 0.0
  %10683 = vmatprep.subr.mxu0 0.0
  %10684 = vmatpush1.msra.mxu0 0.0
  %10685 = vmatprep.subr.mxu0 %v9164
  %10686 = vmatpush1.msra.mxu0 %v9163
  %10687 = vmatprep.subr.mxu0 %v9157
  %10688 = vmatpush1.msra.mxu0 %v9156
  %10689 = vmatprep.subr.mxu0 %v9150
  %10690 = vmatpush1.msra.mxu0 %v9149
  %10691 = vmatprep.subr.mxu0 %v9143
  %10692 = vmatpush1.msra.mxu0 %v9142
  %10693 = vmatprep.subr.mxu0 %v9136
  %10694 = vmatpush1.msra.mxu0 %v9135
  %10695 = vmatprep.subr.mxu0 %v9129
  %10696 = vmatpush1.msra.mxu0 %v9128
  %10697 = vmatprep.subr.mxu0 %v9122
  %10698 = vmatpush1.msra.mxu0 %v9121
  %10699 = vmatprep.subr.mxu0 %v9115
  %10700 = vmatpush1.msra.mxu0 %v9114
  %10701 = vmatprep.subr.mxu0 %v9108
  %10702 = vmatpush1.msra.mxu0 %v9107
  %10703 = vmatprep.subr.mxu0 0.0
  %10704 = vmatpush2.msra.mxu0 0.0
  %10705 = vmatprep.subr.mxu0 0.0
  %10706 = vmatpush2.msra.mxu0 0.0
  %10707 = vmatprep.subr.mxu0 0.0
  %10708 = vmatpush2.msra.mxu0 0.0
  %10709 = vmatprep.subr.mxu0 0.0
  %10710 = vmatpush2.msra.mxu0 0.0
  %10711 = vmatprep.subr.mxu0 0.0
  %10712 = vmatpush2.msra.mxu0 0.0
  %10713 = vmatprep.subr.mxu0 0.0
  %10714 = vmatpush2.msra.mxu0 0.0
  %10715 = vmatprep.subr.mxu0 0.0
  %10716 = vmatpush2.msra.mxu0 0.0
  %10717 = vmatprep.subr.mxu0 0.0
  %10718 = vmatpush2.msra.mxu0 0.0
  %10719 = vmatprep.subr.mxu0 0.0
  %10720 = vmatpush2.msra.mxu0 0.0
  %10721 = vmatprep.subr.mxu0 0.0
  %10722 = vmatpush2.msra.mxu0 0.0
  %10723 = vmatprep.subr.mxu0 0.0
  %10724 = vmatpush2.msra.mxu0 0.0
  %10725 = vmatprep.subr.mxu0 0.0
  %10726 = vmatpush2.msra.mxu0 0.0
  %10727 = vmatprep.subr.mxu0 0.0
  %10728 = vmatpush2.msra.mxu0 0.0
  %10729 = vmatprep.subr.mxu0 0.0
  %10730 = vmatpush2.msra.mxu0 0.0
  %10731 = vmatprep.subr.mxu0 0.0
  %10732 = vmatpush2.msra.mxu0 0.0
  %10733 = vmatprep.subr.mxu0 0.0
  %10734 = vmatpush2.msra.mxu0 0.0
  %10735 = vmatprep.mubr.f32.mxu0 0.0
  %10736 = vmatmul.mubr.f32.gmra.mxu0 %v10669
  %v10737 = vpop.f32.mrf.mxu0
  %v10738 = vadd.f32 0.0, %v10737
  %v10739 = vpop.f32.mrf.mxu0
  %v10740 = vadd.f32 0.0, %v10739
  %10741 = vdwg.mxu0
  %10742 = vmatprep.subr.mxu0 0.0
  %10743 = vmatpush1.msra.mxu0 0.0
  %10744 = vmatprep.subr.mxu0 0.0
  %10745 = vmatpush1.msra.mxu0 0.0
  %10746 = vmatprep.subr.mxu0 0.0
  %10747 = vmatpush1.msra.mxu0 0.0
  %10748 = vmatprep.subr.mxu0 0.0
  %10749 = vmatpush1.msra.mxu0 0.0
  %10750 = vmatprep.subr.mxu0 0.0
  %10751 = vmatpush1.msra.mxu0 0.0
  %10752 = vmatprep.subr.mxu0 0.0
  %10753 = vmatpush1.msra.mxu0 0.0
  %10754 = vmatprep.subr.mxu0 0.0
  %10755 = vmatpush1.msra.mxu0 0.0
  %10756 = vmatprep.subr.mxu0 %v9166
  %10757 = vmatpush1.msra.mxu0 %v9165
  %10758 = vmatprep.subr.mxu0 %v9159
  %10759 = vmatpush1.msra.mxu0 %v9158
  %10760 = vmatprep.subr.mxu0 %v9152
  %10761 = vmatpush1.msra.mxu0 %v9151
  %10762 = vmatprep.subr.mxu0 %v9145
  %10763 = vmatpush1.msra.mxu0 %v9144
  %10764 = vmatprep.subr.mxu0 %v9138
  %10765 = vmatpush1.msra.mxu0 %v9137
  %10766 = vmatprep.subr.mxu0 %v9131
  %10767 = vmatpush1.msra.mxu0 %v9130
  %10768 = vmatprep.subr.mxu0 %v9124
  %10769 = vmatpush1.msra.mxu0 %v9123
  %10770 = vmatprep.subr.mxu0 %v9117
  %10771 = vmatpush1.msra.mxu0 %v9116
  %10772 = vmatprep.subr.mxu0 %v9110
  %10773 = vmatpush1.msra.mxu0 %v9109
  %10774 = vmatprep.subr.mxu0 0.0
  %10775 = vmatpush2.msra.mxu0 0.0
  %10776 = vmatprep.subr.mxu0 0.0
  %10777 = vmatpush2.msra.mxu0 0.0
  %10778 = vmatprep.subr.mxu0 0.0
  %10779 = vmatpush2.msra.mxu0 0.0
  %10780 = vmatprep.subr.mxu0 0.0
  %10781 = vmatpush2.msra.mxu0 0.0
  %10782 = vmatprep.subr.mxu0 0.0
  %10783 = vmatpush2.msra.mxu0 0.0
  %10784 = vmatprep.subr.mxu0 0.0
  %10785 = vmatpush2.msra.mxu0 0.0
  %10786 = vmatprep.subr.mxu0 0.0
  %10787 = vmatpush2.msra.mxu0 0.0
  %10788 = vmatprep.subr.mxu0 0.0
  %10789 = vmatpush2.msra.mxu0 0.0
  %10790 = vmatprep.subr.mxu0 0.0
  %10791 = vmatpush2.msra.mxu0 0.0
  %10792 = vmatprep.subr.mxu0 0.0
  %10793 = vmatpush2.msra.mxu0 0.0
  %10794 = vmatprep.subr.mxu0 0.0
  %10795 = vmatpush2.msra.mxu0 0.0
  %10796 = vmatprep.subr.mxu0 0.0
  %10797 = vmatpush2.msra.mxu0 0.0
  %10798 = vmatprep.subr.mxu0 0.0
  %10799 = vmatpush2.msra.mxu0 0.0
  %10800 = vmatprep.subr.mxu0 0.0
  %10801 = vmatpush2.msra.mxu0 0.0
  %10802 = vmatprep.subr.mxu0 0.0
  %10803 = vmatpush2.msra.mxu0 0.0
  %10804 = vmatprep.subr.mxu0 0.0
  %10805 = vmatpush2.msra.mxu0 0.0
  %10806 = vmatprep.mubr.f32.mxu0 0.0
  %10807 = vmatmul.mubr.f32.gmra.mxu0 %v10669
  %v10808 = vpop.f32.mrf.mxu0
  %v10809 = vadd.f32 0.0, %v10808
  %v10810 = vpop.f32.mrf.mxu0
  %v10811 = vadd.f32 0.0, %v10810
  %10812 = vdwg.mxu0
  %10813 = vmatprep.subr.mxu0 0.0
  %10814 = vmatpush1.msra.mxu0 0.0
  %10815 = vmatprep.subr.mxu0 0.0
  %10816 = vmatpush1.msra.mxu0 0.0
  %10817 = vmatprep.subr.mxu0 0.0
  %10818 = vmatpush1.msra.mxu0 0.0
  %10819 = vmatprep.subr.mxu0 0.0
  %10820 = vmatpush1.msra.mxu0 0.0
  %10821 = vmatprep.subr.mxu0 0.0
  %10822 = vmatpush1.msra.mxu0 0.0
  %10823 = vmatprep.subr.mxu0 0.0
  %10824 = vmatpush1.msra.mxu0 0.0
  %10825 = vmatprep.subr.mxu0 0.0
  %10826 = vmatpush1.msra.mxu0 0.0
  %10827 = vmatprep.subr.mxu0 %v9168
  %10828 = vmatpush1.msra.mxu0 %v9167
  %10829 = vmatprep.subr.mxu0 %v9161
  %10830 = vmatpush1.msra.mxu0 %v9160
  %10831 = vmatprep.subr.mxu0 %v9154
  %10832 = vmatpush1.msra.mxu0 %v9153
  %10833 = vmatprep.subr.mxu0 %v9147
  %10834 = vmatpush1.msra.mxu0 %v9146
  %10835 = vmatprep.subr.mxu0 %v9140
  %10836 = vmatpush1.msra.mxu0 %v9139
  %10837 = vmatprep.subr.mxu0 %v9133
  %10838 = vmatpush1.msra.mxu0 %v9132
  %10839 = vmatprep.subr.mxu0 %v9126
  %10840 = vmatpush1.msra.mxu0 %v9125
  %10841 = vmatprep.subr.mxu0 %v9119
  %10842 = vmatpush1.msra.mxu0 %v9118
  %10843 = vmatprep.subr.mxu0 %v9112
  %10844 = vmatpush1.msra.mxu0 %v9111
  %10845 = vmatprep.subr.mxu0 0.0
  %10846 = vmatpush2.msra.mxu0 0.0
  %10847 = vmatprep.subr.mxu0 0.0
  %10848 = vmatpush2.msra.mxu0 0.0
  %10849 = vmatprep.subr.mxu0 0.0
  %10850 = vmatpush2.msra.mxu0 0.0
  %10851 = vmatprep.subr.mxu0 0.0
  %10852 = vmatpush2.msra.mxu0 0.0
  %10853 = vmatprep.subr.mxu0 0.0
  %10854 = vmatpush2.msra.mxu0 0.0
  %10855 = vmatprep.subr.mxu0 0.0
  %10856 = vmatpush2.msra.mxu0 0.0
  %10857 = vmatprep.subr.mxu0 0.0
  %10858 = vmatpush2.msra.mxu0 0.0
  %10859 = vmatprep.subr.mxu0 0.0
  %10860 = vmatpush2.msra.mxu0 0.0
  %10861 = vmatprep.subr.mxu0 0.0
  %10862 = vmatpush2.msra.mxu0 0.0
  %10863 = vmatprep.subr.mxu0 0.0
  %10864 = vmatpush2.msra.mxu0 0.0
  %10865 = vmatprep.subr.mxu0 0.0
  %10866 = vmatpush2.msra.mxu0 0.0
  %10867 = vmatprep.subr.mxu0 0.0
  %10868 = vmatpush2.msra.mxu0 0.0
  %10869 = vmatprep.subr.mxu0 0.0
  %10870 = vmatpush2.msra.mxu0 0.0
  %10871 = vmatprep.subr.mxu0 0.0
  %10872 = vmatpush2.msra.mxu0 0.0
  %10873 = vmatprep.subr.mxu0 0.0
  %10874 = vmatpush2.msra.mxu0 0.0
  %10875 = vmatprep.subr.mxu0 0.0
  %10876 = vmatpush2.msra.mxu0 0.0
  %10877 = vmatprep.mubr.f32.mxu0 0.0
  %10878 = vmatmul.mubr.f32.gmra.mxu0 %v10669
  %v10879 = vpop.f32.mrf.mxu0
  %v10880 = vadd.f32 0.0, %v10879
  %v10881 = vpop.f32.mrf.mxu0
  %v10882 = vadd.f32 0.0, %v10881
  %10883 = vdwg.mxu0
  %10884 = vmatprep.subr.mxu0 0.0
  %10885 = vmatpush1.msra.mxu0 0.0
  %10886 = vmatprep.subr.mxu0 0.0
  %10887 = vmatpush1.msra.mxu0 0.0
  %10888 = vmatprep.subr.mxu0 0.0
  %10889 = vmatpush1.msra.mxu0 0.0
  %10890 = vmatprep.subr.mxu0 0.0
  %10891 = vmatpush1.msra.mxu0 0.0
  %10892 = vmatprep.subr.mxu0 0.0
  %10893 = vmatpush1.msra.mxu0 0.0
  %10894 = vmatprep.subr.mxu0 0.0
  %10895 = vmatpush1.msra.mxu0 0.0
  %10896 = vmatprep.subr.mxu0 0.0
  %10897 = vmatpush1.msra.mxu0 0.0
  %10898 = vmatprep.subr.mxu0 0.0
  %10899 = vmatpush1.msra.mxu0 %v9169
  %10900 = vmatprep.subr.mxu0 0.0
  %10901 = vmatpush1.msra.mxu0 %v9162
  %10902 = vmatprep.subr.mxu0 0.0
  %10903 = vmatpush1.msra.mxu0 %v9155
  %10904 = vmatprep.subr.mxu0 0.0
  %10905 = vmatpush1.msra.mxu0 %v9148
  %10906 = vmatprep.subr.mxu0 0.0
  %10907 = vmatpush1.msra.mxu0 %v9141
  %10908 = vmatprep.subr.mxu0 0.0
  %10909 = vmatpush1.msra.mxu0 %v9134
  %10910 = vmatprep.subr.mxu0 0.0
  %10911 = vmatpush1.msra.mxu0 %v9127
  %10912 = vmatprep.subr.mxu0 0.0
  %10913 = vmatpush1.msra.mxu0 %v9120
  %10914 = vmatprep.subr.mxu0 0.0
  %10915 = vmatpush1.msra.mxu0 %v9113
  %10916 = vmatprep.subr.mxu0 0.0
  %10917 = vmatpush2.msra.mxu0 0.0
  %10918 = vmatprep.subr.mxu0 0.0
  %10919 = vmatpush2.msra.mxu0 0.0
  %10920 = vmatprep.subr.mxu0 0.0
  %10921 = vmatpush2.msra.mxu0 0.0
  %10922 = vmatprep.subr.mxu0 0.0
  %10923 = vmatpush2.msra.mxu0 0.0
  %10924 = vmatprep.subr.mxu0 0.0
  %10925 = vmatpush2.msra.mxu0 0.0
  %10926 = vmatprep.subr.mxu0 0.0
  %10927 = vmatpush2.msra.mxu0 0.0
  %10928 = vmatprep.subr.mxu0 0.0
  %10929 = vmatpush2.msra.mxu0 0.0
  %10930 = vmatprep.subr.mxu0 0.0
  %10931 = vmatpush2.msra.mxu0 0.0
  %10932 = vmatprep.subr.mxu0 0.0
  %10933 = vmatpush2.msra.mxu0 0.0
  %10934 = vmatprep.subr.mxu0 0.0
  %10935 = vmatpush2.msra.mxu0 0.0
  %10936 = vmatprep.subr.mxu0 0.0
  %10937 = vmatpush2.msra.mxu0 0.0
  %10938 = vmatprep.subr.mxu0 0.0
  %10939 = vmatpush2.msra.mxu0 0.0
  %10940 = vmatprep.subr.mxu0 0.0
  %10941 = vmatpush2.msra.mxu0 0.0
  %10942 = vmatprep.subr.mxu0 0.0
  %10943 = vmatpush2.msra.mxu0 0.0
  %10944 = vmatprep.subr.mxu0 0.0
  %10945 = vmatpush2.msra.mxu0 0.0
  %10946 = vmatprep.subr.mxu0 0.0
  %10947 = vmatpush2.msra.mxu0 0.0
  %10948 = vmatprep.mubr.f32.mxu0 0.0
  %10949 = vmatmul.mubr.f32.gmra.mxu0 %v10669
  %v10950 = vpop.f32.mrf.mxu0
  %v10951 = vadd.f32 0.0, %v10950
  %v10952 = vpop.f32.mrf.mxu0
  %10953 = vdwg.mxu0
  %s10954 = scalar_lea.vmem %s21, 28
  %v10955 = vld [vmem:[%s10954] sm:$0x7f]
  %v10957 = vlaneseq
  %v10958 = vshrl.u32 %v10957, 7
  %v10959 = vsub.s32 0, %v10958
  %v10960 = vrot.slane %v10955, %v10959
  %v10961 = vlaneseq
  %v10962 = vshrl.u32 %v10961, 7
  %v10963 = vsub.s32 1, %v10962
  %v10964 = vrot.slane %v10955, %v10963
  %v10965 = vlaneseq
  %v10966 = vshrl.u32 %v10965, 7
  %v10967 = vsub.s32 2, %v10966
  %v10968 = vrot.slane %v10955, %v10967
  %v10969 = vlaneseq
  %v10970 = vshrl.u32 %v10969, 7
  %v10971 = vsub.s32 3, %v10970
  %v10972 = vrot.slane %v10955, %v10971
  %v10973 = vlaneseq
  %v10974 = vshrl.u32 %v10973, 7
  %v10975 = vsub.s32 4, %v10974
  %v10976 = vrot.slane %v10955, %v10975
  %v10977 = vlaneseq
  %v10978 = vshrl.u32 %v10977, 7
  %v10979 = vsub.s32 5, %v10978
  %v10980 = vrot.slane %v10955, %v10979
  %v10981 = vlaneseq
  %v10982 = vshrl.u32 %v10981, 7
  %v10983 = vsub.s32 6, %v10982
  %v10984 = vrot.slane %v10955, %v10983
  %v10992 = vmul.f32 %v10738, %v10960
  %v10993 = vmul.f32 %v10740, %v10964
  %v10994 = vmul.f32 %v10809, %v10968
  %v10995 = vmul.f32 %v10811, %v10972
  %v10996 = vmul.f32 %v10880, %v10976
  %v10997 = vmul.f32 %v10882, %v10980
  %v10998 = vmul.f32 %v10951, %v10984
  %v10999 = vadd.f32 %v10659, %v10992
  %v11000 = vadd.f32 %v10660, %v10993
  %v11001 = vadd.f32 %v10661, %v10994
  %v11002 = vadd.f32 %v10662, %v10995
  %v11003 = vadd.f32 %v10663, %v10996
  %v11004 = vadd.f32 %v10664, %v10997
  %v11005 = vadd.f32 %v10665, %v10998
  %s11006 = scalar_lea.vmem %s20, 10
  %v11007 = vld [vmem:[%s11006] sm:$0x3]
  %v11009 = vsel %vm8337, %v11007, 0
  %11011 = vmatprep.subr.mxu0 0.0
  %11012 = vmatpush1.msra.mxu0 0.0
  %11013 = vmatprep.subr.mxu0 0.0
  %11014 = vmatpush1.msra.mxu0 0.0
  %11015 = vmatprep.subr.mxu0 0.0
  %11016 = vmatpush1.msra.mxu0 0.0
  %11017 = vmatprep.subr.mxu0 0.0
  %11018 = vmatpush1.msra.mxu0 0.0
  %11019 = vmatprep.subr.mxu0 0.0
  %11020 = vmatpush1.msra.mxu0 0.0
  %11021 = vmatprep.subr.mxu0 0.0
  %11022 = vmatpush1.msra.mxu0 0.0
  %11023 = vmatprep.subr.mxu0 0.0
  %11024 = vmatpush1.msra.mxu0 0.0
  %11025 = vmatprep.subr.mxu0 %v9164
  %11026 = vmatpush1.msra.mxu0 %v9163
  %11027 = vmatprep.subr.mxu0 %v9157
  %11028 = vmatpush1.msra.mxu0 %v9156
  %11029 = vmatprep.subr.mxu0 %v9150
  %11030 = vmatpush1.msra.mxu0 %v9149
  %11031 = vmatprep.subr.mxu0 %v9143
  %11032 = vmatpush1.msra.mxu0 %v9142
  %11033 = vmatprep.subr.mxu0 %v9136
  %11034 = vmatpush1.msra.mxu0 %v9135
  %11035 = vmatprep.subr.mxu0 %v9129
  %11036 = vmatpush1.msra.mxu0 %v9128
  %11037 = vmatprep.subr.mxu0 %v9122
  %11038 = vmatpush1.msra.mxu0 %v9121
  %11039 = vmatprep.subr.mxu0 %v9115
  %11040 = vmatpush1.msra.mxu0 %v9114
  %11041 = vmatprep.subr.mxu0 %v9108
  %11042 = vmatpush1.msra.mxu0 %v9107
  %11043 = vmatprep.subr.mxu0 0.0
  %11044 = vmatpush2.msra.mxu0 0.0
  %11045 = vmatprep.subr.mxu0 0.0
  %11046 = vmatpush2.msra.mxu0 0.0
  %11047 = vmatprep.subr.mxu0 0.0
  %11048 = vmatpush2.msra.mxu0 0.0
  %11049 = vmatprep.subr.mxu0 0.0
  %11050 = vmatpush2.msra.mxu0 0.0
  %11051 = vmatprep.subr.mxu0 0.0
  %11052 = vmatpush2.msra.mxu0 0.0
  %11053 = vmatprep.subr.mxu0 0.0
  %11054 = vmatpush2.msra.mxu0 0.0
  %11055 = vmatprep.subr.mxu0 0.0
  %11056 = vmatpush2.msra.mxu0 0.0
  %11057 = vmatprep.subr.mxu0 0.0
  %11058 = vmatpush2.msra.mxu0 0.0
  %11059 = vmatprep.subr.mxu0 0.0
  %11060 = vmatpush2.msra.mxu0 0.0
  %11061 = vmatprep.subr.mxu0 0.0
  %11062 = vmatpush2.msra.mxu0 0.0
  %11063 = vmatprep.subr.mxu0 0.0
  %11064 = vmatpush2.msra.mxu0 0.0
  %11065 = vmatprep.subr.mxu0 0.0
  %11066 = vmatpush2.msra.mxu0 0.0
  %11067 = vmatprep.subr.mxu0 0.0
  %11068 = vmatpush2.msra.mxu0 0.0
  %11069 = vmatprep.subr.mxu0 0.0
  %11070 = vmatpush2.msra.mxu0 0.0
  %11071 = vmatprep.subr.mxu0 0.0
  %11072 = vmatpush2.msra.mxu0 0.0
  %11073 = vmatprep.subr.mxu0 0.0
  %11074 = vmatpush2.msra.mxu0 0.0
  %11075 = vmatprep.mubr.f32.mxu0 0.0
  %11076 = vmatmul.mubr.f32.gmra.mxu0 %v11009
  %v11077 = vpop.f32.mrf.mxu0
  %v11078 = vadd.f32 0.0, %v11077
  %v11079 = vpop.f32.mrf.mxu0
  %v11080 = vadd.f32 0.0, %v11079
  %11081 = vdwg.mxu0
  %11082 = vmatprep.subr.mxu0 0.0
  %11083 = vmatpush1.msra.mxu0 0.0
  %11084 = vmatprep.subr.mxu0 0.0
  %11085 = vmatpush1.msra.mxu0 0.0
  %11086 = vmatprep.subr.mxu0 0.0
  %11087 = vmatpush1.msra.mxu0 0.0
  %11088 = vmatprep.subr.mxu0 0.0
  %11089 = vmatpush1.msra.mxu0 0.0
  %11090 = vmatprep.subr.mxu0 0.0
  %11091 = vmatpush1.msra.mxu0 0.0
  %11092 = vmatprep.subr.mxu0 0.0
  %11093 = vmatpush1.msra.mxu0 0.0
  %11094 = vmatprep.subr.mxu0 0.0
  %11095 = vmatpush1.msra.mxu0 0.0
  %11096 = vmatprep.subr.mxu0 %v9166
  %11097 = vmatpush1.msra.mxu0 %v9165
  %11098 = vmatprep.subr.mxu0 %v9159
  %11099 = vmatpush1.msra.mxu0 %v9158
  %11100 = vmatprep.subr.mxu0 %v9152
  %11101 = vmatpush1.msra.mxu0 %v9151
  %11102 = vmatprep.subr.mxu0 %v9145
  %11103 = vmatpush1.msra.mxu0 %v9144
  %11104 = vmatprep.subr.mxu0 %v9138
  %11105 = vmatpush1.msra.mxu0 %v9137
  %11106 = vmatprep.subr.mxu0 %v9131
  %11107 = vmatpush1.msra.mxu0 %v9130
  %11108 = vmatprep.subr.mxu0 %v9124
  %11109 = vmatpush1.msra.mxu0 %v9123
  %11110 = vmatprep.subr.mxu0 %v9117
  %11111 = vmatpush1.msra.mxu0 %v9116
  %11112 = vmatprep.subr.mxu0 %v9110
  %11113 = vmatpush1.msra.mxu0 %v9109
  %11114 = vmatprep.subr.mxu0 0.0
  %11115 = vmatpush2.msra.mxu0 0.0
  %11116 = vmatprep.subr.mxu0 0.0
  %11117 = vmatpush2.msra.mxu0 0.0
  %11118 = vmatprep.subr.mxu0 0.0
  %11119 = vmatpush2.msra.mxu0 0.0
  %11120 = vmatprep.subr.mxu0 0.0
  %11121 = vmatpush2.msra.mxu0 0.0
  %11122 = vmatprep.subr.mxu0 0.0
  %11123 = vmatpush2.msra.mxu0 0.0
  %11124 = vmatprep.subr.mxu0 0.0
  %11125 = vmatpush2.msra.mxu0 0.0
  %11126 = vmatprep.subr.mxu0 0.0
  %11127 = vmatpush2.msra.mxu0 0.0
  %11128 = vmatprep.subr.mxu0 0.0
  %11129 = vmatpush2.msra.mxu0 0.0
  %11130 = vmatprep.subr.mxu0 0.0
  %11131 = vmatpush2.msra.mxu0 0.0
  %11132 = vmatprep.subr.mxu0 0.0
  %11133 = vmatpush2.msra.mxu0 0.0
  %11134 = vmatprep.subr.mxu0 0.0
  %11135 = vmatpush2.msra.mxu0 0.0
  %11136 = vmatprep.subr.mxu0 0.0
  %11137 = vmatpush2.msra.mxu0 0.0
  %11138 = vmatprep.subr.mxu0 0.0
  %11139 = vmatpush2.msra.mxu0 0.0
  %11140 = vmatprep.subr.mxu0 0.0
  %11141 = vmatpush2.msra.mxu0 0.0
  %11142 = vmatprep.subr.mxu0 0.0
  %11143 = vmatpush2.msra.mxu0 0.0
  %11144 = vmatprep.subr.mxu0 0.0
  %11145 = vmatpush2.msra.mxu0 0.0
  %11146 = vmatprep.mubr.f32.mxu0 0.0
  %11147 = vmatmul.mubr.f32.gmra.mxu0 %v11009
  %v11148 = vpop.f32.mrf.mxu0
  %v11149 = vadd.f32 0.0, %v11148
  %v11150 = vpop.f32.mrf.mxu0
  %v11151 = vadd.f32 0.0, %v11150
  %11152 = vdwg.mxu0
  %11153 = vmatprep.subr.mxu0 0.0
  %11154 = vmatpush1.msra.mxu0 0.0
  %11155 = vmatprep.subr.mxu0 0.0
  %11156 = vmatpush1.msra.mxu0 0.0
  %11157 = vmatprep.subr.mxu0 0.0
  %11158 = vmatpush1.msra.mxu0 0.0
  %11159 = vmatprep.subr.mxu0 0.0
  %11160 = vmatpush1.msra.mxu0 0.0
  %11161 = vmatprep.subr.mxu0 0.0
  %11162 = vmatpush1.msra.mxu0 0.0
  %11163 = vmatprep.subr.mxu0 0.0
  %11164 = vmatpush1.msra.mxu0 0.0
  %11165 = vmatprep.subr.mxu0 0.0
  %11166 = vmatpush1.msra.mxu0 0.0
  %11167 = vmatprep.subr.mxu0 %v9168
  %11168 = vmatpush1.msra.mxu0 %v9167
  %11169 = vmatprep.subr.mxu0 %v9161
  %11170 = vmatpush1.msra.mxu0 %v9160
  %11171 = vmatprep.subr.mxu0 %v9154
  %11172 = vmatpush1.msra.mxu0 %v9153
  %11173 = vmatprep.subr.mxu0 %v9147
  %11174 = vmatpush1.msra.mxu0 %v9146
  %11175 = vmatprep.subr.mxu0 %v9140
  %11176 = vmatpush1.msra.mxu0 %v9139
  %11177 = vmatprep.subr.mxu0 %v9133
  %11178 = vmatpush1.msra.mxu0 %v9132
  %11179 = vmatprep.subr.mxu0 %v9126
  %11180 = vmatpush1.msra.mxu0 %v9125
  %11181 = vmatprep.subr.mxu0 %v9119
  %11182 = vmatpush1.msra.mxu0 %v9118
  %11183 = vmatprep.subr.mxu0 %v9112
  %11184 = vmatpush1.msra.mxu0 %v9111
  %11185 = vmatprep.subr.mxu0 0.0
  %11186 = vmatpush2.msra.mxu0 0.0
  %11187 = vmatprep.subr.mxu0 0.0
  %11188 = vmatpush2.msra.mxu0 0.0
  %11189 = vmatprep.subr.mxu0 0.0
  %11190 = vmatpush2.msra.mxu0 0.0
  %11191 = vmatprep.subr.mxu0 0.0
  %11192 = vmatpush2.msra.mxu0 0.0
  %11193 = vmatprep.subr.mxu0 0.0
  %11194 = vmatpush2.msra.mxu0 0.0
  %11195 = vmatprep.subr.mxu0 0.0
  %11196 = vmatpush2.msra.mxu0 0.0
  %11197 = vmatprep.subr.mxu0 0.0
  %11198 = vmatpush2.msra.mxu0 0.0
  %11199 = vmatprep.subr.mxu0 0.0
  %11200 = vmatpush2.msra.mxu0 0.0
  %11201 = vmatprep.subr.mxu0 0.0
  %11202 = vmatpush2.msra.mxu0 0.0
  %11203 = vmatprep.subr.mxu0 0.0
  %11204 = vmatpush2.msra.mxu0 0.0
  %11205 = vmatprep.subr.mxu0 0.0
  %11206 = vmatpush2.msra.mxu0 0.0
  %11207 = vmatprep.subr.mxu0 0.0
  %11208 = vmatpush2.msra.mxu0 0.0
  %11209 = vmatprep.subr.mxu0 0.0
  %11210 = vmatpush2.msra.mxu0 0.0
  %11211 = vmatprep.subr.mxu0 0.0
  %11212 = vmatpush2.msra.mxu0 0.0
  %11213 = vmatprep.subr.mxu0 0.0
  %11214 = vmatpush2.msra.mxu0 0.0
  %11215 = vmatprep.subr.mxu0 0.0
  %11216 = vmatpush2.msra.mxu0 0.0
  %11217 = vmatprep.mubr.f32.mxu0 0.0
  %11218 = vmatmul.mubr.f32.gmra.mxu0 %v11009
  %v11219 = vpop.f32.mrf.mxu0
  %v11220 = vadd.f32 0.0, %v11219
  %v11221 = vpop.f32.mrf.mxu0
  %v11222 = vadd.f32 0.0, %v11221
  %11223 = vdwg.mxu0
  %11224 = vmatprep.subr.mxu0 0.0
  %11225 = vmatpush1.msra.mxu0 0.0
  %11226 = vmatprep.subr.mxu0 0.0
  %11227 = vmatpush1.msra.mxu0 0.0
  %11228 = vmatprep.subr.mxu0 0.0
  %11229 = vmatpush1.msra.mxu0 0.0
  %11230 = vmatprep.subr.mxu0 0.0
  %11231 = vmatpush1.msra.mxu0 0.0
  %11232 = vmatprep.subr.mxu0 0.0
  %11233 = vmatpush1.msra.mxu0 0.0
  %11234 = vmatprep.subr.mxu0 0.0
  %11235 = vmatpush1.msra.mxu0 0.0
  %11236 = vmatprep.subr.mxu0 0.0
  %11237 = vmatpush1.msra.mxu0 0.0
  %11238 = vmatprep.subr.mxu0 0.0
  %11239 = vmatpush1.msra.mxu0 %v9169
  %11240 = vmatprep.subr.mxu0 0.0
  %11241 = vmatpush1.msra.mxu0 %v9162
  %11242 = vmatprep.subr.mxu0 0.0
  %11243 = vmatpush1.msra.mxu0 %v9155
  %11244 = vmatprep.subr.mxu0 0.0
  %11245 = vmatpush1.msra.mxu0 %v9148
  %11246 = vmatprep.subr.mxu0 0.0
  %11247 = vmatpush1.msra.mxu0 %v9141
  %11248 = vmatprep.subr.mxu0 0.0
  %11249 = vmatpush1.msra.mxu0 %v9134
  %11250 = vmatprep.subr.mxu0 0.0
  %11251 = vmatpush1.msra.mxu0 %v9127
  %11252 = vmatprep.subr.mxu0 0.0
  %11253 = vmatpush1.msra.mxu0 %v9120
  %11254 = vmatprep.subr.mxu0 0.0
  %11255 = vmatpush1.msra.mxu0 %v9113
  %11256 = vmatprep.subr.mxu0 0.0
  %11257 = vmatpush2.msra.mxu0 0.0
  %11258 = vmatprep.subr.mxu0 0.0
  %11259 = vmatpush2.msra.mxu0 0.0
  %11260 = vmatprep.subr.mxu0 0.0
  %11261 = vmatpush2.msra.mxu0 0.0
  %11262 = vmatprep.subr.mxu0 0.0
  %11263 = vmatpush2.msra.mxu0 0.0
  %11264 = vmatprep.subr.mxu0 0.0
  %11265 = vmatpush2.msra.mxu0 0.0
  %11266 = vmatprep.subr.mxu0 0.0
  %11267 = vmatpush2.msra.mxu0 0.0
  %11268 = vmatprep.subr.mxu0 0.0
  %11269 = vmatpush2.msra.mxu0 0.0
  %11270 = vmatprep.subr.mxu0 0.0
  %11271 = vmatpush2.msra.mxu0 0.0
  %11272 = vmatprep.subr.mxu0 0.0
  %11273 = vmatpush2.msra.mxu0 0.0
  %11274 = vmatprep.subr.mxu0 0.0
  %11275 = vmatpush2.msra.mxu0 0.0
  %11276 = vmatprep.subr.mxu0 0.0
  %11277 = vmatpush2.msra.mxu0 0.0
  %11278 = vmatprep.subr.mxu0 0.0
  %11279 = vmatpush2.msra.mxu0 0.0
  %11280 = vmatprep.subr.mxu0 0.0
  %11281 = vmatpush2.msra.mxu0 0.0
  %11282 = vmatprep.subr.mxu0 0.0
  %11283 = vmatpush2.msra.mxu0 0.0
  %11284 = vmatprep.subr.mxu0 0.0
  %11285 = vmatpush2.msra.mxu0 0.0
  %11286 = vmatprep.subr.mxu0 0.0
  %11287 = vmatpush2.msra.mxu0 0.0
  %11288 = vmatprep.mubr.f32.mxu0 0.0
  %11289 = vmatmul.mubr.f32.gmra.mxu0 %v11009
  %v11290 = vpop.f32.mrf.mxu0
  %v11291 = vadd.f32 0.0, %v11290
  %v11292 = vpop.f32.mrf.mxu0
  %11293 = vdwg.mxu0
  %11301 = vrot.lane.b32.xlu0 %v11078, 1
  %v11302 = vpop.permute.xlu0 %11301
  %11303 = vrot.lane.b32.xlu0 %v11080, 1
  %v11304 = vpop.permute.xlu0 %11303
  %11305 = vrot.lane.b32.xlu0 %v11149, 1
  %v11306 = vpop.permute.xlu0 %11305
  %11307 = vrot.lane.b32.xlu0 %v11151, 1
  %v11308 = vpop.permute.xlu0 %11307
  %11309 = vrot.lane.b32.xlu0 %v11220, 1
  %v11310 = vpop.permute.xlu0 %11309
  %11311 = vrot.lane.b32.xlu0 %v11222, 1
  %v11312 = vpop.permute.xlu0 %11311
  %11313 = vrot.lane.b32.xlu0 %v11291, 1
  %v11314 = vpop.permute.xlu0 %11313
  %vm11315 = vcmask 7168
  %v11316 = vsel %vm11315, %v11302, %v11304
  %v11317 = vsel %vm11315, %v11304, %v11306
  %v11318 = vsel %vm11315, %v11306, %v11308
  %v11319 = vsel %vm11315, %v11308, %v11310
  %v11320 = vsel %vm11315, %v11310, %v11312
  %v11321 = vsel %vm11315, %v11312, %v11314
  %v11329 = vsel %vm11315, 0.0, %v11302
  %s11330 = scalar_lea.vmem %s21, 35
  %v11331 = vld [vmem:[%s11330] sm:$0x7f]
  %v11333 = vlaneseq
  %v11334 = vshrl.u32 %v11333, 7
  %v11335 = vsub.s32 0, %v11334
  %v11336 = vrot.slane %v11331, %v11335
  %v11337 = vlaneseq
  %v11338 = vshrl.u32 %v11337, 7
  %v11339 = vsub.s32 1, %v11338
  %v11340 = vrot.slane %v11331, %v11339
  %v11341 = vlaneseq
  %v11342 = vshrl.u32 %v11341, 7
  %v11343 = vsub.s32 2, %v11342
  %v11344 = vrot.slane %v11331, %v11343
  %v11345 = vlaneseq
  %v11346 = vshrl.u32 %v11345, 7
  %v11347 = vsub.s32 3, %v11346
  %v11348 = vrot.slane %v11331, %v11347
  %v11349 = vlaneseq
  %v11350 = vshrl.u32 %v11349, 7
  %v11351 = vsub.s32 4, %v11350
  %v11352 = vrot.slane %v11331, %v11351
  %v11353 = vlaneseq
  %v11354 = vshrl.u32 %v11353, 7
  %v11355 = vsub.s32 5, %v11354
  %v11356 = vrot.slane %v11331, %v11355
  %v11357 = vlaneseq
  %v11358 = vshrl.u32 %v11357, 7
  %v11359 = vsub.s32 6, %v11358
  %v11360 = vrot.slane %v11331, %v11359
  %v11368 = vmul.f32 %v11329, %v11336
  %v11369 = vmul.f32 %v11316, %v11340
  %v11370 = vmul.f32 %v11317, %v11344
  %v11371 = vmul.f32 %v11318, %v11348
  %v11372 = vmul.f32 %v11319, %v11352
  %v11373 = vmul.f32 %v11320, %v11356
  %v11374 = vmul.f32 %v11321, %v11360
  %v11375 = vadd.f32 %v10999, %v11368
  %v11376 = vadd.f32 %v11000, %v11369
  %v11377 = vadd.f32 %v11001, %v11370
  %v11378 = vadd.f32 %v11002, %v11371
  %v11379 = vadd.f32 %v11003, %v11372
  %v11380 = vadd.f32 %v11004, %v11373
  %v11381 = vadd.f32 %v11005, %v11374
  %s11382 = scalar_lea.vmem %s20, 12
  %v11383 = vld [vmem:[%s11382] sm:$0x3]
  %v11385 = vsel %vm8337, %v11383, 0
  %11387 = vmatprep.subr.mxu0 0.0
  %11388 = vmatpush1.msra.mxu0 0.0
  %11389 = vmatprep.subr.mxu0 0.0
  %11390 = vmatpush1.msra.mxu0 0.0
  %11391 = vmatprep.subr.mxu0 0.0
  %11392 = vmatpush1.msra.mxu0 0.0
  %11393 = vmatprep.subr.mxu0 0.0
  %11394 = vmatpush1.msra.mxu0 0.0
  %11395 = vmatprep.subr.mxu0 0.0
  %11396 = vmatpush1.msra.mxu0 0.0
  %11397 = vmatprep.subr.mxu0 0.0
  %11398 = vmatpush1.msra.mxu0 0.0
  %11399 = vmatprep.subr.mxu0 0.0
  %11400 = vmatpush1.msra.mxu0 0.0
  %11401 = vmatprep.subr.mxu0 %v9164
  %11402 = vmatpush1.msra.mxu0 %v9163
  %11403 = vmatprep.subr.mxu0 %v9157
  %11404 = vmatpush1.msra.mxu0 %v9156
  %11405 = vmatprep.subr.mxu0 %v9150
  %11406 = vmatpush1.msra.mxu0 %v9149
  %11407 = vmatprep.subr.mxu0 %v9143
  %11408 = vmatpush1.msra.mxu0 %v9142
  %11409 = vmatprep.subr.mxu0 %v9136
  %11410 = vmatpush1.msra.mxu0 %v9135
  %11411 = vmatprep.subr.mxu0 %v9129
  %11412 = vmatpush1.msra.mxu0 %v9128
  %11413 = vmatprep.subr.mxu0 %v9122
  %11414 = vmatpush1.msra.mxu0 %v9121
  %11415 = vmatprep.subr.mxu0 %v9115
  %11416 = vmatpush1.msra.mxu0 %v9114
  %11417 = vmatprep.subr.mxu0 %v9108
  %11418 = vmatpush1.msra.mxu0 %v9107
  %11419 = vmatprep.subr.mxu0 0.0
  %11420 = vmatpush2.msra.mxu0 0.0
  %11421 = vmatprep.subr.mxu0 0.0
  %11422 = vmatpush2.msra.mxu0 0.0
  %11423 = vmatprep.subr.mxu0 0.0
  %11424 = vmatpush2.msra.mxu0 0.0
  %11425 = vmatprep.subr.mxu0 0.0
  %11426 = vmatpush2.msra.mxu0 0.0
  %11427 = vmatprep.subr.mxu0 0.0
  %11428 = vmatpush2.msra.mxu0 0.0
  %11429 = vmatprep.subr.mxu0 0.0
  %11430 = vmatpush2.msra.mxu0 0.0
  %11431 = vmatprep.subr.mxu0 0.0
  %11432 = vmatpush2.msra.mxu0 0.0
  %11433 = vmatprep.subr.mxu0 0.0
  %11434 = vmatpush2.msra.mxu0 0.0
  %11435 = vmatprep.subr.mxu0 0.0
  %11436 = vmatpush2.msra.mxu0 0.0
  %11437 = vmatprep.subr.mxu0 0.0
  %11438 = vmatpush2.msra.mxu0 0.0
  %11439 = vmatprep.subr.mxu0 0.0
  %11440 = vmatpush2.msra.mxu0 0.0
  %11441 = vmatprep.subr.mxu0 0.0
  %11442 = vmatpush2.msra.mxu0 0.0
  %11443 = vmatprep.subr.mxu0 0.0
  %11444 = vmatpush2.msra.mxu0 0.0
  %11445 = vmatprep.subr.mxu0 0.0
  %11446 = vmatpush2.msra.mxu0 0.0
  %11447 = vmatprep.subr.mxu0 0.0
  %11448 = vmatpush2.msra.mxu0 0.0
  %11449 = vmatprep.subr.mxu0 0.0
  %11450 = vmatpush2.msra.mxu0 0.0
  %11451 = vmatprep.mubr.f32.mxu0 0.0
  %11452 = vmatmul.mubr.f32.gmra.mxu0 %v11385
  %v11453 = vpop.f32.mrf.mxu0
  %v11454 = vadd.f32 0.0, %v11453
  %v11455 = vpop.f32.mrf.mxu0
  %v11456 = vadd.f32 0.0, %v11455
  %11457 = vdwg.mxu0
  %11458 = vmatprep.subr.mxu0 0.0
  %11459 = vmatpush1.msra.mxu0 0.0
  %11460 = vmatprep.subr.mxu0 0.0
  %11461 = vmatpush1.msra.mxu0 0.0
  %11462 = vmatprep.subr.mxu0 0.0
  %11463 = vmatpush1.msra.mxu0 0.0
  %11464 = vmatprep.subr.mxu0 0.0
  %11465 = vmatpush1.msra.mxu0 0.0
  %11466 = vmatprep.subr.mxu0 0.0
  %11467 = vmatpush1.msra.mxu0 0.0
  %11468 = vmatprep.subr.mxu0 0.0
  %11469 = vmatpush1.msra.mxu0 0.0
  %11470 = vmatprep.subr.mxu0 0.0
  %11471 = vmatpush1.msra.mxu0 0.0
  %11472 = vmatprep.subr.mxu0 %v9166
  %11473 = vmatpush1.msra.mxu0 %v9165
  %11474 = vmatprep.subr.mxu0 %v9159
  %11475 = vmatpush1.msra.mxu0 %v9158
  %11476 = vmatprep.subr.mxu0 %v9152
  %11477 = vmatpush1.msra.mxu0 %v9151
  %11478 = vmatprep.subr.mxu0 %v9145
  %11479 = vmatpush1.msra.mxu0 %v9144
  %11480 = vmatprep.subr.mxu0 %v9138
  %11481 = vmatpush1.msra.mxu0 %v9137
  %11482 = vmatprep.subr.mxu0 %v9131
  %11483 = vmatpush1.msra.mxu0 %v9130
  %11484 = vmatprep.subr.mxu0 %v9124
  %11485 = vmatpush1.msra.mxu0 %v9123
  %11486 = vmatprep.subr.mxu0 %v9117
  %11487 = vmatpush1.msra.mxu0 %v9116
  %11488 = vmatprep.subr.mxu0 %v9110
  %11489 = vmatpush1.msra.mxu0 %v9109
  %11490 = vmatprep.subr.mxu0 0.0
  %11491 = vmatpush2.msra.mxu0 0.0
  %11492 = vmatprep.subr.mxu0 0.0
  %11493 = vmatpush2.msra.mxu0 0.0
  %11494 = vmatprep.subr.mxu0 0.0
  %11495 = vmatpush2.msra.mxu0 0.0
  %11496 = vmatprep.subr.mxu0 0.0
  %11497 = vmatpush2.msra.mxu0 0.0
  %11498 = vmatprep.subr.mxu0 0.0
  %11499 = vmatpush2.msra.mxu0 0.0
  %11500 = vmatprep.subr.mxu0 0.0
  %11501 = vmatpush2.msra.mxu0 0.0
  %11502 = vmatprep.subr.mxu0 0.0
  %11503 = vmatpush2.msra.mxu0 0.0
  %11504 = vmatprep.subr.mxu0 0.0
  %11505 = vmatpush2.msra.mxu0 0.0
  %11506 = vmatprep.subr.mxu0 0.0
  %11507 = vmatpush2.msra.mxu0 0.0
  %11508 = vmatprep.subr.mxu0 0.0
  %11509 = vmatpush2.msra.mxu0 0.0
  %11510 = vmatprep.subr.mxu0 0.0
  %11511 = vmatpush2.msra.mxu0 0.0
  %11512 = vmatprep.subr.mxu0 0.0
  %11513 = vmatpush2.msra.mxu0 0.0
  %11514 = vmatprep.subr.mxu0 0.0
  %11515 = vmatpush2.msra.mxu0 0.0
  %11516 = vmatprep.subr.mxu0 0.0
  %11517 = vmatpush2.msra.mxu0 0.0
  %11518 = vmatprep.subr.mxu0 0.0
  %11519 = vmatpush2.msra.mxu0 0.0
  %11520 = vmatprep.subr.mxu0 0.0
  %11521 = vmatpush2.msra.mxu0 0.0
  %11522 = vmatprep.mubr.f32.mxu0 0.0
  %11523 = vmatmul.mubr.f32.gmra.mxu0 %v11385
  %v11524 = vpop.f32.mrf.mxu0
  %v11525 = vadd.f32 0.0, %v11524
  %v11526 = vpop.f32.mrf.mxu0
  %v11527 = vadd.f32 0.0, %v11526
  %11528 = vdwg.mxu0
  %11529 = vmatprep.subr.mxu0 0.0
  %11530 = vmatpush1.msra.mxu0 0.0
  %11531 = vmatprep.subr.mxu0 0.0
  %11532 = vmatpush1.msra.mxu0 0.0
  %11533 = vmatprep.subr.mxu0 0.0
  %11534 = vmatpush1.msra.mxu0 0.0
  %11535 = vmatprep.subr.mxu0 0.0
  %11536 = vmatpush1.msra.mxu0 0.0
  %11537 = vmatprep.subr.mxu0 0.0
  %11538 = vmatpush1.msra.mxu0 0.0
  %11539 = vmatprep.subr.mxu0 0.0
  %11540 = vmatpush1.msra.mxu0 0.0
  %11541 = vmatprep.subr.mxu0 0.0
  %11542 = vmatpush1.msra.mxu0 0.0
  %11543 = vmatprep.subr.mxu0 %v9168
  %11544 = vmatpush1.msra.mxu0 %v9167
  %11545 = vmatprep.subr.mxu0 %v9161
  %11546 = vmatpush1.msra.mxu0 %v9160
  %11547 = vmatprep.subr.mxu0 %v9154
  %11548 = vmatpush1.msra.mxu0 %v9153
  %11549 = vmatprep.subr.mxu0 %v9147
  %11550 = vmatpush1.msra.mxu0 %v9146
  %11551 = vmatprep.subr.mxu0 %v9140
  %11552 = vmatpush1.msra.mxu0 %v9139
  %11553 = vmatprep.subr.mxu0 %v9133
  %11554 = vmatpush1.msra.mxu0 %v9132
  %11555 = vmatprep.subr.mxu0 %v9126
  %11556 = vmatpush1.msra.mxu0 %v9125
  %11557 = vmatprep.subr.mxu0 %v9119
  %11558 = vmatpush1.msra.mxu0 %v9118
  %11559 = vmatprep.subr.mxu0 %v9112
  %11560 = vmatpush1.msra.mxu0 %v9111
  %11561 = vmatprep.subr.mxu0 0.0
  %11562 = vmatpush2.msra.mxu0 0.0
  %11563 = vmatprep.subr.mxu0 0.0
  %11564 = vmatpush2.msra.mxu0 0.0
  %11565 = vmatprep.subr.mxu0 0.0
  %11566 = vmatpush2.msra.mxu0 0.0
  %11567 = vmatprep.subr.mxu0 0.0
  %11568 = vmatpush2.msra.mxu0 0.0
  %11569 = vmatprep.subr.mxu0 0.0
  %11570 = vmatpush2.msra.mxu0 0.0
  %11571 = vmatprep.subr.mxu0 0.0
  %11572 = vmatpush2.msra.mxu0 0.0
  %11573 = vmatprep.subr.mxu0 0.0
  %11574 = vmatpush2.msra.mxu0 0.0
  %11575 = vmatprep.subr.mxu0 0.0
  %11576 = vmatpush2.msra.mxu0 0.0
  %11577 = vmatprep.subr.mxu0 0.0
  %11578 = vmatpush2.msra.mxu0 0.0
  %11579 = vmatprep.subr.mxu0 0.0
  %11580 = vmatpush2.msra.mxu0 0.0
  %11581 = vmatprep.subr.mxu0 0.0
  %11582 = vmatpush2.msra.mxu0 0.0
  %11583 = vmatprep.subr.mxu0 0.0
  %11584 = vmatpush2.msra.mxu0 0.0
  %11585 = vmatprep.subr.mxu0 0.0
  %11586 = vmatpush2.msra.mxu0 0.0
  %11587 = vmatprep.subr.mxu0 0.0
  %11588 = vmatpush2.msra.mxu0 0.0
  %11589 = vmatprep.subr.mxu0 0.0
  %11590 = vmatpush2.msra.mxu0 0.0
  %11591 = vmatprep.subr.mxu0 0.0
  %11592 = vmatpush2.msra.mxu0 0.0
  %11593 = vmatprep.mubr.f32.mxu0 0.0
  %11594 = vmatmul.mubr.f32.gmra.mxu0 %v11385
  %v11595 = vpop.f32.mrf.mxu0
  %v11596 = vadd.f32 0.0, %v11595
  %v11597 = vpop.f32.mrf.mxu0
  %v11598 = vadd.f32 0.0, %v11597
  %11599 = vdwg.mxu0
  %11606 = vrot.lane.b32.xlu0 %v11454, 27
  %v11607 = vpop.permute.xlu0 %11606
  %11608 = vrot.lane.b32.xlu0 %v11456, 27
  %v11609 = vpop.permute.xlu0 %11608
  %11610 = vrot.lane.b32.xlu0 %v11525, 27
  %v11611 = vpop.permute.xlu0 %11610
  %11612 = vrot.lane.b32.xlu0 %v11527, 27
  %v11613 = vpop.permute.xlu0 %11612
  %11614 = vrot.lane.b32.xlu0 %v11596, 27
  %v11615 = vpop.permute.xlu0 %11614
  %11616 = vrot.lane.b32.xlu0 %v11598, 27
  %v11617 = vpop.permute.xlu0 %11616
  %vm11618 = vcmask 220160
  %v11619 = vsel %vm11618, %v11607, %v11609
  %v11620 = vsel %vm11618, %v11609, %v11611
  %v11621 = vsel %vm11618, %v11611, %v11613
  %v11622 = vsel %vm11618, %v11613, %v11615
  %v11623 = vsel %vm11618, %v11615, %v11617
  %v11631 = vsel %vm11618, 0.0, %v11607
  %s11632 = scalar_lea.vmem %s21, 42
  %v11633 = vld [vmem:[%s11632] sm:$0x7f]
  %v11635 = vlaneseq
  %v11636 = vshrl.u32 %v11635, 7
  %v11637 = vsub.s32 0, %v11636
  %v11638 = vrot.slane %v11633, %v11637
  %v11639 = vlaneseq
  %v11640 = vshrl.u32 %v11639, 7
  %v11641 = vsub.s32 1, %v11640
  %v11642 = vrot.slane %v11633, %v11641
  %v11643 = vlaneseq
  %v11644 = vshrl.u32 %v11643, 7
  %v11645 = vsub.s32 2, %v11644
  %v11646 = vrot.slane %v11633, %v11645
  %v11647 = vlaneseq
  %v11648 = vshrl.u32 %v11647, 7
  %v11649 = vsub.s32 3, %v11648
  %v11650 = vrot.slane %v11633, %v11649
  %v11651 = vlaneseq
  %v11652 = vshrl.u32 %v11651, 7
  %v11653 = vsub.s32 4, %v11652
  %v11654 = vrot.slane %v11633, %v11653
  %v11655 = vlaneseq
  %v11656 = vshrl.u32 %v11655, 7
  %v11657 = vsub.s32 5, %v11656
  %v11658 = vrot.slane %v11633, %v11657
  %v11659 = vlaneseq
  %v11660 = vshrl.u32 %v11659, 7
  %v11661 = vsub.s32 6, %v11660
  %v11662 = vrot.slane %v11633, %v11661
  %v11670 = vmul.f32 %v11631, %v11638
  %v11671 = vmul.f32 %v11619, %v11642
  %v11672 = vmul.f32 %v11620, %v11646
  %v11673 = vmul.f32 %v11621, %v11650
  %v11674 = vmul.f32 %v11622, %v11654
  %v11675 = vmul.f32 %v11623, %v11658
  %v11676 = vmul.f32 %v11617, %v11662
  %v11677 = vadd.f32 %v11375, %v11670
  %v11678 = vadd.f32 %v11376, %v11671
  %v11679 = vadd.f32 %v11377, %v11672
  %v11680 = vadd.f32 %v11378, %v11673
  %v11681 = vadd.f32 %v11379, %v11674
  %v11682 = vadd.f32 %v11380, %v11675
  %v11683 = vadd.f32 %v11381, %v11676
  %s11684 = scalar_lea.vmem %s20, 14
  %v11685 = vld [vmem:[%s11684] sm:$0x3]
  %v11687 = vsel %vm8337, %v11685, 0
  %11689 = vmatprep.subr.mxu0 0.0
  %11690 = vmatpush1.msra.mxu0 0.0
  %11691 = vmatprep.subr.mxu0 0.0
  %11692 = vmatpush1.msra.mxu0 0.0
  %11693 = vmatprep.subr.mxu0 0.0
  %11694 = vmatpush1.msra.mxu0 0.0
  %11695 = vmatprep.subr.mxu0 0.0
  %11696 = vmatpush1.msra.mxu0 0.0
  %11697 = vmatprep.subr.mxu0 0.0
  %11698 = vmatpush1.msra.mxu0 0.0
  %11699 = vmatprep.subr.mxu0 0.0
  %11700 = vmatpush1.msra.mxu0 0.0
  %11701 = vmatprep.subr.mxu0 0.0
  %11702 = vmatpush1.msra.mxu0 0.0
  %11703 = vmatprep.subr.mxu0 %v9164
  %11704 = vmatpush1.msra.mxu0 %v9163
  %11705 = vmatprep.subr.mxu0 %v9157
  %11706 = vmatpush1.msra.mxu0 %v9156
  %11707 = vmatprep.subr.mxu0 %v9150
  %11708 = vmatpush1.msra.mxu0 %v9149
  %11709 = vmatprep.subr.mxu0 %v9143
  %11710 = vmatpush1.msra.mxu0 %v9142
  %11711 = vmatprep.subr.mxu0 %v9136
  %11712 = vmatpush1.msra.mxu0 %v9135
  %11713 = vmatprep.subr.mxu0 %v9129
  %11714 = vmatpush1.msra.mxu0 %v9128
  %11715 = vmatprep.subr.mxu0 %v9122
  %11716 = vmatpush1.msra.mxu0 %v9121
  %11717 = vmatprep.subr.mxu0 %v9115
  %11718 = vmatpush1.msra.mxu0 %v9114
  %11719 = vmatprep.subr.mxu0 %v9108
  %11720 = vmatpush1.msra.mxu0 %v9107
  %11721 = vmatprep.subr.mxu0 0.0
  %11722 = vmatpush2.msra.mxu0 0.0
  %11723 = vmatprep.subr.mxu0 0.0
  %11724 = vmatpush2.msra.mxu0 0.0
  %11725 = vmatprep.subr.mxu0 0.0
  %11726 = vmatpush2.msra.mxu0 0.0
  %11727 = vmatprep.subr.mxu0 0.0
  %11728 = vmatpush2.msra.mxu0 0.0
  %11729 = vmatprep.subr.mxu0 0.0
  %11730 = vmatpush2.msra.mxu0 0.0
  %11731 = vmatprep.subr.mxu0 0.0
  %11732 = vmatpush2.msra.mxu0 0.0
  %11733 = vmatprep.subr.mxu0 0.0
  %11734 = vmatpush2.msra.mxu0 0.0
  %11735 = vmatprep.subr.mxu0 0.0
  %11736 = vmatpush2.msra.mxu0 0.0
  %11737 = vmatprep.subr.mxu0 0.0
  %11738 = vmatpush2.msra.mxu0 0.0
  %11739 = vmatprep.subr.mxu0 0.0
  %11740 = vmatpush2.msra.mxu0 0.0
  %11741 = vmatprep.subr.mxu0 0.0
  %11742 = vmatpush2.msra.mxu0 0.0
  %11743 = vmatprep.subr.mxu0 0.0
  %11744 = vmatpush2.msra.mxu0 0.0
  %11745 = vmatprep.subr.mxu0 0.0
  %11746 = vmatpush2.msra.mxu0 0.0
  %11747 = vmatprep.subr.mxu0 0.0
  %11748 = vmatpush2.msra.mxu0 0.0
  %11749 = vmatprep.subr.mxu0 0.0
  %11750 = vmatpush2.msra.mxu0 0.0
  %11751 = vmatprep.subr.mxu0 0.0
  %11752 = vmatpush2.msra.mxu0 0.0
  %11753 = vmatprep.mubr.f32.mxu0 0.0
  %11754 = vmatmul.mubr.f32.gmra.mxu0 %v11687
  %v11755 = vpop.f32.mrf.mxu0
  %v11756 = vadd.f32 0.0, %v11755
  %v11757 = vpop.f32.mrf.mxu0
  %v11758 = vadd.f32 0.0, %v11757
  %11759 = vdwg.mxu0
  %11760 = vmatprep.subr.mxu0 0.0
  %11761 = vmatpush1.msra.mxu0 0.0
  %11762 = vmatprep.subr.mxu0 0.0
  %11763 = vmatpush1.msra.mxu0 0.0
  %11764 = vmatprep.subr.mxu0 0.0
  %11765 = vmatpush1.msra.mxu0 0.0
  %11766 = vmatprep.subr.mxu0 0.0
  %11767 = vmatpush1.msra.mxu0 0.0
  %11768 = vmatprep.subr.mxu0 0.0
  %11769 = vmatpush1.msra.mxu0 0.0
  %11770 = vmatprep.subr.mxu0 0.0
  %11771 = vmatpush1.msra.mxu0 0.0
  %11772 = vmatprep.subr.mxu0 0.0
  %11773 = vmatpush1.msra.mxu0 0.0
  %11774 = vmatprep.subr.mxu0 %v9166
  %11775 = vmatpush1.msra.mxu0 %v9165
  %11776 = vmatprep.subr.mxu0 %v9159
  %11777 = vmatpush1.msra.mxu0 %v9158
  %11778 = vmatprep.subr.mxu0 %v9152
  %11779 = vmatpush1.msra.mxu0 %v9151
  %11780 = vmatprep.subr.mxu0 %v9145
  %11781 = vmatpush1.msra.mxu0 %v9144
  %11782 = vmatprep.subr.mxu0 %v9138
  %11783 = vmatpush1.msra.mxu0 %v9137
  %11784 = vmatprep.subr.mxu0 %v9131
  %11785 = vmatpush1.msra.mxu0 %v9130
  %11786 = vmatprep.subr.mxu0 %v9124
  %11787 = vmatpush1.msra.mxu0 %v9123
  %11788 = vmatprep.subr.mxu0 %v9117
  %11789 = vmatpush1.msra.mxu0 %v9116
  %11790 = vmatprep.subr.mxu0 %v9110
  %11791 = vmatpush1.msra.mxu0 %v9109
  %11792 = vmatprep.subr.mxu0 0.0
  %11793 = vmatpush2.msra.mxu0 0.0
  %11794 = vmatprep.subr.mxu0 0.0
  %11795 = vmatpush2.msra.mxu0 0.0
  %11796 = vmatprep.subr.mxu0 0.0
  %11797 = vmatpush2.msra.mxu0 0.0
  %11798 = vmatprep.subr.mxu0 0.0
  %11799 = vmatpush2.msra.mxu0 0.0
  %11800 = vmatprep.subr.mxu0 0.0
  %11801 = vmatpush2.msra.mxu0 0.0
  %11802 = vmatprep.subr.mxu0 0.0
  %11803 = vmatpush2.msra.mxu0 0.0
  %11804 = vmatprep.subr.mxu0 0.0
  %11805 = vmatpush2.msra.mxu0 0.0
  %11806 = vmatprep.subr.mxu0 0.0
  %11807 = vmatpush2.msra.mxu0 0.0
  %11808 = vmatprep.subr.mxu0 0.0
  %11809 = vmatpush2.msra.mxu0 0.0
  %11810 = vmatprep.subr.mxu0 0.0
  %11811 = vmatpush2.msra.mxu0 0.0
  %11812 = vmatprep.subr.mxu0 0.0
  %11813 = vmatpush2.msra.mxu0 0.0
  %11814 = vmatprep.subr.mxu0 0.0
  %11815 = vmatpush2.msra.mxu0 0.0
  %11816 = vmatprep.subr.mxu0 0.0
  %11817 = vmatpush2.msra.mxu0 0.0
  %11818 = vmatprep.subr.mxu0 0.0
  %11819 = vmatpush2.msra.mxu0 0.0
  %11820 = vmatprep.subr.mxu0 0.0
  %11821 = vmatpush2.msra.mxu0 0.0
  %11822 = vmatprep.subr.mxu0 0.0
  %11823 = vmatpush2.msra.mxu0 0.0
  %11824 = vmatprep.mubr.f32.mxu0 0.0
  %11825 = vmatmul.mubr.f32.gmra.mxu0 %v11687
  %v11826 = vpop.f32.mrf.mxu0
  %v11827 = vadd.f32 0.0, %v11826
  %v11828 = vpop.f32.mrf.mxu0
  %v11829 = vadd.f32 0.0, %v11828
  %11830 = vdwg.mxu0
  %11831 = vmatprep.subr.mxu0 0.0
  %11832 = vmatpush1.msra.mxu0 0.0
  %11833 = vmatprep.subr.mxu0 0.0
  %11834 = vmatpush1.msra.mxu0 0.0
  %11835 = vmatprep.subr.mxu0 0.0
  %11836 = vmatpush1.msra.mxu0 0.0
  %11837 = vmatprep.subr.mxu0 0.0
  %11838 = vmatpush1.msra.mxu0 0.0
  %11839 = vmatprep.subr.mxu0 0.0
  %11840 = vmatpush1.msra.mxu0 0.0
  %11841 = vmatprep.subr.mxu0 0.0
  %11842 = vmatpush1.msra.mxu0 0.0
  %11843 = vmatprep.subr.mxu0 0.0
  %11844 = vmatpush1.msra.mxu0 0.0
  %11845 = vmatprep.subr.mxu0 %v9168
  %11846 = vmatpush1.msra.mxu0 %v9167
  %11847 = vmatprep.subr.mxu0 %v9161
  %11848 = vmatpush1.msra.mxu0 %v9160
  %11849 = vmatprep.subr.mxu0 %v9154
  %11850 = vmatpush1.msra.mxu0 %v9153
  %11851 = vmatprep.subr.mxu0 %v9147
  %11852 = vmatpush1.msra.mxu0 %v9146
  %11853 = vmatprep.subr.mxu0 %v9140
  %11854 = vmatpush1.msra.mxu0 %v9139
  %11855 = vmatprep.subr.mxu0 %v9133
  %11856 = vmatpush1.msra.mxu0 %v9132
  %11857 = vmatprep.subr.mxu0 %v9126
  %11858 = vmatpush1.msra.mxu0 %v9125
  %11859 = vmatprep.subr.mxu0 %v9119
  %11860 = vmatpush1.msra.mxu0 %v9118
  %11861 = vmatprep.subr.mxu0 %v9112
  %11862 = vmatpush1.msra.mxu0 %v9111
  %11863 = vmatprep.subr.mxu0 0.0
  %11864 = vmatpush2.msra.mxu0 0.0
  %11865 = vmatprep.subr.mxu0 0.0
  %11866 = vmatpush2.msra.mxu0 0.0
  %11867 = vmatprep.subr.mxu0 0.0
  %11868 = vmatpush2.msra.mxu0 0.0
  %11869 = vmatprep.subr.mxu0 0.0
  %11870 = vmatpush2.msra.mxu0 0.0
  %11871 = vmatprep.subr.mxu0 0.0
  %11872 = vmatpush2.msra.mxu0 0.0
  %11873 = vmatprep.subr.mxu0 0.0
  %11874 = vmatpush2.msra.mxu0 0.0
  %11875 = vmatprep.subr.mxu0 0.0
  %11876 = vmatpush2.msra.mxu0 0.0
  %11877 = vmatprep.subr.mxu0 0.0
  %11878 = vmatpush2.msra.mxu0 0.0
  %11879 = vmatprep.subr.mxu0 0.0
  %11880 = vmatpush2.msra.mxu0 0.0
  %11881 = vmatprep.subr.mxu0 0.0
  %11882 = vmatpush2.msra.mxu0 0.0
  %11883 = vmatprep.subr.mxu0 0.0
  %11884 = vmatpush2.msra.mxu0 0.0
  %11885 = vmatprep.subr.mxu0 0.0
  %11886 = vmatpush2.msra.mxu0 0.0
  %11887 = vmatprep.subr.mxu0 0.0
  %11888 = vmatpush2.msra.mxu0 0.0
  %11889 = vmatprep.subr.mxu0 0.0
  %11890 = vmatpush2.msra.mxu0 0.0
  %11891 = vmatprep.subr.mxu0 0.0
  %11892 = vmatpush2.msra.mxu0 0.0
  %11893 = vmatprep.subr.mxu0 0.0
  %11894 = vmatpush2.msra.mxu0 0.0
  %11895 = vmatprep.mubr.f32.mxu0 0.0
  %11896 = vmatmul.mubr.f32.gmra.mxu0 %v11687
  %v11897 = vpop.f32.mrf.mxu0
  %v11898 = vadd.f32 0.0, %v11897
  %v11899 = vpop.f32.mrf.mxu0
  %v11900 = vadd.f32 0.0, %v11899
  %11901 = vdwg.mxu0
  %11908 = vrot.lane.b32.xlu0 %v11756, 28
  %v11909 = vpop.permute.xlu0 %11908
  %11910 = vrot.lane.b32.xlu0 %v11758, 28
  %v11911 = vpop.permute.xlu0 %11910
  %11912 = vrot.lane.b32.xlu0 %v11827, 28
  %v11913 = vpop.permute.xlu0 %11912
  %11914 = vrot.lane.b32.xlu0 %v11829, 28
  %v11915 = vpop.permute.xlu0 %11914
  %11916 = vrot.lane.b32.xlu0 %v11898, 28
  %v11917 = vpop.permute.xlu0 %11916
  %11918 = vrot.lane.b32.xlu0 %v11900, 28
  %v11919 = vpop.permute.xlu0 %11918
  %vm11920 = vcmask 228352
  %v11921 = vsel %vm11920, %v11909, %v11911
  %v11922 = vsel %vm11920, %v11911, %v11913
  %v11923 = vsel %vm11920, %v11913, %v11915
  %v11924 = vsel %vm11920, %v11915, %v11917
  %v11925 = vsel %vm11920, %v11917, %v11919
  %v11933 = vsel %vm11920, 0.0, %v11909
  %s11934 = scalar_lea.vmem %s21, 49
  %v11935 = vld [vmem:[%s11934] sm:$0x7f]
  %v11937 = vlaneseq
  %v11938 = vshrl.u32 %v11937, 7
  %v11939 = vsub.s32 0, %v11938
  %v11940 = vrot.slane %v11935, %v11939
  %v11941 = vlaneseq
  %v11942 = vshrl.u32 %v11941, 7
  %v11943 = vsub.s32 1, %v11942
  %v11944 = vrot.slane %v11935, %v11943
  %v11945 = vlaneseq
  %v11946 = vshrl.u32 %v11945, 7
  %v11947 = vsub.s32 2, %v11946
  %v11948 = vrot.slane %v11935, %v11947
  %v11949 = vlaneseq
  %v11950 = vshrl.u32 %v11949, 7
  %v11951 = vsub.s32 3, %v11950
  %v11952 = vrot.slane %v11935, %v11951
  %v11953 = vlaneseq
  %v11954 = vshrl.u32 %v11953, 7
  %v11955 = vsub.s32 4, %v11954
  %v11956 = vrot.slane %v11935, %v11955
  %v11957 = vlaneseq
  %v11958 = vshrl.u32 %v11957, 7
  %v11959 = vsub.s32 5, %v11958
  %v11960 = vrot.slane %v11935, %v11959
  %v11961 = vlaneseq
  %v11962 = vshrl.u32 %v11961, 7
  %v11963 = vsub.s32 6, %v11962
  %v11964 = vrot.slane %v11935, %v11963
  %v11972 = vmul.f32 %v11933, %v11940
  %v11973 = vmul.f32 %v11921, %v11944
  %v11974 = vmul.f32 %v11922, %v11948
  %v11975 = vmul.f32 %v11923, %v11952
  %v11976 = vmul.f32 %v11924, %v11956
  %v11977 = vmul.f32 %v11925, %v11960
  %v11978 = vmul.f32 %v11919, %v11964
  %v11979 = vadd.f32 %v11677, %v11972
  %v11980 = vadd.f32 %v11678, %v11973
  %v11981 = vadd.f32 %v11679, %v11974
  %v11982 = vadd.f32 %v11680, %v11975
  %v11983 = vadd.f32 %v11681, %v11976
  %v11984 = vadd.f32 %v11682, %v11977
  %v11985 = vadd.f32 %v11683, %v11978
  %s11986 = scalar_lea.vmem %s20, 16
  %v11987 = vld [vmem:[%s11986] sm:$0x3]
  %v11989 = vsel %vm8337, %v11987, 0
  %11991 = vmatprep.subr.mxu0 0.0
  %11992 = vmatpush1.msra.mxu0 0.0
  %11993 = vmatprep.subr.mxu0 0.0
  %11994 = vmatpush1.msra.mxu0 0.0
  %11995 = vmatprep.subr.mxu0 0.0
  %11996 = vmatpush1.msra.mxu0 0.0
  %11997 = vmatprep.subr.mxu0 0.0
  %11998 = vmatpush1.msra.mxu0 0.0
  %11999 = vmatprep.subr.mxu0 0.0
  %12000 = vmatpush1.msra.mxu0 0.0
  %12001 = vmatprep.subr.mxu0 0.0
  %12002 = vmatpush1.msra.mxu0 0.0
  %12003 = vmatprep.subr.mxu0 0.0
  %12004 = vmatpush1.msra.mxu0 0.0
  %12005 = vmatprep.subr.mxu0 %v9164
  %12006 = vmatpush1.msra.mxu0 %v9163
  %12007 = vmatprep.subr.mxu0 %v9157
  %12008 = vmatpush1.msra.mxu0 %v9156
  %12009 = vmatprep.subr.mxu0 %v9150
  %12010 = vmatpush1.msra.mxu0 %v9149
  %12011 = vmatprep.subr.mxu0 %v9143
  %12012 = vmatpush1.msra.mxu0 %v9142
  %12013 = vmatprep.subr.mxu0 %v9136
  %12014 = vmatpush1.msra.mxu0 %v9135
  %12015 = vmatprep.subr.mxu0 %v9129
  %12016 = vmatpush1.msra.mxu0 %v9128
  %12017 = vmatprep.subr.mxu0 %v9122
  %12018 = vmatpush1.msra.mxu0 %v9121
  %12019 = vmatprep.subr.mxu0 %v9115
  %12020 = vmatpush1.msra.mxu0 %v9114
  %12021 = vmatprep.subr.mxu0 %v9108
  %12022 = vmatpush1.msra.mxu0 %v9107
  %12023 = vmatprep.subr.mxu0 0.0
  %12024 = vmatpush2.msra.mxu0 0.0
  %12025 = vmatprep.subr.mxu0 0.0
  %12026 = vmatpush2.msra.mxu0 0.0
  %12027 = vmatprep.subr.mxu0 0.0
  %12028 = vmatpush2.msra.mxu0 0.0
  %12029 = vmatprep.subr.mxu0 0.0
  %12030 = vmatpush2.msra.mxu0 0.0
  %12031 = vmatprep.subr.mxu0 0.0
  %12032 = vmatpush2.msra.mxu0 0.0
  %12033 = vmatprep.subr.mxu0 0.0
  %12034 = vmatpush2.msra.mxu0 0.0
  %12035 = vmatprep.subr.mxu0 0.0
  %12036 = vmatpush2.msra.mxu0 0.0
  %12037 = vmatprep.subr.mxu0 0.0
  %12038 = vmatpush2.msra.mxu0 0.0
  %12039 = vmatprep.subr.mxu0 0.0
  %12040 = vmatpush2.msra.mxu0 0.0
  %12041 = vmatprep.subr.mxu0 0.0
  %12042 = vmatpush2.msra.mxu0 0.0
  %12043 = vmatprep.subr.mxu0 0.0
  %12044 = vmatpush2.msra.mxu0 0.0
  %12045 = vmatprep.subr.mxu0 0.0
  %12046 = vmatpush2.msra.mxu0 0.0
  %12047 = vmatprep.subr.mxu0 0.0
  %12048 = vmatpush2.msra.mxu0 0.0
  %12049 = vmatprep.subr.mxu0 0.0
  %12050 = vmatpush2.msra.mxu0 0.0
  %12051 = vmatprep.subr.mxu0 0.0
  %12052 = vmatpush2.msra.mxu0 0.0
  %12053 = vmatprep.subr.mxu0 0.0
  %12054 = vmatpush2.msra.mxu0 0.0
  %12055 = vmatprep.mubr.f32.mxu0 0.0
  %12056 = vmatmul.mubr.f32.gmra.mxu0 %v11989
  %v12057 = vpop.f32.mrf.mxu0
  %v12058 = vadd.f32 0.0, %v12057
  %v12059 = vpop.f32.mrf.mxu0
  %v12060 = vadd.f32 0.0, %v12059
  %12061 = vdwg.mxu0
  %12062 = vmatprep.subr.mxu0 0.0
  %12063 = vmatpush1.msra.mxu0 0.0
  %12064 = vmatprep.subr.mxu0 0.0
  %12065 = vmatpush1.msra.mxu0 0.0
  %12066 = vmatprep.subr.mxu0 0.0
  %12067 = vmatpush1.msra.mxu0 0.0
  %12068 = vmatprep.subr.mxu0 0.0
  %12069 = vmatpush1.msra.mxu0 0.0
  %12070 = vmatprep.subr.mxu0 0.0
  %12071 = vmatpush1.msra.mxu0 0.0
  %12072 = vmatprep.subr.mxu0 0.0
  %12073 = vmatpush1.msra.mxu0 0.0
  %12074 = vmatprep.subr.mxu0 0.0
  %12075 = vmatpush1.msra.mxu0 0.0
  %12076 = vmatprep.subr.mxu0 %v9166
  %12077 = vmatpush1.msra.mxu0 %v9165
  %12078 = vmatprep.subr.mxu0 %v9159
  %12079 = vmatpush1.msra.mxu0 %v9158
  %12080 = vmatprep.subr.mxu0 %v9152
  %12081 = vmatpush1.msra.mxu0 %v9151
  %12082 = vmatprep.subr.mxu0 %v9145
  %12083 = vmatpush1.msra.mxu0 %v9144
  %12084 = vmatprep.subr.mxu0 %v9138
  %12085 = vmatpush1.msra.mxu0 %v9137
  %12086 = vmatprep.subr.mxu0 %v9131
  %12087 = vmatpush1.msra.mxu0 %v9130
  %12088 = vmatprep.subr.mxu0 %v9124
  %12089 = vmatpush1.msra.mxu0 %v9123
  %12090 = vmatprep.subr.mxu0 %v9117
  %12091 = vmatpush1.msra.mxu0 %v9116
  %12092 = vmatprep.subr.mxu0 %v9110
  %12093 = vmatpush1.msra.mxu0 %v9109
  %12094 = vmatprep.subr.mxu0 0.0
  %12095 = vmatpush2.msra.mxu0 0.0
  %12096 = vmatprep.subr.mxu0 0.0
  %12097 = vmatpush2.msra.mxu0 0.0
  %12098 = vmatprep.subr.mxu0 0.0
  %12099 = vmatpush2.msra.mxu0 0.0
  %12100 = vmatprep.subr.mxu0 0.0
  %12101 = vmatpush2.msra.mxu0 0.0
  %12102 = vmatprep.subr.mxu0 0.0
  %12103 = vmatpush2.msra.mxu0 0.0
  %12104 = vmatprep.subr.mxu0 0.0
  %12105 = vmatpush2.msra.mxu0 0.0
  %12106 = vmatprep.subr.mxu0 0.0
  %12107 = vmatpush2.msra.mxu0 0.0
  %12108 = vmatprep.subr.mxu0 0.0
  %12109 = vmatpush2.msra.mxu0 0.0
  %12110 = vmatprep.subr.mxu0 0.0
  %12111 = vmatpush2.msra.mxu0 0.0
  %12112 = vmatprep.subr.mxu0 0.0
  %12113 = vmatpush2.msra.mxu0 0.0
  %12114 = vmatprep.subr.mxu0 0.0
  %12115 = vmatpush2.msra.mxu0 0.0
  %12116 = vmatprep.subr.mxu0 0.0
  %12117 = vmatpush2.msra.mxu0 0.0
  %12118 = vmatprep.subr.mxu0 0.0
  %12119 = vmatpush2.msra.mxu0 0.0
  %12120 = vmatprep.subr.mxu0 0.0
  %12121 = vmatpush2.msra.mxu0 0.0
  %12122 = vmatprep.subr.mxu0 0.0
  %12123 = vmatpush2.msra.mxu0 0.0
  %12124 = vmatprep.subr.mxu0 0.0
  %12125 = vmatpush2.msra.mxu0 0.0
  %12126 = vmatprep.mubr.f32.mxu0 0.0
  %12127 = vmatmul.mubr.f32.gmra.mxu0 %v11989
  %v12128 = vpop.f32.mrf.mxu0
  %v12129 = vadd.f32 0.0, %v12128
  %v12130 = vpop.f32.mrf.mxu0
  %v12131 = vadd.f32 0.0, %v12130
  %12132 = vdwg.mxu0
  %12133 = vmatprep.subr.mxu0 0.0
  %12134 = vmatpush1.msra.mxu0 0.0
  %12135 = vmatprep.subr.mxu0 0.0
  %12136 = vmatpush1.msra.mxu0 0.0
  %12137 = vmatprep.subr.mxu0 0.0
  %12138 = vmatpush1.msra.mxu0 0.0
  %12139 = vmatprep.subr.mxu0 0.0
  %12140 = vmatpush1.msra.mxu0 0.0
  %12141 = vmatprep.subr.mxu0 0.0
  %12142 = vmatpush1.msra.mxu0 0.0
  %12143 = vmatprep.subr.mxu0 0.0
  %12144 = vmatpush1.msra.mxu0 0.0
  %12145 = vmatprep.subr.mxu0 0.0
  %12146 = vmatpush1.msra.mxu0 0.0
  %12147 = vmatprep.subr.mxu0 %v9168
  %12148 = vmatpush1.msra.mxu0 %v9167
  %12149 = vmatprep.subr.mxu0 %v9161
  %12150 = vmatpush1.msra.mxu0 %v9160
  %12151 = vmatprep.subr.mxu0 %v9154
  %12152 = vmatpush1.msra.mxu0 %v9153
  %12153 = vmatprep.subr.mxu0 %v9147
  %12154 = vmatpush1.msra.mxu0 %v9146
  %12155 = vmatprep.subr.mxu0 %v9140
  %12156 = vmatpush1.msra.mxu0 %v9139
  %12157 = vmatprep.subr.mxu0 %v9133
  %12158 = vmatpush1.msra.mxu0 %v9132
  %12159 = vmatprep.subr.mxu0 %v9126
  %12160 = vmatpush1.msra.mxu0 %v9125
  %12161 = vmatprep.subr.mxu0 %v9119
  %12162 = vmatpush1.msra.mxu0 %v9118
  %12163 = vmatprep.subr.mxu0 %v9112
  %12164 = vmatpush1.msra.mxu0 %v9111
  %12165 = vmatprep.subr.mxu0 0.0
  %12166 = vmatpush2.msra.mxu0 0.0
  %12167 = vmatprep.subr.mxu0 0.0
  %12168 = vmatpush2.msra.mxu0 0.0
  %12169 = vmatprep.subr.mxu0 0.0
  %12170 = vmatpush2.msra.mxu0 0.0
  %12171 = vmatprep.subr.mxu0 0.0
  %12172 = vmatpush2.msra.mxu0 0.0
  %12173 = vmatprep.subr.mxu0 0.0
  %12174 = vmatpush2.msra.mxu0 0.0
  %12175 = vmatprep.subr.mxu0 0.0
  %12176 = vmatpush2.msra.mxu0 0.0
  %12177 = vmatprep.subr.mxu0 0.0
  %12178 = vmatpush2.msra.mxu0 0.0
  %12179 = vmatprep.subr.mxu0 0.0
  %12180 = vmatpush2.msra.mxu0 0.0
  %12181 = vmatprep.subr.mxu0 0.0
  %12182 = vmatpush2.msra.mxu0 0.0
  %12183 = vmatprep.subr.mxu0 0.0
  %12184 = vmatpush2.msra.mxu0 0.0
  %12185 = vmatprep.subr.mxu0 0.0
  %12186 = vmatpush2.msra.mxu0 0.0
  %12187 = vmatprep.subr.mxu0 0.0
  %12188 = vmatpush2.msra.mxu0 0.0
  %12189 = vmatprep.subr.mxu0 0.0
  %12190 = vmatpush2.msra.mxu0 0.0
  %12191 = vmatprep.subr.mxu0 0.0
  %12192 = vmatpush2.msra.mxu0 0.0
  %12193 = vmatprep.subr.mxu0 0.0
  %12194 = vmatpush2.msra.mxu0 0.0
  %12195 = vmatprep.subr.mxu0 0.0
  %12196 = vmatpush2.msra.mxu0 0.0
  %12197 = vmatprep.mubr.f32.mxu0 0.0
  %12198 = vmatmul.mubr.f32.gmra.mxu0 %v11989
  %v12199 = vpop.f32.mrf.mxu0
  %v12200 = vadd.f32 0.0, %v12199
  %v12201 = vpop.f32.mrf.mxu0
  %v12202 = vadd.f32 0.0, %v12201
  %12203 = vdwg.mxu0
  %12210 = vrot.lane.b32.xlu0 %v12058, 29
  %v12211 = vpop.permute.xlu0 %12210
  %12212 = vrot.lane.b32.xlu0 %v12060, 29
  %v12213 = vpop.permute.xlu0 %12212
  %12214 = vrot.lane.b32.xlu0 %v12129, 29
  %v12215 = vpop.permute.xlu0 %12214
  %12216 = vrot.lane.b32.xlu0 %v12131, 29
  %v12217 = vpop.permute.xlu0 %12216
  %12218 = vrot.lane.b32.xlu0 %v12200, 29
  %v12219 = vpop.permute.xlu0 %12218
  %12220 = vrot.lane.b32.xlu0 %v12202, 29
  %v12221 = vpop.permute.xlu0 %12220
  %vm12222 = vcmask 236544
  %v12223 = vsel %vm12222, %v12211, %v12213
  %v12224 = vsel %vm12222, %v12213, %v12215
  %v12225 = vsel %vm12222, %v12215, %v12217
  %v12226 = vsel %vm12222, %v12217, %v12219
  %v12227 = vsel %vm12222, %v12219, %v12221
  %v12235 = vsel %vm12222, 0.0, %v12211
  %s12236 = scalar_lea.vmem %s21, 56
  %v12237 = vld [vmem:[%s12236] sm:$0x7f]
  %v12239 = vlaneseq
  %v12240 = vshrl.u32 %v12239, 7
  %v12241 = vsub.s32 0, %v12240
  %v12242 = vrot.slane %v12237, %v12241
  %v12243 = vlaneseq
  %v12244 = vshrl.u32 %v12243, 7
  %v12245 = vsub.s32 1, %v12244
  %v12246 = vrot.slane %v12237, %v12245
  %v12247 = vlaneseq
  %v12248 = vshrl.u32 %v12247, 7
  %v12249 = vsub.s32 2, %v12248
  %v12250 = vrot.slane %v12237, %v12249
  %v12251 = vlaneseq
  %v12252 = vshrl.u32 %v12251, 7
  %v12253 = vsub.s32 3, %v12252
  %v12254 = vrot.slane %v12237, %v12253
  %v12255 = vlaneseq
  %v12256 = vshrl.u32 %v12255, 7
  %v12257 = vsub.s32 4, %v12256
  %v12258 = vrot.slane %v12237, %v12257
  %v12259 = vlaneseq
  %v12260 = vshrl.u32 %v12259, 7
  %v12261 = vsub.s32 5, %v12260
  %v12262 = vrot.slane %v12237, %v12261
  %v12263 = vlaneseq
  %v12264 = vshrl.u32 %v12263, 7
  %v12265 = vsub.s32 6, %v12264
  %v12266 = vrot.slane %v12237, %v12265
  %v12274 = vmul.f32 %v12235, %v12242
  %v12275 = vmul.f32 %v12223, %v12246
  %v12276 = vmul.f32 %v12224, %v12250
  %v12277 = vmul.f32 %v12225, %v12254
  %v12278 = vmul.f32 %v12226, %v12258
  %v12279 = vmul.f32 %v12227, %v12262
  %v12280 = vmul.f32 %v12221, %v12266
  %v12281 = vadd.f32 %v11979, %v12274
  %v12282 = vadd.f32 %v11980, %v12275
  %v12283 = vadd.f32 %v11981, %v12276
  %v12284 = vadd.f32 %v11982, %v12277
  %v12285 = vadd.f32 %v11983, %v12278
  %v12286 = vadd.f32 %v11984, %v12279
  %v12287 = vadd.f32 %v11985, %v12280
  %v12288 = vld [vmem:[#allocation2] sm:$0x1]
  %v12290 = vlaneseq
  %v12291 = vshrl.u32 %v12290, 7
  %v12292 = vsub.s32 0, %v12291
  %v12293 = vrot.slane %v12288, %v12292
  %12294 = vset.pattern.permute.xlu0 0
  %12295 = vperm.xlu0 %12294, %v12293
  %v12296 = vpop.permute.xlu0 %12295
  %v12298 = vadd.f32 %v12281, %v12296
  %v12299 = vadd.f32 %v12282, %v12296
  %v12300 = vadd.f32 %v12283, %v12296
  %v12301 = vadd.f32 %v12284, %v12296
  %v12302 = vadd.f32 %v12285, %v12296
  %v12303 = vadd.f32 %v12286, %v12296
  %v12304 = vadd.f32 %v12287, %v12296
  %v12312 = vcombine.low %v12298, %v12299
  %v12313 = vcombine.low %v12300, %v12301
  %v12315 = vunpack.c.l.s4 1983009808
  %v12316 = vunpack.c.0.s8 %v12315
  %v12317 = vlaneseq
  %v12318 = vshrl.u32 %v12317, 7
  %v12319 = vsub.s32 %v12316, %v12318
  %v12320 = vrot.slane %v12312, %v12319
  %v12322 = vunpack.c.l.s4 1983009808
  %v12323 = vunpack.c.0.s8 %v12322
  %v12324 = vlaneseq
  %v12325 = vshrl.u32 %v12324, 7
  %v12326 = vsub.s32 %v12323, %v12325
  %v12327 = vrot.slane %v12313, %v12326
  %v12328 = vcombine.low %v12320, %v12327
  %v12329 = vcombine.low %v12302, %v12303
  %v12331 = vunpack.c.l.s4 1983009808
  %v12332 = vunpack.c.0.s8 %v12331
  %v12333 = vlaneseq
  %v12334 = vshrl.u32 %v12333, 7
  %v12335 = vsub.s32 %v12332, %v12334
  %v12336 = vrot.slane %v12329, %v12335
  %v12338 = vunpack.c.l.s4 1983009808
  %v12339 = vunpack.c.0.s8 %v12338
  %v12340 = vlaneseq
  %v12341 = vshrl.u32 %v12340, 7
  %v12342 = vsub.s32 %v12339, %v12341
  %v12343 = vrot.slane %v12304, %v12342
  %v12344 = vcombine.low %v12336, %v12343
  %12347 = vst [vmem:[%s23] sm:$0xff] %v12328
  %vm12348 = vcmask 1041408
  %vm12349 = vcmask 1043458
  %vm12350 = vmor %vm12349, %vm12348
  %vm12351 = vcmask 128004
  %vm12352 = vmor %vm12351, %vm12350
  %12353 = vst.msk [vmem:[%s23 + $0x8] sm:$0x3f] %vm12352, %v12344
  // Predicated region
  $region94: #{decoder_forward.1} parent=0 // pred_check
    _
  $region95: #{decoder_forward.1} parent=0 // pred_check_branch
    %12355 = sbr.rel (0) target = $region97
  $region96: #{decoder_forward.1} parent=0 // pred_region
    _
  $region97: #{decoder_forward.1} parent=0 // pred_fallthru
    _
  // Predicated region
  $region98: #{decoder_forward.1} parent=0 // pred_check
    _
  $region99: #{decoder_forward.1} parent=0 // pred_check_branch
    %12357 = sbr.rel (0) target = $region101
  $region100: #{decoder_forward.1} parent=0 // pred_region
    _
  $region101: #{decoder_forward.1} parent=0 // pred_fallthru
    _

</llo_original>
